<compile_context>
chip_gen: v5e
topology: v5e:2x2
jax: 0.10.0
libtpu: 0.0.40
codegen_flags: <defaults>
</compile_context>

<pallas_src>
import functools
import math

import jax
import jax.numpy as jnp
from jax.experimental import pallas as pl
from jax.experimental.pallas import tpu as pltpu


def _round_up(n, m):
    return ((n + m - 1) // m) * m


def _pad_gate_rows(w, H, Hp):
    """(4H, K) -> (4Hp, K), padding each of the 4 gate blocks separately."""
    K = w.shape[1]
    w4 = w.reshape(4, H, K)
    w4 = jnp.pad(w4, ((0, 0), (0, Hp - H), (0, 0)))
    return w4.reshape(4 * Hp, K)


def _pad_gate_vec(b, H, Hp):
    """(4H,) -> (4Hp,), padding each gate block separately."""
    b4 = b.reshape(4, H)
    b4 = jnp.pad(b4, ((0, 0), (0, Hp - H)))
    return b4.reshape(4 * Hp)


def _pick_batch_tile(B, batch_tile):
    b8 = _round_up(B, 8)
    tb = min(_round_up(batch_tile, 8), b8)
    # v7x megacore: ensure the (parallel) batch grid axis has >= 2 blocks when
    # the batch allows it, so both TensorCores run part of the recurrence.
    if b8 >= 16 and b8 // tb < 2:
        tb = max(8, _round_up(b8 // 2, 8))
    return tb


# ----------------------------------------------------------------------------
# 2-layer LSTM kernel (time-blocked, state carried in registers inside the
# block, VMEM scratch only at block boundaries)
# ----------------------------------------------------------------------------
def _lstm2_kernel(x_ref, wih0_ref, whh0_ref, wih1_ref, whh1_ref, b0_ref, b1_ref,
                  y_ref, g0_scr, hcat, ccat):
    """One grid step == T time steps for one batch block.

    x_ref    : (T, TB, Ip) f32   input block
    wih0_ref : (Ip, 4Hp)   cdt   layer-0 input weight (transposed)
    whh0_ref : (Hp, 4Hp)   cdt   layer-0 recurrent weight (transposed)
    wih1_ref : (Hp, 4Hp)   cdt   layer-1 input weight (transposed)
    whh1_ref : (Hp, 4Hp)   cdt   layer-1 recurrent weight (transposed)
    b0_ref   : (1, 4Hp)    f32   b_ih0 + b_hh0
    b1_ref   : (1, 4Hp)    f32   b_ih1 + b_hh1
    y_ref    : (T, TB, Hp) f32   layer-1 hidden states
    g0_scr   : (T*TB, 4Hp) f32   block input projection scratch
    hcat,ccat: (TB, 2Hp)   f32   [h0 | h1], [c0 | c1] carried across time blocks
    """
    T, TB, Ip = x_ref.shape
    Hp = whh0_ref.shape[0]
    cdt = whh0_ref.dtype
    f32 = jnp.float32

    # Reset recurrent state at the start of each batch block's time sweep.
    @pl.when(pl.program_id(1) == 0)
    def _():
        hcat[...] = jnp.zeros_like(hcat)
        ccat[...] = jnp.zeros_like(ccat)

    # ---- Block input projection: one MXU-friendly matmul per T steps, off
    #      the per-step recurrence critical path.  Bias b0 folded in here.
    #      (TB is a multiple of 8, so the collapse reshape is tile-aligned.)
    xb = x_ref[...].reshape(T * TB, Ip).astype(cdt)
    g0_scr[...] = (jnp.dot(xb, wih0_ref[...], preferred_element_type=f32)
                   + b0_ref[...])

    b1 = b1_ref[...]

    def sig(v):
        # sigmoid via a single EUP tanh (vs exp + reciprocal = 2 EUP ops).
        return 0.5 * jnp.tanh(0.5 * v) + 0.5

    def gates(g):
        return (sig(g[:, 0 * Hp:1 * Hp]),        # i
                sig(g[:, 1 * Hp:2 * Hp]),        # f
                jnp.tanh(g[:, 2 * Hp:3 * Hp]),   # g
                sig(g[:, 3 * Hp:4 * Hp]))        # o

    def step(t, carry):
        h0, c0, h1, c1 = carry

        # Layer-1 recurrent term first: it only depends on the previous h1,
        # so the MXU can process it while the VPU/EUP handles layer-0 gates.
        r1 = jnp.dot(h1.astype(cdt), whh1_ref[...], preferred_element_type=f32)

        # ---- layer 0 (input projection already in g0_scr)
        g0 = (g0_scr[pl.ds(t * TB, TB), :]
              + jnp.dot(h0.astype(cdt), whh0_ref[...],
                        preferred_element_type=f32))
        i0, f0, gg0, o0 = gates(g0)
        c0 = f0 * c0 + i0 * gg0
        h0 = o0 * jnp.tanh(c0)

        # ---- layer 1
        g1 = (r1 + b1
              + jnp.dot(h0.astype(cdt), wih1_ref[...],
                        preferred_element_type=f32))
        i1, f1, gg1, o1 = gates(g1)
        c1 = f1 * c1 + i1 * gg1
        h1 = o1 * jnp.tanh(c1)

        y_ref[t] = h1
        return (h0, c0, h1, c1)

    carry0 = (hcat[:, 0:Hp], ccat[:, 0:Hp],
              hcat[:, Hp:2 * Hp], ccat[:, Hp:2 * Hp])
    h0, c0, h1, c1 = jax.lax.fori_loop(0, T, step, carry0, unroll=True)

    # Write recurrent state back once per T-step block (not once per step).
    hcat[:, 0:Hp] = h0
    hcat[:, Hp:2 * Hp] = h1
    ccat[:, 0:Hp] = c0
    ccat[:, Hp:2 * Hp] = c1


def lstm2_pallas(x, params, *, compute_dtype=jnp.bfloat16,
                 time_tile=16, batch_tile=128):
    """x: (S, B, I) f32 -> (S, B, H) f32 (2-layer LSTM, PyTorch i,f,g,o order)."""
    S, B, I = x.shape
    w_ih0, w_hh0, b_ih0, b_hh0, w_ih1, w_hh1, b_ih1, b_hh1 = params
    H = w_hh0.shape[1]
    f32 = jnp.float32
    cdt = compute_dtype

    Hp = _round_up(H, 128)            # lane-dense gates / output
    Ip = _round_up(I, 128)            # lane-dense input features
    TB = _pick_batch_tile(B, batch_tile)
    Bp = _round_up(B, TB)             # sublane-full batch
    T = min(time_tile, S)
    Sp = _round_up(S, T)              # padded tail steps are sliced off

    # --- weight prep (would be cached in a real deployment) ----------------
    wih0_t = jnp.pad(_pad_gate_rows(w_ih0, H, Hp),
                     ((0, 0), (0, Ip - I))).T.astype(cdt)    # (Ip, 4Hp)
    whh0_t = jnp.pad(_pad_gate_rows(w_hh0, H, Hp),
                     ((0, 0), (0, Hp - H))).T.astype(cdt)    # (Hp, 4Hp)
    wih1_t = jnp.pad(_pad_gate_rows(w_ih1, H, Hp),
                     ((0, 0), (0, Hp - H))).T.astype(cdt)    # (Hp, 4Hp)
    whh1_t = jnp.pad(_pad_gate_rows(w_hh1, H, Hp),
                     ((0, 0), (0, Hp - H))).T.astype(cdt)    # (Hp, 4Hp)
    b0_p = (_pad_gate_vec(b_ih0, H, Hp)
            + _pad_gate_vec(b_hh0, H, Hp))[None, :].astype(f32)   # (1, 4Hp)
    b1_p = (_pad_gate_vec(b_ih1, H, Hp)
            + _pad_gate_vec(b_hh1, H, Hp))[None, :].astype(f32)   # (1, 4Hp)

    # --- input: streamed into the kernel (no (S,B,4H) g0 intermediate) -----
    x_p = jnp.pad(x.astype(f32), ((0, Sp - S), (0, Bp - B), (0, Ip - I)))

    # --- VMEM budgeting: single-buffer weights + explicit limit only when
    #     big enough to matter (v7x: 64 MiB physical, 32 MiB default scoped).
    wt_size = jnp.dtype(cdt).itemsize
    weight_bytes = (Ip + 3 * Hp) * 4 * Hp * wt_size
    single_buf = weight_bytes > (8 << 20)
    blk_bytes = T * TB * Ip * 4 + T * TB * Hp * 4          # x block + y block
    scratch_bytes = T * TB * 4 * Hp * 4 + 2 * TB * 2 * Hp * 4
    est = (2 * blk_bytes + (1 if single_buf else 2) * weight_bytes
           + scratch_bytes + 4 * 4 * Hp * 4)
    cp_kwargs = dict(dimension_semantics=("parallel", "arbitrary"))
    if est > (12 << 20):
        cp_kwargs["vmem_limit_bytes"] = min(int(est * 2) + (4 << 20), 128 << 20)

    def _const_spec(shape):
        return pl.BlockSpec(shape, lambda b, t: (0,) * len(shape))

    def _weight_spec(shape):
        if single_buf:
            return pl.BlockSpec(shape, lambda b, t: (0,) * len(shape),
                                pipeline_mode=pl.Buffered(1))
        return _const_spec(shape)

    grid = (Bp // TB, Sp // T)
    y_pad = pl.pallas_call(
        _lstm2_kernel,
        out_shape=jax.ShapeDtypeStruct((Sp, Bp, Hp), f32),
        grid_spec=pltpu.PrefetchScalarGridSpec(
            num_scalar_prefetch=0,
            grid=grid,
            in_specs=[
                pl.BlockSpec((T, TB, Ip), lambda b, t: (t, b, 0)),   # x block
                _weight_spec((Ip, 4 * Hp)),                          # W_ih0^T
                _weight_spec((Hp, 4 * Hp)),                          # W_hh0^T
                _weight_spec((Hp, 4 * Hp)),                          # W_ih1^T
                _weight_spec((Hp, 4 * Hp)),                          # W_hh1^T
                _const_spec((1, 4 * Hp)),                            # b0
                _const_spec((1, 4 * Hp)),                            # b1
            ],
            out_specs=pl.BlockSpec((T, TB, Hp), lambda b, t: (t, b, 0)),
            scratch_shapes=[
                pltpu.VMEM((T * TB, 4 * Hp), f32),   # block input projection
                pltpu.VMEM((TB, 2 * Hp), f32),       # [h0 | h1]
                pltpu.VMEM((TB, 2 * Hp), f32),       # [c0 | c1]
            ],
        ),
        compiler_params=pltpu.CompilerParams(**cp_kwargs),
    )(x_p, wih0_t, whh0_t, wih1_t, whh1_t, b0_p, b1_p)

    return y_pad[:S, :B, :H]


# ----------------------------------------------------------------------------
# power2db kernel: 10 * log10(max(eps, x)), gridded + lane-dense, ~2 MB blocks
# ----------------------------------------------------------------------------
def _power2db_kernel(x_ref, o_ref, *, eps):
    scale = jnp.float32(10.0 / math.log(10.0))   # folded 10/ln(10)
    o_ref[...] = scale * jnp.log(jnp.maximum(x_ref[...], jnp.float32(eps)))


def power2db_pallas(mat, eps=1e-10, target_block_bytes=2 << 20):
    orig_shape = mat.shape
    orig_dtype = mat.dtype
    mat2 = mat.reshape(1, -1) if mat.ndim == 1 else mat.reshape(-1, orig_shape[-1])
    R, C = mat2.shape
    Cp = _round_up(C, 128)                       # lane-dense last dim
    rows = max(8, (target_block_bytes // (Cp * 4)) // 8 * 8)
    TR = min(rows, _round_up(R, 8))
    Rp = _round_up(R, TR)
    padded = jnp.pad(mat2.astype(jnp.float32), ((0, Rp - R), (0, Cp - C)))

    out = pl.pallas_call(
        functools.partial(_power2db_kernel, eps=eps),
        out_shape=jax.ShapeDtypeStruct((Rp, Cp), jnp.float32),
        grid_spec=pltpu.PrefetchScalarGridSpec(
            num_scalar_prefetch=0,
            grid=(Rp // TR,),
            in_specs=[pl.BlockSpec((TR, Cp), lambda i: (i, 0))],
            out_specs=pl.BlockSpec((TR, Cp), lambda i: (i, 0)),
        ),
        compiler_params=pltpu.CompilerParams(dimension_semantics=("parallel",)),
    )(padded)
    return out[:R, :C].astype(orig_dtype).reshape(orig_shape)


# ----------------------------------------------------------------------------
# Module wrapper (forward of lstm_2_and_SAE, decoding_target_layer=None)
# ----------------------------------------------------------------------------
def lstm_2_and_sae_forward(x, lstm_params, mel_en=True, return_lat12=True,
                           compute_dtype=jnp.bfloat16):
    y = lstm2_pallas(x, lstm_params, compute_dtype=compute_dtype)  # (S, B, H)
    x4 = y[None]                              # x.unsqueeze(0)    -> (1, S, B, H)
    lat12 = jnp.swapaxes(x4, -2, -1)          # x.transpose(-2,-1)-> (1, S, H, B)

    # TODO(synk): self.decoder (HiFi-GAN) + MelSpectrogram skipped (external
    # checkpoint / FFT).  power2db is demonstrated on a synthetic power input
    # derived from the latent, fed in the H-last (lane-dense) layout and
    # transposed back (elementwise => identical values).
    power_hlast = y[0].astype(jnp.float32) ** 2                  # (B, H)
    mel_like = (power2db_pallas(power_hlast).T if mel_en else power_hlast.T)  # (H, B)

    out = {'mel': mel_like, 'wf': y}
    if return_lat12:
        out['latent_space'] = lat12
    return out


# ----------------------------------------------------------------------------
# Pure-JAX f32 reference (for correctness checks)
# ----------------------------------------------------------------------------
def lstm2_ref(x, params):
    w_ih0, w_hh0, b_ih0, b_hh0, w_ih1, w_hh1, b_ih1, b_hh1 = params
    S, B, _ = x.shape
    H = w_hh0.shape[1]
    hi = jax.lax.Precision.HIGHEST

    def cell(x_t, h, c, wih, whh, b):
        g = jnp.dot(x_t, wih.T, precision=hi) + jnp.dot(h, whh.T, precision=hi) + b
        i, f, gg, o = jnp.split(g, 4, axis=-1)
        c = jax.nn.sigmoid(f) * c + jax.nn.sigmoid(i) * jnp.tanh(gg)
        h = jax.nn.sigmoid(o) * jnp.tanh(c)
        return h, c

    h0 = c0 = jnp.zeros((B, H), jnp.float32)
    h1 = c1 = jnp.zeros((B, H), jnp.float32)
    b0, b1 = b_ih0 + b_hh0, b_ih1 + b_hh1
    ys = []
    for t in range(S):
        h0, c0 = cell(x[t], h0, c0, w_ih0, w_hh0, b0)
        h1, c1 = cell(h0, h1, c1, w_ih1, w_hh1, b1)
        ys.append(h1)
    return jnp.stack(ys)


# ----------------------------------------------------------------------------
# Deterministic PyTorch-style nn.LSTM init (uniform(-1/sqrt(H), 1/sqrt(H)))
# ----------------------------------------------------------------------------
def init_lstm_params(key, in_dim, hidden):
    k = 1.0 / math.sqrt(hidden)
    ks = jax.random.split(key, 8)
    u = lambda kk, shape: jax.random.uniform(kk, shape, jnp.float32, -k, k)
    return (u(ks[0], (4 * hidden, in_dim)),    # W_ih0
            u(ks[1], (4 * hidden, hidden)),    # W_hh0
            u(ks[2], (4 * hidden,)),           # b_ih0
            u(ks[3], (4 * hidden,)),           # b_hh0
            u(ks[4], (4 * hidden, hidden)),    # W_ih1
            u(ks[5], (4 * hidden, hidden)),    # W_hh1
            u(ks[6], (4 * hidden,)),           # b_ih1
            u(ks[7], (4 * hidden,)))           # b_hh1


if __name__ == "__main__":
    SEQ, BATCH, IN_DIM, OUT_DIM = 8, 4, 16, 32

    key = jax.random.PRNGKey(0)
    k_x, k_p = jax.random.split(key)
    x = jax.random.normal(k_x, (SEQ, BATCH, IN_DIM), jnp.float32)
    params = init_lstm_params(k_p, IN_DIM, OUT_DIM)

    ref = lstm2_ref(x, params)

    # 1) f32 matmul path: tight check vs the pure-JAX reference.
    out32 = lstm_2_and_sae_forward(x, params, compute_dtype=jnp.float32)
    jax.block_until_ready(out32)
    assert out32['wf'].shape == (SEQ, BATCH, OUT_DIM)
    assert out32['latent_space'].shape == (1, SEQ, OUT_DIM, BATCH)
    assert jnp.allclose(out32['wf'], ref, atol=3e-4, rtol=1e-3), "LSTM f32 mismatch"

    p = jnp.asarray(out32['latent_space'][0, 0], jnp.float32) ** 2   # (H, B)
    ref_db = 10.0 * jnp.log10(jnp.maximum(jnp.full_like(p, 1e-10), p))
    assert jnp.allclose(out32['mel'], ref_db, atol=1e-3, rtol=1e-5), "power2db mismatch"

    # 2) bf16-operand matmul path (production perf config): loose check.
    out_bf = lstm_2_and_sae_forward(x, params, compute_dtype=jnp.bfloat16)
    jax.block_until_ready(out_bf)
    assert out_bf['wf'].shape == (SEQ, BATCH, OUT_DIM)
    assert jnp.allclose(out_bf['wf'], ref, atol=5e-2), "LSTM bf16 mismatch"

    print("KERNEL_OK")
</pallas_src>

<mosaic_0001>
module attributes {stable_mosaic.version = 11 : i64} {
  func.func @_lstm2_kernel(%arg0: i32, %arg1: i32, %arg2: memref<8x8x128xf32, #tpu.memory_space<vmem>>, %arg3: memref<128x512xf32, #tpu.memory_space<vmem>>, %arg4: memref<128x512xf32, #tpu.memory_space<vmem>>, %arg5: memref<128x512xf32, #tpu.memory_space<vmem>>, %arg6: memref<128x512xf32, #tpu.memory_space<vmem>>, %arg7: memref<1x512xf32, #tpu.memory_space<vmem>>, %arg8: memref<1x512xf32, #tpu.memory_space<vmem>>, %arg9: memref<8x8x128xf32, #tpu.memory_space<vmem>>, %arg10: memref<64x512xf32, #tpu.memory_space<vmem>>, %arg11: memref<8x256xf32, #tpu.memory_space<vmem>>, %arg12: memref<8x256xf32, #tpu.memory_space<vmem>>) attributes {dimension_semantics = [#tpu.dimension_semantics<parallel>, #tpu.dimension_semantics<arbitrary>], iteration_bounds = array<i64: 1, 1>, scalar_prefetch = 0 : i64, scratch_operands = 3 : i64, tpu.core_type = #tpu.core_type<tc>, window_params = [{transform_indices = @transform_0, window_bounds = array<i64: 8, 8, 128>}, {pipeline_mode = #tpu.pipeline_mode<synchronous>, transform_indices = @transform_1, window_bounds = array<i64: 128, 512>}, {pipeline_mode = #tpu.pipeline_mode<synchronous>, transform_indices = @transform_2, window_bounds = array<i64: 128, 512>}, {pipeline_mode = #tpu.pipeline_mode<synchronous>, transform_indices = @transform_3, window_bounds = array<i64: 128, 512>}, {pipeline_mode = #tpu.pipeline_mode<synchronous>, transform_indices = @transform_4, window_bounds = array<i64: 128, 512>}, {pipeline_mode = #tpu.pipeline_mode<synchronous>, transform_indices = @transform_5, window_bounds = array<i64: 1, 512>}, {pipeline_mode = #tpu.pipeline_mode<synchronous>, transform_indices = @transform_6, window_bounds = array<i64: 1, 512>}, {transform_indices = @transform_7, window_bounds = array<i64: 8, 8, 128>}]} {
    %c0_i32 = arith.constant 0 : i32
    %0 = arith.cmpi eq, %arg1, %c0_i32 : i32
    %1 = arith.extui %0 : i1 to i32
    %c0_i32_0 = arith.constant 0 : i32
    %2 = arith.cmpi ne, %1, %c0_i32_0 : i32
    scf.if %2 {
      %cst_275 = arith.constant 0.000000e+00 : f32
      %652 = vector.broadcast %cst_275 : f32 to vector<8x256xf32>
      %c0_276 = arith.constant 0 : index
      %c0_277 = arith.constant 0 : index
      %653 = vector.load %arg11[%c0_276, %c0_277] : memref<8x256xf32, #tpu.memory_space<vmem>>, vector<8x256xf32>
      tpu.vector_store %arg11[%c0_276, %c0_277], %652 {strides = array<i32>} : memref<8x256xf32, #tpu.memory_space<vmem>>, vector<8x256xf32>,
      %cst_278 = arith.constant 0.000000e+00 : f32
      %654 = vector.broadcast %cst_278 : f32 to vector<8x256xf32>
      %c0_279 = arith.constant 0 : index
      %c0_280 = arith.constant 0 : index
      %655 = vector.load %arg12[%c0_279, %c0_280] : memref<8x256xf32, #tpu.memory_space<vmem>>, vector<8x256xf32>
      tpu.vector_store %arg12[%c0_279, %c0_280], %654 {strides = array<i32>} : memref<8x256xf32, #tpu.memory_space<vmem>>, vector<8x256xf32>,
    } else {
    }
    %c0 = arith.constant 0 : index
    %c0_1 = arith.constant 0 : index
    %c0_2 = arith.constant 0 : index
    %3 = vector.load %arg2[%c0, %c0_1, %c0_2] : memref<8x8x128xf32, #tpu.memory_space<vmem>>, vector<8x8x128xf32>
    %4 = vector.shape_cast %3 : vector<8x8x128xf32> to vector<64x128xf32>
    %c0_3 = arith.constant 0 : index
    %c0_4 = arith.constant 0 : index
    %5 = vector.load %arg3[%c0_3, %c0_4] : memref<128x512xf32, #tpu.memory_space<vmem>>, vector<128x512xf32>
    %cst = arith.constant dense<0.000000e+00> : vector<64x512xf32>
    %6 = tpu.matmul %4, %5, %cst {dimension_numbers = #tpu.dot_dimension_numbers<[1], [0], [0], [1], [0, 0, 1, 1], [], []>} : vector<64x128xf32>, vector<128x512xf32>, vector<64x512xf32> -> vector<64x512xf32>
    %c0_5 = arith.constant 0 : index
    %c0_6 = arith.constant 0 : index
    %7 = vector.load %arg7[%c0_5, %c0_6] : memref<1x512xf32, #tpu.memory_space<vmem>>, vector<1x512xf32>
    %8 = vector.broadcast %7 : vector<1x512xf32> to vector<64x512xf32>
    %9 = arith.addf %6, %8 : vector<64x512xf32>
    %c0_7 = arith.constant 0 : index
    %c0_8 = arith.constant 0 : index
    %10 = vector.load %arg10[%c0_7, %c0_8] : memref<64x512xf32, #tpu.memory_space<vmem>>, vector<64x512xf32>
    tpu.vector_store %arg10[%c0_7, %c0_8], %9 {strides = array<i32>} : memref<64x512xf32, #tpu.memory_space<vmem>>, vector<64x512xf32>,
    %c0_9 = arith.constant 0 : index
    %c0_10 = arith.constant 0 : index
    %11 = vector.load %arg8[%c0_9, %c0_10] : memref<1x512xf32, #tpu.memory_space<vmem>>, vector<1x512xf32>
    %c0_11 = arith.constant 0 : index
    %c0_12 = arith.constant 0 : index
    %12 = vector.load %arg11[%c0_11, %c0_12] : memref<8x256xf32, #tpu.memory_space<vmem>>, vector<8x128xf32>
    %c0_13 = arith.constant 0 : index
    %c0_14 = arith.constant 0 : index
    %13 = vector.load %arg12[%c0_13, %c0_14] : memref<8x256xf32, #tpu.memory_space<vmem>>, vector<8x128xf32>
    %c0_15 = arith.constant 0 : index
    %c128 = arith.constant 128 : index
    %14 = vector.load %arg11[%c0_15, %c128] : memref<8x256xf32, #tpu.memory_space<vmem>>, vector<8x128xf32>
    %c0_16 = arith.constant 0 : index
    %c128_17 = arith.constant 128 : index
    %15 = vector.load %arg12[%c0_16, %c128_17] : memref<8x256xf32, #tpu.memory_space<vmem>>, vector<8x128xf32>
    %c0_i32_18 = arith.constant 0 : i32
    %c0_19 = arith.constant 0 : index
    %c0_20 = arith.constant 0 : index
    %16 = vector.load %arg6[%c0_19, %c0_20] : memref<128x512xf32, #tpu.memory_space<vmem>>, vector<128x512xf32>
    %cst_21 = arith.constant dense<0.000000e+00> : vector<8x512xf32>
    %17 = tpu.matmul %14, %16, %cst_21 {dimension_numbers = #tpu.dot_dimension_numbers<[1], [0], [0], [1], [0, 0, 1, 1], [], []>} : vector<8x128xf32>, vector<128x512xf32>, vector<8x512xf32> -> vector<8x512xf32>
    %c8_i32 = arith.constant 8 : i32
    %18 = arith.muli %c0_i32_18, %c8_i32 : i32
    %19 = arith.index_cast %18 : i32 to index
    %c0_22 = arith.constant 0 : index
    %20 = vector.load %arg10[%19, %c0_22] : memref<64x512xf32, #tpu.memory_space<vmem>>, vector<8x512xf32>
    %c0_23 = arith.constant 0 : index
    %c0_24 = arith.constant 0 : index
    %21 = vector.load %arg4[%c0_23, %c0_24] : memref<128x512xf32, #tpu.memory_space<vmem>>, vector<128x512xf32>
    %cst_25 = arith.constant dense<0.000000e+00> : vector<8x512xf32>
    %22 = tpu.matmul %12, %21, %cst_25 {dimension_numbers = #tpu.dot_dimension_numbers<[1], [0], [0], [1], [0, 0, 1, 1], [], []>} : vector<8x128xf32>, vector<128x512xf32>, vector<8x512xf32> -> vector<8x512xf32>
    %23 = arith.addf %20, %22 : vector<8x512xf32>
    %24 = vector.extract_strided_slice %23 {offsets = [0, 0], sizes = [8, 128], strides = [1, 1]} : vector<8x512xf32> to vector<8x128xf32>
    %cst_26 = arith.constant 5.000000e-01 : f32
    %25 = vector.broadcast %cst_26 : f32 to vector<8x128xf32>
    %26 = arith.mulf %25, %24 : vector<8x128xf32>
    %27 = math.tanh %26 : vector<8x128xf32>
    %cst_27 = arith.constant 5.000000e-01 : f32
    %28 = vector.broadcast %cst_27 : f32 to vector<8x128xf32>
    %29 = arith.mulf %28, %27 : vector<8x128xf32>
    %cst_28 = arith.constant 5.000000e-01 : f32
    %30 = vector.broadcast %cst_28 : f32 to vector<8x128xf32>
    %31 = arith.addf %29, %30 : vector<8x128xf32>
    %32 = vector.extract_strided_slice %23 {offsets = [0, 128], sizes = [8, 128], strides = [1, 1]} : vector<8x512xf32> to vector<8x128xf32>
    %cst_29 = arith.constant 5.000000e-01 : f32
    %33 = vector.broadcast %cst_29 : f32 to vector<8x128xf32>
    %34 = arith.mulf %33, %32 : vector<8x128xf32>
    %35 = math.tanh %34 : vector<8x128xf32>
    %cst_30 = arith.constant 5.000000e-01 : f32
    %36 = vector.broadcast %cst_30 : f32 to vector<8x128xf32>
    %37 = arith.mulf %36, %35 : vector<8x128xf32>
    %cst_31 = arith.constant 5.000000e-01 : f32
    %38 = vector.broadcast %cst_31 : f32 to vector<8x128xf32>
    %39 = arith.addf %37, %38 : vector<8x128xf32>
    %40 = vector.extract_strided_slice %23 {offsets = [0, 256], sizes = [8, 128], strides = [1, 1]} : vector<8x512xf32> to vector<8x128xf32>
    %41 = math.tanh %40 : vector<8x128xf32>
    %42 = vector.extract_strided_slice %23 {offsets = [0, 384], sizes = [8, 128], strides = [1, 1]} : vector<8x512xf32> to vector<8x128xf32>
    %cst_32 = arith.constant 5.000000e-01 : f32
    %43 = vector.broadcast %cst_32 : f32 to vector<8x128xf32>
    %44 = arith.mulf %43, %42 : vector<8x128xf32>
    %45 = math.tanh %44 : vector<8x128xf32>
    %cst_33 = arith.constant 5.000000e-01 : f32
    %46 = vector.broadcast %cst_33 : f32 to vector<8x128xf32>
    %47 = arith.mulf %46, %45 : vector<8x128xf32>
    %cst_34 = arith.constant 5.000000e-01 : f32
    %48 = vector.broadcast %cst_34 : f32 to vector<8x128xf32>
    %49 = arith.addf %47, %48 : vector<8x128xf32>
    %50 = arith.mulf %39, %13 : vector<8x128xf32>
    %51 = arith.mulf %31, %41 : vector<8x128xf32>
    %52 = arith.addf %50, %51 : vector<8x128xf32>
    %53 = math.tanh %52 : vector<8x128xf32>
    %54 = arith.mulf %49, %53 : vector<8x128xf32>
    %55 = vector.broadcast %11 : vector<1x512xf32> to vector<8x512xf32>
    %56 = arith.addf %17, %55 : vector<8x512xf32>
    %c0_35 = arith.constant 0 : index
    %c0_36 = arith.constant 0 : index
    %57 = vector.load %arg5[%c0_35, %c0_36] : memref<128x512xf32, #tpu.memory_space<vmem>>, vector<128x512xf32>
    %cst_37 = arith.constant dense<0.000000e+00> : vector<8x512xf32>
    %58 = tpu.matmul %54, %57, %cst_37 {dimension_numbers = #tpu.dot_dimension_numbers<[1], [0], [0], [1], [0, 0, 1, 1], [], []>} : vector<8x128xf32>, vector<128x512xf32>, vector<8x512xf32> -> vector<8x512xf32>
    %59 = arith.addf %56, %58 : vector<8x512xf32>
    %60 = vector.extract_strided_slice %59 {offsets = [0, 0], sizes = [8, 128], strides = [1, 1]} : vector<8x512xf32> to vector<8x128xf32>
    %cst_38 = arith.constant 5.000000e-01 : f32
    %61 = vector.broadcast %cst_38 : f32 to vector<8x128xf32>
    %62 = arith.mulf %61, %60 : vector<8x128xf32>
    %63 = math.tanh %62 : vector<8x128xf32>
    %cst_39 = arith.constant 5.000000e-01 : f32
    %64 = vector.broadcast %cst_39 : f32 to vector<8x128xf32>
    %65 = arith.mulf %64, %63 : vector<8x128xf32>
    %cst_40 = arith.constant 5.000000e-01 : f32
    %66 = vector.broadcast %cst_40 : f32 to vector<8x128xf32>
    %67 = arith.addf %65, %66 : vector<8x128xf32>
    %68 = vector.extract_strided_slice %59 {offsets = [0, 128], sizes = [8, 128], strides = [1, 1]} : vector<8x512xf32> to vector<8x128xf32>
    %cst_41 = arith.constant 5.000000e-01 : f32
    %69 = vector.broadcast %cst_41 : f32 to vector<8x128xf32>
    %70 = arith.mulf %69, %68 : vector<8x128xf32>
    %71 = math.tanh %70 : vector<8x128xf32>
    %cst_42 = arith.constant 5.000000e-01 : f32
    %72 = vector.broadcast %cst_42 : f32 to vector<8x128xf32>
    %73 = arith.mulf %72, %71 : vector<8x128xf32>
    %cst_43 = arith.constant 5.000000e-01 : f32
    %74 = vector.broadcast %cst_43 : f32 to vector<8x128xf32>
    %75 = arith.addf %73, %74 : vector<8x128xf32>
    %76 = vector.extract_strided_slice %59 {offsets = [0, 256], sizes = [8, 128], strides = [1, 1]} : vector<8x512xf32> to vector<8x128xf32>
    %77 = math.tanh %76 : vector<8x128xf32>
    %78 = vector.extract_strided_slice %59 {offsets = [0, 384], sizes = [8, 128], strides = [1, 1]} : vector<8x512xf32> to vector<8x128xf32>
    %cst_44 = arith.constant 5.000000e-01 : f32
    %79 = vector.broadcast %cst_44 : f32 to vector<8x128xf32>
    %80 = arith.mulf %79, %78 : vector<8x128xf32>
    %81 = math.tanh %80 : vector<8x128xf32>
    %cst_45 = arith.constant 5.000000e-01 : f32
    %82 = vector.broadcast %cst_45 : f32 to vector<8x128xf32>
    %83 = arith.mulf %82, %81 : vector<8x128xf32>
    %cst_46 = arith.constant 5.000000e-01 : f32
    %84 = vector.broadcast %cst_46 : f32 to vector<8x128xf32>
    %85 = arith.addf %83, %84 : vector<8x128xf32>
    %86 = arith.mulf %75, %15 : vector<8x128xf32>
    %87 = arith.mulf %67, %77 : vector<8x128xf32>
    %88 = arith.addf %86, %87 : vector<8x128xf32>
    %89 = math.tanh %88 : vector<8x128xf32>
    %90 = arith.mulf %85, %89 : vector<8x128xf32>
    %91 = arith.index_cast %c0_i32_18 : i32 to index
    %c0_47 = arith.constant 0 : index
    %c0_48 = arith.constant 0 : index
    %92 = vector.load %arg9[%91, %c0_47, %c0_48] : memref<8x8x128xf32, #tpu.memory_space<vmem>>, vector<1x8x128xf32>
    %93 = vector.shape_cast %92 : vector<1x8x128xf32> to vector<8x128xf32>
    %94 = vector.shape_cast %90 : vector<8x128xf32> to vector<1x8x128xf32>
    tpu.vector_store %arg9[%91, %c0_47, %c0_48], %94 {strides = array<i32>} : memref<8x8x128xf32, #tpu.memory_space<vmem>>, vector<1x8x128xf32>,
    %c1_i32 = arith.constant 1 : i32
    %c0_49 = arith.constant 0 : index
    %c0_50 = arith.constant 0 : index
    %95 = vector.load %arg6[%c0_49, %c0_50] : memref<128x512xf32, #tpu.memory_space<vmem>>, vector<128x512xf32>
    %cst_51 = arith.constant dense<0.000000e+00> : vector<8x512xf32>
    %96 = tpu.matmul %90, %95, %cst_51 {dimension_numbers = #tpu.dot_dimension_numbers<[1], [0], [0], [1], [0, 0, 1, 1], [], []>} : vector<8x128xf32>, vector<128x512xf32>, vector<8x512xf32> -> vector<8x512xf32>
    %c8_i32_52 = arith.constant 8 : i32
    %97 = arith.muli %c1_i32, %c8_i32_52 : i32
    %98 = arith.index_cast %97 : i32 to index
    %c0_53 = arith.constant 0 : index
    %99 = vector.load %arg10[%98, %c0_53] : memref<64x512xf32, #tpu.memory_space<vmem>>, vector<8x512xf32>
    %c0_54 = arith.constant 0 : index
    %c0_55 = arith.constant 0 : index
    %100 = vector.load %arg4[%c0_54, %c0_55] : memref<128x512xf32, #tpu.memory_space<vmem>>, vector<128x512xf32>
    %cst_56 = arith.constant dense<0.000000e+00> : vector<8x512xf32>
    %101 = tpu.matmul %54, %100, %cst_56 {dimension_numbers = #tpu.dot_dimension_numbers<[1], [0], [0], [1], [0, 0, 1, 1], [], []>} : vector<8x128xf32>, vector<128x512xf32>, vector<8x512xf32> -> vector<8x512xf32>
    %102 = arith.addf %99, %101 : vector<8x512xf32>
    %103 = vector.extract_strided_slice %102 {offsets = [0, 0], sizes = [8, 128], strides = [1, 1]} : vector<8x512xf32> to vector<8x128xf32>
    %cst_57 = arith.constant 5.000000e-01 : f32
    %104 = vector.broadcast %cst_57 : f32 to vector<8x128xf32>
    %105 = arith.mulf %104, %103 : vector<8x128xf32>
    %106 = math.tanh %105 : vector<8x128xf32>
    %cst_58 = arith.constant 5.000000e-01 : f32
    %107 = vector.broadcast %cst_58 : f32 to vector<8x128xf32>
    %108 = arith.mulf %107, %106 : vector<8x128xf32>
    %cst_59 = arith.constant 5.000000e-01 : f32
    %109 = vector.broadcast %cst_59 : f32 to vector<8x128xf32>
    %110 = arith.addf %108, %109 : vector<8x128xf32>
    %111 = vector.extract_strided_slice %102 {offsets = [0, 128], sizes = [8, 128], strides = [1, 1]} : vector<8x512xf32> to vector<8x128xf32>
    %cst_60 = arith.constant 5.000000e-01 : f32
    %112 = vector.broadcast %cst_60 : f32 to vector<8x128xf32>
    %113 = arith.mulf %112, %111 : vector<8x128xf32>
    %114 = math.tanh %113 : vector<8x128xf32>
    %cst_61 = arith.constant 5.000000e-01 : f32
    %115 = vector.broadcast %cst_61 : f32 to vector<8x128xf32>
    %116 = arith.mulf %115, %114 : vector<8x128xf32>
    %cst_62 = arith.constant 5.000000e-01 : f32
    %117 = vector.broadcast %cst_62 : f32 to vector<8x128xf32>
    %118 = arith.addf %116, %117 : vector<8x128xf32>
    %119 = vector.extract_strided_slice %102 {offsets = [0, 256], sizes = [8, 128], strides = [1, 1]} : vector<8x512xf32> to vector<8x128xf32>
    %120 = math.tanh %119 : vector<8x128xf32>
    %121 = vector.extract_strided_slice %102 {offsets = [0, 384], sizes = [8, 128], strides = [1, 1]} : vector<8x512xf32> to vector<8x128xf32>
    %cst_63 = arith.constant 5.000000e-01 : f32
    %122 = vector.broadcast %cst_63 : f32 to vector<8x128xf32>
    %123 = arith.mulf %122, %121 : vector<8x128xf32>
    %124 = math.tanh %123 : vector<8x128xf32>
    %cst_64 = arith.constant 5.000000e-01 : f32
    %125 = vector.broadcast %cst_64 : f32 to vector<8x128xf32>
    %126 = arith.mulf %125, %124 : vector<8x128xf32>
    %cst_65 = arith.constant 5.000000e-01 : f32
    %127 = vector.broadcast %cst_65 : f32 to vector<8x128xf32>
    %128 = arith.addf %126, %127 : vector<8x128xf32>
    %129 = arith.mulf %118, %52 : vector<8x128xf32>
    %130 = arith.mulf %110, %120 : vector<8x128xf32>
    %131 = arith.addf %129, %130 : vector<8x128xf32>
    %132 = math.tanh %131 : vector<8x128xf32>
    %133 = arith.mulf %128, %132 : vector<8x128xf32>
    %134 = vector.broadcast %11 : vector<1x512xf32> to vector<8x512xf32>
    %135 = arith.addf %96, %134 : vector<8x512xf32>
    %c0_66 = arith.constant 0 : index
    %c0_67 = arith.constant 0 : index
    %136 = vector.load %arg5[%c0_66, %c0_67] : memref<128x512xf32, #tpu.memory_space<vmem>>, vector<128x512xf32>
    %cst_68 = arith.constant dense<0.000000e+00> : vector<8x512xf32>
    %137 = tpu.matmul %133, %136, %cst_68 {dimension_numbers = #tpu.dot_dimension_numbers<[1], [0], [0], [1], [0, 0, 1, 1], [], []>} : vector<8x128xf32>, vector<128x512xf32>, vector<8x512xf32> -> vector<8x512xf32>
    %138 = arith.addf %135, %137 : vector<8x512xf32>
    %139 = vector.extract_strided_slice %138 {offsets = [0, 0], sizes = [8, 128], strides = [1, 1]} : vector<8x512xf32> to vector<8x128xf32>
    %cst_69 = arith.constant 5.000000e-01 : f32
    %140 = vector.broadcast %cst_69 : f32 to vector<8x128xf32>
    %141 = arith.mulf %140, %139 : vector<8x128xf32>
    %142 = math.tanh %141 : vector<8x128xf32>
    %cst_70 = arith.constant 5.000000e-01 : f32
    %143 = vector.broadcast %cst_70 : f32 to vector<8x128xf32>
    %144 = arith.mulf %143, %142 : vector<8x128xf32>
    %cst_71 = arith.constant 5.000000e-01 : f32
    %145 = vector.broadcast %cst_71 : f32 to vector<8x128xf32>
    %146 = arith.addf %144, %145 : vector<8x128xf32>
    %147 = vector.extract_strided_slice %138 {offsets = [0, 128], sizes = [8, 128], strides = [1, 1]} : vector<8x512xf32> to vector<8x128xf32>
    %cst_72 = arith.constant 5.000000e-01 : f32
    %148 = vector.broadcast %cst_72 : f32 to vector<8x128xf32>
    %149 = arith.mulf %148, %147 : vector<8x128xf32>
    %150 = math.tanh %149 : vector<8x128xf32>
    %cst_73 = arith.constant 5.000000e-01 : f32
    %151 = vector.broadcast %cst_73 : f32 to vector<8x128xf32>
    %152 = arith.mulf %151, %150 : vector<8x128xf32>
    %cst_74 = arith.constant 5.000000e-01 : f32
    %153 = vector.broadcast %cst_74 : f32 to vector<8x128xf32>
    %154 = arith.addf %152, %153 : vector<8x128xf32>
    %155 = vector.extract_strided_slice %138 {offsets = [0, 256], sizes = [8, 128], strides = [1, 1]} : vector<8x512xf32> to vector<8x128xf32>
    %156 = math.tanh %155 : vector<8x128xf32>
    %157 = vector.extract_strided_slice %138 {offsets = [0, 384], sizes = [8, 128], strides = [1, 1]} : vector<8x512xf32> to vector<8x128xf32>
    %cst_75 = arith.constant 5.000000e-01 : f32
    %158 = vector.broadcast %cst_75 : f32 to vector<8x128xf32>
    %159 = arith.mulf %158, %157 : vector<8x128xf32>
    %160 = math.tanh %159 : vector<8x128xf32>
    %cst_76 = arith.constant 5.000000e-01 : f32
    %161 = vector.broadcast %cst_76 : f32 to vector<8x128xf32>
    %162 = arith.mulf %161, %160 : vector<8x128xf32>
    %cst_77 = arith.constant 5.000000e-01 : f32
    %163 = vector.broadcast %cst_77 : f32 to vector<8x128xf32>
    %164 = arith.addf %162, %163 : vector<8x128xf32>
    %165 = arith.mulf %154, %88 : vector<8x128xf32>
    %166 = arith.mulf %146, %156 : vector<8x128xf32>
    %167 = arith.addf %165, %166 : vector<8x128xf32>
    %168 = math.tanh %167 : vector<8x128xf32>
    %169 = arith.mulf %164, %168 : vector<8x128xf32>
    %170 = arith.index_cast %c1_i32 : i32 to index
    %c0_78 = arith.constant 0 : index
    %c0_79 = arith.constant 0 : index
    %171 = vector.load %arg9[%170, %c0_78, %c0_79] : memref<8x8x128xf32, #tpu.memory_space<vmem>>, vector<1x8x128xf32>
    %172 = vector.shape_cast %171 : vector<1x8x128xf32> to vector<8x128xf32>
    %173 = vector.shape_cast %169 : vector<8x128xf32> to vector<1x8x128xf32>
    tpu.vector_store %arg9[%170, %c0_78, %c0_79], %173 {strides = array<i32>} : memref<8x8x128xf32, #tpu.memory_space<vmem>>, vector<1x8x128xf32>,
    %c2_i32 = arith.constant 2 : i32
    %c0_80 = arith.constant 0 : index
    %c0_81 = arith.constant 0 : index
    %174 = vector.load %arg6[%c0_80, %c0_81] : memref<128x512xf32, #tpu.memory_space<vmem>>, vector<128x512xf32>
    %cst_82 = arith.constant dense<0.000000e+00> : vector<8x512xf32>
    %175 = tpu.matmul %169, %174, %cst_82 {dimension_numbers = #tpu.dot_dimension_numbers<[1], [0], [0], [1], [0, 0, 1, 1], [], []>} : vector<8x128xf32>, vector<128x512xf32>, vector<8x512xf32> -> vector<8x512xf32>
    %c8_i32_83 = arith.constant 8 : i32
    %176 = arith.muli %c2_i32, %c8_i32_83 : i32
    %177 = arith.index_cast %176 : i32 to index
    %c0_84 = arith.constant 0 : index
    %178 = vector.load %arg10[%177, %c0_84] : memref<64x512xf32, #tpu.memory_space<vmem>>, vector<8x512xf32>
    %c0_85 = arith.constant 0 : index
    %c0_86 = arith.constant 0 : index
    %179 = vector.load %arg4[%c0_85, %c0_86] : memref<128x512xf32, #tpu.memory_space<vmem>>, vector<128x512xf32>
    %cst_87 = arith.constant dense<0.000000e+00> : vector<8x512xf32>
    %180 = tpu.matmul %133, %179, %cst_87 {dimension_numbers = #tpu.dot_dimension_numbers<[1], [0], [0], [1], [0, 0, 1, 1], [], []>} : vector<8x128xf32>, vector<128x512xf32>, vector<8x512xf32> -> vector<8x512xf32>
    %181 = arith.addf %178, %180 : vector<8x512xf32>
    %182 = vector.extract_strided_slice %181 {offsets = [0, 0], sizes = [8, 128], strides = [1, 1]} : vector<8x512xf32> to vector<8x128xf32>
    %cst_88 = arith.constant 5.000000e-01 : f32
    %183 = vector.broadcast %cst_88 : f32 to vector<8x128xf32>
    %184 = arith.mulf %183, %182 : vector<8x128xf32>
    %185 = math.tanh %184 : vector<8x128xf32>
    %cst_89 = arith.constant 5.000000e-01 : f32
    %186 = vector.broadcast %cst_89 : f32 to vector<8x128xf32>
    %187 = arith.mulf %186, %185 : vector<8x128xf32>
    %cst_90 = arith.constant 5.000000e-01 : f32
    %188 = vector.broadcast %cst_90 : f32 to vector<8x128xf32>
    %189 = arith.addf %187, %188 : vector<8x128xf32>
    %190 = vector.extract_strided_slice %181 {offsets = [0, 128], sizes = [8, 128], strides = [1, 1]} : vector<8x512xf32> to vector<8x128xf32>
    %cst_91 = arith.constant 5.000000e-01 : f32
    %191 = vector.broadcast %cst_91 : f32 to vector<8x128xf32>
    %192 = arith.mulf %191, %190 : vector<8x128xf32>
    %193 = math.tanh %192 : vector<8x128xf32>
    %cst_92 = arith.constant 5.000000e-01 : f32
    %194 = vector.broadcast %cst_92 : f32 to vector<8x128xf32>
    %195 = arith.mulf %194, %193 : vector<8x128xf32>
    %cst_93 = arith.constant 5.000000e-01 : f32
    %196 = vector.broadcast %cst_93 : f32 to vector<8x128xf32>
    %197 = arith.addf %195, %196 : vector<8x128xf32>
    %198 = vector.extract_strided_slice %181 {offsets = [0, 256], sizes = [8, 128], strides = [1, 1]} : vector<8x512xf32> to vector<8x128xf32>
    %199 = math.tanh %198 : vector<8x128xf32>
    %200 = vector.extract_strided_slice %181 {offsets = [0, 384], sizes = [8, 128], strides = [1, 1]} : vector<8x512xf32> to vector<8x128xf32>
    %cst_94 = arith.constant 5.000000e-01 : f32
    %201 = vector.broadcast %cst_94 : f32 to vector<8x128xf32>
    %202 = arith.mulf %201, %200 : vector<8x128xf32>
    %203 = math.tanh %202 : vector<8x128xf32>
    %cst_95 = arith.constant 5.000000e-01 : f32
    %204 = vector.broadcast %cst_95 : f32 to vector<8x128xf32>
    %205 = arith.mulf %204, %203 : vector<8x128xf32>
    %cst_96 = arith.constant 5.000000e-01 : f32
    %206 = vector.broadcast %cst_96 : f32 to vector<8x128xf32>
    %207 = arith.addf %205, %206 : vector<8x128xf32>
    %208 = arith.mulf %197, %131 : vector<8x128xf32>
    %209 = arith.mulf %189, %199 : vector<8x128xf32>
    %210 = arith.addf %208, %209 : vector<8x128xf32>
    %211 = math.tanh %210 : vector<8x128xf32>
    %212 = arith.mulf %207, %211 : vector<8x128xf32>
    %213 = vector.broadcast %11 : vector<1x512xf32> to vector<8x512xf32>
    %214 = arith.addf %175, %213 : vector<8x512xf32>
    %c0_97 = arith.constant 0 : index
    %c0_98 = arith.constant 0 : index
    %215 = vector.load %arg5[%c0_97, %c0_98] : memref<128x512xf32, #tpu.memory_space<vmem>>, vector<128x512xf32>
    %cst_99 = arith.constant dense<0.000000e+00> : vector<8x512xf32>
    %216 = tpu.matmul %212, %215, %cst_99 {dimension_numbers = #tpu.dot_dimension_numbers<[1], [0], [0], [1], [0, 0, 1, 1], [], []>} : vector<8x128xf32>, vector<128x512xf32>, vector<8x512xf32> -> vector<8x512xf32>
    %217 = arith.addf %214, %216 : vector<8x512xf32>
    %218 = vector.extract_strided_slice %217 {offsets = [0, 0], sizes = [8, 128], strides = [1, 1]} : vector<8x512xf32> to vector<8x128xf32>
    %cst_100 = arith.constant 5.000000e-01 : f32
    %219 = vector.broadcast %cst_100 : f32 to vector<8x128xf32>
    %220 = arith.mulf %219, %218 : vector<8x128xf32>
    %221 = math.tanh %220 : vector<8x128xf32>
    %cst_101 = arith.constant 5.000000e-01 : f32
    %222 = vector.broadcast %cst_101 : f32 to vector<8x128xf32>
    %223 = arith.mulf %222, %221 : vector<8x128xf32>
    %cst_102 = arith.constant 5.000000e-01 : f32
    %224 = vector.broadcast %cst_102 : f32 to vector<8x128xf32>
    %225 = arith.addf %223, %224 : vector<8x128xf32>
    %226 = vector.extract_strided_slice %217 {offsets = [0, 128], sizes = [8, 128], strides = [1, 1]} : vector<8x512xf32> to vector<8x128xf32>
    %cst_103 = arith.constant 5.000000e-01 : f32
    %227 = vector.broadcast %cst_103 : f32 to vector<8x128xf32>
    %228 = arith.mulf %227, %226 : vector<8x128xf32>
    %229 = math.tanh %228 : vector<8x128xf32>
    %cst_104 = arith.constant 5.000000e-01 : f32
    %230 = vector.broadcast %cst_104 : f32 to vector<8x128xf32>
    %231 = arith.mulf %230, %229 : vector<8x128xf32>
    %cst_105 = arith.constant 5.000000e-01 : f32
    %232 = vector.broadcast %cst_105 : f32 to vector<8x128xf32>
    %233 = arith.addf %231, %232 : vector<8x128xf32>
    %234 = vector.extract_strided_slice %217 {offsets = [0, 256], sizes = [8, 128], strides = [1, 1]} : vector<8x512xf32> to vector<8x128xf32>
    %235 = math.tanh %234 : vector<8x128xf32>
    %236 = vector.extract_strided_slice %217 {offsets = [0, 384], sizes = [8, 128], strides = [1, 1]} : vector<8x512xf32> to vector<8x128xf32>
    %cst_106 = arith.constant 5.000000e-01 : f32
    %237 = vector.broadcast %cst_106 : f32 to vector<8x128xf32>
    %238 = arith.mulf %237, %236 : vector<8x128xf32>
    %239 = math.tanh %238 : vector<8x128xf32>
    %cst_107 = arith.constant 5.000000e-01 : f32
    %240 = vector.broadcast %cst_107 : f32 to vector<8x128xf32>
    %241 = arith.mulf %240, %239 : vector<8x128xf32>
    %cst_108 = arith.constant 5.000000e-01 : f32
    %242 = vector.broadcast %cst_108 : f32 to vector<8x128xf32>
    %243 = arith.addf %241, %242 : vector<8x128xf32>
    %244 = arith.mulf %233, %167 : vector<8x128xf32>
    %245 = arith.mulf %225, %235 : vector<8x128xf32>
    %246 = arith.addf %244, %245 : vector<8x128xf32>
    %247 = math.tanh %246 : vector<8x128xf32>
    %248 = arith.mulf %243, %247 : vector<8x128xf32>
    %249 = arith.index_cast %c2_i32 : i32 to index
    %c0_109 = arith.constant 0 : index
    %c0_110 = arith.constant 0 : index
    %250 = vector.load %arg9[%249, %c0_109, %c0_110] : memref<8x8x128xf32, #tpu.memory_space<vmem>>, vector<1x8x128xf32>
    %251 = vector.shape_cast %250 : vector<1x8x128xf32> to vector<8x128xf32>
    %252 = vector.shape_cast %248 : vector<8x128xf32> to vector<1x8x128xf32>
    tpu.vector_store %arg9[%249, %c0_109, %c0_110], %252 {strides = array<i32>} : memref<8x8x128xf32, #tpu.memory_space<vmem>>, vector<1x8x128xf32>,
    %c3_i32 = arith.constant 3 : i32
    %c0_111 = arith.constant 0 : index
    %c0_112 = arith.constant 0 : index
    %253 = vector.load %arg6[%c0_111, %c0_112] : memref<128x512xf32, #tpu.memory_space<vmem>>, vector<128x512xf32>
    %cst_113 = arith.constant dense<0.000000e+00> : vector<8x512xf32>
    %254 = tpu.matmul %248, %253, %cst_113 {dimension_numbers = #tpu.dot_dimension_numbers<[1], [0], [0], [1], [0, 0, 1, 1], [], []>} : vector<8x128xf32>, vector<128x512xf32>, vector<8x512xf32> -> vector<8x512xf32>
    %c8_i32_114 = arith.constant 8 : i32
    %255 = arith.muli %c3_i32, %c8_i32_114 : i32
    %256 = arith.index_cast %255 : i32 to index
    %c0_115 = arith.constant 0 : index
    %257 = vector.load %arg10[%256, %c0_115] : memref<64x512xf32, #tpu.memory_space<vmem>>, vector<8x512xf32>
    %c0_116 = arith.constant 0 : index
    %c0_117 = arith.constant 0 : index
    %258 = vector.load %arg4[%c0_116, %c0_117] : memref<128x512xf32, #tpu.memory_space<vmem>>, vector<128x512xf32>
    %cst_118 = arith.constant dense<0.000000e+00> : vector<8x512xf32>
    %259 = tpu.matmul %212, %258, %cst_118 {dimension_numbers = #tpu.dot_dimension_numbers<[1], [0], [0], [1], [0, 0, 1, 1], [], []>} : vector<8x128xf32>, vector<128x512xf32>, vector<8x512xf32> -> vector<8x512xf32>
    %260 = arith.addf %257, %259 : vector<8x512xf32>
    %261 = vector.extract_strided_slice %260 {offsets = [0, 0], sizes = [8, 128], strides = [1, 1]} : vector<8x512xf32> to vector<8x128xf32>
    %cst_119 = arith.constant 5.000000e-01 : f32
    %262 = vector.broadcast %cst_119 : f32 to vector<8x128xf32>
    %263 = arith.mulf %262, %261 : vector<8x128xf32>
    %264 = math.tanh %263 : vector<8x128xf32>
    %cst_120 = arith.constant 5.000000e-01 : f32
    %265 = vector.broadcast %cst_120 : f32 to vector<8x128xf32>
    %266 = arith.mulf %265, %264 : vector<8x128xf32>
    %cst_121 = arith.constant 5.000000e-01 : f32
    %267 = vector.broadcast %cst_121 : f32 to vector<8x128xf32>
    %268 = arith.addf %266, %267 : vector<8x128xf32>
    %269 = vector.extract_strided_slice %260 {offsets = [0, 128], sizes = [8, 128], strides = [1, 1]} : vector<8x512xf32> to vector<8x128xf32>
    %cst_122 = arith.constant 5.000000e-01 : f32
    %270 = vector.broadcast %cst_122 : f32 to vector<8x128xf32>
    %271 = arith.mulf %270, %269 : vector<8x128xf32>
    %272 = math.tanh %271 : vector<8x128xf32>
    %cst_123 = arith.constant 5.000000e-01 : f32
    %273 = vector.broadcast %cst_123 : f32 to vector<8x128xf32>
    %274 = arith.mulf %273, %272 : vector<8x128xf32>
    %cst_124 = arith.constant 5.000000e-01 : f32
    %275 = vector.broadcast %cst_124 : f32 to vector<8x128xf32>
    %276 = arith.addf %274, %275 : vector<8x128xf32>
    %277 = vector.extract_strided_slice %260 {offsets = [0, 256], sizes = [8, 128], strides = [1, 1]} : vector<8x512xf32> to vector<8x128xf32>
    %278 = math.tanh %277 : vector<8x128xf32>
    %279 = vector.extract_strided_slice %260 {offsets = [0, 384], sizes = [8, 128], strides = [1, 1]} : vector<8x512xf32> to vector<8x128xf32>
    %cst_125 = arith.constant 5.000000e-01 : f32
    %280 = vector.broadcast %cst_125 : f32 to vector<8x128xf32>
    %281 = arith.mulf %280, %279 : vector<8x128xf32>
    %282 = math.tanh %281 : vector<8x128xf32>
    %cst_126 = arith.constant 5.000000e-01 : f32
    %283 = vector.broadcast %cst_126 : f32 to vector<8x128xf32>
    %284 = arith.mulf %283, %282 : vector<8x128xf32>
    %cst_127 = arith.constant 5.000000e-01 : f32
    %285 = vector.broadcast %cst_127 : f32 to vector<8x128xf32>
    %286 = arith.addf %284, %285 : vector<8x128xf32>
    %287 = arith.mulf %276, %210 : vector<8x128xf32>
    %288 = arith.mulf %268, %278 : vector<8x128xf32>
    %289 = arith.addf %287, %288 : vector<8x128xf32>
    %290 = math.tanh %289 : vector<8x128xf32>
    %291 = arith.mulf %286, %290 : vector<8x128xf32>
    %292 = vector.broadcast %11 : vector<1x512xf32> to vector<8x512xf32>
    %293 = arith.addf %254, %292 : vector<8x512xf32>
    %c0_128 = arith.constant 0 : index
    %c0_129 = arith.constant 0 : index
    %294 = vector.load %arg5[%c0_128, %c0_129] : memref<128x512xf32, #tpu.memory_space<vmem>>, vector<128x512xf32>
    %cst_130 = arith.constant dense<0.000000e+00> : vector<8x512xf32>
    %295 = tpu.matmul %291, %294, %cst_130 {dimension_numbers = #tpu.dot_dimension_numbers<[1], [0], [0], [1], [0, 0, 1, 1], [], []>} : vector<8x128xf32>, vector<128x512xf32>, vector<8x512xf32> -> vector<8x512xf32>
    %296 = arith.addf %293, %295 : vector<8x512xf32>
    %297 = vector.extract_strided_slice %296 {offsets = [0, 0], sizes = [8, 128], strides = [1, 1]} : vector<8x512xf32> to vector<8x128xf32>
    %cst_131 = arith.constant 5.000000e-01 : f32
    %298 = vector.broadcast %cst_131 : f32 to vector<8x128xf32>
    %299 = arith.mulf %298, %297 : vector<8x128xf32>
    %300 = math.tanh %299 : vector<8x128xf32>
    %cst_132 = arith.constant 5.000000e-01 : f32
    %301 = vector.broadcast %cst_132 : f32 to vector<8x128xf32>
    %302 = arith.mulf %301, %300 : vector<8x128xf32>
    %cst_133 = arith.constant 5.000000e-01 : f32
    %303 = vector.broadcast %cst_133 : f32 to vector<8x128xf32>
    %304 = arith.addf %302, %303 : vector<8x128xf32>
    %305 = vector.extract_strided_slice %296 {offsets = [0, 128], sizes = [8, 128], strides = [1, 1]} : vector<8x512xf32> to vector<8x128xf32>
    %cst_134 = arith.constant 5.000000e-01 : f32
    %306 = vector.broadcast %cst_134 : f32 to vector<8x128xf32>
    %307 = arith.mulf %306, %305 : vector<8x128xf32>
    %308 = math.tanh %307 : vector<8x128xf32>
    %cst_135 = arith.constant 5.000000e-01 : f32
    %309 = vector.broadcast %cst_135 : f32 to vector<8x128xf32>
    %310 = arith.mulf %309, %308 : vector<8x128xf32>
    %cst_136 = arith.constant 5.000000e-01 : f32
    %311 = vector.broadcast %cst_136 : f32 to vector<8x128xf32>
    %312 = arith.addf %310, %311 : vector<8x128xf32>
    %313 = vector.extract_strided_slice %296 {offsets = [0, 256], sizes = [8, 128], strides = [1, 1]} : vector<8x512xf32> to vector<8x128xf32>
    %314 = math.tanh %313 : vector<8x128xf32>
    %315 = vector.extract_strided_slice %296 {offsets = [0, 384], sizes = [8, 128], strides = [1, 1]} : vector<8x512xf32> to vector<8x128xf32>
    %cst_137 = arith.constant 5.000000e-01 : f32
    %316 = vector.broadcast %cst_137 : f32 to vector<8x128xf32>
    %317 = arith.mulf %316, %315 : vector<8x128xf32>
    %318 = math.tanh %317 : vector<8x128xf32>
    %cst_138 = arith.constant 5.000000e-01 : f32
    %319 = vector.broadcast %cst_138 : f32 to vector<8x128xf32>
    %320 = arith.mulf %319, %318 : vector<8x128xf32>
    %cst_139 = arith.constant 5.000000e-01 : f32
    %321 = vector.broadcast %cst_139 : f32 to vector<8x128xf32>
    %322 = arith.addf %320, %321 : vector<8x128xf32>
    %323 = arith.mulf %312, %246 : vector<8x128xf32>
    %324 = arith.mulf %304, %314 : vector<8x128xf32>
    %325 = arith.addf %323, %324 : vector<8x128xf32>
    %326 = math.tanh %325 : vector<8x128xf32>
    %327 = arith.mulf %322, %326 : vector<8x128xf32>
    %328 = arith.index_cast %c3_i32 : i32 to index
    %c0_140 = arith.constant 0 : index
    %c0_141 = arith.constant 0 : index
    %329 = vector.load %arg9[%328, %c0_140, %c0_141] : memref<8x8x128xf32, #tpu.memory_space<vmem>>, vector<1x8x128xf32>
    %330 = vector.shape_cast %329 : vector<1x8x128xf32> to vector<8x128xf32>
    %331 = vector.shape_cast %327 : vector<8x128xf32> to vector<1x8x128xf32>
    tpu.vector_store %arg9[%328, %c0_140, %c0_141], %331 {strides = array<i32>} : memref<8x8x128xf32, #tpu.memory_space<vmem>>, vector<1x8x128xf32>,
    %c4_i32 = arith.constant 4 : i32
    %c0_142 = arith.constant 0 : index
    %c0_143 = arith.constant 0 : index
    %332 = vector.load %arg6[%c0_142, %c0_143] : memref<128x512xf32, #tpu.memory_space<vmem>>, vector<128x512xf32>
    %cst_144 = arith.constant dense<0.000000e+00> : vector<8x512xf32>
    %333 = tpu.matmul %327, %332, %cst_144 {dimension_numbers = #tpu.dot_dimension_numbers<[1], [0], [0], [1], [0, 0, 1, 1], [], []>} : vector<8x128xf32>, vector<128x512xf32>, vector<8x512xf32> -> vector<8x512xf32>
    %c8_i32_145 = arith.constant 8 : i32
    %334 = arith.muli %c4_i32, %c8_i32_145 : i32
    %335 = arith.index_cast %334 : i32 to index
    %c0_146 = arith.constant 0 : index
    %336 = vector.load %arg10[%335, %c0_146] : memref<64x512xf32, #tpu.memory_space<vmem>>, vector<8x512xf32>
    %c0_147 = arith.constant 0 : index
    %c0_148 = arith.constant 0 : index
    %337 = vector.load %arg4[%c0_147, %c0_148] : memref<128x512xf32, #tpu.memory_space<vmem>>, vector<128x512xf32>
    %cst_149 = arith.constant dense<0.000000e+00> : vector<8x512xf32>
    %338 = tpu.matmul %291, %337, %cst_149 {dimension_numbers = #tpu.dot_dimension_numbers<[1], [0], [0], [1], [0, 0, 1, 1], [], []>} : vector<8x128xf32>, vector<128x512xf32>, vector<8x512xf32> -> vector<8x512xf32>
    %339 = arith.addf %336, %338 : vector<8x512xf32>
    %340 = vector.extract_strided_slice %339 {offsets = [0, 0], sizes = [8, 128], strides = [1, 1]} : vector<8x512xf32> to vector<8x128xf32>
    %cst_150 = arith.constant 5.000000e-01 : f32
    %341 = vector.broadcast %cst_150 : f32 to vector<8x128xf32>
    %342 = arith.mulf %341, %340 : vector<8x128xf32>
    %343 = math.tanh %342 : vector<8x128xf32>
    %cst_151 = arith.constant 5.000000e-01 : f32
    %344 = vector.broadcast %cst_151 : f32 to vector<8x128xf32>
    %345 = arith.mulf %344, %343 : vector<8x128xf32>
    %cst_152 = arith.constant 5.000000e-01 : f32
    %346 = vector.broadcast %cst_152 : f32 to vector<8x128xf32>
    %347 = arith.addf %345, %346 : vector<8x128xf32>
    %348 = vector.extract_strided_slice %339 {offsets = [0, 128], sizes = [8, 128], strides = [1, 1]} : vector<8x512xf32> to vector<8x128xf32>
    %cst_153 = arith.constant 5.000000e-01 : f32
    %349 = vector.broadcast %cst_153 : f32 to vector<8x128xf32>
    %350 = arith.mulf %349, %348 : vector<8x128xf32>
    %351 = math.tanh %350 : vector<8x128xf32>
    %cst_154 = arith.constant 5.000000e-01 : f32
    %352 = vector.broadcast %cst_154 : f32 to vector<8x128xf32>
    %353 = arith.mulf %352, %351 : vector<8x128xf32>
    %cst_155 = arith.constant 5.000000e-01 : f32
    %354 = vector.broadcast %cst_155 : f32 to vector<8x128xf32>
    %355 = arith.addf %353, %354 : vector<8x128xf32>
    %356 = vector.extract_strided_slice %339 {offsets = [0, 256], sizes = [8, 128], strides = [1, 1]} : vector<8x512xf32> to vector<8x128xf32>
    %357 = math.tanh %356 : vector<8x128xf32>
    %358 = vector.extract_strided_slice %339 {offsets = [0, 384], sizes = [8, 128], strides = [1, 1]} : vector<8x512xf32> to vector<8x128xf32>
    %cst_156 = arith.constant 5.000000e-01 : f32
    %359 = vector.broadcast %cst_156 : f32 to vector<8x128xf32>
    %360 = arith.mulf %359, %358 : vector<8x128xf32>
    %361 = math.tanh %360 : vector<8x128xf32>
    %cst_157 = arith.constant 5.000000e-01 : f32
    %362 = vector.broadcast %cst_157 : f32 to vector<8x128xf32>
    %363 = arith.mulf %362, %361 : vector<8x128xf32>
    %cst_158 = arith.constant 5.000000e-01 : f32
    %364 = vector.broadcast %cst_158 : f32 to vector<8x128xf32>
    %365 = arith.addf %363, %364 : vector<8x128xf32>
    %366 = arith.mulf %355, %289 : vector<8x128xf32>
    %367 = arith.mulf %347, %357 : vector<8x128xf32>
    %368 = arith.addf %366, %367 : vector<8x128xf32>
    %369 = math.tanh %368 : vector<8x128xf32>
    %370 = arith.mulf %365, %369 : vector<8x128xf32>
    %371 = vector.broadcast %11 : vector<1x512xf32> to vector<8x512xf32>
    %372 = arith.addf %333, %371 : vector<8x512xf32>
    %c0_159 = arith.constant 0 : index
    %c0_160 = arith.constant 0 : index
    %373 = vector.load %arg5[%c0_159, %c0_160] : memref<128x512xf32, #tpu.memory_space<vmem>>, vector<128x512xf32>
    %cst_161 = arith.constant dense<0.000000e+00> : vector<8x512xf32>
    %374 = tpu.matmul %370, %373, %cst_161 {dimension_numbers = #tpu.dot_dimension_numbers<[1], [0], [0], [1], [0, 0, 1, 1], [], []>} : vector<8x128xf32>, vector<128x512xf32>, vector<8x512xf32> -> vector<8x512xf32>
    %375 = arith.addf %372, %374 : vector<8x512xf32>
    %376 = vector.extract_strided_slice %375 {offsets = [0, 0], sizes = [8, 128], strides = [1, 1]} : vector<8x512xf32> to vector<8x128xf32>
    %cst_162 = arith.constant 5.000000e-01 : f32
    %377 = vector.broadcast %cst_162 : f32 to vector<8x128xf32>
    %378 = arith.mulf %377, %376 : vector<8x128xf32>
    %379 = math.tanh %378 : vector<8x128xf32>
    %cst_163 = arith.constant 5.000000e-01 : f32
    %380 = vector.broadcast %cst_163 : f32 to vector<8x128xf32>
    %381 = arith.mulf %380, %379 : vector<8x128xf32>
    %cst_164 = arith.constant 5.000000e-01 : f32
    %382 = vector.broadcast %cst_164 : f32 to vector<8x128xf32>
    %383 = arith.addf %381, %382 : vector<8x128xf32>
    %384 = vector.extract_strided_slice %375 {offsets = [0, 128], sizes = [8, 128], strides = [1, 1]} : vector<8x512xf32> to vector<8x128xf32>
    %cst_165 = arith.constant 5.000000e-01 : f32
    %385 = vector.broadcast %cst_165 : f32 to vector<8x128xf32>
    %386 = arith.mulf %385, %384 : vector<8x128xf32>
    %387 = math.tanh %386 : vector<8x128xf32>
    %cst_166 = arith.constant 5.000000e-01 : f32
    %388 = vector.broadcast %cst_166 : f32 to vector<8x128xf32>
    %389 = arith.mulf %388, %387 : vector<8x128xf32>
    %cst_167 = arith.constant 5.000000e-01 : f32
    %390 = vector.broadcast %cst_167 : f32 to vector<8x128xf32>
    %391 = arith.addf %389, %390 : vector<8x128xf32>
    %392 = vector.extract_strided_slice %375 {offsets = [0, 256], sizes = [8, 128], strides = [1, 1]} : vector<8x512xf32> to vector<8x128xf32>
    %393 = math.tanh %392 : vector<8x128xf32>
    %394 = vector.extract_strided_slice %375 {offsets = [0, 384], sizes = [8, 128], strides = [1, 1]} : vector<8x512xf32> to vector<8x128xf32>
    %cst_168 = arith.constant 5.000000e-01 : f32
    %395 = vector.broadcast %cst_168 : f32 to vector<8x128xf32>
    %396 = arith.mulf %395, %394 : vector<8x128xf32>
    %397 = math.tanh %396 : vector<8x128xf32>
    %cst_169 = arith.constant 5.000000e-01 : f32
    %398 = vector.broadcast %cst_169 : f32 to vector<8x128xf32>
    %399 = arith.mulf %398, %397 : vector<8x128xf32>
    %cst_170 = arith.constant 5.000000e-01 : f32
    %400 = vector.broadcast %cst_170 : f32 to vector<8x128xf32>
    %401 = arith.addf %399, %400 : vector<8x128xf32>
    %402 = arith.mulf %391, %325 : vector<8x128xf32>
    %403 = arith.mulf %383, %393 : vector<8x128xf32>
    %404 = arith.addf %402, %403 : vector<8x128xf32>
    %405 = math.tanh %404 : vector<8x128xf32>
    %406 = arith.mulf %401, %405 : vector<8x128xf32>
    %407 = arith.index_cast %c4_i32 : i32 to index
    %c0_171 = arith.constant 0 : index
    %c0_172 = arith.constant 0 : index
    %408 = vector.load %arg9[%407, %c0_171, %c0_172] : memref<8x8x128xf32, #tpu.memory_space<vmem>>, vector<1x8x128xf32>
    %409 = vector.shape_cast %408 : vector<1x8x128xf32> to vector<8x128xf32>
    %410 = vector.shape_cast %406 : vector<8x128xf32> to vector<1x8x128xf32>
    tpu.vector_store %arg9[%407, %c0_171, %c0_172], %410 {strides = array<i32>} : memref<8x8x128xf32, #tpu.memory_space<vmem>>, vector<1x8x128xf32>,
    %c5_i32 = arith.constant 5 : i32
    %c0_173 = arith.constant 0 : index
    %c0_174 = arith.constant 0 : index
    %411 = vector.load %arg6[%c0_173, %c0_174] : memref<128x512xf32, #tpu.memory_space<vmem>>, vector<128x512xf32>
    %cst_175 = arith.constant dense<0.000000e+00> : vector<8x512xf32>
    %412 = tpu.matmul %406, %411, %cst_175 {dimension_numbers = #tpu.dot_dimension_numbers<[1], [0], [0], [1], [0, 0, 1, 1], [], []>} : vector<8x128xf32>, vector<128x512xf32>, vector<8x512xf32> -> vector<8x512xf32>
    %c8_i32_176 = arith.constant 8 : i32
    %413 = arith.muli %c5_i32, %c8_i32_176 : i32
    %414 = arith.index_cast %413 : i32 to index
    %c0_177 = arith.constant 0 : index
    %415 = vector.load %arg10[%414, %c0_177] : memref<64x512xf32, #tpu.memory_space<vmem>>, vector<8x512xf32>
    %c0_178 = arith.constant 0 : index
    %c0_179 = arith.constant 0 : index
    %416 = vector.load %arg4[%c0_178, %c0_179] : memref<128x512xf32, #tpu.memory_space<vmem>>, vector<128x512xf32>
    %cst_180 = arith.constant dense<0.000000e+00> : vector<8x512xf32>
    %417 = tpu.matmul %370, %416, %cst_180 {dimension_numbers = #tpu.dot_dimension_numbers<[1], [0], [0], [1], [0, 0, 1, 1], [], []>} : vector<8x128xf32>, vector<128x512xf32>, vector<8x512xf32> -> vector<8x512xf32>
    %418 = arith.addf %415, %417 : vector<8x512xf32>
    %419 = vector.extract_strided_slice %418 {offsets = [0, 0], sizes = [8, 128], strides = [1, 1]} : vector<8x512xf32> to vector<8x128xf32>
    %cst_181 = arith.constant 5.000000e-01 : f32
    %420 = vector.broadcast %cst_181 : f32 to vector<8x128xf32>
    %421 = arith.mulf %420, %419 : vector<8x128xf32>
    %422 = math.tanh %421 : vector<8x128xf32>
    %cst_182 = arith.constant 5.000000e-01 : f32
    %423 = vector.broadcast %cst_182 : f32 to vector<8x128xf32>
    %424 = arith.mulf %423, %422 : vector<8x128xf32>
    %cst_183 = arith.constant 5.000000e-01 : f32
    %425 = vector.broadcast %cst_183 : f32 to vector<8x128xf32>
    %426 = arith.addf %424, %425 : vector<8x128xf32>
    %427 = vector.extract_strided_slice %418 {offsets = [0, 128], sizes = [8, 128], strides = [1, 1]} : vector<8x512xf32> to vector<8x128xf32>
    %cst_184 = arith.constant 5.000000e-01 : f32
    %428 = vector.broadcast %cst_184 : f32 to vector<8x128xf32>
    %429 = arith.mulf %428, %427 : vector<8x128xf32>
    %430 = math.tanh %429 : vector<8x128xf32>
    %cst_185 = arith.constant 5.000000e-01 : f32
    %431 = vector.broadcast %cst_185 : f32 to vector<8x128xf32>
    %432 = arith.mulf %431, %430 : vector<8x128xf32>
    %cst_186 = arith.constant 5.000000e-01 : f32
    %433 = vector.broadcast %cst_186 : f32 to vector<8x128xf32>
    %434 = arith.addf %432, %433 : vector<8x128xf32>
    %435 = vector.extract_strided_slice %418 {offsets = [0, 256], sizes = [8, 128], strides = [1, 1]} : vector<8x512xf32> to vector<8x128xf32>
    %436 = math.tanh %435 : vector<8x128xf32>
    %437 = vector.extract_strided_slice %418 {offsets = [0, 384], sizes = [8, 128], strides = [1, 1]} : vector<8x512xf32> to vector<8x128xf32>
    %cst_187 = arith.constant 5.000000e-01 : f32
    %438 = vector.broadcast %cst_187 : f32 to vector<8x128xf32>
    %439 = arith.mulf %438, %437 : vector<8x128xf32>
    %440 = math.tanh %439 : vector<8x128xf32>
    %cst_188 = arith.constant 5.000000e-01 : f32
    %441 = vector.broadcast %cst_188 : f32 to vector<8x128xf32>
    %442 = arith.mulf %441, %440 : vector<8x128xf32>
    %cst_189 = arith.constant 5.000000e-01 : f32
    %443 = vector.broadcast %cst_189 : f32 to vector<8x128xf32>
    %444 = arith.addf %442, %443 : vector<8x128xf32>
    %445 = arith.mulf %434, %368 : vector<8x128xf32>
    %446 = arith.mulf %426, %436 : vector<8x128xf32>
    %447 = arith.addf %445, %446 : vector<8x128xf32>
    %448 = math.tanh %447 : vector<8x128xf32>
    %449 = arith.mulf %444, %448 : vector<8x128xf32>
    %450 = vector.broadcast %11 : vector<1x512xf32> to vector<8x512xf32>
    %451 = arith.addf %412, %450 : vector<8x512xf32>
    %c0_190 = arith.constant 0 : index
    %c0_191 = arith.constant 0 : index
    %452 = vector.load %arg5[%c0_190, %c0_191] : memref<128x512xf32, #tpu.memory_space<vmem>>, vector<128x512xf32>
    %cst_192 = arith.constant dense<0.000000e+00> : vector<8x512xf32>
    %453 = tpu.matmul %449, %452, %cst_192 {dimension_numbers = #tpu.dot_dimension_numbers<[1], [0], [0], [1], [0, 0, 1, 1], [], []>} : vector<8x128xf32>, vector<128x512xf32>, vector<8x512xf32> -> vector<8x512xf32>
    %454 = arith.addf %451, %453 : vector<8x512xf32>
    %455 = vector.extract_strided_slice %454 {offsets = [0, 0], sizes = [8, 128], strides = [1, 1]} : vector<8x512xf32> to vector<8x128xf32>
    %cst_193 = arith.constant 5.000000e-01 : f32
    %456 = vector.broadcast %cst_193 : f32 to vector<8x128xf32>
    %457 = arith.mulf %456, %455 : vector<8x128xf32>
    %458 = math.tanh %457 : vector<8x128xf32>
    %cst_194 = arith.constant 5.000000e-01 : f32
    %459 = vector.broadcast %cst_194 : f32 to vector<8x128xf32>
    %460 = arith.mulf %459, %458 : vector<8x128xf32>
    %cst_195 = arith.constant 5.000000e-01 : f32
    %461 = vector.broadcast %cst_195 : f32 to vector<8x128xf32>
    %462 = arith.addf %460, %461 : vector<8x128xf32>
    %463 = vector.extract_strided_slice %454 {offsets = [0, 128], sizes = [8, 128], strides = [1, 1]} : vector<8x512xf32> to vector<8x128xf32>
    %cst_196 = arith.constant 5.000000e-01 : f32
    %464 = vector.broadcast %cst_196 : f32 to vector<8x128xf32>
    %465 = arith.mulf %464, %463 : vector<8x128xf32>
    %466 = math.tanh %465 : vector<8x128xf32>
    %cst_197 = arith.constant 5.000000e-01 : f32
    %467 = vector.broadcast %cst_197 : f32 to vector<8x128xf32>
    %468 = arith.mulf %467, %466 : vector<8x128xf32>
    %cst_198 = arith.constant 5.000000e-01 : f32
    %469 = vector.broadcast %cst_198 : f32 to vector<8x128xf32>
    %470 = arith.addf %468, %469 : vector<8x128xf32>
    %471 = vector.extract_strided_slice %454 {offsets = [0, 256], sizes = [8, 128], strides = [1, 1]} : vector<8x512xf32> to vector<8x128xf32>
    %472 = math.tanh %471 : vector<8x128xf32>
    %473 = vector.extract_strided_slice %454 {offsets = [0, 384], sizes = [8, 128], strides = [1, 1]} : vector<8x512xf32> to vector<8x128xf32>
    %cst_199 = arith.constant 5.000000e-01 : f32
    %474 = vector.broadcast %cst_199 : f32 to vector<8x128xf32>
    %475 = arith.mulf %474, %473 : vector<8x128xf32>
    %476 = math.tanh %475 : vector<8x128xf32>
    %cst_200 = arith.constant 5.000000e-01 : f32
    %477 = vector.broadcast %cst_200 : f32 to vector<8x128xf32>
    %478 = arith.mulf %477, %476 : vector<8x128xf32>
    %cst_201 = arith.constant 5.000000e-01 : f32
    %479 = vector.broadcast %cst_201 : f32 to vector<8x128xf32>
    %480 = arith.addf %478, %479 : vector<8x128xf32>
    %481 = arith.mulf %470, %404 : vector<8x128xf32>
    %482 = arith.mulf %462, %472 : vector<8x128xf32>
    %483 = arith.addf %481, %482 : vector<8x128xf32>
    %484 = math.tanh %483 : vector<8x128xf32>
    %485 = arith.mulf %480, %484 : vector<8x128xf32>
    %486 = arith.index_cast %c5_i32 : i32 to index
    %c0_202 = arith.constant 0 : index
    %c0_203 = arith.constant 0 : index
    %487 = vector.load %arg9[%486, %c0_202, %c0_203] : memref<8x8x128xf32, #tpu.memory_space<vmem>>, vector<1x8x128xf32>
    %488 = vector.shape_cast %487 : vector<1x8x128xf32> to vector<8x128xf32>
    %489 = vector.shape_cast %485 : vector<8x128xf32> to vector<1x8x128xf32>
    tpu.vector_store %arg9[%486, %c0_202, %c0_203], %489 {strides = array<i32>} : memref<8x8x128xf32, #tpu.memory_space<vmem>>, vector<1x8x128xf32>,
    %c6_i32 = arith.constant 6 : i32
    %c0_204 = arith.constant 0 : index
    %c0_205 = arith.constant 0 : index
    %490 = vector.load %arg6[%c0_204, %c0_205] : memref<128x512xf32, #tpu.memory_space<vmem>>, vector<128x512xf32>
    %cst_206 = arith.constant dense<0.000000e+00> : vector<8x512xf32>
    %491 = tpu.matmul %485, %490, %cst_206 {dimension_numbers = #tpu.dot_dimension_numbers<[1], [0], [0], [1], [0, 0, 1, 1], [], []>} : vector<8x128xf32>, vector<128x512xf32>, vector<8x512xf32> -> vector<8x512xf32>
    %c8_i32_207 = arith.constant 8 : i32
    %492 = arith.muli %c6_i32, %c8_i32_207 : i32
    %493 = arith.index_cast %492 : i32 to index
    %c0_208 = arith.constant 0 : index
    %494 = vector.load %arg10[%493, %c0_208] : memref<64x512xf32, #tpu.memory_space<vmem>>, vector<8x512xf32>
    %c0_209 = arith.constant 0 : index
    %c0_210 = arith.constant 0 : index
    %495 = vector.load %arg4[%c0_209, %c0_210] : memref<128x512xf32, #tpu.memory_space<vmem>>, vector<128x512xf32>
    %cst_211 = arith.constant dense<0.000000e+00> : vector<8x512xf32>
    %496 = tpu.matmul %449, %495, %cst_211 {dimension_numbers = #tpu.dot_dimension_numbers<[1], [0], [0], [1], [0, 0, 1, 1], [], []>} : vector<8x128xf32>, vector<128x512xf32>, vector<8x512xf32> -> vector<8x512xf32>
    %497 = arith.addf %494, %496 : vector<8x512xf32>
    %498 = vector.extract_strided_slice %497 {offsets = [0, 0], sizes = [8, 128], strides = [1, 1]} : vector<8x512xf32> to vector<8x128xf32>
    %cst_212 = arith.constant 5.000000e-01 : f32
    %499 = vector.broadcast %cst_212 : f32 to vector<8x128xf32>
    %500 = arith.mulf %499, %498 : vector<8x128xf32>
    %501 = math.tanh %500 : vector<8x128xf32>
    %cst_213 = arith.constant 5.000000e-01 : f32
    %502 = vector.broadcast %cst_213 : f32 to vector<8x128xf32>
    %503 = arith.mulf %502, %501 : vector<8x128xf32>
    %cst_214 = arith.constant 5.000000e-01 : f32
    %504 = vector.broadcast %cst_214 : f32 to vector<8x128xf32>
    %505 = arith.addf %503, %504 : vector<8x128xf32>
    %506 = vector.extract_strided_slice %497 {offsets = [0, 128], sizes = [8, 128], strides = [1, 1]} : vector<8x512xf32> to vector<8x128xf32>
    %cst_215 = arith.constant 5.000000e-01 : f32
    %507 = vector.broadcast %cst_215 : f32 to vector<8x128xf32>
    %508 = arith.mulf %507, %506 : vector<8x128xf32>
    %509 = math.tanh %508 : vector<8x128xf32>
    %cst_216 = arith.constant 5.000000e-01 : f32
    %510 = vector.broadcast %cst_216 : f32 to vector<8x128xf32>
    %511 = arith.mulf %510, %509 : vector<8x128xf32>
    %cst_217 = arith.constant 5.000000e-01 : f32
    %512 = vector.broadcast %cst_217 : f32 to vector<8x128xf32>
    %513 = arith.addf %511, %512 : vector<8x128xf32>
    %514 = vector.extract_strided_slice %497 {offsets = [0, 256], sizes = [8, 128], strides = [1, 1]} : vector<8x512xf32> to vector<8x128xf32>
    %515 = math.tanh %514 : vector<8x128xf32>
    %516 = vector.extract_strided_slice %497 {offsets = [0, 384], sizes = [8, 128], strides = [1, 1]} : vector<8x512xf32> to vector<8x128xf32>
    %cst_218 = arith.constant 5.000000e-01 : f32
    %517 = vector.broadcast %cst_218 : f32 to vector<8x128xf32>
    %518 = arith.mulf %517, %516 : vector<8x128xf32>
    %519 = math.tanh %518 : vector<8x128xf32>
    %cst_219 = arith.constant 5.000000e-01 : f32
    %520 = vector.broadcast %cst_219 : f32 to vector<8x128xf32>
    %521 = arith.mulf %520, %519 : vector<8x128xf32>
    %cst_220 = arith.constant 5.000000e-01 : f32
    %522 = vector.broadcast %cst_220 : f32 to vector<8x128xf32>
    %523 = arith.addf %521, %522 : vector<8x128xf32>
    %524 = arith.mulf %513, %447 : vector<8x128xf32>
    %525 = arith.mulf %505, %515 : vector<8x128xf32>
    %526 = arith.addf %524, %525 : vector<8x128xf32>
    %527 = math.tanh %526 : vector<8x128xf32>
    %528 = arith.mulf %523, %527 : vector<8x128xf32>
    %529 = vector.broadcast %11 : vector<1x512xf32> to vector<8x512xf32>
    %530 = arith.addf %491, %529 : vector<8x512xf32>
    %c0_221 = arith.constant 0 : index
    %c0_222 = arith.constant 0 : index
    %531 = vector.load %arg5[%c0_221, %c0_222] : memref<128x512xf32, #tpu.memory_space<vmem>>, vector<128x512xf32>
    %cst_223 = arith.constant dense<0.000000e+00> : vector<8x512xf32>
    %532 = tpu.matmul %528, %531, %cst_223 {dimension_numbers = #tpu.dot_dimension_numbers<[1], [0], [0], [1], [0, 0, 1, 1], [], []>} : vector<8x128xf32>, vector<128x512xf32>, vector<8x512xf32> -> vector<8x512xf32>
    %533 = arith.addf %530, %532 : vector<8x512xf32>
    %534 = vector.extract_strided_slice %533 {offsets = [0, 0], sizes = [8, 128], strides = [1, 1]} : vector<8x512xf32> to vector<8x128xf32>
    %cst_224 = arith.constant 5.000000e-01 : f32
    %535 = vector.broadcast %cst_224 : f32 to vector<8x128xf32>
    %536 = arith.mulf %535, %534 : vector<8x128xf32>
    %537 = math.tanh %536 : vector<8x128xf32>
    %cst_225 = arith.constant 5.000000e-01 : f32
    %538 = vector.broadcast %cst_225 : f32 to vector<8x128xf32>
    %539 = arith.mulf %538, %537 : vector<8x128xf32>
    %cst_226 = arith.constant 5.000000e-01 : f32
    %540 = vector.broadcast %cst_226 : f32 to vector<8x128xf32>
    %541 = arith.addf %539, %540 : vector<8x128xf32>
    %542 = vector.extract_strided_slice %533 {offsets = [0, 128], sizes = [8, 128], strides = [1, 1]} : vector<8x512xf32> to vector<8x128xf32>
    %cst_227 = arith.constant 5.000000e-01 : f32
    %543 = vector.broadcast %cst_227 : f32 to vector<8x128xf32>
    %544 = arith.mulf %543, %542 : vector<8x128xf32>
    %545 = math.tanh %544 : vector<8x128xf32>
    %cst_228 = arith.constant 5.000000e-01 : f32
    %546 = vector.broadcast %cst_228 : f32 to vector<8x128xf32>
    %547 = arith.mulf %546, %545 : vector<8x128xf32>
    %cst_229 = arith.constant 5.000000e-01 : f32
    %548 = vector.broadcast %cst_229 : f32 to vector<8x128xf32>
    %549 = arith.addf %547, %548 : vector<8x128xf32>
    %550 = vector.extract_strided_slice %533 {offsets = [0, 256], sizes = [8, 128], strides = [1, 1]} : vector<8x512xf32> to vector<8x128xf32>
    %551 = math.tanh %550 : vector<8x128xf32>
    %552 = vector.extract_strided_slice %533 {offsets = [0, 384], sizes = [8, 128], strides = [1, 1]} : vector<8x512xf32> to vector<8x128xf32>
    %cst_230 = arith.constant 5.000000e-01 : f32
    %553 = vector.broadcast %cst_230 : f32 to vector<8x128xf32>
    %554 = arith.mulf %553, %552 : vector<8x128xf32>
    %555 = math.tanh %554 : vector<8x128xf32>
    %cst_231 = arith.constant 5.000000e-01 : f32
    %556 = vector.broadcast %cst_231 : f32 to vector<8x128xf32>
    %557 = arith.mulf %556, %555 : vector<8x128xf32>
    %cst_232 = arith.constant 5.000000e-01 : f32
    %558 = vector.broadcast %cst_232 : f32 to vector<8x128xf32>
    %559 = arith.addf %557, %558 : vector<8x128xf32>
    %560 = arith.mulf %549, %483 : vector<8x128xf32>
    %561 = arith.mulf %541, %551 : vector<8x128xf32>
    %562 = arith.addf %560, %561 : vector<8x128xf32>
    %563 = math.tanh %562 : vector<8x128xf32>
    %564 = arith.mulf %559, %563 : vector<8x128xf32>
    %565 = arith.index_cast %c6_i32 : i32 to index
    %c0_233 = arith.constant 0 : index
    %c0_234 = arith.constant 0 : index
    %566 = vector.load %arg9[%565, %c0_233, %c0_234] : memref<8x8x128xf32, #tpu.memory_space<vmem>>, vector<1x8x128xf32>
    %567 = vector.shape_cast %566 : vector<1x8x128xf32> to vector<8x128xf32>
    %568 = vector.shape_cast %564 : vector<8x128xf32> to vector<1x8x128xf32>
    tpu.vector_store %arg9[%565, %c0_233, %c0_234], %568 {strides = array<i32>} : memref<8x8x128xf32, #tpu.memory_space<vmem>>, vector<1x8x128xf32>,
    %c7_i32 = arith.constant 7 : i32
    %c0_235 = arith.constant 0 : index
    %c0_236 = arith.constant 0 : index
    %569 = vector.load %arg6[%c0_235, %c0_236] : memref<128x512xf32, #tpu.memory_space<vmem>>, vector<128x512xf32>
    %cst_237 = arith.constant dense<0.000000e+00> : vector<8x512xf32>
    %570 = tpu.matmul %564, %569, %cst_237 {dimension_numbers = #tpu.dot_dimension_numbers<[1], [0], [0], [1], [0, 0, 1, 1], [], []>} : vector<8x128xf32>, vector<128x512xf32>, vector<8x512xf32> -> vector<8x512xf32>
    %c8_i32_238 = arith.constant 8 : i32
    %571 = arith.muli %c7_i32, %c8_i32_238 : i32
    %572 = arith.index_cast %571 : i32 to index
    %c0_239 = arith.constant 0 : index
    %573 = vector.load %arg10[%572, %c0_239] : memref<64x512xf32, #tpu.memory_space<vmem>>, vector<8x512xf32>
    %c0_240 = arith.constant 0 : index
    %c0_241 = arith.constant 0 : index
    %574 = vector.load %arg4[%c0_240, %c0_241] : memref<128x512xf32, #tpu.memory_space<vmem>>, vector<128x512xf32>
    %cst_242 = arith.constant dense<0.000000e+00> : vector<8x512xf32>
    %575 = tpu.matmul %528, %574, %cst_242 {dimension_numbers = #tpu.dot_dimension_numbers<[1], [0], [0], [1], [0, 0, 1, 1], [], []>} : vector<8x128xf32>, vector<128x512xf32>, vector<8x512xf32> -> vector<8x512xf32>
    %576 = arith.addf %573, %575 : vector<8x512xf32>
    %577 = vector.extract_strided_slice %576 {offsets = [0, 0], sizes = [8, 128], strides = [1, 1]} : vector<8x512xf32> to vector<8x128xf32>
    %cst_243 = arith.constant 5.000000e-01 : f32
    %578 = vector.broadcast %cst_243 : f32 to vector<8x128xf32>
    %579 = arith.mulf %578, %577 : vector<8x128xf32>
    %580 = math.tanh %579 : vector<8x128xf32>
    %cst_244 = arith.constant 5.000000e-01 : f32
    %581 = vector.broadcast %cst_244 : f32 to vector<8x128xf32>
    %582 = arith.mulf %581, %580 : vector<8x128xf32>
    %cst_245 = arith.constant 5.000000e-01 : f32
    %583 = vector.broadcast %cst_245 : f32 to vector<8x128xf32>
    %584 = arith.addf %582, %583 : vector<8x128xf32>
    %585 = vector.extract_strided_slice %576 {offsets = [0, 128], sizes = [8, 128], strides = [1, 1]} : vector<8x512xf32> to vector<8x128xf32>
    %cst_246 = arith.constant 5.000000e-01 : f32
    %586 = vector.broadcast %cst_246 : f32 to vector<8x128xf32>
    %587 = arith.mulf %586, %585 : vector<8x128xf32>
    %588 = math.tanh %587 : vector<8x128xf32>
    %cst_247 = arith.constant 5.000000e-01 : f32
    %589 = vector.broadcast %cst_247 : f32 to vector<8x128xf32>
    %590 = arith.mulf %589, %588 : vector<8x128xf32>
    %cst_248 = arith.constant 5.000000e-01 : f32
    %591 = vector.broadcast %cst_248 : f32 to vector<8x128xf32>
    %592 = arith.addf %590, %591 : vector<8x128xf32>
    %593 = vector.extract_strided_slice %576 {offsets = [0, 256], sizes = [8, 128], strides = [1, 1]} : vector<8x512xf32> to vector<8x128xf32>
    %594 = math.tanh %593 : vector<8x128xf32>
    %595 = vector.extract_strided_slice %576 {offsets = [0, 384], sizes = [8, 128], strides = [1, 1]} : vector<8x512xf32> to vector<8x128xf32>
    %cst_249 = arith.constant 5.000000e-01 : f32
    %596 = vector.broadcast %cst_249 : f32 to vector<8x128xf32>
    %597 = arith.mulf %596, %595 : vector<8x128xf32>
    %598 = math.tanh %597 : vector<8x128xf32>
    %cst_250 = arith.constant 5.000000e-01 : f32
    %599 = vector.broadcast %cst_250 : f32 to vector<8x128xf32>
    %600 = arith.mulf %599, %598 : vector<8x128xf32>
    %cst_251 = arith.constant 5.000000e-01 : f32
    %601 = vector.broadcast %cst_251 : f32 to vector<8x128xf32>
    %602 = arith.addf %600, %601 : vector<8x128xf32>
    %603 = arith.mulf %592, %526 : vector<8x128xf32>
    %604 = arith.mulf %584, %594 : vector<8x128xf32>
    %605 = arith.addf %603, %604 : vector<8x128xf32>
    %606 = math.tanh %605 : vector<8x128xf32>
    %607 = arith.mulf %602, %606 : vector<8x128xf32>
    %608 = vector.broadcast %11 : vector<1x512xf32> to vector<8x512xf32>
    %609 = arith.addf %570, %608 : vector<8x512xf32>
    %c0_252 = arith.constant 0 : index
    %c0_253 = arith.constant 0 : index
    %610 = vector.load %arg5[%c0_252, %c0_253] : memref<128x512xf32, #tpu.memory_space<vmem>>, vector<128x512xf32>
    %cst_254 = arith.constant dense<0.000000e+00> : vector<8x512xf32>
    %611 = tpu.matmul %607, %610, %cst_254 {dimension_numbers = #tpu.dot_dimension_numbers<[1], [0], [0], [1], [0, 0, 1, 1], [], []>} : vector<8x128xf32>, vector<128x512xf32>, vector<8x512xf32> -> vector<8x512xf32>
    %612 = arith.addf %609, %611 : vector<8x512xf32>
    %613 = vector.extract_strided_slice %612 {offsets = [0, 0], sizes = [8, 128], strides = [1, 1]} : vector<8x512xf32> to vector<8x128xf32>
    %cst_255 = arith.constant 5.000000e-01 : f32
    %614 = vector.broadcast %cst_255 : f32 to vector<8x128xf32>
    %615 = arith.mulf %614, %613 : vector<8x128xf32>
    %616 = math.tanh %615 : vector<8x128xf32>
    %cst_256 = arith.constant 5.000000e-01 : f32
    %617 = vector.broadcast %cst_256 : f32 to vector<8x128xf32>
    %618 = arith.mulf %617, %616 : vector<8x128xf32>
    %cst_257 = arith.constant 5.000000e-01 : f32
    %619 = vector.broadcast %cst_257 : f32 to vector<8x128xf32>
    %620 = arith.addf %618, %619 : vector<8x128xf32>
    %621 = vector.extract_strided_slice %612 {offsets = [0, 128], sizes = [8, 128], strides = [1, 1]} : vector<8x512xf32> to vector<8x128xf32>
    %cst_258 = arith.constant 5.000000e-01 : f32
    %622 = vector.broadcast %cst_258 : f32 to vector<8x128xf32>
    %623 = arith.mulf %622, %621 : vector<8x128xf32>
    %624 = math.tanh %623 : vector<8x128xf32>
    %cst_259 = arith.constant 5.000000e-01 : f32
    %625 = vector.broadcast %cst_259 : f32 to vector<8x128xf32>
    %626 = arith.mulf %625, %624 : vector<8x128xf32>
    %cst_260 = arith.constant 5.000000e-01 : f32
    %627 = vector.broadcast %cst_260 : f32 to vector<8x128xf32>
    %628 = arith.addf %626, %627 : vector<8x128xf32>
    %629 = vector.extract_strided_slice %612 {offsets = [0, 256], sizes = [8, 128], strides = [1, 1]} : vector<8x512xf32> to vector<8x128xf32>
    %630 = math.tanh %629 : vector<8x128xf32>
    %631 = vector.extract_strided_slice %612 {offsets = [0, 384], sizes = [8, 128], strides = [1, 1]} : vector<8x512xf32> to vector<8x128xf32>
    %cst_261 = arith.constant 5.000000e-01 : f32
    %632 = vector.broadcast %cst_261 : f32 to vector<8x128xf32>
    %633 = arith.mulf %632, %631 : vector<8x128xf32>
    %634 = math.tanh %633 : vector<8x128xf32>
    %cst_262 = arith.constant 5.000000e-01 : f32
    %635 = vector.broadcast %cst_262 : f32 to vector<8x128xf32>
    %636 = arith.mulf %635, %634 : vector<8x128xf32>
    %cst_263 = arith.constant 5.000000e-01 : f32
    %637 = vector.broadcast %cst_263 : f32 to vector<8x128xf32>
    %638 = arith.addf %636, %637 : vector<8x128xf32>
    %639 = arith.mulf %628, %562 : vector<8x128xf32>
    %640 = arith.mulf %620, %630 : vector<8x128xf32>
    %641 = arith.addf %639, %640 : vector<8x128xf32>
    %642 = math.tanh %641 : vector<8x128xf32>
    %643 = arith.mulf %638, %642 : vector<8x128xf32>
    %644 = arith.index_cast %c7_i32 : i32 to index
    %c0_264 = arith.constant 0 : index
    %c0_265 = arith.constant 0 : index
    %645 = vector.load %arg9[%644, %c0_264, %c0_265] : memref<8x8x128xf32, #tpu.memory_space<vmem>>, vector<1x8x128xf32>
    %646 = vector.shape_cast %645 : vector<1x8x128xf32> to vector<8x128xf32>
    %647 = vector.shape_cast %643 : vector<8x128xf32> to vector<1x8x128xf32>
    tpu.vector_store %arg9[%644, %c0_264, %c0_265], %647 {strides = array<i32>} : memref<8x8x128xf32, #tpu.memory_space<vmem>>, vector<1x8x128xf32>,
    %c8_i32_266 = arith.constant 8 : i32
    %c0_267 = arith.constant 0 : index
    %c0_268 = arith.constant 0 : index
    %648 = vector.load %arg11[%c0_267, %c0_268] : memref<8x256xf32, #tpu.memory_space<vmem>>, vector<8x128xf32>
    tpu.vector_store %arg11[%c0_267, %c0_268], %607 {strides = array<i32>} : memref<8x256xf32, #tpu.memory_space<vmem>>, vector<8x128xf32>,
    %c0_269 = arith.constant 0 : index
    %c128_270 = arith.constant 128 : index
    %649 = vector.load %arg11[%c0_269, %c128_270] : memref<8x256xf32, #tpu.memory_space<vmem>>, vector<8x128xf32>
    tpu.vector_store %arg11[%c0_269, %c128_270], %643 {strides = array<i32>} : memref<8x256xf32, #tpu.memory_space<vmem>>, vector<8x128xf32>,
    %c0_271 = arith.constant 0 : index
    %c0_272 = arith.constant 0 : index
    %650 = vector.load %arg12[%c0_271, %c0_272] : memref<8x256xf32, #tpu.memory_space<vmem>>, vector<8x128xf32>
    tpu.vector_store %arg12[%c0_271, %c0_272], %605 {strides = array<i32>} : memref<8x256xf32, #tpu.memory_space<vmem>>, vector<8x128xf32>,
    %c0_273 = arith.constant 0 : index
    %c128_274 = arith.constant 128 : index
    %651 = vector.load %arg12[%c0_273, %c128_274] : memref<8x256xf32, #tpu.memory_space<vmem>>, vector<8x128xf32>
    tpu.vector_store %arg12[%c0_273, %c128_274], %641 {strides = array<i32>} : memref<8x256xf32, #tpu.memory_space<vmem>>, vector<8x128xf32>,
    return
  }
  func.func @transform_0(%arg0: i32, %arg1: i32) -> (i32, i32, i32) {
    %c0_i32 = arith.constant 0 : i32
    %c0_i32_0 = arith.constant 0 : i32
    return %arg1, %arg0, %c0_i32 : i32, i32, i32
  }
  func.func @transform_1(%arg0: i32, %arg1: i32) -> (i32, i32) {
    %c0_i32 = arith.constant 0 : i32
    %c0_i32_0 = arith.constant 0 : i32
    %c0_i32_1 = arith.constant 0 : i32
    return %c0_i32, %c0_i32_0 : i32, i32
  }
  func.func @transform_2(%arg0: i32, %arg1: i32) -> (i32, i32) {
    %c0_i32 = arith.constant 0 : i32
    %c0_i32_0 = arith.constant 0 : i32
    %c0_i32_1 = arith.constant 0 : i32
    return %c0_i32, %c0_i32_0 : i32, i32
  }
  func.func @transform_3(%arg0: i32, %arg1: i32) -> (i32, i32) {
    %c0_i32 = arith.constant 0 : i32
    %c0_i32_0 = arith.constant 0 : i32
    %c0_i32_1 = arith.constant 0 : i32
    return %c0_i32, %c0_i32_0 : i32, i32
  }
  func.func @transform_4(%arg0: i32, %arg1: i32) -> (i32, i32) {
    %c0_i32 = arith.constant 0 : i32
    %c0_i32_0 = arith.constant 0 : i32
    %c0_i32_1 = arith.constant 0 : i32
    return %c0_i32, %c0_i32_0 : i32, i32
  }
  func.func @transform_5(%arg0: i32, %arg1: i32) -> (i32, i32) {
    %c0_i32 = arith.constant 0 : i32
    %c0_i32_0 = arith.constant 0 : i32
    %c0_i32_1 = arith.constant 0 : i32
    return %c0_i32, %c0_i32_0 : i32, i32
  }
  func.func @transform_6(%arg0: i32, %arg1: i32) -> (i32, i32) {
    %c0_i32 = arith.constant 0 : i32
    %c0_i32_0 = arith.constant 0 : i32
    %c0_i32_1 = arith.constant 0 : i32
    return %c0_i32, %c0_i32_0 : i32, i32
  }
  func.func @transform_7(%arg0: i32, %arg1: i32) -> (i32, i32, i32) {
    %c0_i32 = arith.constant 0 : i32
    %c0_i32_0 = arith.constant 0 : i32
    return %arg1, %arg0, %c0_i32 : i32, i32, i32
  }
}

</mosaic_0001>

<llo_original>
// kernel: tpu_custom_call.1
$region0: #{tpu_custom_call.1}
  #allocation0 [shape = 'u32[]', space=smem, size = 0x4, offset = 0x4, fixed_abs, tag = 'smem constant byte address 0x4 - core index']
  #allocation1 [shape = 'u32[72,128]{1,0:T(1,128)}', space=vmem, size = 0x9000, scoped, tag = 'internal scratch']
  #allocation2 [shape = 'f32[64,512]{1,0:T(8,128)}', space=vmem, size = 0x20000, scoped, tag = 'scratch operand']
  #allocation3 [shape = 'f32[8,256]{1,0:T(8,128)}', space=vmem, size = 0x2000, scoped, tag = 'scratch operand']
  #allocation4 [shape = 'f32[8,256]{1,0:T(8,128)}', space=vmem, size = 0x2000, scoped, tag = 'scratch operand']
  %s0 = inlined_call_operand.hbm [shape: f32[8,8,128], index: 0, kind: input, shape index: {}]
  %s1 = inlined_call_operand.hbm [shape: f32[128,512], index: 1, kind: input, shape index: {}]
  %s2 = inlined_call_operand.hbm [shape: f32[128,512], index: 2, kind: input, shape index: {}]
  %s3 = inlined_call_operand.hbm [shape: f32[128,512], index: 3, kind: input, shape index: {}]
  %s4 = inlined_call_operand.hbm [shape: f32[128,512], index: 4, kind: input, shape index: {}]
  %s5 = inlined_call_operand.vmem [shape: f32[1,512], index: 5, kind: input, shape index: {}]
  %s6 = inlined_call_operand.hbm [shape: f32[1,512], index: 6, kind: input, shape index: {}]
  %s7 = inlined_call_operand.hbm [shape: f32[8,8,128], index: 7, kind: output, shape index: {}]
  %s8 = sld [smem:[#allocation0]]
  $region66: #{tpu_custom_call.1} parent=0
    _
  %s10 = ssub.s32 1, %s8
  %s11 = scalar_select 0, %s10, %s8
  $region1: #{tpu_custom_call.1} parent=0
    #allocation5 [shape = 'u8[32768]{0}', space=vmem, size = 0x8000, scoped, tag = 'input window, operand 0, single buffered']
    #allocation6 [shape = 's32[1]{0}', space=sflag, size = 0x4, scoped, tag = 'scoped memory for tpu_custom_call.1']
    #allocation7 [shape = 's32[1]{0}', space=sflag, size = 0x4, scoped, tag = 'scoped memory for tpu_custom_call.1']
    #allocation8 [shape = 'u8[262144]{0}', space=vmem, size = 0x40000, scoped, tag = 'input window, operand 1, single buffered']
    #allocation9 [shape = 's32[1]{0}', space=sflag, size = 0x4, scoped, tag = 'scoped memory for tpu_custom_call.1']
    #allocation10 [shape = 'u8[262144]{0}', space=vmem, size = 0x40000, scoped, tag = 'input window, operand 2, single buffered']
    #allocation11 [shape = 'u8[262144]{0}', space=vmem, size = 0x40000, scoped, tag = 'input window, operand 3, single buffered']
    #allocation12 [shape = 's32[1]{0}', space=sflag, size = 0x4, scoped, tag = 'scoped memory for tpu_custom_call.1']
    #allocation13 [shape = 'u8[262144]{0}', space=vmem, size = 0x40000, scoped, tag = 'input window, operand 4, single buffered']
    #allocation14 [shape = 'u8[2048]{0}', space=vmem, size = 0x800, scoped, tag = 'input window, operand 6, single buffered']
    #allocation15 [shape = 's32[1]{0}', space=sflag, size = 0x4, scoped, tag = 'scoped memory for tpu_custom_call.1']
    #allocation16 [shape = 'u8[32768]{0}', space=vmem, size = 0x8000, scoped, tag = 'output window, operand 0, single buffered']
    %12 = vsyncpa [#allocation6], 0
    %13 = vsyncpa [#allocation9], 0
    %14 = vsyncpa [#allocation12], 0
    %15 = vsyncpa [#allocation15], 0
    %16 = vsyncpa [#allocation7], 0
    // Predicated region
    $region2: #{tpu_custom_call.1} parent=1 // pred_check
      _
    $region3: #{tpu_custom_call.1} parent=1 // pred_check_branch
      %18 = sbr.rel (0) target = $region5
    $region4: #{tpu_custom_call.1} parent=1 // pred_region
      %20 = vsyncadd [#allocation6], 0
      %s21 = sshll.u32 %s0, 4
      %s22 = int_to_ptr.hbm [resolvable:$true] %s21
      %s23 = sshll.u32 [#allocation5], 4
      %s24 = int_to_ptr.vmem [resolvable:$true] %s23
      %29 = dma.hbm_to_vmem [thread:$0]  %s22, 1024, %s24, [#allocation6], 128, 128, 8
    $region5: #{tpu_custom_call.1} parent=1 // pred_fallthru
      _
    // Predicated region
    $region6: #{tpu_custom_call.1} parent=1 // pred_check
      _
    $region7: #{tpu_custom_call.1} parent=1 // pred_check_branch
      %31 = sbr.rel (0) target = $region9
    $region8: #{tpu_custom_call.1} parent=1 // pred_region
      %33 = vsyncadd [#allocation9], 0
      %s34 = sshll.u32 %s1, 4
      %s35 = int_to_ptr.hbm [resolvable:$true] %s34
      %s36 = sshll.u32 [#allocation8], 4
      %s37 = int_to_ptr.vmem [resolvable:$true] %s36
      %42 = dma.hbm_to_vmem [thread:$0]  %s35, 8192, %s37, [#allocation9], 512, 512, 32
    $region9: #{tpu_custom_call.1} parent=1 // pred_fallthru
      _
    // Predicated region
    $region10: #{tpu_custom_call.1} parent=1 // pred_check
      _
    $region11: #{tpu_custom_call.1} parent=1 // pred_check_branch
      %44 = sbr.rel (0) target = $region13
    $region12: #{tpu_custom_call.1} parent=1 // pred_region
      %46 = vsyncadd [#allocation9], 0
      %s47 = sshll.u32 %s2, 4
      %s48 = int_to_ptr.hbm [resolvable:$true] %s47
      %s49 = sshll.u32 [#allocation10], 4
      %s50 = int_to_ptr.vmem [resolvable:$true] %s49
      %55 = dma.hbm_to_vmem [thread:$0]  %s48, 8192, %s50, [#allocation9], 512, 512, 32
    $region13: #{tpu_custom_call.1} parent=1 // pred_fallthru
      _
    // Predicated region
    $region14: #{tpu_custom_call.1} parent=1 // pred_check
      _
    $region15: #{tpu_custom_call.1} parent=1 // pred_check_branch
      %57 = sbr.rel (0) target = $region17
    $region16: #{tpu_custom_call.1} parent=1 // pred_region
      %59 = vsyncadd [#allocation12], 0
      %s60 = sshll.u32 %s3, 4
      %s61 = int_to_ptr.hbm [resolvable:$true] %s60
      %s62 = sshll.u32 [#allocation11], 4
      %s63 = int_to_ptr.vmem [resolvable:$true] %s62
      %68 = dma.hbm_to_vmem [thread:$0]  %s61, 8192, %s63, [#allocation12], 512, 512, 32
    $region17: #{tpu_custom_call.1} parent=1 // pred_fallthru
      _
    // Predicated region
    $region18: #{tpu_custom_call.1} parent=1 // pred_check
      _
    $region19: #{tpu_custom_call.1} parent=1 // pred_check_branch
      %70 = sbr.rel (0) target = $region21
    $region20: #{tpu_custom_call.1} parent=1 // pred_region
      %72 = vsyncadd [#allocation12], 0
      %s73 = sshll.u32 %s4, 4
      %s74 = int_to_ptr.hbm [resolvable:$true] %s73
      %s75 = sshll.u32 [#allocation13], 4
      %s76 = int_to_ptr.vmem [resolvable:$true] %s75
      %81 = dma.hbm_to_vmem [thread:$0]  %s74, 8192, %s76, [#allocation12], 512, 512, 32
    $region21: #{tpu_custom_call.1} parent=1 // pred_fallthru
      _
    // Predicated region
    $region22: #{tpu_custom_call.1} parent=1 // pred_check
      _
    $region23: #{tpu_custom_call.1} parent=1 // pred_check_branch
      %83 = sbr.rel (0) target = $region25
    $region24: #{tpu_custom_call.1} parent=1 // pred_region
      _
    $region25: #{tpu_custom_call.1} parent=1 // pred_fallthru
      _
    // Predicated region
    $region26: #{tpu_custom_call.1} parent=1 // pred_check
      _
    $region27: #{tpu_custom_call.1} parent=1 // pred_check_branch
      %85 = sbr.rel (0) target = $region29
    $region28: #{tpu_custom_call.1} parent=1 // pred_region
      %87 = vsyncadd [#allocation15], 0
      %s89 = sshll.u32 %s6, 4
      %s90 = int_to_ptr.hbm [resolvable:$true] %s89
      %s91 = sshll.u32 [#allocation14], 4
      %s92 = int_to_ptr.vmem [resolvable:$true] %s91
      %94 = dma.hbm_to_vmem [thread:$0]  %s90, 64, %s92, [#allocation15]
    $region29: #{tpu_custom_call.1} parent=1 // pred_fallthru
      _
    // Predicated region
    $region30: #{tpu_custom_call.1} parent=1 // pred_check
      _
    $region31: #{tpu_custom_call.1} parent=1 // pred_check_branch
      %96 = sbr.rel (0) target = $region33
    $region32: #{tpu_custom_call.1} parent=1 // pred_region
      %98 = dma.done [#allocation6], 1024
    $region33: #{tpu_custom_call.1} parent=1 // pred_fallthru
      _
    // Predicated region
    $region34: #{tpu_custom_call.1} parent=1 // pred_check
      _
    $region35: #{tpu_custom_call.1} parent=1 // pred_check_branch
      %100 = sbr.rel (0) target = $region37
    $region36: #{tpu_custom_call.1} parent=1 // pred_region
      %102 = dma.done [#allocation9], 8192
    $region37: #{tpu_custom_call.1} parent=1 // pred_fallthru
      _
    // Predicated region
    $region38: #{tpu_custom_call.1} parent=1 // pred_check
      _
    $region39: #{tpu_custom_call.1} parent=1 // pred_check_branch
      %104 = sbr.rel (0) target = $region41
    $region40: #{tpu_custom_call.1} parent=1 // pred_region
      %106 = dma.done [#allocation9], 8192
    $region41: #{tpu_custom_call.1} parent=1 // pred_fallthru
      _
    // Predicated region
    $region42: #{tpu_custom_call.1} parent=1 // pred_check
      _
    $region43: #{tpu_custom_call.1} parent=1 // pred_check_branch
      %108 = sbr.rel (0) target = $region45
    $region44: #{tpu_custom_call.1} parent=1 // pred_region
      %110 = dma.done [#allocation12], 8192
    $region45: #{tpu_custom_call.1} parent=1 // pred_fallthru
      _
    // Predicated region
    $region46: #{tpu_custom_call.1} parent=1 // pred_check
      _
    $region47: #{tpu_custom_call.1} parent=1 // pred_check_branch
      %112 = sbr.rel (0) target = $region49
    $region48: #{tpu_custom_call.1} parent=1 // pred_region
      %114 = dma.done [#allocation12], 8192
    $region49: #{tpu_custom_call.1} parent=1 // pred_fallthru
      _
    // Predicated region
    $region50: #{tpu_custom_call.1} parent=1 // pred_check
      _
    $region51: #{tpu_custom_call.1} parent=1 // pred_check_branch
      %116 = sbr.rel (0) target = $region53
    $region52: #{tpu_custom_call.1} parent=1 // pred_region
      %118 = dma.done [#allocation15], 64
    $region53: #{tpu_custom_call.1} parent=1 // pred_fallthru
      _
    %p119 = scmp.eq.s32.totalorder 0, 0
    // Predicated region
    $region54: #{tpu_custom_call.1} parent=1 // pred_check
      %p120 = pneg %p119
    $region55: #{tpu_custom_call.1} parent=1 // pred_check_branch
      %122 = sbr.rel (%p120) target = $region57
    $region56: #{tpu_custom_call.1} parent=1 // pred_region
      %123 = vst [vmem:[#allocation3] sm:$0xff] 0.0
      %124 = vst [vmem:[#allocation3 + $0x8] sm:$0xff] 0.0
      %125 = vst [vmem:[#allocation4] sm:$0xff] 0.0
      %126 = vst [vmem:[#allocation4 + $0x8] sm:$0xff] 0.0
    $region57: #{tpu_custom_call.1} parent=1 // pred_fallthru
      _
    %v127 = vld [vmem:[#allocation5] sm:$0xff]
    %v128 = vld [vmem:[#allocation5 + $0x8] sm:$0xff]
    %v129 = vld [vmem:[#allocation5 + $0x10] sm:$0xff]
    %v130 = vld [vmem:[#allocation5 + $0x18] sm:$0xff]
    %v131 = vld [vmem:[#allocation5 + $0x20] sm:$0xff]
    %v132 = vld [vmem:[#allocation5 + $0x28] sm:$0xff]
    %v133 = vld [vmem:[#allocation5 + $0x30] sm:$0xff]
    %v134 = vld [vmem:[#allocation5 + $0x38] sm:$0xff]
    %v135 = vld [vmem:[#allocation8] sm:$0xff]
    %v136 = vld [vmem:[#allocation8 + $0x8] sm:$0xff]
    %v137 = vld [vmem:[#allocation8 + $0x10] sm:$0xff]
    %v138 = vld [vmem:[#allocation8 + $0x18] sm:$0xff]
    %v139 = vld [vmem:[#allocation8 + $0x20] sm:$0xff]
    %v140 = vld [vmem:[#allocation8 + $0x28] sm:$0xff]
    %v141 = vld [vmem:[#allocation8 + $0x30] sm:$0xff]
    %v142 = vld [vmem:[#allocation8 + $0x38] sm:$0xff]
    %v143 = vld [vmem:[#allocation8 + $0x40] sm:$0xff]
    %v144 = vld [vmem:[#allocation8 + $0x48] sm:$0xff]
    %v145 = vld [vmem:[#allocation8 + $0x50] sm:$0xff]
    %v146 = vld [vmem:[#allocation8 + $0x58] sm:$0xff]
    %v147 = vld [vmem:[#allocation8 + $0x60] sm:$0xff]
    %v148 = vld [vmem:[#allocation8 + $0x68] sm:$0xff]
    %v149 = vld [vmem:[#allocation8 + $0x70] sm:$0xff]
    %v150 = vld [vmem:[#allocation8 + $0x78] sm:$0xff]
    %v151 = vld [vmem:[#allocation8 + $0x80] sm:$0xff]
    %v152 = vld [vmem:[#allocation8 + $0x88] sm:$0xff]
    %v153 = vld [vmem:[#allocation8 + $0x90] sm:$0xff]
    %v154 = vld [vmem:[#allocation8 + $0x98] sm:$0xff]
    %v155 = vld [vmem:[#allocation8 + $0xa0] sm:$0xff]
    %v156 = vld [vmem:[#allocation8 + $0xa8] sm:$0xff]
    %v157 = vld [vmem:[#allocation8 + $0xb0] sm:$0xff]
    %v158 = vld [vmem:[#allocation8 + $0xb8] sm:$0xff]
    %v159 = vld [vmem:[#allocation8 + $0xc0] sm:$0xff]
    %v160 = vld [vmem:[#allocation8 + $0xc8] sm:$0xff]
    %v161 = vld [vmem:[#allocation8 + $0xd0] sm:$0xff]
    %v162 = vld [vmem:[#allocation8 + $0xd8] sm:$0xff]
    %v163 = vld [vmem:[#allocation8 + $0xe0] sm:$0xff]
    %v164 = vld [vmem:[#allocation8 + $0xe8] sm:$0xff]
    %v165 = vld [vmem:[#allocation8 + $0xf0] sm:$0xff]
    %v166 = vld [vmem:[#allocation8 + $0xf8] sm:$0xff]
    %v167 = vld [vmem:[#allocation8 + $0x100] sm:$0xff]
    %v168 = vld [vmem:[#allocation8 + $0x108] sm:$0xff]
    %v169 = vld [vmem:[#allocation8 + $0x110] sm:$0xff]
    %v170 = vld [vmem:[#allocation8 + $0x118] sm:$0xff]
    %v171 = vld [vmem:[#allocation8 + $0x120] sm:$0xff]
    %v172 = vld [vmem:[#allocation8 + $0x128] sm:$0xff]
    %v173 = vld [vmem:[#allocation8 + $0x130] sm:$0xff]
    %v174 = vld [vmem:[#allocation8 + $0x138] sm:$0xff]
    %v175 = vld [vmem:[#allocation8 + $0x140] sm:$0xff]
    %v176 = vld [vmem:[#allocation8 + $0x148] sm:$0xff]
    %v177 = vld [vmem:[#allocation8 + $0x150] sm:$0xff]
    %v178 = vld [vmem:[#allocation8 + $0x158] sm:$0xff]
    %v179 = vld [vmem:[#allocation8 + $0x160] sm:$0xff]
    %v180 = vld [vmem:[#allocation8 + $0x168] sm:$0xff]
    %v181 = vld [vmem:[#allocation8 + $0x170] sm:$0xff]
    %v182 = vld [vmem:[#allocation8 + $0x178] sm:$0xff]
    %v183 = vld [vmem:[#allocation8 + $0x180] sm:$0xff]
    %v184 = vld [vmem:[#allocation8 + $0x188] sm:$0xff]
    %v185 = vld [vmem:[#allocation8 + $0x190] sm:$0xff]
    %v186 = vld [vmem:[#allocation8 + $0x198] sm:$0xff]
    %v187 = vld [vmem:[#allocation8 + $0x1a0] sm:$0xff]
    %v188 = vld [vmem:[#allocation8 + $0x1a8] sm:$0xff]
    %v189 = vld [vmem:[#allocation8 + $0x1b0] sm:$0xff]
    %v190 = vld [vmem:[#allocation8 + $0x1b8] sm:$0xff]
    %v191 = vld [vmem:[#allocation8 + $0x1c0] sm:$0xff]
    %v192 = vld [vmem:[#allocation8 + $0x1c8] sm:$0xff]
    %v193 = vld [vmem:[#allocation8 + $0x1d0] sm:$0xff]
    %v194 = vld [vmem:[#allocation8 + $0x1d8] sm:$0xff]
    %v195 = vld [vmem:[#allocation8 + $0x1e0] sm:$0xff]
    %v196 = vld [vmem:[#allocation8 + $0x1e8] sm:$0xff]
    %v197 = vld [vmem:[#allocation8 + $0x1f0] sm:$0xff]
    %v198 = vld [vmem:[#allocation8 + $0x1f8] sm:$0xff]
    %v199 = vld [vmem:[%s5] sm:$0xf]
    %v201 = vperm.slane %v199, 0
    %v202 = vperm.slane %v199, 1
    %v203 = vperm.slane %v199, 2
    %v204 = vperm.slane %v199, 3
    %209 = vmatpush.msra.mxu0 %v195
    %210 = vmatpush.msra.mxu0 %v191
    %211 = vmatpush.msra.mxu0 %v187
    %212 = vmatpush.msra.mxu0 %v183
    %213 = vmatpush.msra.mxu0 %v179
    %214 = vmatpush.msra.mxu0 %v175
    %215 = vmatpush.msra.mxu0 %v171
    %216 = vmatpush.msra.mxu0 %v167
    %217 = vmatpush.msra.mxu0 %v163
    %218 = vmatpush.msra.mxu0 %v159
    %219 = vmatpush.msra.mxu0 %v155
    %220 = vmatpush.msra.mxu0 %v151
    %221 = vmatpush.msra.mxu0 %v147
    %222 = vmatpush.msra.mxu0 %v143
    %223 = vmatpush.msra.mxu0 %v139
    %224 = vmatpush.msra.mxu0 %v135
    %225 = vmatmul.f32.gmra.mxu0 %v127
    %v226 = vpop.f32.mrf.mxu0
    %v227 = vadd.f32 %v201, %v226
    %228 = vmatmul.f32.gmra.mxu0 %v128
    %v229 = vpop.f32.mrf.mxu0
    %v230 = vadd.f32 %v201, %v229
    %231 = vmatmul.f32.gmra.mxu0 %v129
    %v232 = vpop.f32.mrf.mxu0
    %v233 = vadd.f32 %v201, %v232
    %234 = vmatmul.f32.gmra.mxu0 %v130
    %v235 = vpop.f32.mrf.mxu0
    %v236 = vadd.f32 %v201, %v235
    %237 = vmatmul.f32.gmra.mxu0 %v131
    %v238 = vpop.f32.mrf.mxu0
    %v239 = vadd.f32 %v201, %v238
    %240 = vmatmul.f32.gmra.mxu0 %v132
    %v241 = vpop.f32.mrf.mxu0
    %v242 = vadd.f32 %v201, %v241
    %243 = vmatmul.f32.gmra.mxu0 %v133
    %v244 = vpop.f32.mrf.mxu0
    %v245 = vadd.f32 %v201, %v244
    %246 = vmatmul.f32.gmra.mxu0 %v134
    %v247 = vpop.f32.mrf.mxu0
    %v248 = vadd.f32 %v201, %v247
    %249 = vdwg.mxu0
    %250 = vmatpush.msra.mxu0 %v196
    %251 = vmatpush.msra.mxu0 %v192
    %252 = vmatpush.msra.mxu0 %v188
    %253 = vmatpush.msra.mxu0 %v184
    %254 = vmatpush.msra.mxu0 %v180
    %255 = vmatpush.msra.mxu0 %v176
    %256 = vmatpush.msra.mxu0 %v172
    %257 = vmatpush.msra.mxu0 %v168
    %258 = vmatpush.msra.mxu0 %v164
    %259 = vmatpush.msra.mxu0 %v160
    %260 = vmatpush.msra.mxu0 %v156
    %261 = vmatpush.msra.mxu0 %v152
    %262 = vmatpush.msra.mxu0 %v148
    %263 = vmatpush.msra.mxu0 %v144
    %264 = vmatpush.msra.mxu0 %v140
    %265 = vmatpush.msra.mxu0 %v136
    %266 = vmatmul.f32.gmra.mxu0 %v127
    %v267 = vpop.f32.mrf.mxu0
    %v268 = vadd.f32 %v202, %v267
    %269 = vmatmul.f32.gmra.mxu0 %v128
    %v270 = vpop.f32.mrf.mxu0
    %v271 = vadd.f32 %v202, %v270
    %272 = vmatmul.f32.gmra.mxu0 %v129
    %v273 = vpop.f32.mrf.mxu0
    %v274 = vadd.f32 %v202, %v273
    %275 = vmatmul.f32.gmra.mxu0 %v130
    %v276 = vpop.f32.mrf.mxu0
    %v277 = vadd.f32 %v202, %v276
    %278 = vmatmul.f32.gmra.mxu0 %v131
    %v279 = vpop.f32.mrf.mxu0
    %v280 = vadd.f32 %v202, %v279
    %281 = vmatmul.f32.gmra.mxu0 %v132
    %v282 = vpop.f32.mrf.mxu0
    %v283 = vadd.f32 %v202, %v282
    %284 = vmatmul.f32.gmra.mxu0 %v133
    %v285 = vpop.f32.mrf.mxu0
    %v286 = vadd.f32 %v202, %v285
    %287 = vmatmul.f32.gmra.mxu0 %v134
    %v288 = vpop.f32.mrf.mxu0
    %v289 = vadd.f32 %v202, %v288
    %290 = vdwg.mxu0
    %291 = vmatpush.msra.mxu0 %v197
    %292 = vmatpush.msra.mxu0 %v193
    %293 = vmatpush.msra.mxu0 %v189
    %294 = vmatpush.msra.mxu0 %v185
    %295 = vmatpush.msra.mxu0 %v181
    %296 = vmatpush.msra.mxu0 %v177
    %297 = vmatpush.msra.mxu0 %v173
    %298 = vmatpush.msra.mxu0 %v169
    %299 = vmatpush.msra.mxu0 %v165
    %300 = vmatpush.msra.mxu0 %v161
    %301 = vmatpush.msra.mxu0 %v157
    %302 = vmatpush.msra.mxu0 %v153
    %303 = vmatpush.msra.mxu0 %v149
    %304 = vmatpush.msra.mxu0 %v145
    %305 = vmatpush.msra.mxu0 %v141
    %306 = vmatpush.msra.mxu0 %v137
    %307 = vmatmul.f32.gmra.mxu0 %v127
    %v308 = vpop.f32.mrf.mxu0
    %v309 = vadd.f32 %v203, %v308
    %310 = vmatmul.f32.gmra.mxu0 %v128
    %v311 = vpop.f32.mrf.mxu0
    %v312 = vadd.f32 %v203, %v311
    %313 = vmatmul.f32.gmra.mxu0 %v129
    %v314 = vpop.f32.mrf.mxu0
    %v315 = vadd.f32 %v203, %v314
    %316 = vmatmul.f32.gmra.mxu0 %v130
    %v317 = vpop.f32.mrf.mxu0
    %v318 = vadd.f32 %v203, %v317
    %319 = vmatmul.f32.gmra.mxu0 %v131
    %v320 = vpop.f32.mrf.mxu0
    %v321 = vadd.f32 %v203, %v320
    %322 = vmatmul.f32.gmra.mxu0 %v132
    %v323 = vpop.f32.mrf.mxu0
    %v324 = vadd.f32 %v203, %v323
    %325 = vmatmul.f32.gmra.mxu0 %v133
    %v326 = vpop.f32.mrf.mxu0
    %v327 = vadd.f32 %v203, %v326
    %328 = vmatmul.f32.gmra.mxu0 %v134
    %v329 = vpop.f32.mrf.mxu0
    %v330 = vadd.f32 %v203, %v329
    %331 = vdwg.mxu0
    %332 = vmatpush.msra.mxu0 %v198
    %333 = vmatpush.msra.mxu0 %v194
    %334 = vmatpush.msra.mxu0 %v190
    %335 = vmatpush.msra.mxu0 %v186
    %336 = vmatpush.msra.mxu0 %v182
    %337 = vmatpush.msra.mxu0 %v178
    %338 = vmatpush.msra.mxu0 %v174
    %339 = vmatpush.msra.mxu0 %v170
    %340 = vmatpush.msra.mxu0 %v166
    %341 = vmatpush.msra.mxu0 %v162
    %342 = vmatpush.msra.mxu0 %v158
    %343 = vmatpush.msra.mxu0 %v154
    %344 = vmatpush.msra.mxu0 %v150
    %345 = vmatpush.msra.mxu0 %v146
    %346 = vmatpush.msra.mxu0 %v142
    %347 = vmatpush.msra.mxu0 %v138
    %348 = vmatmul.f32.gmra.mxu0 %v127
    %v349 = vpop.f32.mrf.mxu0
    %v350 = vadd.f32 %v204, %v349
    %351 = vmatmul.f32.gmra.mxu0 %v128
    %v352 = vpop.f32.mrf.mxu0
    %v353 = vadd.f32 %v204, %v352
    %354 = vmatmul.f32.gmra.mxu0 %v129
    %v355 = vpop.f32.mrf.mxu0
    %v356 = vadd.f32 %v204, %v355
    %357 = vmatmul.f32.gmra.mxu0 %v130
    %v358 = vpop.f32.mrf.mxu0
    %v359 = vadd.f32 %v204, %v358
    %360 = vmatmul.f32.gmra.mxu0 %v131
    %v361 = vpop.f32.mrf.mxu0
    %v362 = vadd.f32 %v204, %v361
    %363 = vmatmul.f32.gmra.mxu0 %v132
    %v364 = vpop.f32.mrf.mxu0
    %v365 = vadd.f32 %v204, %v364
    %366 = vmatmul.f32.gmra.mxu0 %v133
    %v367 = vpop.f32.mrf.mxu0
    %v368 = vadd.f32 %v204, %v367
    %369 = vmatmul.f32.gmra.mxu0 %v134
    %v370 = vpop.f32.mrf.mxu0
    %v371 = vadd.f32 %v204, %v370
    %372 = vdwg.mxu0
    %373 = vst [vmem:[#allocation2] sm:$0xff] %v227
    %374 = vst [vmem:[#allocation2 + $0x8] sm:$0xff] %v268
    %375 = vst [vmem:[#allocation2 + $0x10] sm:$0xff] %v309
    %376 = vst [vmem:[#allocation2 + $0x18] sm:$0xff] %v350
    %377 = vst [vmem:[#allocation2 + $0x20] sm:$0xff] %v230
    %378 = vst [vmem:[#allocation2 + $0x28] sm:$0xff] %v271
    %379 = vst [vmem:[#allocation2 + $0x30] sm:$0xff] %v312
    %380 = vst [vmem:[#allocation2 + $0x38] sm:$0xff] %v353
    %381 = vst [vmem:[#allocation2 + $0x40] sm:$0xff] %v233
    %382 = vst [vmem:[#allocation2 + $0x48] sm:$0xff] %v274
    %383 = vst [vmem:[#allocation2 + $0x50] sm:$0xff] %v315
    %384 = vst [vmem:[#allocation2 + $0x58] sm:$0xff] %v356
    %385 = vst [vmem:[#allocation2 + $0x60] sm:$0xff] %v236
    %386 = vst [vmem:[#allocation2 + $0x68] sm:$0xff] %v277
    %387 = vst [vmem:[#allocation2 + $0x70] sm:$0xff] %v318
    %388 = vst [vmem:[#allocation2 + $0x78] sm:$0xff] %v359
    %389 = vst [vmem:[#allocation2 + $0x80] sm:$0xff] %v239
    %390 = vst [vmem:[#allocation2 + $0x88] sm:$0xff] %v280
    %391 = vst [vmem:[#allocation2 + $0x90] sm:$0xff] %v321
    %392 = vst [vmem:[#allocation2 + $0x98] sm:$0xff] %v362
    %393 = vst [vmem:[#allocation2 + $0xa0] sm:$0xff] %v242
    %394 = vst [vmem:[#allocation2 + $0xa8] sm:$0xff] %v283
    %395 = vst [vmem:[#allocation2 + $0xb0] sm:$0xff] %v324
    %396 = vst [vmem:[#allocation2 + $0xb8] sm:$0xff] %v365
    %397 = vst [vmem:[#allocation2 + $0xc0] sm:$0xff] %v245
    %398 = vst [vmem:[#allocation2 + $0xc8] sm:$0xff] %v286
    %399 = vst [vmem:[#allocation2 + $0xd0] sm:$0xff] %v327
    %400 = vst [vmem:[#allocation2 + $0xd8] sm:$0xff] %v368
    %401 = vst [vmem:[#allocation2 + $0xe0] sm:$0xff] %v248
    %402 = vst [vmem:[#allocation2 + $0xe8] sm:$0xff] %v289
    %403 = vst [vmem:[#allocation2 + $0xf0] sm:$0xff] %v330
    %404 = vst [vmem:[#allocation2 + $0xf8] sm:$0xff] %v371
    %v405 = vld [vmem:[#allocation14] sm:$0xf]
    %v406 = vld [vmem:[#allocation3] sm:$0xff]
    %v407 = vld [vmem:[#allocation4] sm:$0xff]
    %v408 = vld [vmem:[#allocation3 + $0x8] sm:$0xff]
    %v409 = vld [vmem:[#allocation4 + $0x8] sm:$0xff]
    %v410 = vld [vmem:[#allocation13] sm:$0xff]
    %v411 = vld [vmem:[#allocation13 + $0x8] sm:$0xff]
    %v412 = vld [vmem:[#allocation13 + $0x10] sm:$0xff]
    %v413 = vld [vmem:[#allocation13 + $0x18] sm:$0xff]
    %v414 = vld [vmem:[#allocation13 + $0x20] sm:$0xff]
    %v415 = vld [vmem:[#allocation13 + $0x28] sm:$0xff]
    %v416 = vld [vmem:[#allocation13 + $0x30] sm:$0xff]
    %v417 = vld [vmem:[#allocation13 + $0x38] sm:$0xff]
    %v418 = vld [vmem:[#allocation13 + $0x40] sm:$0xff]
    %v419 = vld [vmem:[#allocation13 + $0x48] sm:$0xff]
    %v420 = vld [vmem:[#allocation13 + $0x50] sm:$0xff]
    %v421 = vld [vmem:[#allocation13 + $0x58] sm:$0xff]
    %v422 = vld [vmem:[#allocation13 + $0x60] sm:$0xff]
    %v423 = vld [vmem:[#allocation13 + $0x68] sm:$0xff]
    %v424 = vld [vmem:[#allocation13 + $0x70] sm:$0xff]
    %v425 = vld [vmem:[#allocation13 + $0x78] sm:$0xff]
    %v426 = vld [vmem:[#allocation13 + $0x80] sm:$0xff]
    %v427 = vld [vmem:[#allocation13 + $0x88] sm:$0xff]
    %v428 = vld [vmem:[#allocation13 + $0x90] sm:$0xff]
    %v429 = vld [vmem:[#allocation13 + $0x98] sm:$0xff]
    %v430 = vld [vmem:[#allocation13 + $0xa0] sm:$0xff]
    %v431 = vld [vmem:[#allocation13 + $0xa8] sm:$0xff]
    %v432 = vld [vmem:[#allocation13 + $0xb0] sm:$0xff]
    %v433 = vld [vmem:[#allocation13 + $0xb8] sm:$0xff]
    %v434 = vld [vmem:[#allocation13 + $0xc0] sm:$0xff]
    %v435 = vld [vmem:[#allocation13 + $0xc8] sm:$0xff]
    %v436 = vld [vmem:[#allocation13 + $0xd0] sm:$0xff]
    %v437 = vld [vmem:[#allocation13 + $0xd8] sm:$0xff]
    %v438 = vld [vmem:[#allocation13 + $0xe0] sm:$0xff]
    %v439 = vld [vmem:[#allocation13 + $0xe8] sm:$0xff]
    %v440 = vld [vmem:[#allocation13 + $0xf0] sm:$0xff]
    %v441 = vld [vmem:[#allocation13 + $0xf8] sm:$0xff]
    %v442 = vld [vmem:[#allocation13 + $0x100] sm:$0xff]
    %v443 = vld [vmem:[#allocation13 + $0x108] sm:$0xff]
    %v444 = vld [vmem:[#allocation13 + $0x110] sm:$0xff]
    %v445 = vld [vmem:[#allocation13 + $0x118] sm:$0xff]
    %v446 = vld [vmem:[#allocation13 + $0x120] sm:$0xff]
    %v447 = vld [vmem:[#allocation13 + $0x128] sm:$0xff]
    %v448 = vld [vmem:[#allocation13 + $0x130] sm:$0xff]
    %v449 = vld [vmem:[#allocation13 + $0x138] sm:$0xff]
    %v450 = vld [vmem:[#allocation13 + $0x140] sm:$0xff]
    %v451 = vld [vmem:[#allocation13 + $0x148] sm:$0xff]
    %v452 = vld [vmem:[#allocation13 + $0x150] sm:$0xff]
    %v453 = vld [vmem:[#allocation13 + $0x158] sm:$0xff]
    %v454 = vld [vmem:[#allocation13 + $0x160] sm:$0xff]
    %v455 = vld [vmem:[#allocation13 + $0x168] sm:$0xff]
    %v456 = vld [vmem:[#allocation13 + $0x170] sm:$0xff]
    %v457 = vld [vmem:[#allocation13 + $0x178] sm:$0xff]
    %v458 = vld [vmem:[#allocation13 + $0x180] sm:$0xff]
    %v459 = vld [vmem:[#allocation13 + $0x188] sm:$0xff]
    %v460 = vld [vmem:[#allocation13 + $0x190] sm:$0xff]
    %v461 = vld [vmem:[#allocation13 + $0x198] sm:$0xff]
    %v462 = vld [vmem:[#allocation13 + $0x1a0] sm:$0xff]
    %v463 = vld [vmem:[#allocation13 + $0x1a8] sm:$0xff]
    %v464 = vld [vmem:[#allocation13 + $0x1b0] sm:$0xff]
    %v465 = vld [vmem:[#allocation13 + $0x1b8] sm:$0xff]
    %v466 = vld [vmem:[#allocation13 + $0x1c0] sm:$0xff]
    %v467 = vld [vmem:[#allocation13 + $0x1c8] sm:$0xff]
    %v468 = vld [vmem:[#allocation13 + $0x1d0] sm:$0xff]
    %v469 = vld [vmem:[#allocation13 + $0x1d8] sm:$0xff]
    %v470 = vld [vmem:[#allocation13 + $0x1e0] sm:$0xff]
    %v471 = vld [vmem:[#allocation13 + $0x1e8] sm:$0xff]
    %v472 = vld [vmem:[#allocation13 + $0x1f0] sm:$0xff]
    %v473 = vld [vmem:[#allocation13 + $0x1f8] sm:$0xff]
    %v474 = vld [vmem:[#allocation2] sm:$0xff]
    %v475 = vld [vmem:[#allocation2 + $0x8] sm:$0xff]
    %v476 = vld [vmem:[#allocation2 + $0x10] sm:$0xff]
    %v477 = vld [vmem:[#allocation2 + $0x18] sm:$0xff]
    %v478 = vld [vmem:[#allocation10] sm:$0xff]
    %v479 = vld [vmem:[#allocation10 + $0x8] sm:$0xff]
    %v480 = vld [vmem:[#allocation10 + $0x10] sm:$0xff]
    %v481 = vld [vmem:[#allocation10 + $0x18] sm:$0xff]
    %v482 = vld [vmem:[#allocation10 + $0x20] sm:$0xff]
    %v483 = vld [vmem:[#allocation10 + $0x28] sm:$0xff]
    %v484 = vld [vmem:[#allocation10 + $0x30] sm:$0xff]
    %v485 = vld [vmem:[#allocation10 + $0x38] sm:$0xff]
    %v486 = vld [vmem:[#allocation10 + $0x40] sm:$0xff]
    %v487 = vld [vmem:[#allocation10 + $0x48] sm:$0xff]
    %v488 = vld [vmem:[#allocation10 + $0x50] sm:$0xff]
    %v489 = vld [vmem:[#allocation10 + $0x58] sm:$0xff]
    %v490 = vld [vmem:[#allocation10 + $0x60] sm:$0xff]
    %v491 = vld [vmem:[#allocation10 + $0x68] sm:$0xff]
    %v492 = vld [vmem:[#allocation10 + $0x70] sm:$0xff]
    %v493 = vld [vmem:[#allocation10 + $0x78] sm:$0xff]
    %v494 = vld [vmem:[#allocation10 + $0x80] sm:$0xff]
    %v495 = vld [vmem:[#allocation10 + $0x88] sm:$0xff]
    %v496 = vld [vmem:[#allocation10 + $0x90] sm:$0xff]
    %v497 = vld [vmem:[#allocation10 + $0x98] sm:$0xff]
    %v498 = vld [vmem:[#allocation10 + $0xa0] sm:$0xff]
    %v499 = vld [vmem:[#allocation10 + $0xa8] sm:$0xff]
    %v500 = vld [vmem:[#allocation10 + $0xb0] sm:$0xff]
    %v501 = vld [vmem:[#allocation10 + $0xb8] sm:$0xff]
    %v502 = vld [vmem:[#allocation10 + $0xc0] sm:$0xff]
    %v503 = vld [vmem:[#allocation10 + $0xc8] sm:$0xff]
    %v504 = vld [vmem:[#allocation10 + $0xd0] sm:$0xff]
    %v505 = vld [vmem:[#allocation10 + $0xd8] sm:$0xff]
    %v506 = vld [vmem:[#allocation10 + $0xe0] sm:$0xff]
    %v507 = vld [vmem:[#allocation10 + $0xe8] sm:$0xff]
    %v508 = vld [vmem:[#allocation10 + $0xf0] sm:$0xff]
    %v509 = vld [vmem:[#allocation10 + $0xf8] sm:$0xff]
    %v510 = vld [vmem:[#allocation10 + $0x100] sm:$0xff]
    %v511 = vld [vmem:[#allocation10 + $0x108] sm:$0xff]
    %v512 = vld [vmem:[#allocation10 + $0x110] sm:$0xff]
    %v513 = vld [vmem:[#allocation10 + $0x118] sm:$0xff]
    %v514 = vld [vmem:[#allocation10 + $0x120] sm:$0xff]
    %v515 = vld [vmem:[#allocation10 + $0x128] sm:$0xff]
    %v516 = vld [vmem:[#allocation10 + $0x130] sm:$0xff]
    %v517 = vld [vmem:[#allocation10 + $0x138] sm:$0xff]
    %v518 = vld [vmem:[#allocation10 + $0x140] sm:$0xff]
    %v519 = vld [vmem:[#allocation10 + $0x148] sm:$0xff]
    %v520 = vld [vmem:[#allocation10 + $0x150] sm:$0xff]
    %v521 = vld [vmem:[#allocation10 + $0x158] sm:$0xff]
    %v522 = vld [vmem:[#allocation10 + $0x160] sm:$0xff]
    %v523 = vld [vmem:[#allocation10 + $0x168] sm:$0xff]
    %v524 = vld [vmem:[#allocation10 + $0x170] sm:$0xff]
    %v525 = vld [vmem:[#allocation10 + $0x178] sm:$0xff]
    %v526 = vld [vmem:[#allocation10 + $0x180] sm:$0xff]
    %v527 = vld [vmem:[#allocation10 + $0x188] sm:$0xff]
    %v528 = vld [vmem:[#allocation10 + $0x190] sm:$0xff]
    %v529 = vld [vmem:[#allocation10 + $0x198] sm:$0xff]
    %v530 = vld [vmem:[#allocation10 + $0x1a0] sm:$0xff]
    %v531 = vld [vmem:[#allocation10 + $0x1a8] sm:$0xff]
    %v532 = vld [vmem:[#allocation10 + $0x1b0] sm:$0xff]
    %v533 = vld [vmem:[#allocation10 + $0x1b8] sm:$0xff]
    %v534 = vld [vmem:[#allocation10 + $0x1c0] sm:$0xff]
    %v535 = vld [vmem:[#allocation10 + $0x1c8] sm:$0xff]
    %v536 = vld [vmem:[#allocation10 + $0x1d0] sm:$0xff]
    %v537 = vld [vmem:[#allocation10 + $0x1d8] sm:$0xff]
    %v538 = vld [vmem:[#allocation10 + $0x1e0] sm:$0xff]
    %v539 = vld [vmem:[#allocation10 + $0x1e8] sm:$0xff]
    %v540 = vld [vmem:[#allocation10 + $0x1f0] sm:$0xff]
    %v541 = vld [vmem:[#allocation10 + $0x1f8] sm:$0xff]
    %542 = vmatpush.msra.mxu0 %v538
    %543 = vmatpush.msra.mxu0 %v534
    %544 = vmatpush.msra.mxu0 %v530
    %545 = vmatpush.msra.mxu0 %v526
    %546 = vmatpush.msra.mxu0 %v522
    %547 = vmatpush.msra.mxu0 %v518
    %548 = vmatpush.msra.mxu0 %v514
    %549 = vmatpush.msra.mxu0 %v510
    %550 = vmatpush.msra.mxu0 %v506
    %551 = vmatpush.msra.mxu0 %v502
    %552 = vmatpush.msra.mxu0 %v498
    %553 = vmatpush.msra.mxu0 %v494
    %554 = vmatpush.msra.mxu0 %v490
    %555 = vmatpush.msra.mxu0 %v486
    %556 = vmatpush.msra.mxu0 %v482
    %557 = vmatpush.msra.mxu0 %v478
    %558 = vmatmul.f32.gmra.mxu0 %v406
    %v559 = vpop.f32.mrf.mxu0
    %v560 = vadd.f32 0.0, %v559
    %561 = vdwg.mxu0
    %562 = vmatpush.msra.mxu0 %v539
    %563 = vmatpush.msra.mxu0 %v535
    %564 = vmatpush.msra.mxu0 %v531
    %565 = vmatpush.msra.mxu0 %v527
    %566 = vmatpush.msra.mxu0 %v523
    %567 = vmatpush.msra.mxu0 %v519
    %568 = vmatpush.msra.mxu0 %v515
    %569 = vmatpush.msra.mxu0 %v511
    %570 = vmatpush.msra.mxu0 %v507
    %571 = vmatpush.msra.mxu0 %v503
    %572 = vmatpush.msra.mxu0 %v499
    %573 = vmatpush.msra.mxu0 %v495
    %574 = vmatpush.msra.mxu0 %v491
    %575 = vmatpush.msra.mxu0 %v487
    %576 = vmatpush.msra.mxu0 %v483
    %577 = vmatpush.msra.mxu0 %v479
    %578 = vmatmul.f32.gmra.mxu0 %v406
    %v579 = vpop.f32.mrf.mxu0
    %v580 = vadd.f32 0.0, %v579
    %581 = vdwg.mxu0
    %582 = vmatpush.msra.mxu0 %v540
    %583 = vmatpush.msra.mxu0 %v536
    %584 = vmatpush.msra.mxu0 %v532
    %585 = vmatpush.msra.mxu0 %v528
    %586 = vmatpush.msra.mxu0 %v524
    %587 = vmatpush.msra.mxu0 %v520
    %588 = vmatpush.msra.mxu0 %v516
    %589 = vmatpush.msra.mxu0 %v512
    %590 = vmatpush.msra.mxu0 %v508
    %591 = vmatpush.msra.mxu0 %v504
    %592 = vmatpush.msra.mxu0 %v500
    %593 = vmatpush.msra.mxu0 %v496
    %594 = vmatpush.msra.mxu0 %v492
    %595 = vmatpush.msra.mxu0 %v488
    %596 = vmatpush.msra.mxu0 %v484
    %597 = vmatpush.msra.mxu0 %v480
    %598 = vmatmul.f32.gmra.mxu0 %v406
    %v599 = vpop.f32.mrf.mxu0
    %v600 = vadd.f32 0.0, %v599
    %601 = vdwg.mxu0
    %602 = vmatpush.msra.mxu0 %v541
    %603 = vmatpush.msra.mxu0 %v537
    %604 = vmatpush.msra.mxu0 %v533
    %605 = vmatpush.msra.mxu0 %v529
    %606 = vmatpush.msra.mxu0 %v525
    %607 = vmatpush.msra.mxu0 %v521
    %608 = vmatpush.msra.mxu0 %v517
    %609 = vmatpush.msra.mxu0 %v513
    %610 = vmatpush.msra.mxu0 %v509
    %611 = vmatpush.msra.mxu0 %v505
    %612 = vmatpush.msra.mxu0 %v501
    %613 = vmatpush.msra.mxu0 %v497
    %614 = vmatpush.msra.mxu0 %v493
    %615 = vmatpush.msra.mxu0 %v489
    %616 = vmatpush.msra.mxu0 %v485
    %617 = vmatpush.msra.mxu0 %v481
    %618 = vmatmul.f32.gmra.mxu0 %v406
    %v619 = vpop.f32.mrf.mxu0
    %v620 = vadd.f32 0.0, %v619
    %621 = vdwg.mxu0
    %v622 = vadd.f32 %v474, %v560
    %v623 = vadd.f32 %v475, %v580
    %v624 = vadd.f32 %v476, %v600
    %v625 = vadd.f32 %v477, %v620
    %v626 = vmul.f32 %v622, 0.5
    %v627 = vtanh.pop %v626
    %v628 = vmul.f32 %v627, 0.5
    %v629 = vadd.f32 %v628, 0.5
    %v630 = vmul.f32 %v623, 0.5
    %v631 = vtanh.pop %v630
    %v632 = vmul.f32 %v631, 0.5
    %v633 = vadd.f32 %v632, 0.5
    %v634 = vtanh.pop %v624
    %v635 = vmul.f32 %v625, 0.5
    %v636 = vtanh.pop %v635
    %v637 = vmul.f32 %v636, 0.5
    %v638 = vadd.f32 %v637, 0.5
    %v639 = vmul.f32 %v633, %v407
    %v640 = vmul.f32 %v629, %v634
    %v641 = vadd.f32 %v639, %v640
    %v642 = vtanh.pop %v641
    %v643 = vmul.f32 %v638, %v642
    %v645 = vperm.slane %v405, 0
    %v646 = vperm.slane %v405, 1
    %v647 = vperm.slane %v405, 2
    %v648 = vperm.slane %v405, 3
    %653 = vmatpush.msra.mxu0 %v470
    %654 = vmatpush.msra.mxu0 %v466
    %655 = vmatpush.msra.mxu0 %v462
    %656 = vmatpush.msra.mxu0 %v458
    %657 = vmatpush.msra.mxu0 %v454
    %658 = vmatpush.msra.mxu0 %v450
    %659 = vmatpush.msra.mxu0 %v446
    %660 = vmatpush.msra.mxu0 %v442
    %661 = vmatpush.msra.mxu0 %v438
    %662 = vmatpush.msra.mxu0 %v434
    %663 = vmatpush.msra.mxu0 %v430
    %664 = vmatpush.msra.mxu0 %v426
    %665 = vmatpush.msra.mxu0 %v422
    %666 = vmatpush.msra.mxu0 %v418
    %667 = vmatpush.msra.mxu0 %v414
    %668 = vmatpush.msra.mxu0 %v410
    %669 = vmatmul.f32.gmra.mxu0 %v408
    %v670 = vpop.f32.mrf.mxu0
    %v671 = vadd.f32 %v645, %v670
    %672 = vdwg.mxu0
    %673 = vmatpush.msra.mxu0 %v471
    %674 = vmatpush.msra.mxu0 %v467
    %675 = vmatpush.msra.mxu0 %v463
    %676 = vmatpush.msra.mxu0 %v459
    %677 = vmatpush.msra.mxu0 %v455
    %678 = vmatpush.msra.mxu0 %v451
    %679 = vmatpush.msra.mxu0 %v447
    %680 = vmatpush.msra.mxu0 %v443
    %681 = vmatpush.msra.mxu0 %v439
    %682 = vmatpush.msra.mxu0 %v435
    %683 = vmatpush.msra.mxu0 %v431
    %684 = vmatpush.msra.mxu0 %v427
    %685 = vmatpush.msra.mxu0 %v423
    %686 = vmatpush.msra.mxu0 %v419
    %687 = vmatpush.msra.mxu0 %v415
    %688 = vmatpush.msra.mxu0 %v411
    %689 = vmatmul.f32.gmra.mxu0 %v408
    %v690 = vpop.f32.mrf.mxu0
    %v691 = vadd.f32 %v646, %v690
    %692 = vdwg.mxu0
    %693 = vmatpush.msra.mxu0 %v472
    %694 = vmatpush.msra.mxu0 %v468
    %695 = vmatpush.msra.mxu0 %v464
    %696 = vmatpush.msra.mxu0 %v460
    %697 = vmatpush.msra.mxu0 %v456
    %698 = vmatpush.msra.mxu0 %v452
    %699 = vmatpush.msra.mxu0 %v448
    %700 = vmatpush.msra.mxu0 %v444
    %701 = vmatpush.msra.mxu0 %v440
    %702 = vmatpush.msra.mxu0 %v436
    %703 = vmatpush.msra.mxu0 %v432
    %704 = vmatpush.msra.mxu0 %v428
    %705 = vmatpush.msra.mxu0 %v424
    %706 = vmatpush.msra.mxu0 %v420
    %707 = vmatpush.msra.mxu0 %v416
    %708 = vmatpush.msra.mxu0 %v412
    %709 = vmatmul.f32.gmra.mxu0 %v408
    %v710 = vpop.f32.mrf.mxu0
    %v711 = vadd.f32 %v647, %v710
    %712 = vdwg.mxu0
    %713 = vmatpush.msra.mxu0 %v473
    %714 = vmatpush.msra.mxu0 %v469
    %715 = vmatpush.msra.mxu0 %v465
    %716 = vmatpush.msra.mxu0 %v461
    %717 = vmatpush.msra.mxu0 %v457
    %718 = vmatpush.msra.mxu0 %v453
    %719 = vmatpush.msra.mxu0 %v449
    %720 = vmatpush.msra.mxu0 %v445
    %721 = vmatpush.msra.mxu0 %v441
    %722 = vmatpush.msra.mxu0 %v437
    %723 = vmatpush.msra.mxu0 %v433
    %724 = vmatpush.msra.mxu0 %v429
    %725 = vmatpush.msra.mxu0 %v425
    %726 = vmatpush.msra.mxu0 %v421
    %727 = vmatpush.msra.mxu0 %v417
    %728 = vmatpush.msra.mxu0 %v413
    %729 = vmatmul.f32.gmra.mxu0 %v408
    %v730 = vpop.f32.mrf.mxu0
    %v731 = vadd.f32 %v648, %v730
    %732 = vdwg.mxu0
    %v733 = vld [vmem:[#allocation11] sm:$0xff]
    %v734 = vld [vmem:[#allocation11 + $0x8] sm:$0xff]
    %v735 = vld [vmem:[#allocation11 + $0x10] sm:$0xff]
    %v736 = vld [vmem:[#allocation11 + $0x18] sm:$0xff]
    %v737 = vld [vmem:[#allocation11 + $0x20] sm:$0xff]
    %v738 = vld [vmem:[#allocation11 + $0x28] sm:$0xff]
    %v739 = vld [vmem:[#allocation11 + $0x30] sm:$0xff]
    %v740 = vld [vmem:[#allocation11 + $0x38] sm:$0xff]
    %v741 = vld [vmem:[#allocation11 + $0x40] sm:$0xff]
    %v742 = vld [vmem:[#allocation11 + $0x48] sm:$0xff]
    %v743 = vld [vmem:[#allocation11 + $0x50] sm:$0xff]
    %v744 = vld [vmem:[#allocation11 + $0x58] sm:$0xff]
    %v745 = vld [vmem:[#allocation11 + $0x60] sm:$0xff]
    %v746 = vld [vmem:[#allocation11 + $0x68] sm:$0xff]
    %v747 = vld [vmem:[#allocation11 + $0x70] sm:$0xff]
    %v748 = vld [vmem:[#allocation11 + $0x78] sm:$0xff]
    %v749 = vld [vmem:[#allocation11 + $0x80] sm:$0xff]
    %v750 = vld [vmem:[#allocation11 + $0x88] sm:$0xff]
    %v751 = vld [vmem:[#allocation11 + $0x90] sm:$0xff]
    %v752 = vld [vmem:[#allocation11 + $0x98] sm:$0xff]
    %v753 = vld [vmem:[#allocation11 + $0xa0] sm:$0xff]
    %v754 = vld [vmem:[#allocation11 + $0xa8] sm:$0xff]
    %v755 = vld [vmem:[#allocation11 + $0xb0] sm:$0xff]
    %v756 = vld [vmem:[#allocation11 + $0xb8] sm:$0xff]
    %v757 = vld [vmem:[#allocation11 + $0xc0] sm:$0xff]
    %v758 = vld [vmem:[#allocation11 + $0xc8] sm:$0xff]
    %v759 = vld [vmem:[#allocation11 + $0xd0] sm:$0xff]
    %v760 = vld [vmem:[#allocation11 + $0xd8] sm:$0xff]
    %v761 = vld [vmem:[#allocation11 + $0xe0] sm:$0xff]
    %v762 = vld [vmem:[#allocation11 + $0xe8] sm:$0xff]
    %v763 = vld [vmem:[#allocation11 + $0xf0] sm:$0xff]
    %v764 = vld [vmem:[#allocation11 + $0xf8] sm:$0xff]
    %v765 = vld [vmem:[#allocation11 + $0x100] sm:$0xff]
    %v766 = vld [vmem:[#allocation11 + $0x108] sm:$0xff]
    %v767 = vld [vmem:[#allocation11 + $0x110] sm:$0xff]
    %v768 = vld [vmem:[#allocation11 + $0x118] sm:$0xff]
    %v769 = vld [vmem:[#allocation11 + $0x120] sm:$0xff]
    %v770 = vld [vmem:[#allocation11 + $0x128] sm:$0xff]
    %v771 = vld [vmem:[#allocation11 + $0x130] sm:$0xff]
    %v772 = vld [vmem:[#allocation11 + $0x138] sm:$0xff]
    %v773 = vld [vmem:[#allocation11 + $0x140] sm:$0xff]
    %v774 = vld [vmem:[#allocation11 + $0x148] sm:$0xff]
    %v775 = vld [vmem:[#allocation11 + $0x150] sm:$0xff]
    %v776 = vld [vmem:[#allocation11 + $0x158] sm:$0xff]
    %v777 = vld [vmem:[#allocation11 + $0x160] sm:$0xff]
    %v778 = vld [vmem:[#allocation11 + $0x168] sm:$0xff]
    %v779 = vld [vmem:[#allocation11 + $0x170] sm:$0xff]
    %v780 = vld [vmem:[#allocation11 + $0x178] sm:$0xff]
    %v781 = vld [vmem:[#allocation11 + $0x180] sm:$0xff]
    %v782 = vld [vmem:[#allocation11 + $0x188] sm:$0xff]
    %v783 = vld [vmem:[#allocation11 + $0x190] sm:$0xff]
    %v784 = vld [vmem:[#allocation11 + $0x198] sm:$0xff]
    %v785 = vld [vmem:[#allocation11 + $0x1a0] sm:$0xff]
    %v786 = vld [vmem:[#allocation11 + $0x1a8] sm:$0xff]
    %v787 = vld [vmem:[#allocation11 + $0x1b0] sm:$0xff]
    %v788 = vld [vmem:[#allocation11 + $0x1b8] sm:$0xff]
    %v789 = vld [vmem:[#allocation11 + $0x1c0] sm:$0xff]
    %v790 = vld [vmem:[#allocation11 + $0x1c8] sm:$0xff]
    %v791 = vld [vmem:[#allocation11 + $0x1d0] sm:$0xff]
    %v792 = vld [vmem:[#allocation11 + $0x1d8] sm:$0xff]
    %v793 = vld [vmem:[#allocation11 + $0x1e0] sm:$0xff]
    %v794 = vld [vmem:[#allocation11 + $0x1e8] sm:$0xff]
    %v795 = vld [vmem:[#allocation11 + $0x1f0] sm:$0xff]
    %v796 = vld [vmem:[#allocation11 + $0x1f8] sm:$0xff]
    %797 = vmatpush.msra.mxu0 %v793
    %798 = vmatpush.msra.mxu0 %v789
    %799 = vmatpush.msra.mxu0 %v785
    %800 = vmatpush.msra.mxu0 %v781
    %801 = vmatpush.msra.mxu0 %v777
    %802 = vmatpush.msra.mxu0 %v773
    %803 = vmatpush.msra.mxu0 %v769
    %804 = vmatpush.msra.mxu0 %v765
    %805 = vmatpush.msra.mxu0 %v761
    %806 = vmatpush.msra.mxu0 %v757
    %807 = vmatpush.msra.mxu0 %v753
    %808 = vmatpush.msra.mxu0 %v749
    %809 = vmatpush.msra.mxu0 %v745
    %810 = vmatpush.msra.mxu0 %v741
    %811 = vmatpush.msra.mxu0 %v737
    %812 = vmatpush.msra.mxu0 %v733
    %813 = vmatmul.f32.gmra.mxu0 %v643
    %v814 = vpop.f32.mrf.mxu0
    %v815 = vadd.f32 0.0, %v814
    %816 = vdwg.mxu0
    %817 = vmatpush.msra.mxu0 %v794
    %818 = vmatpush.msra.mxu0 %v790
    %819 = vmatpush.msra.mxu0 %v786
    %820 = vmatpush.msra.mxu0 %v782
    %821 = vmatpush.msra.mxu0 %v778
    %822 = vmatpush.msra.mxu0 %v774
    %823 = vmatpush.msra.mxu0 %v770
    %824 = vmatpush.msra.mxu0 %v766
    %825 = vmatpush.msra.mxu0 %v762
    %826 = vmatpush.msra.mxu0 %v758
    %827 = vmatpush.msra.mxu0 %v754
    %828 = vmatpush.msra.mxu0 %v750
    %829 = vmatpush.msra.mxu0 %v746
    %830 = vmatpush.msra.mxu0 %v742
    %831 = vmatpush.msra.mxu0 %v738
    %832 = vmatpush.msra.mxu0 %v734
    %833 = vmatmul.f32.gmra.mxu0 %v643
    %v834 = vpop.f32.mrf.mxu0
    %v835 = vadd.f32 0.0, %v834
    %836 = vdwg.mxu0
    %837 = vmatpush.msra.mxu0 %v795
    %838 = vmatpush.msra.mxu0 %v791
    %839 = vmatpush.msra.mxu0 %v787
    %840 = vmatpush.msra.mxu0 %v783
    %841 = vmatpush.msra.mxu0 %v779
    %842 = vmatpush.msra.mxu0 %v775
    %843 = vmatpush.msra.mxu0 %v771
    %844 = vmatpush.msra.mxu0 %v767
    %845 = vmatpush.msra.mxu0 %v763
    %846 = vmatpush.msra.mxu0 %v759
    %847 = vmatpush.msra.mxu0 %v755
    %848 = vmatpush.msra.mxu0 %v751
    %849 = vmatpush.msra.mxu0 %v747
    %850 = vmatpush.msra.mxu0 %v743
    %851 = vmatpush.msra.mxu0 %v739
    %852 = vmatpush.msra.mxu0 %v735
    %853 = vmatmul.f32.gmra.mxu0 %v643
    %v854 = vpop.f32.mrf.mxu0
    %v855 = vadd.f32 0.0, %v854
    %856 = vdwg.mxu0
    %857 = vmatpush.msra.mxu0 %v796
    %858 = vmatpush.msra.mxu0 %v792
    %859 = vmatpush.msra.mxu0 %v788
    %860 = vmatpush.msra.mxu0 %v784
    %861 = vmatpush.msra.mxu0 %v780
    %862 = vmatpush.msra.mxu0 %v776
    %863 = vmatpush.msra.mxu0 %v772
    %864 = vmatpush.msra.mxu0 %v768
    %865 = vmatpush.msra.mxu0 %v764
    %866 = vmatpush.msra.mxu0 %v760
    %867 = vmatpush.msra.mxu0 %v756
    %868 = vmatpush.msra.mxu0 %v752
    %869 = vmatpush.msra.mxu0 %v748
    %870 = vmatpush.msra.mxu0 %v744
    %871 = vmatpush.msra.mxu0 %v740
    %872 = vmatpush.msra.mxu0 %v736
    %873 = vmatmul.f32.gmra.mxu0 %v643
    %v874 = vpop.f32.mrf.mxu0
    %v875 = vadd.f32 0.0, %v874
    %876 = vdwg.mxu0
    %v877 = vadd.f32 %v671, %v815
    %v878 = vadd.f32 %v691, %v835
    %v879 = vadd.f32 %v711, %v855
    %v880 = vadd.f32 %v731, %v875
    %v881 = vmul.f32 %v877, 0.5
    %v882 = vtanh.pop %v881
    %v883 = vmul.f32 %v882, 0.5
    %v884 = vadd.f32 %v883, 0.5
    %v885 = vmul.f32 %v878, 0.5
    %v886 = vtanh.pop %v885
    %v887 = vmul.f32 %v886, 0.5
    %v888 = vadd.f32 %v887, 0.5
    %v889 = vtanh.pop %v879
    %v890 = vmul.f32 %v880, 0.5
    %v891 = vtanh.pop %v890
    %v892 = vmul.f32 %v891, 0.5
    %v893 = vadd.f32 %v892, 0.5
    %v894 = vmul.f32 %v888, %v409
    %v895 = vmul.f32 %v884, %v889
    %v896 = vadd.f32 %v894, %v895
    %v897 = vtanh.pop %v896
    %v898 = vmul.f32 %v893, %v897
    %899 = vst [vmem:[#allocation16] sm:$0xff] %v898
    %v900 = vld [vmem:[#allocation13] sm:$0xff]
    %v901 = vld [vmem:[#allocation13 + $0x8] sm:$0xff]
    %v902 = vld [vmem:[#allocation13 + $0x10] sm:$0xff]
    %v903 = vld [vmem:[#allocation13 + $0x18] sm:$0xff]
    %v904 = vld [vmem:[#allocation13 + $0x20] sm:$0xff]
    %v905 = vld [vmem:[#allocation13 + $0x28] sm:$0xff]
    %v906 = vld [vmem:[#allocation13 + $0x30] sm:$0xff]
    %v907 = vld [vmem:[#allocation13 + $0x38] sm:$0xff]
    %v908 = vld [vmem:[#allocation13 + $0x40] sm:$0xff]
    %v909 = vld [vmem:[#allocation13 + $0x48] sm:$0xff]
    %v910 = vld [vmem:[#allocation13 + $0x50] sm:$0xff]
    %v911 = vld [vmem:[#allocation13 + $0x58] sm:$0xff]
    %v912 = vld [vmem:[#allocation13 + $0x60] sm:$0xff]
    %v913 = vld [vmem:[#allocation13 + $0x68] sm:$0xff]
    %v914 = vld [vmem:[#allocation13 + $0x70] sm:$0xff]
    %v915 = vld [vmem:[#allocation13 + $0x78] sm:$0xff]
    %v916 = vld [vmem:[#allocation13 + $0x80] sm:$0xff]
    %v917 = vld [vmem:[#allocation13 + $0x88] sm:$0xff]
    %v918 = vld [vmem:[#allocation13 + $0x90] sm:$0xff]
    %v919 = vld [vmem:[#allocation13 + $0x98] sm:$0xff]
    %v920 = vld [vmem:[#allocation13 + $0xa0] sm:$0xff]
    %v921 = vld [vmem:[#allocation13 + $0xa8] sm:$0xff]
    %v922 = vld [vmem:[#allocation13 + $0xb0] sm:$0xff]
    %v923 = vld [vmem:[#allocation13 + $0xb8] sm:$0xff]
    %v924 = vld [vmem:[#allocation13 + $0xc0] sm:$0xff]
    %v925 = vld [vmem:[#allocation13 + $0xc8] sm:$0xff]
    %v926 = vld [vmem:[#allocation13 + $0xd0] sm:$0xff]
    %v927 = vld [vmem:[#allocation13 + $0xd8] sm:$0xff]
    %v928 = vld [vmem:[#allocation13 + $0xe0] sm:$0xff]
    %v929 = vld [vmem:[#allocation13 + $0xe8] sm:$0xff]
    %v930 = vld [vmem:[#allocation13 + $0xf0] sm:$0xff]
    %v931 = vld [vmem:[#allocation13 + $0xf8] sm:$0xff]
    %v932 = vld [vmem:[#allocation13 + $0x100] sm:$0xff]
    %v933 = vld [vmem:[#allocation13 + $0x108] sm:$0xff]
    %v934 = vld [vmem:[#allocation13 + $0x110] sm:$0xff]
    %v935 = vld [vmem:[#allocation13 + $0x118] sm:$0xff]
    %v936 = vld [vmem:[#allocation13 + $0x120] sm:$0xff]
    %v937 = vld [vmem:[#allocation13 + $0x128] sm:$0xff]
    %v938 = vld [vmem:[#allocation13 + $0x130] sm:$0xff]
    %v939 = vld [vmem:[#allocation13 + $0x138] sm:$0xff]
    %v940 = vld [vmem:[#allocation13 + $0x140] sm:$0xff]
    %v941 = vld [vmem:[#allocation13 + $0x148] sm:$0xff]
    %v942 = vld [vmem:[#allocation13 + $0x150] sm:$0xff]
    %v943 = vld [vmem:[#allocation13 + $0x158] sm:$0xff]
    %v944 = vld [vmem:[#allocation13 + $0x160] sm:$0xff]
    %v945 = vld [vmem:[#allocation13 + $0x168] sm:$0xff]
    %v946 = vld [vmem:[#allocation13 + $0x170] sm:$0xff]
    %v947 = vld [vmem:[#allocation13 + $0x178] sm:$0xff]
    %v948 = vld [vmem:[#allocation13 + $0x180] sm:$0xff]
    %v949 = vld [vmem:[#allocation13 + $0x188] sm:$0xff]
    %v950 = vld [vmem:[#allocation13 + $0x190] sm:$0xff]
    %v951 = vld [vmem:[#allocation13 + $0x198] sm:$0xff]
    %v952 = vld [vmem:[#allocation13 + $0x1a0] sm:$0xff]
    %v953 = vld [vmem:[#allocation13 + $0x1a8] sm:$0xff]
    %v954 = vld [vmem:[#allocation13 + $0x1b0] sm:$0xff]
    %v955 = vld [vmem:[#allocation13 + $0x1b8] sm:$0xff]
    %v956 = vld [vmem:[#allocation13 + $0x1c0] sm:$0xff]
    %v957 = vld [vmem:[#allocation13 + $0x1c8] sm:$0xff]
    %v958 = vld [vmem:[#allocation13 + $0x1d0] sm:$0xff]
    %v959 = vld [vmem:[#allocation13 + $0x1d8] sm:$0xff]
    %v960 = vld [vmem:[#allocation13 + $0x1e0] sm:$0xff]
    %v961 = vld [vmem:[#allocation13 + $0x1e8] sm:$0xff]
    %v962 = vld [vmem:[#allocation13 + $0x1f0] sm:$0xff]
    %v963 = vld [vmem:[#allocation13 + $0x1f8] sm:$0xff]
    %v964 = vld [vmem:[#allocation2 + $0x20] sm:$0xff]
    %v965 = vld [vmem:[#allocation2 + $0x28] sm:$0xff]
    %v966 = vld [vmem:[#allocation2 + $0x30] sm:$0xff]
    %v967 = vld [vmem:[#allocation2 + $0x38] sm:$0xff]
    %v968 = vld [vmem:[#allocation10] sm:$0xff]
    %v969 = vld [vmem:[#allocation10 + $0x8] sm:$0xff]
    %v970 = vld [vmem:[#allocation10 + $0x10] sm:$0xff]
    %v971 = vld [vmem:[#allocation10 + $0x18] sm:$0xff]
    %v972 = vld [vmem:[#allocation10 + $0x20] sm:$0xff]
    %v973 = vld [vmem:[#allocation10 + $0x28] sm:$0xff]
    %v974 = vld [vmem:[#allocation10 + $0x30] sm:$0xff]
    %v975 = vld [vmem:[#allocation10 + $0x38] sm:$0xff]
    %v976 = vld [vmem:[#allocation10 + $0x40] sm:$0xff]
    %v977 = vld [vmem:[#allocation10 + $0x48] sm:$0xff]
    %v978 = vld [vmem:[#allocation10 + $0x50] sm:$0xff]
    %v979 = vld [vmem:[#allocation10 + $0x58] sm:$0xff]
    %v980 = vld [vmem:[#allocation10 + $0x60] sm:$0xff]
    %v981 = vld [vmem:[#allocation10 + $0x68] sm:$0xff]
    %v982 = vld [vmem:[#allocation10 + $0x70] sm:$0xff]
    %v983 = vld [vmem:[#allocation10 + $0x78] sm:$0xff]
    %v984 = vld [vmem:[#allocation10 + $0x80] sm:$0xff]
    %v985 = vld [vmem:[#allocation10 + $0x88] sm:$0xff]
    %v986 = vld [vmem:[#allocation10 + $0x90] sm:$0xff]
    %v987 = vld [vmem:[#allocation10 + $0x98] sm:$0xff]
    %v988 = vld [vmem:[#allocation10 + $0xa0] sm:$0xff]
    %v989 = vld [vmem:[#allocation10 + $0xa8] sm:$0xff]
    %v990 = vld [vmem:[#allocation10 + $0xb0] sm:$0xff]
    %v991 = vld [vmem:[#allocation10 + $0xb8] sm:$0xff]
    %v992 = vld [vmem:[#allocation10 + $0xc0] sm:$0xff]
    %v993 = vld [vmem:[#allocation10 + $0xc8] sm:$0xff]
    %v994 = vld [vmem:[#allocation10 + $0xd0] sm:$0xff]
    %v995 = vld [vmem:[#allocation10 + $0xd8] sm:$0xff]
    %v996 = vld [vmem:[#allocation10 + $0xe0] sm:$0xff]
    %v997 = vld [vmem:[#allocation10 + $0xe8] sm:$0xff]
    %v998 = vld [vmem:[#allocation10 + $0xf0] sm:$0xff]
    %v999 = vld [vmem:[#allocation10 + $0xf8] sm:$0xff]
    %v1000 = vld [vmem:[#allocation10 + $0x100] sm:$0xff]
    %v1001 = vld [vmem:[#allocation10 + $0x108] sm:$0xff]
    %v1002 = vld [vmem:[#allocation10 + $0x110] sm:$0xff]
    %v1003 = vld [vmem:[#allocation10 + $0x118] sm:$0xff]
    %v1004 = vld [vmem:[#allocation10 + $0x120] sm:$0xff]
    %v1005 = vld [vmem:[#allocation10 + $0x128] sm:$0xff]
    %v1006 = vld [vmem:[#allocation10 + $0x130] sm:$0xff]
    %v1007 = vld [vmem:[#allocation10 + $0x138] sm:$0xff]
    %v1008 = vld [vmem:[#allocation10 + $0x140] sm:$0xff]
    %v1009 = vld [vmem:[#allocation10 + $0x148] sm:$0xff]
    %v1010 = vld [vmem:[#allocation10 + $0x150] sm:$0xff]
    %v1011 = vld [vmem:[#allocation10 + $0x158] sm:$0xff]
    %v1012 = vld [vmem:[#allocation10 + $0x160] sm:$0xff]
    %v1013 = vld [vmem:[#allocation10 + $0x168] sm:$0xff]
    %v1014 = vld [vmem:[#allocation10 + $0x170] sm:$0xff]
    %v1015 = vld [vmem:[#allocation10 + $0x178] sm:$0xff]
    %v1016 = vld [vmem:[#allocation10 + $0x180] sm:$0xff]
    %v1017 = vld [vmem:[#allocation10 + $0x188] sm:$0xff]
    %v1018 = vld [vmem:[#allocation10 + $0x190] sm:$0xff]
    %v1019 = vld [vmem:[#allocation10 + $0x198] sm:$0xff]
    %v1020 = vld [vmem:[#allocation10 + $0x1a0] sm:$0xff]
    %v1021 = vld [vmem:[#allocation10 + $0x1a8] sm:$0xff]
    %v1022 = vld [vmem:[#allocation10 + $0x1b0] sm:$0xff]
    %v1023 = vld [vmem:[#allocation10 + $0x1b8] sm:$0xff]
    %v1024 = vld [vmem:[#allocation10 + $0x1c0] sm:$0xff]
    %v1025 = vld [vmem:[#allocation10 + $0x1c8] sm:$0xff]
    %v1026 = vld [vmem:[#allocation10 + $0x1d0] sm:$0xff]
    %v1027 = vld [vmem:[#allocation10 + $0x1d8] sm:$0xff]
    %v1028 = vld [vmem:[#allocation10 + $0x1e0] sm:$0xff]
    %v1029 = vld [vmem:[#allocation10 + $0x1e8] sm:$0xff]
    %v1030 = vld [vmem:[#allocation10 + $0x1f0] sm:$0xff]
    %v1031 = vld [vmem:[#allocation10 + $0x1f8] sm:$0xff]
    %1032 = vmatpush.msra.mxu0 %v1028
    %1033 = vmatpush.msra.mxu0 %v1024
    %1034 = vmatpush.msra.mxu0 %v1020
    %1035 = vmatpush.msra.mxu0 %v1016
    %1036 = vmatpush.msra.mxu0 %v1012
    %1037 = vmatpush.msra.mxu0 %v1008
    %1038 = vmatpush.msra.mxu0 %v1004
    %1039 = vmatpush.msra.mxu0 %v1000
    %1040 = vmatpush.msra.mxu0 %v996
    %1041 = vmatpush.msra.mxu0 %v992
    %1042 = vmatpush.msra.mxu0 %v988
    %1043 = vmatpush.msra.mxu0 %v984
    %1044 = vmatpush.msra.mxu0 %v980
    %1045 = vmatpush.msra.mxu0 %v976
    %1046 = vmatpush.msra.mxu0 %v972
    %1047 = vmatpush.msra.mxu0 %v968
    %1048 = vmatmul.f32.gmra.mxu0 %v643
    %v1049 = vpop.f32.mrf.mxu0
    %v1050 = vadd.f32 0.0, %v1049
    %1051 = vdwg.mxu0
    %1052 = vmatpush.msra.mxu0 %v1029
    %1053 = vmatpush.msra.mxu0 %v1025
    %1054 = vmatpush.msra.mxu0 %v1021
    %1055 = vmatpush.msra.mxu0 %v1017
    %1056 = vmatpush.msra.mxu0 %v1013
    %1057 = vmatpush.msra.mxu0 %v1009
    %1058 = vmatpush.msra.mxu0 %v1005
    %1059 = vmatpush.msra.mxu0 %v1001
    %1060 = vmatpush.msra.mxu0 %v997
    %1061 = vmatpush.msra.mxu0 %v993
    %1062 = vmatpush.msra.mxu0 %v989
    %1063 = vmatpush.msra.mxu0 %v985
    %1064 = vmatpush.msra.mxu0 %v981
    %1065 = vmatpush.msra.mxu0 %v977
    %1066 = vmatpush.msra.mxu0 %v973
    %1067 = vmatpush.msra.mxu0 %v969
    %1068 = vmatmul.f32.gmra.mxu0 %v643
    %v1069 = vpop.f32.mrf.mxu0
    %v1070 = vadd.f32 0.0, %v1069
    %1071 = vdwg.mxu0
    %1072 = vmatpush.msra.mxu0 %v1030
    %1073 = vmatpush.msra.mxu0 %v1026
    %1074 = vmatpush.msra.mxu0 %v1022
    %1075 = vmatpush.msra.mxu0 %v1018
    %1076 = vmatpush.msra.mxu0 %v1014
    %1077 = vmatpush.msra.mxu0 %v1010
    %1078 = vmatpush.msra.mxu0 %v1006
    %1079 = vmatpush.msra.mxu0 %v1002
    %1080 = vmatpush.msra.mxu0 %v998
    %1081 = vmatpush.msra.mxu0 %v994
    %1082 = vmatpush.msra.mxu0 %v990
    %1083 = vmatpush.msra.mxu0 %v986
    %1084 = vmatpush.msra.mxu0 %v982
    %1085 = vmatpush.msra.mxu0 %v978
    %1086 = vmatpush.msra.mxu0 %v974
    %1087 = vmatpush.msra.mxu0 %v970
    %1088 = vmatmul.f32.gmra.mxu0 %v643
    %v1089 = vpop.f32.mrf.mxu0
    %v1090 = vadd.f32 0.0, %v1089
    %1091 = vdwg.mxu0
    %1092 = vmatpush.msra.mxu0 %v1031
    %1093 = vmatpush.msra.mxu0 %v1027
    %1094 = vmatpush.msra.mxu0 %v1023
    %1095 = vmatpush.msra.mxu0 %v1019
    %1096 = vmatpush.msra.mxu0 %v1015
    %1097 = vmatpush.msra.mxu0 %v1011
    %1098 = vmatpush.msra.mxu0 %v1007
    %1099 = vmatpush.msra.mxu0 %v1003
    %1100 = vmatpush.msra.mxu0 %v999
    %1101 = vmatpush.msra.mxu0 %v995
    %1102 = vmatpush.msra.mxu0 %v991
    %1103 = vmatpush.msra.mxu0 %v987
    %1104 = vmatpush.msra.mxu0 %v983
    %1105 = vmatpush.msra.mxu0 %v979
    %1106 = vmatpush.msra.mxu0 %v975
    %1107 = vmatpush.msra.mxu0 %v971
    %1108 = vmatmul.f32.gmra.mxu0 %v643
    %v1109 = vpop.f32.mrf.mxu0
    %v1110 = vadd.f32 0.0, %v1109
    %1111 = vdwg.mxu0
    %v1112 = vadd.f32 %v964, %v1050
    %v1113 = vadd.f32 %v965, %v1070
    %v1114 = vadd.f32 %v966, %v1090
    %v1115 = vadd.f32 %v967, %v1110
    %v1116 = vmul.f32 %v1112, 0.5
    %v1117 = vtanh.pop %v1116
    %v1118 = vmul.f32 %v1117, 0.5
    %v1119 = vadd.f32 %v1118, 0.5
    %v1120 = vmul.f32 %v1113, 0.5
    %v1121 = vtanh.pop %v1120
    %v1122 = vmul.f32 %v1121, 0.5
    %v1123 = vadd.f32 %v1122, 0.5
    %v1124 = vtanh.pop %v1114
    %v1125 = vmul.f32 %v1115, 0.5
    %v1126 = vtanh.pop %v1125
    %v1127 = vmul.f32 %v1126, 0.5
    %v1128 = vadd.f32 %v1127, 0.5
    %v1129 = vmul.f32 %v1123, %v641
    %v1130 = vmul.f32 %v1119, %v1124
    %v1131 = vadd.f32 %v1129, %v1130
    %v1132 = vtanh.pop %v1131
    %v1133 = vmul.f32 %v1128, %v1132
    %1134 = vmatpush.msra.mxu0 %v960
    %1135 = vmatpush.msra.mxu0 %v956
    %1136 = vmatpush.msra.mxu0 %v952
    %1137 = vmatpush.msra.mxu0 %v948
    %1138 = vmatpush.msra.mxu0 %v944
    %1139 = vmatpush.msra.mxu0 %v940
    %1140 = vmatpush.msra.mxu0 %v936
    %1141 = vmatpush.msra.mxu0 %v932
    %1142 = vmatpush.msra.mxu0 %v928
    %1143 = vmatpush.msra.mxu0 %v924
    %1144 = vmatpush.msra.mxu0 %v920
    %1145 = vmatpush.msra.mxu0 %v916
    %1146 = vmatpush.msra.mxu0 %v912
    %1147 = vmatpush.msra.mxu0 %v908
    %1148 = vmatpush.msra.mxu0 %v904
    %1149 = vmatpush.msra.mxu0 %v900
    %1150 = vmatmul.f32.gmra.mxu0 %v898
    %v1151 = vpop.f32.mrf.mxu0
    %v1152 = vadd.f32 %v645, %v1151
    %1153 = vdwg.mxu0
    %1154 = vmatpush.msra.mxu0 %v961
    %1155 = vmatpush.msra.mxu0 %v957
    %1156 = vmatpush.msra.mxu0 %v953
    %1157 = vmatpush.msra.mxu0 %v949
    %1158 = vmatpush.msra.mxu0 %v945
    %1159 = vmatpush.msra.mxu0 %v941
    %1160 = vmatpush.msra.mxu0 %v937
    %1161 = vmatpush.msra.mxu0 %v933
    %1162 = vmatpush.msra.mxu0 %v929
    %1163 = vmatpush.msra.mxu0 %v925
    %1164 = vmatpush.msra.mxu0 %v921
    %1165 = vmatpush.msra.mxu0 %v917
    %1166 = vmatpush.msra.mxu0 %v913
    %1167 = vmatpush.msra.mxu0 %v909
    %1168 = vmatpush.msra.mxu0 %v905
    %1169 = vmatpush.msra.mxu0 %v901
    %1170 = vmatmul.f32.gmra.mxu0 %v898
    %v1171 = vpop.f32.mrf.mxu0
    %v1172 = vadd.f32 %v646, %v1171
    %1173 = vdwg.mxu0
    %1174 = vmatpush.msra.mxu0 %v962
    %1175 = vmatpush.msra.mxu0 %v958
    %1176 = vmatpush.msra.mxu0 %v954
    %1177 = vmatpush.msra.mxu0 %v950
    %1178 = vmatpush.msra.mxu0 %v946
    %1179 = vmatpush.msra.mxu0 %v942
    %1180 = vmatpush.msra.mxu0 %v938
    %1181 = vmatpush.msra.mxu0 %v934
    %1182 = vmatpush.msra.mxu0 %v930
    %1183 = vmatpush.msra.mxu0 %v926
    %1184 = vmatpush.msra.mxu0 %v922
    %1185 = vmatpush.msra.mxu0 %v918
    %1186 = vmatpush.msra.mxu0 %v914
    %1187 = vmatpush.msra.mxu0 %v910
    %1188 = vmatpush.msra.mxu0 %v906
    %1189 = vmatpush.msra.mxu0 %v902
    %1190 = vmatmul.f32.gmra.mxu0 %v898
    %v1191 = vpop.f32.mrf.mxu0
    %v1192 = vadd.f32 %v647, %v1191
    %1193 = vdwg.mxu0
    %1194 = vmatpush.msra.mxu0 %v963
    %1195 = vmatpush.msra.mxu0 %v959
    %1196 = vmatpush.msra.mxu0 %v955
    %1197 = vmatpush.msra.mxu0 %v951
    %1198 = vmatpush.msra.mxu0 %v947
    %1199 = vmatpush.msra.mxu0 %v943
    %1200 = vmatpush.msra.mxu0 %v939
    %1201 = vmatpush.msra.mxu0 %v935
    %1202 = vmatpush.msra.mxu0 %v931
    %1203 = vmatpush.msra.mxu0 %v927
    %1204 = vmatpush.msra.mxu0 %v923
    %1205 = vmatpush.msra.mxu0 %v919
    %1206 = vmatpush.msra.mxu0 %v915
    %1207 = vmatpush.msra.mxu0 %v911
    %1208 = vmatpush.msra.mxu0 %v907
    %1209 = vmatpush.msra.mxu0 %v903
    %1210 = vmatmul.f32.gmra.mxu0 %v898
    %v1211 = vpop.f32.mrf.mxu0
    %v1212 = vadd.f32 %v648, %v1211
    %1213 = vdwg.mxu0
    %v1214 = vld [vmem:[#allocation11] sm:$0xff]
    %v1215 = vld [vmem:[#allocation11 + $0x8] sm:$0xff]
    %v1216 = vld [vmem:[#allocation11 + $0x10] sm:$0xff]
    %v1217 = vld [vmem:[#allocation11 + $0x18] sm:$0xff]
    %v1218 = vld [vmem:[#allocation11 + $0x20] sm:$0xff]
    %v1219 = vld [vmem:[#allocation11 + $0x28] sm:$0xff]
    %v1220 = vld [vmem:[#allocation11 + $0x30] sm:$0xff]
    %v1221 = vld [vmem:[#allocation11 + $0x38] sm:$0xff]
    %v1222 = vld [vmem:[#allocation11 + $0x40] sm:$0xff]
    %v1223 = vld [vmem:[#allocation11 + $0x48] sm:$0xff]
    %v1224 = vld [vmem:[#allocation11 + $0x50] sm:$0xff]
    %v1225 = vld [vmem:[#allocation11 + $0x58] sm:$0xff]
    %v1226 = vld [vmem:[#allocation11 + $0x60] sm:$0xff]
    %v1227 = vld [vmem:[#allocation11 + $0x68] sm:$0xff]
    %v1228 = vld [vmem:[#allocation11 + $0x70] sm:$0xff]
    %v1229 = vld [vmem:[#allocation11 + $0x78] sm:$0xff]
    %v1230 = vld [vmem:[#allocation11 + $0x80] sm:$0xff]
    %v1231 = vld [vmem:[#allocation11 + $0x88] sm:$0xff]
    %v1232 = vld [vmem:[#allocation11 + $0x90] sm:$0xff]
    %v1233 = vld [vmem:[#allocation11 + $0x98] sm:$0xff]
    %v1234 = vld [vmem:[#allocation11 + $0xa0] sm:$0xff]
    %v1235 = vld [vmem:[#allocation11 + $0xa8] sm:$0xff]
    %v1236 = vld [vmem:[#allocation11 + $0xb0] sm:$0xff]
    %v1237 = vld [vmem:[#allocation11 + $0xb8] sm:$0xff]
    %v1238 = vld [vmem:[#allocation11 + $0xc0] sm:$0xff]
    %v1239 = vld [vmem:[#allocation11 + $0xc8] sm:$0xff]
    %v1240 = vld [vmem:[#allocation11 + $0xd0] sm:$0xff]
    %v1241 = vld [vmem:[#allocation11 + $0xd8] sm:$0xff]
    %v1242 = vld [vmem:[#allocation11 + $0xe0] sm:$0xff]
    %v1243 = vld [vmem:[#allocation11 + $0xe8] sm:$0xff]
    %v1244 = vld [vmem:[#allocation11 + $0xf0] sm:$0xff]
    %v1245 = vld [vmem:[#allocation11 + $0xf8] sm:$0xff]
    %v1246 = vld [vmem:[#allocation11 + $0x100] sm:$0xff]
    %v1247 = vld [vmem:[#allocation11 + $0x108] sm:$0xff]
    %v1248 = vld [vmem:[#allocation11 + $0x110] sm:$0xff]
    %v1249 = vld [vmem:[#allocation11 + $0x118] sm:$0xff]
    %v1250 = vld [vmem:[#allocation11 + $0x120] sm:$0xff]
    %v1251 = vld [vmem:[#allocation11 + $0x128] sm:$0xff]
    %v1252 = vld [vmem:[#allocation11 + $0x130] sm:$0xff]
    %v1253 = vld [vmem:[#allocation11 + $0x138] sm:$0xff]
    %v1254 = vld [vmem:[#allocation11 + $0x140] sm:$0xff]
    %v1255 = vld [vmem:[#allocation11 + $0x148] sm:$0xff]
    %v1256 = vld [vmem:[#allocation11 + $0x150] sm:$0xff]
    %v1257 = vld [vmem:[#allocation11 + $0x158] sm:$0xff]
    %v1258 = vld [vmem:[#allocation11 + $0x160] sm:$0xff]
    %v1259 = vld [vmem:[#allocation11 + $0x168] sm:$0xff]
    %v1260 = vld [vmem:[#allocation11 + $0x170] sm:$0xff]
    %v1261 = vld [vmem:[#allocation11 + $0x178] sm:$0xff]
    %v1262 = vld [vmem:[#allocation11 + $0x180] sm:$0xff]
    %v1263 = vld [vmem:[#allocation11 + $0x188] sm:$0xff]
    %v1264 = vld [vmem:[#allocation11 + $0x190] sm:$0xff]
    %v1265 = vld [vmem:[#allocation11 + $0x198] sm:$0xff]
    %v1266 = vld [vmem:[#allocation11 + $0x1a0] sm:$0xff]
    %v1267 = vld [vmem:[#allocation11 + $0x1a8] sm:$0xff]
    %v1268 = vld [vmem:[#allocation11 + $0x1b0] sm:$0xff]
    %v1269 = vld [vmem:[#allocation11 + $0x1b8] sm:$0xff]
    %v1270 = vld [vmem:[#allocation11 + $0x1c0] sm:$0xff]
    %v1271 = vld [vmem:[#allocation11 + $0x1c8] sm:$0xff]
    %v1272 = vld [vmem:[#allocation11 + $0x1d0] sm:$0xff]
    %v1273 = vld [vmem:[#allocation11 + $0x1d8] sm:$0xff]
    %v1274 = vld [vmem:[#allocation11 + $0x1e0] sm:$0xff]
    %v1275 = vld [vmem:[#allocation11 + $0x1e8] sm:$0xff]
    %v1276 = vld [vmem:[#allocation11 + $0x1f0] sm:$0xff]
    %v1277 = vld [vmem:[#allocation11 + $0x1f8] sm:$0xff]
    %1278 = vmatpush.msra.mxu0 %v1274
    %1279 = vmatpush.msra.mxu0 %v1270
    %1280 = vmatpush.msra.mxu0 %v1266
    %1281 = vmatpush.msra.mxu0 %v1262
    %1282 = vmatpush.msra.mxu0 %v1258
    %1283 = vmatpush.msra.mxu0 %v1254
    %1284 = vmatpush.msra.mxu0 %v1250
    %1285 = vmatpush.msra.mxu0 %v1246
    %1286 = vmatpush.msra.mxu0 %v1242
    %1287 = vmatpush.msra.mxu0 %v1238
    %1288 = vmatpush.msra.mxu0 %v1234
    %1289 = vmatpush.msra.mxu0 %v1230
    %1290 = vmatpush.msra.mxu0 %v1226
    %1291 = vmatpush.msra.mxu0 %v1222
    %1292 = vmatpush.msra.mxu0 %v1218
    %1293 = vmatpush.msra.mxu0 %v1214
    %1294 = vmatmul.f32.gmra.mxu0 %v1133
    %v1295 = vpop.f32.mrf.mxu0
    %v1296 = vadd.f32 0.0, %v1295
    %1297 = vdwg.mxu0
    %1298 = vmatpush.msra.mxu0 %v1275
    %1299 = vmatpush.msra.mxu0 %v1271
    %1300 = vmatpush.msra.mxu0 %v1267
    %1301 = vmatpush.msra.mxu0 %v1263
    %1302 = vmatpush.msra.mxu0 %v1259
    %1303 = vmatpush.msra.mxu0 %v1255
    %1304 = vmatpush.msra.mxu0 %v1251
    %1305 = vmatpush.msra.mxu0 %v1247
    %1306 = vmatpush.msra.mxu0 %v1243
    %1307 = vmatpush.msra.mxu0 %v1239
    %1308 = vmatpush.msra.mxu0 %v1235
    %1309 = vmatpush.msra.mxu0 %v1231
    %1310 = vmatpush.msra.mxu0 %v1227
    %1311 = vmatpush.msra.mxu0 %v1223
    %1312 = vmatpush.msra.mxu0 %v1219
    %1313 = vmatpush.msra.mxu0 %v1215
    %1314 = vmatmul.f32.gmra.mxu0 %v1133
    %v1315 = vpop.f32.mrf.mxu0
    %v1316 = vadd.f32 0.0, %v1315
    %1317 = vdwg.mxu0
    %1318 = vmatpush.msra.mxu0 %v1276
    %1319 = vmatpush.msra.mxu0 %v1272
    %1320 = vmatpush.msra.mxu0 %v1268
    %1321 = vmatpush.msra.mxu0 %v1264
    %1322 = vmatpush.msra.mxu0 %v1260
    %1323 = vmatpush.msra.mxu0 %v1256
    %1324 = vmatpush.msra.mxu0 %v1252
    %1325 = vmatpush.msra.mxu0 %v1248
    %1326 = vmatpush.msra.mxu0 %v1244
    %1327 = vmatpush.msra.mxu0 %v1240
    %1328 = vmatpush.msra.mxu0 %v1236
    %1329 = vmatpush.msra.mxu0 %v1232
    %1330 = vmatpush.msra.mxu0 %v1228
    %1331 = vmatpush.msra.mxu0 %v1224
    %1332 = vmatpush.msra.mxu0 %v1220
    %1333 = vmatpush.msra.mxu0 %v1216
    %1334 = vmatmul.f32.gmra.mxu0 %v1133
    %v1335 = vpop.f32.mrf.mxu0
    %v1336 = vadd.f32 0.0, %v1335
    %1337 = vdwg.mxu0
    %1338 = vmatpush.msra.mxu0 %v1277
    %1339 = vmatpush.msra.mxu0 %v1273
    %1340 = vmatpush.msra.mxu0 %v1269
    %1341 = vmatpush.msra.mxu0 %v1265
    %1342 = vmatpush.msra.mxu0 %v1261
    %1343 = vmatpush.msra.mxu0 %v1257
    %1344 = vmatpush.msra.mxu0 %v1253
    %1345 = vmatpush.msra.mxu0 %v1249
    %1346 = vmatpush.msra.mxu0 %v1245
    %1347 = vmatpush.msra.mxu0 %v1241
    %1348 = vmatpush.msra.mxu0 %v1237
    %1349 = vmatpush.msra.mxu0 %v1233
    %1350 = vmatpush.msra.mxu0 %v1229
    %1351 = vmatpush.msra.mxu0 %v1225
    %1352 = vmatpush.msra.mxu0 %v1221
    %1353 = vmatpush.msra.mxu0 %v1217
    %1354 = vmatmul.f32.gmra.mxu0 %v1133
    %v1355 = vpop.f32.mrf.mxu0
    %v1356 = vadd.f32 0.0, %v1355
    %1357 = vdwg.mxu0
    %v1358 = vadd.f32 %v1152, %v1296
    %v1359 = vadd.f32 %v1172, %v1316
    %v1360 = vadd.f32 %v1192, %v1336
    %v1361 = vadd.f32 %v1212, %v1356
    %v1362 = vmul.f32 %v1358, 0.5
    %v1363 = vtanh.pop %v1362
    %v1364 = vmul.f32 %v1363, 0.5
    %v1365 = vadd.f32 %v1364, 0.5
    %v1366 = vmul.f32 %v1359, 0.5
    %v1367 = vtanh.pop %v1366
    %v1368 = vmul.f32 %v1367, 0.5
    %v1369 = vadd.f32 %v1368, 0.5
    %v1370 = vtanh.pop %v1360
    %v1371 = vmul.f32 %v1361, 0.5
    %v1372 = vtanh.pop %v1371
    %v1373 = vmul.f32 %v1372, 0.5
    %v1374 = vadd.f32 %v1373, 0.5
    %v1375 = vmul.f32 %v1369, %v896
    %v1376 = vmul.f32 %v1365, %v1370
    %v1377 = vadd.f32 %v1375, %v1376
    %v1378 = vtanh.pop %v1377
    %v1379 = vmul.f32 %v1374, %v1378
    %s1380 = scalar_lea.vmem [#allocation16], 8
    %1381 = vst [vmem:[%s1380] sm:$0xff] %v1379
    %v1382 = vld [vmem:[#allocation13] sm:$0xff]
    %v1383 = vld [vmem:[#allocation13 + $0x8] sm:$0xff]
    %v1384 = vld [vmem:[#allocation13 + $0x10] sm:$0xff]
    %v1385 = vld [vmem:[#allocation13 + $0x18] sm:$0xff]
    %v1386 = vld [vmem:[#allocation13 + $0x20] sm:$0xff]
    %v1387 = vld [vmem:[#allocation13 + $0x28] sm:$0xff]
    %v1388 = vld [vmem:[#allocation13 + $0x30] sm:$0xff]
    %v1389 = vld [vmem:[#allocation13 + $0x38] sm:$0xff]
    %v1390 = vld [vmem:[#allocation13 + $0x40] sm:$0xff]
    %v1391 = vld [vmem:[#allocation13 + $0x48] sm:$0xff]
    %v1392 = vld [vmem:[#allocation13 + $0x50] sm:$0xff]
    %v1393 = vld [vmem:[#allocation13 + $0x58] sm:$0xff]
    %v1394 = vld [vmem:[#allocation13 + $0x60] sm:$0xff]
    %v1395 = vld [vmem:[#allocation13 + $0x68] sm:$0xff]
    %v1396 = vld [vmem:[#allocation13 + $0x70] sm:$0xff]
    %v1397 = vld [vmem:[#allocation13 + $0x78] sm:$0xff]
    %v1398 = vld [vmem:[#allocation13 + $0x80] sm:$0xff]
    %v1399 = vld [vmem:[#allocation13 + $0x88] sm:$0xff]
    %v1400 = vld [vmem:[#allocation13 + $0x90] sm:$0xff]
    %v1401 = vld [vmem:[#allocation13 + $0x98] sm:$0xff]
    %v1402 = vld [vmem:[#allocation13 + $0xa0] sm:$0xff]
    %v1403 = vld [vmem:[#allocation13 + $0xa8] sm:$0xff]
    %v1404 = vld [vmem:[#allocation13 + $0xb0] sm:$0xff]
    %v1405 = vld [vmem:[#allocation13 + $0xb8] sm:$0xff]
    %v1406 = vld [vmem:[#allocation13 + $0xc0] sm:$0xff]
    %v1407 = vld [vmem:[#allocation13 + $0xc8] sm:$0xff]
    %v1408 = vld [vmem:[#allocation13 + $0xd0] sm:$0xff]
    %v1409 = vld [vmem:[#allocation13 + $0xd8] sm:$0xff]
    %v1410 = vld [vmem:[#allocation13 + $0xe0] sm:$0xff]
    %v1411 = vld [vmem:[#allocation13 + $0xe8] sm:$0xff]
    %v1412 = vld [vmem:[#allocation13 + $0xf0] sm:$0xff]
    %v1413 = vld [vmem:[#allocation13 + $0xf8] sm:$0xff]
    %v1414 = vld [vmem:[#allocation13 + $0x100] sm:$0xff]
    %v1415 = vld [vmem:[#allocation13 + $0x108] sm:$0xff]
    %v1416 = vld [vmem:[#allocation13 + $0x110] sm:$0xff]
    %v1417 = vld [vmem:[#allocation13 + $0x118] sm:$0xff]
    %v1418 = vld [vmem:[#allocation13 + $0x120] sm:$0xff]
    %v1419 = vld [vmem:[#allocation13 + $0x128] sm:$0xff]
    %v1420 = vld [vmem:[#allocation13 + $0x130] sm:$0xff]
    %v1421 = vld [vmem:[#allocation13 + $0x138] sm:$0xff]
    %v1422 = vld [vmem:[#allocation13 + $0x140] sm:$0xff]
    %v1423 = vld [vmem:[#allocation13 + $0x148] sm:$0xff]
    %v1424 = vld [vmem:[#allocation13 + $0x150] sm:$0xff]
    %v1425 = vld [vmem:[#allocation13 + $0x158] sm:$0xff]
    %v1426 = vld [vmem:[#allocation13 + $0x160] sm:$0xff]
    %v1427 = vld [vmem:[#allocation13 + $0x168] sm:$0xff]
    %v1428 = vld [vmem:[#allocation13 + $0x170] sm:$0xff]
    %v1429 = vld [vmem:[#allocation13 + $0x178] sm:$0xff]
    %v1430 = vld [vmem:[#allocation13 + $0x180] sm:$0xff]
    %v1431 = vld [vmem:[#allocation13 + $0x188] sm:$0xff]
    %v1432 = vld [vmem:[#allocation13 + $0x190] sm:$0xff]
    %v1433 = vld [vmem:[#allocation13 + $0x198] sm:$0xff]
    %v1434 = vld [vmem:[#allocation13 + $0x1a0] sm:$0xff]
    %v1435 = vld [vmem:[#allocation13 + $0x1a8] sm:$0xff]
    %v1436 = vld [vmem:[#allocation13 + $0x1b0] sm:$0xff]
    %v1437 = vld [vmem:[#allocation13 + $0x1b8] sm:$0xff]
    %v1438 = vld [vmem:[#allocation13 + $0x1c0] sm:$0xff]
    %v1439 = vld [vmem:[#allocation13 + $0x1c8] sm:$0xff]
    %v1440 = vld [vmem:[#allocation13 + $0x1d0] sm:$0xff]
    %v1441 = vld [vmem:[#allocation13 + $0x1d8] sm:$0xff]
    %v1442 = vld [vmem:[#allocation13 + $0x1e0] sm:$0xff]
    %v1443 = vld [vmem:[#allocation13 + $0x1e8] sm:$0xff]
    %v1444 = vld [vmem:[#allocation13 + $0x1f0] sm:$0xff]
    %v1445 = vld [vmem:[#allocation13 + $0x1f8] sm:$0xff]
    %v1446 = vld [vmem:[#allocation2 + $0x40] sm:$0xff]
    %v1447 = vld [vmem:[#allocation2 + $0x48] sm:$0xff]
    %v1448 = vld [vmem:[#allocation2 + $0x50] sm:$0xff]
    %v1449 = vld [vmem:[#allocation2 + $0x58] sm:$0xff]
    %v1450 = vld [vmem:[#allocation10] sm:$0xff]
    %v1451 = vld [vmem:[#allocation10 + $0x8] sm:$0xff]
    %v1452 = vld [vmem:[#allocation10 + $0x10] sm:$0xff]
    %v1453 = vld [vmem:[#allocation10 + $0x18] sm:$0xff]
    %v1454 = vld [vmem:[#allocation10 + $0x20] sm:$0xff]
    %v1455 = vld [vmem:[#allocation10 + $0x28] sm:$0xff]
    %v1456 = vld [vmem:[#allocation10 + $0x30] sm:$0xff]
    %v1457 = vld [vmem:[#allocation10 + $0x38] sm:$0xff]
    %v1458 = vld [vmem:[#allocation10 + $0x40] sm:$0xff]
    %v1459 = vld [vmem:[#allocation10 + $0x48] sm:$0xff]
    %v1460 = vld [vmem:[#allocation10 + $0x50] sm:$0xff]
    %v1461 = vld [vmem:[#allocation10 + $0x58] sm:$0xff]
    %v1462 = vld [vmem:[#allocation10 + $0x60] sm:$0xff]
    %v1463 = vld [vmem:[#allocation10 + $0x68] sm:$0xff]
    %v1464 = vld [vmem:[#allocation10 + $0x70] sm:$0xff]
    %v1465 = vld [vmem:[#allocation10 + $0x78] sm:$0xff]
    %v1466 = vld [vmem:[#allocation10 + $0x80] sm:$0xff]
    %v1467 = vld [vmem:[#allocation10 + $0x88] sm:$0xff]
    %v1468 = vld [vmem:[#allocation10 + $0x90] sm:$0xff]
    %v1469 = vld [vmem:[#allocation10 + $0x98] sm:$0xff]
    %v1470 = vld [vmem:[#allocation10 + $0xa0] sm:$0xff]
    %v1471 = vld [vmem:[#allocation10 + $0xa8] sm:$0xff]
    %v1472 = vld [vmem:[#allocation10 + $0xb0] sm:$0xff]
    %v1473 = vld [vmem:[#allocation10 + $0xb8] sm:$0xff]
    %v1474 = vld [vmem:[#allocation10 + $0xc0] sm:$0xff]
    %v1475 = vld [vmem:[#allocation10 + $0xc8] sm:$0xff]
    %v1476 = vld [vmem:[#allocation10 + $0xd0] sm:$0xff]
    %v1477 = vld [vmem:[#allocation10 + $0xd8] sm:$0xff]
    %v1478 = vld [vmem:[#allocation10 + $0xe0] sm:$0xff]
    %v1479 = vld [vmem:[#allocation10 + $0xe8] sm:$0xff]
    %v1480 = vld [vmem:[#allocation10 + $0xf0] sm:$0xff]
    %v1481 = vld [vmem:[#allocation10 + $0xf8] sm:$0xff]
    %v1482 = vld [vmem:[#allocation10 + $0x100] sm:$0xff]
    %v1483 = vld [vmem:[#allocation10 + $0x108] sm:$0xff]
    %v1484 = vld [vmem:[#allocation10 + $0x110] sm:$0xff]
    %v1485 = vld [vmem:[#allocation10 + $0x118] sm:$0xff]
    %v1486 = vld [vmem:[#allocation10 + $0x120] sm:$0xff]
    %v1487 = vld [vmem:[#allocation10 + $0x128] sm:$0xff]
    %v1488 = vld [vmem:[#allocation10 + $0x130] sm:$0xff]
    %v1489 = vld [vmem:[#allocation10 + $0x138] sm:$0xff]
    %v1490 = vld [vmem:[#allocation10 + $0x140] sm:$0xff]
    %v1491 = vld [vmem:[#allocation10 + $0x148] sm:$0xff]
    %v1492 = vld [vmem:[#allocation10 + $0x150] sm:$0xff]
    %v1493 = vld [vmem:[#allocation10 + $0x158] sm:$0xff]
    %v1494 = vld [vmem:[#allocation10 + $0x160] sm:$0xff]
    %v1495 = vld [vmem:[#allocation10 + $0x168] sm:$0xff]
    %v1496 = vld [vmem:[#allocation10 + $0x170] sm:$0xff]
    %v1497 = vld [vmem:[#allocation10 + $0x178] sm:$0xff]
    %v1498 = vld [vmem:[#allocation10 + $0x180] sm:$0xff]
    %v1499 = vld [vmem:[#allocation10 + $0x188] sm:$0xff]
    %v1500 = vld [vmem:[#allocation10 + $0x190] sm:$0xff]
    %v1501 = vld [vmem:[#allocation10 + $0x198] sm:$0xff]
    %v1502 = vld [vmem:[#allocation10 + $0x1a0] sm:$0xff]
    %v1503 = vld [vmem:[#allocation10 + $0x1a8] sm:$0xff]
    %v1504 = vld [vmem:[#allocation10 + $0x1b0] sm:$0xff]
    %v1505 = vld [vmem:[#allocation10 + $0x1b8] sm:$0xff]
    %v1506 = vld [vmem:[#allocation10 + $0x1c0] sm:$0xff]
    %v1507 = vld [vmem:[#allocation10 + $0x1c8] sm:$0xff]
    %v1508 = vld [vmem:[#allocation10 + $0x1d0] sm:$0xff]
    %v1509 = vld [vmem:[#allocation10 + $0x1d8] sm:$0xff]
    %v1510 = vld [vmem:[#allocation10 + $0x1e0] sm:$0xff]
    %v1511 = vld [vmem:[#allocation10 + $0x1e8] sm:$0xff]
    %v1512 = vld [vmem:[#allocation10 + $0x1f0] sm:$0xff]
    %v1513 = vld [vmem:[#allocation10 + $0x1f8] sm:$0xff]
    %1514 = vmatpush.msra.mxu0 %v1510
    %1515 = vmatpush.msra.mxu0 %v1506
    %1516 = vmatpush.msra.mxu0 %v1502
    %1517 = vmatpush.msra.mxu0 %v1498
    %1518 = vmatpush.msra.mxu0 %v1494
    %1519 = vmatpush.msra.mxu0 %v1490
    %1520 = vmatpush.msra.mxu0 %v1486
    %1521 = vmatpush.msra.mxu0 %v1482
    %1522 = vmatpush.msra.mxu0 %v1478
    %1523 = vmatpush.msra.mxu0 %v1474
    %1524 = vmatpush.msra.mxu0 %v1470
    %1525 = vmatpush.msra.mxu0 %v1466
    %1526 = vmatpush.msra.mxu0 %v1462
    %1527 = vmatpush.msra.mxu0 %v1458
    %1528 = vmatpush.msra.mxu0 %v1454
    %1529 = vmatpush.msra.mxu0 %v1450
    %1530 = vmatmul.f32.gmra.mxu0 %v1133
    %v1531 = vpop.f32.mrf.mxu0
    %v1532 = vadd.f32 0.0, %v1531
    %1533 = vdwg.mxu0
    %1534 = vmatpush.msra.mxu0 %v1511
    %1535 = vmatpush.msra.mxu0 %v1507
    %1536 = vmatpush.msra.mxu0 %v1503
    %1537 = vmatpush.msra.mxu0 %v1499
    %1538 = vmatpush.msra.mxu0 %v1495
    %1539 = vmatpush.msra.mxu0 %v1491
    %1540 = vmatpush.msra.mxu0 %v1487
    %1541 = vmatpush.msra.mxu0 %v1483
    %1542 = vmatpush.msra.mxu0 %v1479
    %1543 = vmatpush.msra.mxu0 %v1475
    %1544 = vmatpush.msra.mxu0 %v1471
    %1545 = vmatpush.msra.mxu0 %v1467
    %1546 = vmatpush.msra.mxu0 %v1463
    %1547 = vmatpush.msra.mxu0 %v1459
    %1548 = vmatpush.msra.mxu0 %v1455
    %1549 = vmatpush.msra.mxu0 %v1451
    %1550 = vmatmul.f32.gmra.mxu0 %v1133
    %v1551 = vpop.f32.mrf.mxu0
    %v1552 = vadd.f32 0.0, %v1551
    %1553 = vdwg.mxu0
    %1554 = vmatpush.msra.mxu0 %v1512
    %1555 = vmatpush.msra.mxu0 %v1508
    %1556 = vmatpush.msra.mxu0 %v1504
    %1557 = vmatpush.msra.mxu0 %v1500
    %1558 = vmatpush.msra.mxu0 %v1496
    %1559 = vmatpush.msra.mxu0 %v1492
    %1560 = vmatpush.msra.mxu0 %v1488
    %1561 = vmatpush.msra.mxu0 %v1484
    %1562 = vmatpush.msra.mxu0 %v1480
    %1563 = vmatpush.msra.mxu0 %v1476
    %1564 = vmatpush.msra.mxu0 %v1472
    %1565 = vmatpush.msra.mxu0 %v1468
    %1566 = vmatpush.msra.mxu0 %v1464
    %1567 = vmatpush.msra.mxu0 %v1460
    %1568 = vmatpush.msra.mxu0 %v1456
    %1569 = vmatpush.msra.mxu0 %v1452
    %1570 = vmatmul.f32.gmra.mxu0 %v1133
    %v1571 = vpop.f32.mrf.mxu0
    %v1572 = vadd.f32 0.0, %v1571
    %1573 = vdwg.mxu0
    %1574 = vmatpush.msra.mxu0 %v1513
    %1575 = vmatpush.msra.mxu0 %v1509
    %1576 = vmatpush.msra.mxu0 %v1505
    %1577 = vmatpush.msra.mxu0 %v1501
    %1578 = vmatpush.msra.mxu0 %v1497
    %1579 = vmatpush.msra.mxu0 %v1493
    %1580 = vmatpush.msra.mxu0 %v1489
    %1581 = vmatpush.msra.mxu0 %v1485
    %1582 = vmatpush.msra.mxu0 %v1481
    %1583 = vmatpush.msra.mxu0 %v1477
    %1584 = vmatpush.msra.mxu0 %v1473
    %1585 = vmatpush.msra.mxu0 %v1469
    %1586 = vmatpush.msra.mxu0 %v1465
    %1587 = vmatpush.msra.mxu0 %v1461
    %1588 = vmatpush.msra.mxu0 %v1457
    %1589 = vmatpush.msra.mxu0 %v1453
    %1590 = vmatmul.f32.gmra.mxu0 %v1133
    %v1591 = vpop.f32.mrf.mxu0
    %v1592 = vadd.f32 0.0, %v1591
    %1593 = vdwg.mxu0
    %v1594 = vadd.f32 %v1446, %v1532
    %v1595 = vadd.f32 %v1447, %v1552
    %v1596 = vadd.f32 %v1448, %v1572
    %v1597 = vadd.f32 %v1449, %v1592
    %v1598 = vmul.f32 %v1594, 0.5
    %v1599 = vtanh.pop %v1598
    %v1600 = vmul.f32 %v1599, 0.5
    %v1601 = vadd.f32 %v1600, 0.5
    %v1602 = vmul.f32 %v1595, 0.5
    %v1603 = vtanh.pop %v1602
    %v1604 = vmul.f32 %v1603, 0.5
    %v1605 = vadd.f32 %v1604, 0.5
    %v1606 = vtanh.pop %v1596
    %v1607 = vmul.f32 %v1597, 0.5
    %v1608 = vtanh.pop %v1607
    %v1609 = vmul.f32 %v1608, 0.5
    %v1610 = vadd.f32 %v1609, 0.5
    %v1611 = vmul.f32 %v1605, %v1131
    %v1612 = vmul.f32 %v1601, %v1606
    %v1613 = vadd.f32 %v1611, %v1612
    %v1614 = vtanh.pop %v1613
    %v1615 = vmul.f32 %v1610, %v1614
    %1616 = vmatpush.msra.mxu0 %v1442
    %1617 = vmatpush.msra.mxu0 %v1438
    %1618 = vmatpush.msra.mxu0 %v1434
    %1619 = vmatpush.msra.mxu0 %v1430
    %1620 = vmatpush.msra.mxu0 %v1426
    %1621 = vmatpush.msra.mxu0 %v1422
    %1622 = vmatpush.msra.mxu0 %v1418
    %1623 = vmatpush.msra.mxu0 %v1414
    %1624 = vmatpush.msra.mxu0 %v1410
    %1625 = vmatpush.msra.mxu0 %v1406
    %1626 = vmatpush.msra.mxu0 %v1402
    %1627 = vmatpush.msra.mxu0 %v1398
    %1628 = vmatpush.msra.mxu0 %v1394
    %1629 = vmatpush.msra.mxu0 %v1390
    %1630 = vmatpush.msra.mxu0 %v1386
    %1631 = vmatpush.msra.mxu0 %v1382
    %1632 = vmatmul.f32.gmra.mxu0 %v1379
    %v1633 = vpop.f32.mrf.mxu0
    %v1634 = vadd.f32 %v645, %v1633
    %1635 = vdwg.mxu0
    %1636 = vmatpush.msra.mxu0 %v1443
    %1637 = vmatpush.msra.mxu0 %v1439
    %1638 = vmatpush.msra.mxu0 %v1435
    %1639 = vmatpush.msra.mxu0 %v1431
    %1640 = vmatpush.msra.mxu0 %v1427
    %1641 = vmatpush.msra.mxu0 %v1423
    %1642 = vmatpush.msra.mxu0 %v1419
    %1643 = vmatpush.msra.mxu0 %v1415
    %1644 = vmatpush.msra.mxu0 %v1411
    %1645 = vmatpush.msra.mxu0 %v1407
    %1646 = vmatpush.msra.mxu0 %v1403
    %1647 = vmatpush.msra.mxu0 %v1399
    %1648 = vmatpush.msra.mxu0 %v1395
    %1649 = vmatpush.msra.mxu0 %v1391
    %1650 = vmatpush.msra.mxu0 %v1387
    %1651 = vmatpush.msra.mxu0 %v1383
    %1652 = vmatmul.f32.gmra.mxu0 %v1379
    %v1653 = vpop.f32.mrf.mxu0
    %v1654 = vadd.f32 %v646, %v1653
    %1655 = vdwg.mxu0
    %1656 = vmatpush.msra.mxu0 %v1444
    %1657 = vmatpush.msra.mxu0 %v1440
    %1658 = vmatpush.msra.mxu0 %v1436
    %1659 = vmatpush.msra.mxu0 %v1432
    %1660 = vmatpush.msra.mxu0 %v1428
    %1661 = vmatpush.msra.mxu0 %v1424
    %1662 = vmatpush.msra.mxu0 %v1420
    %1663 = vmatpush.msra.mxu0 %v1416
    %1664 = vmatpush.msra.mxu0 %v1412
    %1665 = vmatpush.msra.mxu0 %v1408
    %1666 = vmatpush.msra.mxu0 %v1404
    %1667 = vmatpush.msra.mxu0 %v1400
    %1668 = vmatpush.msra.mxu0 %v1396
    %1669 = vmatpush.msra.mxu0 %v1392
    %1670 = vmatpush.msra.mxu0 %v1388
    %1671 = vmatpush.msra.mxu0 %v1384
    %1672 = vmatmul.f32.gmra.mxu0 %v1379
    %v1673 = vpop.f32.mrf.mxu0
    %v1674 = vadd.f32 %v647, %v1673
    %1675 = vdwg.mxu0
    %1676 = vmatpush.msra.mxu0 %v1445
    %1677 = vmatpush.msra.mxu0 %v1441
    %1678 = vmatpush.msra.mxu0 %v1437
    %1679 = vmatpush.msra.mxu0 %v1433
    %1680 = vmatpush.msra.mxu0 %v1429
    %1681 = vmatpush.msra.mxu0 %v1425
    %1682 = vmatpush.msra.mxu0 %v1421
    %1683 = vmatpush.msra.mxu0 %v1417
    %1684 = vmatpush.msra.mxu0 %v1413
    %1685 = vmatpush.msra.mxu0 %v1409
    %1686 = vmatpush.msra.mxu0 %v1405
    %1687 = vmatpush.msra.mxu0 %v1401
    %1688 = vmatpush.msra.mxu0 %v1397
    %1689 = vmatpush.msra.mxu0 %v1393
    %1690 = vmatpush.msra.mxu0 %v1389
    %1691 = vmatpush.msra.mxu0 %v1385
    %1692 = vmatmul.f32.gmra.mxu0 %v1379
    %v1693 = vpop.f32.mrf.mxu0
    %v1694 = vadd.f32 %v648, %v1693
    %1695 = vdwg.mxu0
    %v1696 = vld [vmem:[#allocation11] sm:$0xff]
    %v1697 = vld [vmem:[#allocation11 + $0x8] sm:$0xff]
    %v1698 = vld [vmem:[#allocation11 + $0x10] sm:$0xff]
    %v1699 = vld [vmem:[#allocation11 + $0x18] sm:$0xff]
    %v1700 = vld [vmem:[#allocation11 + $0x20] sm:$0xff]
    %v1701 = vld [vmem:[#allocation11 + $0x28] sm:$0xff]
    %v1702 = vld [vmem:[#allocation11 + $0x30] sm:$0xff]
    %v1703 = vld [vmem:[#allocation11 + $0x38] sm:$0xff]
    %v1704 = vld [vmem:[#allocation11 + $0x40] sm:$0xff]
    %v1705 = vld [vmem:[#allocation11 + $0x48] sm:$0xff]
    %v1706 = vld [vmem:[#allocation11 + $0x50] sm:$0xff]
    %v1707 = vld [vmem:[#allocation11 + $0x58] sm:$0xff]
    %v1708 = vld [vmem:[#allocation11 + $0x60] sm:$0xff]
    %v1709 = vld [vmem:[#allocation11 + $0x68] sm:$0xff]
    %v1710 = vld [vmem:[#allocation11 + $0x70] sm:$0xff]
    %v1711 = vld [vmem:[#allocation11 + $0x78] sm:$0xff]
    %v1712 = vld [vmem:[#allocation11 + $0x80] sm:$0xff]
    %v1713 = vld [vmem:[#allocation11 + $0x88] sm:$0xff]
    %v1714 = vld [vmem:[#allocation11 + $0x90] sm:$0xff]
    %v1715 = vld [vmem:[#allocation11 + $0x98] sm:$0xff]
    %v1716 = vld [vmem:[#allocation11 + $0xa0] sm:$0xff]
    %v1717 = vld [vmem:[#allocation11 + $0xa8] sm:$0xff]
    %v1718 = vld [vmem:[#allocation11 + $0xb0] sm:$0xff]
    %v1719 = vld [vmem:[#allocation11 + $0xb8] sm:$0xff]
    %v1720 = vld [vmem:[#allocation11 + $0xc0] sm:$0xff]
    %v1721 = vld [vmem:[#allocation11 + $0xc8] sm:$0xff]
    %v1722 = vld [vmem:[#allocation11 + $0xd0] sm:$0xff]
    %v1723 = vld [vmem:[#allocation11 + $0xd8] sm:$0xff]
    %v1724 = vld [vmem:[#allocation11 + $0xe0] sm:$0xff]
    %v1725 = vld [vmem:[#allocation11 + $0xe8] sm:$0xff]
    %v1726 = vld [vmem:[#allocation11 + $0xf0] sm:$0xff]
    %v1727 = vld [vmem:[#allocation11 + $0xf8] sm:$0xff]
    %v1728 = vld [vmem:[#allocation11 + $0x100] sm:$0xff]
    %v1729 = vld [vmem:[#allocation11 + $0x108] sm:$0xff]
    %v1730 = vld [vmem:[#allocation11 + $0x110] sm:$0xff]
    %v1731 = vld [vmem:[#allocation11 + $0x118] sm:$0xff]
    %v1732 = vld [vmem:[#allocation11 + $0x120] sm:$0xff]
    %v1733 = vld [vmem:[#allocation11 + $0x128] sm:$0xff]
    %v1734 = vld [vmem:[#allocation11 + $0x130] sm:$0xff]
    %v1735 = vld [vmem:[#allocation11 + $0x138] sm:$0xff]
    %v1736 = vld [vmem:[#allocation11 + $0x140] sm:$0xff]
    %v1737 = vld [vmem:[#allocation11 + $0x148] sm:$0xff]
    %v1738 = vld [vmem:[#allocation11 + $0x150] sm:$0xff]
    %v1739 = vld [vmem:[#allocation11 + $0x158] sm:$0xff]
    %v1740 = vld [vmem:[#allocation11 + $0x160] sm:$0xff]
    %v1741 = vld [vmem:[#allocation11 + $0x168] sm:$0xff]
    %v1742 = vld [vmem:[#allocation11 + $0x170] sm:$0xff]
    %v1743 = vld [vmem:[#allocation11 + $0x178] sm:$0xff]
    %v1744 = vld [vmem:[#allocation11 + $0x180] sm:$0xff]
    %v1745 = vld [vmem:[#allocation11 + $0x188] sm:$0xff]
    %v1746 = vld [vmem:[#allocation11 + $0x190] sm:$0xff]
    %v1747 = vld [vmem:[#allocation11 + $0x198] sm:$0xff]
    %v1748 = vld [vmem:[#allocation11 + $0x1a0] sm:$0xff]
    %v1749 = vld [vmem:[#allocation11 + $0x1a8] sm:$0xff]
    %v1750 = vld [vmem:[#allocation11 + $0x1b0] sm:$0xff]
    %v1751 = vld [vmem:[#allocation11 + $0x1b8] sm:$0xff]
    %v1752 = vld [vmem:[#allocation11 + $0x1c0] sm:$0xff]
    %v1753 = vld [vmem:[#allocation11 + $0x1c8] sm:$0xff]
    %v1754 = vld [vmem:[#allocation11 + $0x1d0] sm:$0xff]
    %v1755 = vld [vmem:[#allocation11 + $0x1d8] sm:$0xff]
    %v1756 = vld [vmem:[#allocation11 + $0x1e0] sm:$0xff]
    %v1757 = vld [vmem:[#allocation11 + $0x1e8] sm:$0xff]
    %v1758 = vld [vmem:[#allocation11 + $0x1f0] sm:$0xff]
    %v1759 = vld [vmem:[#allocation11 + $0x1f8] sm:$0xff]
    %1760 = vmatpush.msra.mxu0 %v1756
    %1761 = vmatpush.msra.mxu0 %v1752
    %1762 = vmatpush.msra.mxu0 %v1748
    %1763 = vmatpush.msra.mxu0 %v1744
    %1764 = vmatpush.msra.mxu0 %v1740
    %1765 = vmatpush.msra.mxu0 %v1736
    %1766 = vmatpush.msra.mxu0 %v1732
    %1767 = vmatpush.msra.mxu0 %v1728
    %1768 = vmatpush.msra.mxu0 %v1724
    %1769 = vmatpush.msra.mxu0 %v1720
    %1770 = vmatpush.msra.mxu0 %v1716
    %1771 = vmatpush.msra.mxu0 %v1712
    %1772 = vmatpush.msra.mxu0 %v1708
    %1773 = vmatpush.msra.mxu0 %v1704
    %1774 = vmatpush.msra.mxu0 %v1700
    %1775 = vmatpush.msra.mxu0 %v1696
    %1776 = vmatmul.f32.gmra.mxu0 %v1615
    %v1777 = vpop.f32.mrf.mxu0
    %v1778 = vadd.f32 0.0, %v1777
    %1779 = vdwg.mxu0
    %1780 = vmatpush.msra.mxu0 %v1757
    %1781 = vmatpush.msra.mxu0 %v1753
    %1782 = vmatpush.msra.mxu0 %v1749
    %1783 = vmatpush.msra.mxu0 %v1745
    %1784 = vmatpush.msra.mxu0 %v1741
    %1785 = vmatpush.msra.mxu0 %v1737
    %1786 = vmatpush.msra.mxu0 %v1733
    %1787 = vmatpush.msra.mxu0 %v1729
    %1788 = vmatpush.msra.mxu0 %v1725
    %1789 = vmatpush.msra.mxu0 %v1721
    %1790 = vmatpush.msra.mxu0 %v1717
    %1791 = vmatpush.msra.mxu0 %v1713
    %1792 = vmatpush.msra.mxu0 %v1709
    %1793 = vmatpush.msra.mxu0 %v1705
    %1794 = vmatpush.msra.mxu0 %v1701
    %1795 = vmatpush.msra.mxu0 %v1697
    %1796 = vmatmul.f32.gmra.mxu0 %v1615
    %v1797 = vpop.f32.mrf.mxu0
    %v1798 = vadd.f32 0.0, %v1797
    %1799 = vdwg.mxu0
    %1800 = vmatpush.msra.mxu0 %v1758
    %1801 = vmatpush.msra.mxu0 %v1754
    %1802 = vmatpush.msra.mxu0 %v1750
    %1803 = vmatpush.msra.mxu0 %v1746
    %1804 = vmatpush.msra.mxu0 %v1742
    %1805 = vmatpush.msra.mxu0 %v1738
    %1806 = vmatpush.msra.mxu0 %v1734
    %1807 = vmatpush.msra.mxu0 %v1730
    %1808 = vmatpush.msra.mxu0 %v1726
    %1809 = vmatpush.msra.mxu0 %v1722
    %1810 = vmatpush.msra.mxu0 %v1718
    %1811 = vmatpush.msra.mxu0 %v1714
    %1812 = vmatpush.msra.mxu0 %v1710
    %1813 = vmatpush.msra.mxu0 %v1706
    %1814 = vmatpush.msra.mxu0 %v1702
    %1815 = vmatpush.msra.mxu0 %v1698
    %1816 = vmatmul.f32.gmra.mxu0 %v1615
    %v1817 = vpop.f32.mrf.mxu0
    %v1818 = vadd.f32 0.0, %v1817
    %1819 = vdwg.mxu0
    %1820 = vmatpush.msra.mxu0 %v1759
    %1821 = vmatpush.msra.mxu0 %v1755
    %1822 = vmatpush.msra.mxu0 %v1751
    %1823 = vmatpush.msra.mxu0 %v1747
    %1824 = vmatpush.msra.mxu0 %v1743
    %1825 = vmatpush.msra.mxu0 %v1739
    %1826 = vmatpush.msra.mxu0 %v1735
    %1827 = vmatpush.msra.mxu0 %v1731
    %1828 = vmatpush.msra.mxu0 %v1727
    %1829 = vmatpush.msra.mxu0 %v1723
    %1830 = vmatpush.msra.mxu0 %v1719
    %1831 = vmatpush.msra.mxu0 %v1715
    %1832 = vmatpush.msra.mxu0 %v1711
    %1833 = vmatpush.msra.mxu0 %v1707
    %1834 = vmatpush.msra.mxu0 %v1703
    %1835 = vmatpush.msra.mxu0 %v1699
    %1836 = vmatmul.f32.gmra.mxu0 %v1615
    %v1837 = vpop.f32.mrf.mxu0
    %v1838 = vadd.f32 0.0, %v1837
    %1839 = vdwg.mxu0
    %v1840 = vadd.f32 %v1634, %v1778
    %v1841 = vadd.f32 %v1654, %v1798
    %v1842 = vadd.f32 %v1674, %v1818
    %v1843 = vadd.f32 %v1694, %v1838
    %v1844 = vmul.f32 %v1840, 0.5
    %v1845 = vtanh.pop %v1844
    %v1846 = vmul.f32 %v1845, 0.5
    %v1847 = vadd.f32 %v1846, 0.5
    %v1848 = vmul.f32 %v1841, 0.5
    %v1849 = vtanh.pop %v1848
    %v1850 = vmul.f32 %v1849, 0.5
    %v1851 = vadd.f32 %v1850, 0.5
    %v1852 = vtanh.pop %v1842
    %v1853 = vmul.f32 %v1843, 0.5
    %v1854 = vtanh.pop %v1853
    %v1855 = vmul.f32 %v1854, 0.5
    %v1856 = vadd.f32 %v1855, 0.5
    %v1857 = vmul.f32 %v1851, %v1377
    %v1858 = vmul.f32 %v1847, %v1852
    %v1859 = vadd.f32 %v1857, %v1858
    %v1860 = vtanh.pop %v1859
    %v1861 = vmul.f32 %v1856, %v1860
    %s1862 = scalar_lea.vmem [#allocation16], 16
    %1863 = vst [vmem:[%s1862] sm:$0xff] %v1861
    %v1864 = vld [vmem:[#allocation13] sm:$0xff]
    %v1865 = vld [vmem:[#allocation13 + $0x8] sm:$0xff]
    %v1866 = vld [vmem:[#allocation13 + $0x10] sm:$0xff]
    %v1867 = vld [vmem:[#allocation13 + $0x18] sm:$0xff]
    %v1868 = vld [vmem:[#allocation13 + $0x20] sm:$0xff]
    %v1869 = vld [vmem:[#allocation13 + $0x28] sm:$0xff]
    %v1870 = vld [vmem:[#allocation13 + $0x30] sm:$0xff]
    %v1871 = vld [vmem:[#allocation13 + $0x38] sm:$0xff]
    %v1872 = vld [vmem:[#allocation13 + $0x40] sm:$0xff]
    %v1873 = vld [vmem:[#allocation13 + $0x48] sm:$0xff]
    %v1874 = vld [vmem:[#allocation13 + $0x50] sm:$0xff]
    %v1875 = vld [vmem:[#allocation13 + $0x58] sm:$0xff]
    %v1876 = vld [vmem:[#allocation13 + $0x60] sm:$0xff]
    %v1877 = vld [vmem:[#allocation13 + $0x68] sm:$0xff]
    %v1878 = vld [vmem:[#allocation13 + $0x70] sm:$0xff]
    %v1879 = vld [vmem:[#allocation13 + $0x78] sm:$0xff]
    %v1880 = vld [vmem:[#allocation13 + $0x80] sm:$0xff]
    %v1881 = vld [vmem:[#allocation13 + $0x88] sm:$0xff]
    %v1882 = vld [vmem:[#allocation13 + $0x90] sm:$0xff]
    %v1883 = vld [vmem:[#allocation13 + $0x98] sm:$0xff]
    %v1884 = vld [vmem:[#allocation13 + $0xa0] sm:$0xff]
    %v1885 = vld [vmem:[#allocation13 + $0xa8] sm:$0xff]
    %v1886 = vld [vmem:[#allocation13 + $0xb0] sm:$0xff]
    %v1887 = vld [vmem:[#allocation13 + $0xb8] sm:$0xff]
    %v1888 = vld [vmem:[#allocation13 + $0xc0] sm:$0xff]
    %v1889 = vld [vmem:[#allocation13 + $0xc8] sm:$0xff]
    %v1890 = vld [vmem:[#allocation13 + $0xd0] sm:$0xff]
    %v1891 = vld [vmem:[#allocation13 + $0xd8] sm:$0xff]
    %v1892 = vld [vmem:[#allocation13 + $0xe0] sm:$0xff]
    %v1893 = vld [vmem:[#allocation13 + $0xe8] sm:$0xff]
    %v1894 = vld [vmem:[#allocation13 + $0xf0] sm:$0xff]
    %v1895 = vld [vmem:[#allocation13 + $0xf8] sm:$0xff]
    %v1896 = vld [vmem:[#allocation13 + $0x100] sm:$0xff]
    %v1897 = vld [vmem:[#allocation13 + $0x108] sm:$0xff]
    %v1898 = vld [vmem:[#allocation13 + $0x110] sm:$0xff]
    %v1899 = vld [vmem:[#allocation13 + $0x118] sm:$0xff]
    %v1900 = vld [vmem:[#allocation13 + $0x120] sm:$0xff]
    %v1901 = vld [vmem:[#allocation13 + $0x128] sm:$0xff]
    %v1902 = vld [vmem:[#allocation13 + $0x130] sm:$0xff]
    %v1903 = vld [vmem:[#allocation13 + $0x138] sm:$0xff]
    %v1904 = vld [vmem:[#allocation13 + $0x140] sm:$0xff]
    %v1905 = vld [vmem:[#allocation13 + $0x148] sm:$0xff]
    %v1906 = vld [vmem:[#allocation13 + $0x150] sm:$0xff]
    %v1907 = vld [vmem:[#allocation13 + $0x158] sm:$0xff]
    %v1908 = vld [vmem:[#allocation13 + $0x160] sm:$0xff]
    %v1909 = vld [vmem:[#allocation13 + $0x168] sm:$0xff]
    %v1910 = vld [vmem:[#allocation13 + $0x170] sm:$0xff]
    %v1911 = vld [vmem:[#allocation13 + $0x178] sm:$0xff]
    %v1912 = vld [vmem:[#allocation13 + $0x180] sm:$0xff]
    %v1913 = vld [vmem:[#allocation13 + $0x188] sm:$0xff]
    %v1914 = vld [vmem:[#allocation13 + $0x190] sm:$0xff]
    %v1915 = vld [vmem:[#allocation13 + $0x198] sm:$0xff]
    %v1916 = vld [vmem:[#allocation13 + $0x1a0] sm:$0xff]
    %v1917 = vld [vmem:[#allocation13 + $0x1a8] sm:$0xff]
    %v1918 = vld [vmem:[#allocation13 + $0x1b0] sm:$0xff]
    %v1919 = vld [vmem:[#allocation13 + $0x1b8] sm:$0xff]
    %v1920 = vld [vmem:[#allocation13 + $0x1c0] sm:$0xff]
    %v1921 = vld [vmem:[#allocation13 + $0x1c8] sm:$0xff]
    %v1922 = vld [vmem:[#allocation13 + $0x1d0] sm:$0xff]
    %v1923 = vld [vmem:[#allocation13 + $0x1d8] sm:$0xff]
    %v1924 = vld [vmem:[#allocation13 + $0x1e0] sm:$0xff]
    %v1925 = vld [vmem:[#allocation13 + $0x1e8] sm:$0xff]
    %v1926 = vld [vmem:[#allocation13 + $0x1f0] sm:$0xff]
    %v1927 = vld [vmem:[#allocation13 + $0x1f8] sm:$0xff]
    %v1928 = vld [vmem:[#allocation2 + $0x60] sm:$0xff]
    %v1929 = vld [vmem:[#allocation2 + $0x68] sm:$0xff]
    %v1930 = vld [vmem:[#allocation2 + $0x70] sm:$0xff]
    %v1931 = vld [vmem:[#allocation2 + $0x78] sm:$0xff]
    %v1932 = vld [vmem:[#allocation10] sm:$0xff]
    %v1933 = vld [vmem:[#allocation10 + $0x8] sm:$0xff]
    %v1934 = vld [vmem:[#allocation10 + $0x10] sm:$0xff]
    %v1935 = vld [vmem:[#allocation10 + $0x18] sm:$0xff]
    %v1936 = vld [vmem:[#allocation10 + $0x20] sm:$0xff]
    %v1937 = vld [vmem:[#allocation10 + $0x28] sm:$0xff]
    %v1938 = vld [vmem:[#allocation10 + $0x30] sm:$0xff]
    %v1939 = vld [vmem:[#allocation10 + $0x38] sm:$0xff]
    %v1940 = vld [vmem:[#allocation10 + $0x40] sm:$0xff]
    %v1941 = vld [vmem:[#allocation10 + $0x48] sm:$0xff]
    %v1942 = vld [vmem:[#allocation10 + $0x50] sm:$0xff]
    %v1943 = vld [vmem:[#allocation10 + $0x58] sm:$0xff]
    %v1944 = vld [vmem:[#allocation10 + $0x60] sm:$0xff]
    %v1945 = vld [vmem:[#allocation10 + $0x68] sm:$0xff]
    %v1946 = vld [vmem:[#allocation10 + $0x70] sm:$0xff]
    %v1947 = vld [vmem:[#allocation10 + $0x78] sm:$0xff]
    %v1948 = vld [vmem:[#allocation10 + $0x80] sm:$0xff]
    %v1949 = vld [vmem:[#allocation10 + $0x88] sm:$0xff]
    %v1950 = vld [vmem:[#allocation10 + $0x90] sm:$0xff]
    %v1951 = vld [vmem:[#allocation10 + $0x98] sm:$0xff]
    %v1952 = vld [vmem:[#allocation10 + $0xa0] sm:$0xff]
    %v1953 = vld [vmem:[#allocation10 + $0xa8] sm:$0xff]
    %v1954 = vld [vmem:[#allocation10 + $0xb0] sm:$0xff]
    %v1955 = vld [vmem:[#allocation10 + $0xb8] sm:$0xff]
    %v1956 = vld [vmem:[#allocation10 + $0xc0] sm:$0xff]
    %v1957 = vld [vmem:[#allocation10 + $0xc8] sm:$0xff]
    %v1958 = vld [vmem:[#allocation10 + $0xd0] sm:$0xff]
    %v1959 = vld [vmem:[#allocation10 + $0xd8] sm:$0xff]
    %v1960 = vld [vmem:[#allocation10 + $0xe0] sm:$0xff]
    %v1961 = vld [vmem:[#allocation10 + $0xe8] sm:$0xff]
    %v1962 = vld [vmem:[#allocation10 + $0xf0] sm:$0xff]
    %v1963 = vld [vmem:[#allocation10 + $0xf8] sm:$0xff]
    %v1964 = vld [vmem:[#allocation10 + $0x100] sm:$0xff]
    %v1965 = vld [vmem:[#allocation10 + $0x108] sm:$0xff]
    %v1966 = vld [vmem:[#allocation10 + $0x110] sm:$0xff]
    %v1967 = vld [vmem:[#allocation10 + $0x118] sm:$0xff]
    %v1968 = vld [vmem:[#allocation10 + $0x120] sm:$0xff]
    %v1969 = vld [vmem:[#allocation10 + $0x128] sm:$0xff]
    %v1970 = vld [vmem:[#allocation10 + $0x130] sm:$0xff]
    %v1971 = vld [vmem:[#allocation10 + $0x138] sm:$0xff]
    %v1972 = vld [vmem:[#allocation10 + $0x140] sm:$0xff]
    %v1973 = vld [vmem:[#allocation10 + $0x148] sm:$0xff]
    %v1974 = vld [vmem:[#allocation10 + $0x150] sm:$0xff]
    %v1975 = vld [vmem:[#allocation10 + $0x158] sm:$0xff]
    %v1976 = vld [vmem:[#allocation10 + $0x160] sm:$0xff]
    %v1977 = vld [vmem:[#allocation10 + $0x168] sm:$0xff]
    %v1978 = vld [vmem:[#allocation10 + $0x170] sm:$0xff]
    %v1979 = vld [vmem:[#allocation10 + $0x178] sm:$0xff]
    %v1980 = vld [vmem:[#allocation10 + $0x180] sm:$0xff]
    %v1981 = vld [vmem:[#allocation10 + $0x188] sm:$0xff]
    %v1982 = vld [vmem:[#allocation10 + $0x190] sm:$0xff]
    %v1983 = vld [vmem:[#allocation10 + $0x198] sm:$0xff]
    %v1984 = vld [vmem:[#allocation10 + $0x1a0] sm:$0xff]
    %v1985 = vld [vmem:[#allocation10 + $0x1a8] sm:$0xff]
    %v1986 = vld [vmem:[#allocation10 + $0x1b0] sm:$0xff]
    %v1987 = vld [vmem:[#allocation10 + $0x1b8] sm:$0xff]
    %v1988 = vld [vmem:[#allocation10 + $0x1c0] sm:$0xff]
    %v1989 = vld [vmem:[#allocation10 + $0x1c8] sm:$0xff]
    %v1990 = vld [vmem:[#allocation10 + $0x1d0] sm:$0xff]
    %v1991 = vld [vmem:[#allocation10 + $0x1d8] sm:$0xff]
    %v1992 = vld [vmem:[#allocation10 + $0x1e0] sm:$0xff]
    %v1993 = vld [vmem:[#allocation10 + $0x1e8] sm:$0xff]
    %v1994 = vld [vmem:[#allocation10 + $0x1f0] sm:$0xff]
    %v1995 = vld [vmem:[#allocation10 + $0x1f8] sm:$0xff]
    %1996 = vmatpush.msra.mxu0 %v1992
    %1997 = vmatpush.msra.mxu0 %v1988
    %1998 = vmatpush.msra.mxu0 %v1984
    %1999 = vmatpush.msra.mxu0 %v1980
    %2000 = vmatpush.msra.mxu0 %v1976
    %2001 = vmatpush.msra.mxu0 %v1972
    %2002 = vmatpush.msra.mxu0 %v1968
    %2003 = vmatpush.msra.mxu0 %v1964
    %2004 = vmatpush.msra.mxu0 %v1960
    %2005 = vmatpush.msra.mxu0 %v1956
    %2006 = vmatpush.msra.mxu0 %v1952
    %2007 = vmatpush.msra.mxu0 %v1948
    %2008 = vmatpush.msra.mxu0 %v1944
    %2009 = vmatpush.msra.mxu0 %v1940
    %2010 = vmatpush.msra.mxu0 %v1936
    %2011 = vmatpush.msra.mxu0 %v1932
    %2012 = vmatmul.f32.gmra.mxu0 %v1615
    %v2013 = vpop.f32.mrf.mxu0
    %v2014 = vadd.f32 0.0, %v2013
    %2015 = vdwg.mxu0
    %2016 = vmatpush.msra.mxu0 %v1993
    %2017 = vmatpush.msra.mxu0 %v1989
    %2018 = vmatpush.msra.mxu0 %v1985
    %2019 = vmatpush.msra.mxu0 %v1981
    %2020 = vmatpush.msra.mxu0 %v1977
    %2021 = vmatpush.msra.mxu0 %v1973
    %2022 = vmatpush.msra.mxu0 %v1969
    %2023 = vmatpush.msra.mxu0 %v1965
    %2024 = vmatpush.msra.mxu0 %v1961
    %2025 = vmatpush.msra.mxu0 %v1957
    %2026 = vmatpush.msra.mxu0 %v1953
    %2027 = vmatpush.msra.mxu0 %v1949
    %2028 = vmatpush.msra.mxu0 %v1945
    %2029 = vmatpush.msra.mxu0 %v1941
    %2030 = vmatpush.msra.mxu0 %v1937
    %2031 = vmatpush.msra.mxu0 %v1933
    %2032 = vmatmul.f32.gmra.mxu0 %v1615
    %v2033 = vpop.f32.mrf.mxu0
    %v2034 = vadd.f32 0.0, %v2033
    %2035 = vdwg.mxu0
    %2036 = vmatpush.msra.mxu0 %v1994
    %2037 = vmatpush.msra.mxu0 %v1990
    %2038 = vmatpush.msra.mxu0 %v1986
    %2039 = vmatpush.msra.mxu0 %v1982
    %2040 = vmatpush.msra.mxu0 %v1978
    %2041 = vmatpush.msra.mxu0 %v1974
    %2042 = vmatpush.msra.mxu0 %v1970
    %2043 = vmatpush.msra.mxu0 %v1966
    %2044 = vmatpush.msra.mxu0 %v1962
    %2045 = vmatpush.msra.mxu0 %v1958
    %2046 = vmatpush.msra.mxu0 %v1954
    %2047 = vmatpush.msra.mxu0 %v1950
    %2048 = vmatpush.msra.mxu0 %v1946
    %2049 = vmatpush.msra.mxu0 %v1942
    %2050 = vmatpush.msra.mxu0 %v1938
    %2051 = vmatpush.msra.mxu0 %v1934
    %2052 = vmatmul.f32.gmra.mxu0 %v1615
    %v2053 = vpop.f32.mrf.mxu0
    %v2054 = vadd.f32 0.0, %v2053
    %2055 = vdwg.mxu0
    %2056 = vmatpush.msra.mxu0 %v1995
    %2057 = vmatpush.msra.mxu0 %v1991
    %2058 = vmatpush.msra.mxu0 %v1987
    %2059 = vmatpush.msra.mxu0 %v1983
    %2060 = vmatpush.msra.mxu0 %v1979
    %2061 = vmatpush.msra.mxu0 %v1975
    %2062 = vmatpush.msra.mxu0 %v1971
    %2063 = vmatpush.msra.mxu0 %v1967
    %2064 = vmatpush.msra.mxu0 %v1963
    %2065 = vmatpush.msra.mxu0 %v1959
    %2066 = vmatpush.msra.mxu0 %v1955
    %2067 = vmatpush.msra.mxu0 %v1951
    %2068 = vmatpush.msra.mxu0 %v1947
    %2069 = vmatpush.msra.mxu0 %v1943
    %2070 = vmatpush.msra.mxu0 %v1939
    %2071 = vmatpush.msra.mxu0 %v1935
    %2072 = vmatmul.f32.gmra.mxu0 %v1615
    %v2073 = vpop.f32.mrf.mxu0
    %v2074 = vadd.f32 0.0, %v2073
    %2075 = vdwg.mxu0
    %v2076 = vadd.f32 %v1928, %v2014
    %v2077 = vadd.f32 %v1929, %v2034
    %v2078 = vadd.f32 %v1930, %v2054
    %v2079 = vadd.f32 %v1931, %v2074
    %v2080 = vmul.f32 %v2076, 0.5
    %v2081 = vtanh.pop %v2080
    %v2082 = vmul.f32 %v2081, 0.5
    %v2083 = vadd.f32 %v2082, 0.5
    %v2084 = vmul.f32 %v2077, 0.5
    %v2085 = vtanh.pop %v2084
    %v2086 = vmul.f32 %v2085, 0.5
    %v2087 = vadd.f32 %v2086, 0.5
    %v2088 = vtanh.pop %v2078
    %v2089 = vmul.f32 %v2079, 0.5
    %v2090 = vtanh.pop %v2089
    %v2091 = vmul.f32 %v2090, 0.5
    %v2092 = vadd.f32 %v2091, 0.5
    %v2093 = vmul.f32 %v2087, %v1613
    %v2094 = vmul.f32 %v2083, %v2088
    %v2095 = vadd.f32 %v2093, %v2094
    %v2096 = vtanh.pop %v2095
    %v2097 = vmul.f32 %v2092, %v2096
    %2098 = vmatpush.msra.mxu0 %v1924
    %2099 = vmatpush.msra.mxu0 %v1920
    %2100 = vmatpush.msra.mxu0 %v1916
    %2101 = vmatpush.msra.mxu0 %v1912
    %2102 = vmatpush.msra.mxu0 %v1908
    %2103 = vmatpush.msra.mxu0 %v1904
    %2104 = vmatpush.msra.mxu0 %v1900
    %2105 = vmatpush.msra.mxu0 %v1896
    %2106 = vmatpush.msra.mxu0 %v1892
    %2107 = vmatpush.msra.mxu0 %v1888
    %2108 = vmatpush.msra.mxu0 %v1884
    %2109 = vmatpush.msra.mxu0 %v1880
    %2110 = vmatpush.msra.mxu0 %v1876
    %2111 = vmatpush.msra.mxu0 %v1872
    %2112 = vmatpush.msra.mxu0 %v1868
    %2113 = vmatpush.msra.mxu0 %v1864
    %2114 = vmatmul.f32.gmra.mxu0 %v1861
    %v2115 = vpop.f32.mrf.mxu0
    %v2116 = vadd.f32 %v645, %v2115
    %2117 = vdwg.mxu0
    %2118 = vmatpush.msra.mxu0 %v1925
    %2119 = vmatpush.msra.mxu0 %v1921
    %2120 = vmatpush.msra.mxu0 %v1917
    %2121 = vmatpush.msra.mxu0 %v1913
    %2122 = vmatpush.msra.mxu0 %v1909
    %2123 = vmatpush.msra.mxu0 %v1905
    %2124 = vmatpush.msra.mxu0 %v1901
    %2125 = vmatpush.msra.mxu0 %v1897
    %2126 = vmatpush.msra.mxu0 %v1893
    %2127 = vmatpush.msra.mxu0 %v1889
    %2128 = vmatpush.msra.mxu0 %v1885
    %2129 = vmatpush.msra.mxu0 %v1881
    %2130 = vmatpush.msra.mxu0 %v1877
    %2131 = vmatpush.msra.mxu0 %v1873
    %2132 = vmatpush.msra.mxu0 %v1869
    %2133 = vmatpush.msra.mxu0 %v1865
    %2134 = vmatmul.f32.gmra.mxu0 %v1861
    %v2135 = vpop.f32.mrf.mxu0
    %v2136 = vadd.f32 %v646, %v2135
    %2137 = vdwg.mxu0
    %2138 = vmatpush.msra.mxu0 %v1926
    %2139 = vmatpush.msra.mxu0 %v1922
    %2140 = vmatpush.msra.mxu0 %v1918
    %2141 = vmatpush.msra.mxu0 %v1914
    %2142 = vmatpush.msra.mxu0 %v1910
    %2143 = vmatpush.msra.mxu0 %v1906
    %2144 = vmatpush.msra.mxu0 %v1902
    %2145 = vmatpush.msra.mxu0 %v1898
    %2146 = vmatpush.msra.mxu0 %v1894
    %2147 = vmatpush.msra.mxu0 %v1890
    %2148 = vmatpush.msra.mxu0 %v1886
    %2149 = vmatpush.msra.mxu0 %v1882
    %2150 = vmatpush.msra.mxu0 %v1878
    %2151 = vmatpush.msra.mxu0 %v1874
    %2152 = vmatpush.msra.mxu0 %v1870
    %2153 = vmatpush.msra.mxu0 %v1866
    %2154 = vmatmul.f32.gmra.mxu0 %v1861
    %v2155 = vpop.f32.mrf.mxu0
    %v2156 = vadd.f32 %v647, %v2155
    %2157 = vdwg.mxu0
    %2158 = vmatpush.msra.mxu0 %v1927
    %2159 = vmatpush.msra.mxu0 %v1923
    %2160 = vmatpush.msra.mxu0 %v1919
    %2161 = vmatpush.msra.mxu0 %v1915
    %2162 = vmatpush.msra.mxu0 %v1911
    %2163 = vmatpush.msra.mxu0 %v1907
    %2164 = vmatpush.msra.mxu0 %v1903
    %2165 = vmatpush.msra.mxu0 %v1899
    %2166 = vmatpush.msra.mxu0 %v1895
    %2167 = vmatpush.msra.mxu0 %v1891
    %2168 = vmatpush.msra.mxu0 %v1887
    %2169 = vmatpush.msra.mxu0 %v1883
    %2170 = vmatpush.msra.mxu0 %v1879
    %2171 = vmatpush.msra.mxu0 %v1875
    %2172 = vmatpush.msra.mxu0 %v1871
    %2173 = vmatpush.msra.mxu0 %v1867
    %2174 = vmatmul.f32.gmra.mxu0 %v1861
    %v2175 = vpop.f32.mrf.mxu0
    %v2176 = vadd.f32 %v648, %v2175
    %2177 = vdwg.mxu0
    %v2178 = vld [vmem:[#allocation11] sm:$0xff]
    %v2179 = vld [vmem:[#allocation11 + $0x8] sm:$0xff]
    %v2180 = vld [vmem:[#allocation11 + $0x10] sm:$0xff]
    %v2181 = vld [vmem:[#allocation11 + $0x18] sm:$0xff]
    %v2182 = vld [vmem:[#allocation11 + $0x20] sm:$0xff]
    %v2183 = vld [vmem:[#allocation11 + $0x28] sm:$0xff]
    %v2184 = vld [vmem:[#allocation11 + $0x30] sm:$0xff]
    %v2185 = vld [vmem:[#allocation11 + $0x38] sm:$0xff]
    %v2186 = vld [vmem:[#allocation11 + $0x40] sm:$0xff]
    %v2187 = vld [vmem:[#allocation11 + $0x48] sm:$0xff]
    %v2188 = vld [vmem:[#allocation11 + $0x50] sm:$0xff]
    %v2189 = vld [vmem:[#allocation11 + $0x58] sm:$0xff]
    %v2190 = vld [vmem:[#allocation11 + $0x60] sm:$0xff]
    %v2191 = vld [vmem:[#allocation11 + $0x68] sm:$0xff]
    %v2192 = vld [vmem:[#allocation11 + $0x70] sm:$0xff]
    %v2193 = vld [vmem:[#allocation11 + $0x78] sm:$0xff]
    %v2194 = vld [vmem:[#allocation11 + $0x80] sm:$0xff]
    %v2195 = vld [vmem:[#allocation11 + $0x88] sm:$0xff]
    %v2196 = vld [vmem:[#allocation11 + $0x90] sm:$0xff]
    %v2197 = vld [vmem:[#allocation11 + $0x98] sm:$0xff]
    %v2198 = vld [vmem:[#allocation11 + $0xa0] sm:$0xff]
    %v2199 = vld [vmem:[#allocation11 + $0xa8] sm:$0xff]
    %v2200 = vld [vmem:[#allocation11 + $0xb0] sm:$0xff]
    %v2201 = vld [vmem:[#allocation11 + $0xb8] sm:$0xff]
    %v2202 = vld [vmem:[#allocation11 + $0xc0] sm:$0xff]
    %v2203 = vld [vmem:[#allocation11 + $0xc8] sm:$0xff]
    %v2204 = vld [vmem:[#allocation11 + $0xd0] sm:$0xff]
    %v2205 = vld [vmem:[#allocation11 + $0xd8] sm:$0xff]
    %v2206 = vld [vmem:[#allocation11 + $0xe0] sm:$0xff]
    %v2207 = vld [vmem:[#allocation11 + $0xe8] sm:$0xff]
    %v2208 = vld [vmem:[#allocation11 + $0xf0] sm:$0xff]
    %v2209 = vld [vmem:[#allocation11 + $0xf8] sm:$0xff]
    %v2210 = vld [vmem:[#allocation11 + $0x100] sm:$0xff]
    %v2211 = vld [vmem:[#allocation11 + $0x108] sm:$0xff]
    %v2212 = vld [vmem:[#allocation11 + $0x110] sm:$0xff]
    %v2213 = vld [vmem:[#allocation11 + $0x118] sm:$0xff]
    %v2214 = vld [vmem:[#allocation11 + $0x120] sm:$0xff]
    %v2215 = vld [vmem:[#allocation11 + $0x128] sm:$0xff]
    %v2216 = vld [vmem:[#allocation11 + $0x130] sm:$0xff]
    %v2217 = vld [vmem:[#allocation11 + $0x138] sm:$0xff]
    %v2218 = vld [vmem:[#allocation11 + $0x140] sm:$0xff]
    %v2219 = vld [vmem:[#allocation11 + $0x148] sm:$0xff]
    %v2220 = vld [vmem:[#allocation11 + $0x150] sm:$0xff]
    %v2221 = vld [vmem:[#allocation11 + $0x158] sm:$0xff]
    %v2222 = vld [vmem:[#allocation11 + $0x160] sm:$0xff]
    %v2223 = vld [vmem:[#allocation11 + $0x168] sm:$0xff]
    %v2224 = vld [vmem:[#allocation11 + $0x170] sm:$0xff]
    %v2225 = vld [vmem:[#allocation11 + $0x178] sm:$0xff]
    %v2226 = vld [vmem:[#allocation11 + $0x180] sm:$0xff]
    %v2227 = vld [vmem:[#allocation11 + $0x188] sm:$0xff]
    %v2228 = vld [vmem:[#allocation11 + $0x190] sm:$0xff]
    %v2229 = vld [vmem:[#allocation11 + $0x198] sm:$0xff]
    %v2230 = vld [vmem:[#allocation11 + $0x1a0] sm:$0xff]
    %v2231 = vld [vmem:[#allocation11 + $0x1a8] sm:$0xff]
    %v2232 = vld [vmem:[#allocation11 + $0x1b0] sm:$0xff]
    %v2233 = vld [vmem:[#allocation11 + $0x1b8] sm:$0xff]
    %v2234 = vld [vmem:[#allocation11 + $0x1c0] sm:$0xff]
    %v2235 = vld [vmem:[#allocation11 + $0x1c8] sm:$0xff]
    %v2236 = vld [vmem:[#allocation11 + $0x1d0] sm:$0xff]
    %v2237 = vld [vmem:[#allocation11 + $0x1d8] sm:$0xff]
    %v2238 = vld [vmem:[#allocation11 + $0x1e0] sm:$0xff]
    %v2239 = vld [vmem:[#allocation11 + $0x1e8] sm:$0xff]
    %v2240 = vld [vmem:[#allocation11 + $0x1f0] sm:$0xff]
    %v2241 = vld [vmem:[#allocation11 + $0x1f8] sm:$0xff]
    %2242 = vmatpush.msra.mxu0 %v2238
    %2243 = vmatpush.msra.mxu0 %v2234
    %2244 = vmatpush.msra.mxu0 %v2230
    %2245 = vmatpush.msra.mxu0 %v2226
    %2246 = vmatpush.msra.mxu0 %v2222
    %2247 = vmatpush.msra.mxu0 %v2218
    %2248 = vmatpush.msra.mxu0 %v2214
    %2249 = vmatpush.msra.mxu0 %v2210
    %2250 = vmatpush.msra.mxu0 %v2206
    %2251 = vmatpush.msra.mxu0 %v2202
    %2252 = vmatpush.msra.mxu0 %v2198
    %2253 = vmatpush.msra.mxu0 %v2194
    %2254 = vmatpush.msra.mxu0 %v2190
    %2255 = vmatpush.msra.mxu0 %v2186
    %2256 = vmatpush.msra.mxu0 %v2182
    %2257 = vmatpush.msra.mxu0 %v2178
    %2258 = vmatmul.f32.gmra.mxu0 %v2097
    %v2259 = vpop.f32.mrf.mxu0
    %v2260 = vadd.f32 0.0, %v2259
    %2261 = vdwg.mxu0
    %2262 = vmatpush.msra.mxu0 %v2239
    %2263 = vmatpush.msra.mxu0 %v2235
    %2264 = vmatpush.msra.mxu0 %v2231
    %2265 = vmatpush.msra.mxu0 %v2227
    %2266 = vmatpush.msra.mxu0 %v2223
    %2267 = vmatpush.msra.mxu0 %v2219
    %2268 = vmatpush.msra.mxu0 %v2215
    %2269 = vmatpush.msra.mxu0 %v2211
    %2270 = vmatpush.msra.mxu0 %v2207
    %2271 = vmatpush.msra.mxu0 %v2203
    %2272 = vmatpush.msra.mxu0 %v2199
    %2273 = vmatpush.msra.mxu0 %v2195
    %2274 = vmatpush.msra.mxu0 %v2191
    %2275 = vmatpush.msra.mxu0 %v2187
    %2276 = vmatpush.msra.mxu0 %v2183
    %2277 = vmatpush.msra.mxu0 %v2179
    %2278 = vmatmul.f32.gmra.mxu0 %v2097
    %v2279 = vpop.f32.mrf.mxu0
    %v2280 = vadd.f32 0.0, %v2279
    %2281 = vdwg.mxu0
    %2282 = vmatpush.msra.mxu0 %v2240
    %2283 = vmatpush.msra.mxu0 %v2236
    %2284 = vmatpush.msra.mxu0 %v2232
    %2285 = vmatpush.msra.mxu0 %v2228
    %2286 = vmatpush.msra.mxu0 %v2224
    %2287 = vmatpush.msra.mxu0 %v2220
    %2288 = vmatpush.msra.mxu0 %v2216
    %2289 = vmatpush.msra.mxu0 %v2212
    %2290 = vmatpush.msra.mxu0 %v2208
    %2291 = vmatpush.msra.mxu0 %v2204
    %2292 = vmatpush.msra.mxu0 %v2200
    %2293 = vmatpush.msra.mxu0 %v2196
    %2294 = vmatpush.msra.mxu0 %v2192
    %2295 = vmatpush.msra.mxu0 %v2188
    %2296 = vmatpush.msra.mxu0 %v2184
    %2297 = vmatpush.msra.mxu0 %v2180
    %2298 = vmatmul.f32.gmra.mxu0 %v2097
    %v2299 = vpop.f32.mrf.mxu0
    %v2300 = vadd.f32 0.0, %v2299
    %2301 = vdwg.mxu0
    %2302 = vmatpush.msra.mxu0 %v2241
    %2303 = vmatpush.msra.mxu0 %v2237
    %2304 = vmatpush.msra.mxu0 %v2233
    %2305 = vmatpush.msra.mxu0 %v2229
    %2306 = vmatpush.msra.mxu0 %v2225
    %2307 = vmatpush.msra.mxu0 %v2221
    %2308 = vmatpush.msra.mxu0 %v2217
    %2309 = vmatpush.msra.mxu0 %v2213
    %2310 = vmatpush.msra.mxu0 %v2209
    %2311 = vmatpush.msra.mxu0 %v2205
    %2312 = vmatpush.msra.mxu0 %v2201
    %2313 = vmatpush.msra.mxu0 %v2197
    %2314 = vmatpush.msra.mxu0 %v2193
    %2315 = vmatpush.msra.mxu0 %v2189
    %2316 = vmatpush.msra.mxu0 %v2185
    %2317 = vmatpush.msra.mxu0 %v2181
    %2318 = vmatmul.f32.gmra.mxu0 %v2097
    %v2319 = vpop.f32.mrf.mxu0
    %v2320 = vadd.f32 0.0, %v2319
    %2321 = vdwg.mxu0
    %v2322 = vadd.f32 %v2116, %v2260
    %v2323 = vadd.f32 %v2136, %v2280
    %v2324 = vadd.f32 %v2156, %v2300
    %v2325 = vadd.f32 %v2176, %v2320
    %v2326 = vmul.f32 %v2322, 0.5
    %v2327 = vtanh.pop %v2326
    %v2328 = vmul.f32 %v2327, 0.5
    %v2329 = vadd.f32 %v2328, 0.5
    %v2330 = vmul.f32 %v2323, 0.5
    %v2331 = vtanh.pop %v2330
    %v2332 = vmul.f32 %v2331, 0.5
    %v2333 = vadd.f32 %v2332, 0.5
    %v2334 = vtanh.pop %v2324
    %v2335 = vmul.f32 %v2325, 0.5
    %v2336 = vtanh.pop %v2335
    %v2337 = vmul.f32 %v2336, 0.5
    %v2338 = vadd.f32 %v2337, 0.5
    %v2339 = vmul.f32 %v2333, %v1859
    %v2340 = vmul.f32 %v2329, %v2334
    %v2341 = vadd.f32 %v2339, %v2340
    %v2342 = vtanh.pop %v2341
    %v2343 = vmul.f32 %v2338, %v2342
    %s2344 = scalar_lea.vmem [#allocation16], 24
    %2345 = vst [vmem:[%s2344] sm:$0xff] %v2343
    %v2346 = vld [vmem:[#allocation13] sm:$0xff]
    %v2347 = vld [vmem:[#allocation13 + $0x8] sm:$0xff]
    %v2348 = vld [vmem:[#allocation13 + $0x10] sm:$0xff]
    %v2349 = vld [vmem:[#allocation13 + $0x18] sm:$0xff]
    %v2350 = vld [vmem:[#allocation13 + $0x20] sm:$0xff]
    %v2351 = vld [vmem:[#allocation13 + $0x28] sm:$0xff]
    %v2352 = vld [vmem:[#allocation13 + $0x30] sm:$0xff]
    %v2353 = vld [vmem:[#allocation13 + $0x38] sm:$0xff]
    %v2354 = vld [vmem:[#allocation13 + $0x40] sm:$0xff]
    %v2355 = vld [vmem:[#allocation13 + $0x48] sm:$0xff]
    %v2356 = vld [vmem:[#allocation13 + $0x50] sm:$0xff]
    %v2357 = vld [vmem:[#allocation13 + $0x58] sm:$0xff]
    %v2358 = vld [vmem:[#allocation13 + $0x60] sm:$0xff]
    %v2359 = vld [vmem:[#allocation13 + $0x68] sm:$0xff]
    %v2360 = vld [vmem:[#allocation13 + $0x70] sm:$0xff]
    %v2361 = vld [vmem:[#allocation13 + $0x78] sm:$0xff]
    %v2362 = vld [vmem:[#allocation13 + $0x80] sm:$0xff]
    %v2363 = vld [vmem:[#allocation13 + $0x88] sm:$0xff]
    %v2364 = vld [vmem:[#allocation13 + $0x90] sm:$0xff]
    %v2365 = vld [vmem:[#allocation13 + $0x98] sm:$0xff]
    %v2366 = vld [vmem:[#allocation13 + $0xa0] sm:$0xff]
    %v2367 = vld [vmem:[#allocation13 + $0xa8] sm:$0xff]
    %v2368 = vld [vmem:[#allocation13 + $0xb0] sm:$0xff]
    %v2369 = vld [vmem:[#allocation13 + $0xb8] sm:$0xff]
    %v2370 = vld [vmem:[#allocation13 + $0xc0] sm:$0xff]
    %v2371 = vld [vmem:[#allocation13 + $0xc8] sm:$0xff]
    %v2372 = vld [vmem:[#allocation13 + $0xd0] sm:$0xff]
    %v2373 = vld [vmem:[#allocation13 + $0xd8] sm:$0xff]
    %v2374 = vld [vmem:[#allocation13 + $0xe0] sm:$0xff]
    %v2375 = vld [vmem:[#allocation13 + $0xe8] sm:$0xff]
    %v2376 = vld [vmem:[#allocation13 + $0xf0] sm:$0xff]
    %v2377 = vld [vmem:[#allocation13 + $0xf8] sm:$0xff]
    %v2378 = vld [vmem:[#allocation13 + $0x100] sm:$0xff]
    %v2379 = vld [vmem:[#allocation13 + $0x108] sm:$0xff]
    %v2380 = vld [vmem:[#allocation13 + $0x110] sm:$0xff]
    %v2381 = vld [vmem:[#allocation13 + $0x118] sm:$0xff]
    %v2382 = vld [vmem:[#allocation13 + $0x120] sm:$0xff]
    %v2383 = vld [vmem:[#allocation13 + $0x128] sm:$0xff]
    %v2384 = vld [vmem:[#allocation13 + $0x130] sm:$0xff]
    %v2385 = vld [vmem:[#allocation13 + $0x138] sm:$0xff]
    %v2386 = vld [vmem:[#allocation13 + $0x140] sm:$0xff]
    %v2387 = vld [vmem:[#allocation13 + $0x148] sm:$0xff]
    %v2388 = vld [vmem:[#allocation13 + $0x150] sm:$0xff]
    %v2389 = vld [vmem:[#allocation13 + $0x158] sm:$0xff]
    %v2390 = vld [vmem:[#allocation13 + $0x160] sm:$0xff]
    %v2391 = vld [vmem:[#allocation13 + $0x168] sm:$0xff]
    %v2392 = vld [vmem:[#allocation13 + $0x170] sm:$0xff]
    %v2393 = vld [vmem:[#allocation13 + $0x178] sm:$0xff]
    %v2394 = vld [vmem:[#allocation13 + $0x180] sm:$0xff]
    %v2395 = vld [vmem:[#allocation13 + $0x188] sm:$0xff]
    %v2396 = vld [vmem:[#allocation13 + $0x190] sm:$0xff]
    %v2397 = vld [vmem:[#allocation13 + $0x198] sm:$0xff]
    %v2398 = vld [vmem:[#allocation13 + $0x1a0] sm:$0xff]
    %v2399 = vld [vmem:[#allocation13 + $0x1a8] sm:$0xff]
    %v2400 = vld [vmem:[#allocation13 + $0x1b0] sm:$0xff]
    %v2401 = vld [vmem:[#allocation13 + $0x1b8] sm:$0xff]
    %v2402 = vld [vmem:[#allocation13 + $0x1c0] sm:$0xff]
    %v2403 = vld [vmem:[#allocation13 + $0x1c8] sm:$0xff]
    %v2404 = vld [vmem:[#allocation13 + $0x1d0] sm:$0xff]
    %v2405 = vld [vmem:[#allocation13 + $0x1d8] sm:$0xff]
    %v2406 = vld [vmem:[#allocation13 + $0x1e0] sm:$0xff]
    %v2407 = vld [vmem:[#allocation13 + $0x1e8] sm:$0xff]
    %v2408 = vld [vmem:[#allocation13 + $0x1f0] sm:$0xff]
    %v2409 = vld [vmem:[#allocation13 + $0x1f8] sm:$0xff]
    %v2410 = vld [vmem:[#allocation2 + $0x80] sm:$0xff]
    %v2411 = vld [vmem:[#allocation2 + $0x88] sm:$0xff]
    %v2412 = vld [vmem:[#allocation2 + $0x90] sm:$0xff]
    %v2413 = vld [vmem:[#allocation2 + $0x98] sm:$0xff]
    %v2414 = vld [vmem:[#allocation10] sm:$0xff]
    %v2415 = vld [vmem:[#allocation10 + $0x8] sm:$0xff]
    %v2416 = vld [vmem:[#allocation10 + $0x10] sm:$0xff]
    %v2417 = vld [vmem:[#allocation10 + $0x18] sm:$0xff]
    %v2418 = vld [vmem:[#allocation10 + $0x20] sm:$0xff]
    %v2419 = vld [vmem:[#allocation10 + $0x28] sm:$0xff]
    %v2420 = vld [vmem:[#allocation10 + $0x30] sm:$0xff]
    %v2421 = vld [vmem:[#allocation10 + $0x38] sm:$0xff]
    %v2422 = vld [vmem:[#allocation10 + $0x40] sm:$0xff]
    %v2423 = vld [vmem:[#allocation10 + $0x48] sm:$0xff]
    %v2424 = vld [vmem:[#allocation10 + $0x50] sm:$0xff]
    %v2425 = vld [vmem:[#allocation10 + $0x58] sm:$0xff]
    %v2426 = vld [vmem:[#allocation10 + $0x60] sm:$0xff]
    %v2427 = vld [vmem:[#allocation10 + $0x68] sm:$0xff]
    %v2428 = vld [vmem:[#allocation10 + $0x70] sm:$0xff]
    %v2429 = vld [vmem:[#allocation10 + $0x78] sm:$0xff]
    %v2430 = vld [vmem:[#allocation10 + $0x80] sm:$0xff]
    %v2431 = vld [vmem:[#allocation10 + $0x88] sm:$0xff]
    %v2432 = vld [vmem:[#allocation10 + $0x90] sm:$0xff]
    %v2433 = vld [vmem:[#allocation10 + $0x98] sm:$0xff]
    %v2434 = vld [vmem:[#allocation10 + $0xa0] sm:$0xff]
    %v2435 = vld [vmem:[#allocation10 + $0xa8] sm:$0xff]
    %v2436 = vld [vmem:[#allocation10 + $0xb0] sm:$0xff]
    %v2437 = vld [vmem:[#allocation10 + $0xb8] sm:$0xff]
    %v2438 = vld [vmem:[#allocation10 + $0xc0] sm:$0xff]
    %v2439 = vld [vmem:[#allocation10 + $0xc8] sm:$0xff]
    %v2440 = vld [vmem:[#allocation10 + $0xd0] sm:$0xff]
    %v2441 = vld [vmem:[#allocation10 + $0xd8] sm:$0xff]
    %v2442 = vld [vmem:[#allocation10 + $0xe0] sm:$0xff]
    %v2443 = vld [vmem:[#allocation10 + $0xe8] sm:$0xff]
    %v2444 = vld [vmem:[#allocation10 + $0xf0] sm:$0xff]
    %v2445 = vld [vmem:[#allocation10 + $0xf8] sm:$0xff]
    %v2446 = vld [vmem:[#allocation10 + $0x100] sm:$0xff]
    %v2447 = vld [vmem:[#allocation10 + $0x108] sm:$0xff]
    %v2448 = vld [vmem:[#allocation10 + $0x110] sm:$0xff]
    %v2449 = vld [vmem:[#allocation10 + $0x118] sm:$0xff]
    %v2450 = vld [vmem:[#allocation10 + $0x120] sm:$0xff]
    %v2451 = vld [vmem:[#allocation10 + $0x128] sm:$0xff]
    %v2452 = vld [vmem:[#allocation10 + $0x130] sm:$0xff]
    %v2453 = vld [vmem:[#allocation10 + $0x138] sm:$0xff]
    %v2454 = vld [vmem:[#allocation10 + $0x140] sm:$0xff]
    %v2455 = vld [vmem:[#allocation10 + $0x148] sm:$0xff]
    %v2456 = vld [vmem:[#allocation10 + $0x150] sm:$0xff]
    %v2457 = vld [vmem:[#allocation10 + $0x158] sm:$0xff]
    %v2458 = vld [vmem:[#allocation10 + $0x160] sm:$0xff]
    %v2459 = vld [vmem:[#allocation10 + $0x168] sm:$0xff]
    %v2460 = vld [vmem:[#allocation10 + $0x170] sm:$0xff]
    %v2461 = vld [vmem:[#allocation10 + $0x178] sm:$0xff]
    %v2462 = vld [vmem:[#allocation10 + $0x180] sm:$0xff]
    %v2463 = vld [vmem:[#allocation10 + $0x188] sm:$0xff]
    %v2464 = vld [vmem:[#allocation10 + $0x190] sm:$0xff]
    %v2465 = vld [vmem:[#allocation10 + $0x198] sm:$0xff]
    %v2466 = vld [vmem:[#allocation10 + $0x1a0] sm:$0xff]
    %v2467 = vld [vmem:[#allocation10 + $0x1a8] sm:$0xff]
    %v2468 = vld [vmem:[#allocation10 + $0x1b0] sm:$0xff]
    %v2469 = vld [vmem:[#allocation10 + $0x1b8] sm:$0xff]
    %v2470 = vld [vmem:[#allocation10 + $0x1c0] sm:$0xff]
    %v2471 = vld [vmem:[#allocation10 + $0x1c8] sm:$0xff]
    %v2472 = vld [vmem:[#allocation10 + $0x1d0] sm:$0xff]
    %v2473 = vld [vmem:[#allocation10 + $0x1d8] sm:$0xff]
    %v2474 = vld [vmem:[#allocation10 + $0x1e0] sm:$0xff]
    %v2475 = vld [vmem:[#allocation10 + $0x1e8] sm:$0xff]
    %v2476 = vld [vmem:[#allocation10 + $0x1f0] sm:$0xff]
    %v2477 = vld [vmem:[#allocation10 + $0x1f8] sm:$0xff]
    %2478 = vmatpush.msra.mxu0 %v2474
    %2479 = vmatpush.msra.mxu0 %v2470
    %2480 = vmatpush.msra.mxu0 %v2466
    %2481 = vmatpush.msra.mxu0 %v2462
    %2482 = vmatpush.msra.mxu0 %v2458
    %2483 = vmatpush.msra.mxu0 %v2454
    %2484 = vmatpush.msra.mxu0 %v2450
    %2485 = vmatpush.msra.mxu0 %v2446
    %2486 = vmatpush.msra.mxu0 %v2442
    %2487 = vmatpush.msra.mxu0 %v2438
    %2488 = vmatpush.msra.mxu0 %v2434
    %2489 = vmatpush.msra.mxu0 %v2430
    %2490 = vmatpush.msra.mxu0 %v2426
    %2491 = vmatpush.msra.mxu0 %v2422
    %2492 = vmatpush.msra.mxu0 %v2418
    %2493 = vmatpush.msra.mxu0 %v2414
    %2494 = vmatmul.f32.gmra.mxu0 %v2097
    %v2495 = vpop.f32.mrf.mxu0
    %v2496 = vadd.f32 0.0, %v2495
    %2497 = vdwg.mxu0
    %2498 = vmatpush.msra.mxu0 %v2475
    %2499 = vmatpush.msra.mxu0 %v2471
    %2500 = vmatpush.msra.mxu0 %v2467
    %2501 = vmatpush.msra.mxu0 %v2463
    %2502 = vmatpush.msra.mxu0 %v2459
    %2503 = vmatpush.msra.mxu0 %v2455
    %2504 = vmatpush.msra.mxu0 %v2451
    %2505 = vmatpush.msra.mxu0 %v2447
    %2506 = vmatpush.msra.mxu0 %v2443
    %2507 = vmatpush.msra.mxu0 %v2439
    %2508 = vmatpush.msra.mxu0 %v2435
    %2509 = vmatpush.msra.mxu0 %v2431
    %2510 = vmatpush.msra.mxu0 %v2427
    %2511 = vmatpush.msra.mxu0 %v2423
    %2512 = vmatpush.msra.mxu0 %v2419
    %2513 = vmatpush.msra.mxu0 %v2415
    %2514 = vmatmul.f32.gmra.mxu0 %v2097
    %v2515 = vpop.f32.mrf.mxu0
    %v2516 = vadd.f32 0.0, %v2515
    %2517 = vdwg.mxu0
    %2518 = vmatpush.msra.mxu0 %v2476
    %2519 = vmatpush.msra.mxu0 %v2472
    %2520 = vmatpush.msra.mxu0 %v2468
    %2521 = vmatpush.msra.mxu0 %v2464
    %2522 = vmatpush.msra.mxu0 %v2460
    %2523 = vmatpush.msra.mxu0 %v2456
    %2524 = vmatpush.msra.mxu0 %v2452
    %2525 = vmatpush.msra.mxu0 %v2448
    %2526 = vmatpush.msra.mxu0 %v2444
    %2527 = vmatpush.msra.mxu0 %v2440
    %2528 = vmatpush.msra.mxu0 %v2436
    %2529 = vmatpush.msra.mxu0 %v2432
    %2530 = vmatpush.msra.mxu0 %v2428
    %2531 = vmatpush.msra.mxu0 %v2424
    %2532 = vmatpush.msra.mxu0 %v2420
    %2533 = vmatpush.msra.mxu0 %v2416
    %2534 = vmatmul.f32.gmra.mxu0 %v2097
    %v2535 = vpop.f32.mrf.mxu0
    %v2536 = vadd.f32 0.0, %v2535
    %2537 = vdwg.mxu0
    %2538 = vmatpush.msra.mxu0 %v2477
    %2539 = vmatpush.msra.mxu0 %v2473
    %2540 = vmatpush.msra.mxu0 %v2469
    %2541 = vmatpush.msra.mxu0 %v2465
    %2542 = vmatpush.msra.mxu0 %v2461
    %2543 = vmatpush.msra.mxu0 %v2457
    %2544 = vmatpush.msra.mxu0 %v2453
    %2545 = vmatpush.msra.mxu0 %v2449
    %2546 = vmatpush.msra.mxu0 %v2445
    %2547 = vmatpush.msra.mxu0 %v2441
    %2548 = vmatpush.msra.mxu0 %v2437
    %2549 = vmatpush.msra.mxu0 %v2433
    %2550 = vmatpush.msra.mxu0 %v2429
    %2551 = vmatpush.msra.mxu0 %v2425
    %2552 = vmatpush.msra.mxu0 %v2421
    %2553 = vmatpush.msra.mxu0 %v2417
    %2554 = vmatmul.f32.gmra.mxu0 %v2097
    %v2555 = vpop.f32.mrf.mxu0
    %v2556 = vadd.f32 0.0, %v2555
    %2557 = vdwg.mxu0
    %v2558 = vadd.f32 %v2410, %v2496
    %v2559 = vadd.f32 %v2411, %v2516
    %v2560 = vadd.f32 %v2412, %v2536
    %v2561 = vadd.f32 %v2413, %v2556
    %v2562 = vmul.f32 %v2558, 0.5
    %v2563 = vtanh.pop %v2562
    %v2564 = vmul.f32 %v2563, 0.5
    %v2565 = vadd.f32 %v2564, 0.5
    %v2566 = vmul.f32 %v2559, 0.5
    %v2567 = vtanh.pop %v2566
    %v2568 = vmul.f32 %v2567, 0.5
    %v2569 = vadd.f32 %v2568, 0.5
    %v2570 = vtanh.pop %v2560
    %v2571 = vmul.f32 %v2561, 0.5
    %v2572 = vtanh.pop %v2571
    %v2573 = vmul.f32 %v2572, 0.5
    %v2574 = vadd.f32 %v2573, 0.5
    %v2575 = vmul.f32 %v2569, %v2095
    %v2576 = vmul.f32 %v2565, %v2570
    %v2577 = vadd.f32 %v2575, %v2576
    %v2578 = vtanh.pop %v2577
    %v2579 = vmul.f32 %v2574, %v2578
    %2580 = vmatpush.msra.mxu0 %v2406
    %2581 = vmatpush.msra.mxu0 %v2402
    %2582 = vmatpush.msra.mxu0 %v2398
    %2583 = vmatpush.msra.mxu0 %v2394
    %2584 = vmatpush.msra.mxu0 %v2390
    %2585 = vmatpush.msra.mxu0 %v2386
    %2586 = vmatpush.msra.mxu0 %v2382
    %2587 = vmatpush.msra.mxu0 %v2378
    %2588 = vmatpush.msra.mxu0 %v2374
    %2589 = vmatpush.msra.mxu0 %v2370
    %2590 = vmatpush.msra.mxu0 %v2366
    %2591 = vmatpush.msra.mxu0 %v2362
    %2592 = vmatpush.msra.mxu0 %v2358
    %2593 = vmatpush.msra.mxu0 %v2354
    %2594 = vmatpush.msra.mxu0 %v2350
    %2595 = vmatpush.msra.mxu0 %v2346
    %2596 = vmatmul.f32.gmra.mxu0 %v2343
    %v2597 = vpop.f32.mrf.mxu0
    %v2598 = vadd.f32 %v645, %v2597
    %2599 = vdwg.mxu0
    %2600 = vmatpush.msra.mxu0 %v2407
    %2601 = vmatpush.msra.mxu0 %v2403
    %2602 = vmatpush.msra.mxu0 %v2399
    %2603 = vmatpush.msra.mxu0 %v2395
    %2604 = vmatpush.msra.mxu0 %v2391
    %2605 = vmatpush.msra.mxu0 %v2387
    %2606 = vmatpush.msra.mxu0 %v2383
    %2607 = vmatpush.msra.mxu0 %v2379
    %2608 = vmatpush.msra.mxu0 %v2375
    %2609 = vmatpush.msra.mxu0 %v2371
    %2610 = vmatpush.msra.mxu0 %v2367
    %2611 = vmatpush.msra.mxu0 %v2363
    %2612 = vmatpush.msra.mxu0 %v2359
    %2613 = vmatpush.msra.mxu0 %v2355
    %2614 = vmatpush.msra.mxu0 %v2351
    %2615 = vmatpush.msra.mxu0 %v2347
    %2616 = vmatmul.f32.gmra.mxu0 %v2343
    %v2617 = vpop.f32.mrf.mxu0
    %v2618 = vadd.f32 %v646, %v2617
    %2619 = vdwg.mxu0
    %2620 = vmatpush.msra.mxu0 %v2408
    %2621 = vmatpush.msra.mxu0 %v2404
    %2622 = vmatpush.msra.mxu0 %v2400
    %2623 = vmatpush.msra.mxu0 %v2396
    %2624 = vmatpush.msra.mxu0 %v2392
    %2625 = vmatpush.msra.mxu0 %v2388
    %2626 = vmatpush.msra.mxu0 %v2384
    %2627 = vmatpush.msra.mxu0 %v2380
    %2628 = vmatpush.msra.mxu0 %v2376
    %2629 = vmatpush.msra.mxu0 %v2372
    %2630 = vmatpush.msra.mxu0 %v2368
    %2631 = vmatpush.msra.mxu0 %v2364
    %2632 = vmatpush.msra.mxu0 %v2360
    %2633 = vmatpush.msra.mxu0 %v2356
    %2634 = vmatpush.msra.mxu0 %v2352
    %2635 = vmatpush.msra.mxu0 %v2348
    %2636 = vmatmul.f32.gmra.mxu0 %v2343
    %v2637 = vpop.f32.mrf.mxu0
    %v2638 = vadd.f32 %v647, %v2637
    %2639 = vdwg.mxu0
    %2640 = vmatpush.msra.mxu0 %v2409
    %2641 = vmatpush.msra.mxu0 %v2405
    %2642 = vmatpush.msra.mxu0 %v2401
    %2643 = vmatpush.msra.mxu0 %v2397
    %2644 = vmatpush.msra.mxu0 %v2393
    %2645 = vmatpush.msra.mxu0 %v2389
    %2646 = vmatpush.msra.mxu0 %v2385
    %2647 = vmatpush.msra.mxu0 %v2381
    %2648 = vmatpush.msra.mxu0 %v2377
    %2649 = vmatpush.msra.mxu0 %v2373
    %2650 = vmatpush.msra.mxu0 %v2369
    %2651 = vmatpush.msra.mxu0 %v2365
    %2652 = vmatpush.msra.mxu0 %v2361
    %2653 = vmatpush.msra.mxu0 %v2357
    %2654 = vmatpush.msra.mxu0 %v2353
    %2655 = vmatpush.msra.mxu0 %v2349
    %2656 = vmatmul.f32.gmra.mxu0 %v2343
    %v2657 = vpop.f32.mrf.mxu0
    %v2658 = vadd.f32 %v648, %v2657
    %2659 = vdwg.mxu0
    %v2660 = vld [vmem:[#allocation11] sm:$0xff]
    %v2661 = vld [vmem:[#allocation11 + $0x8] sm:$0xff]
    %v2662 = vld [vmem:[#allocation11 + $0x10] sm:$0xff]
    %v2663 = vld [vmem:[#allocation11 + $0x18] sm:$0xff]
    %v2664 = vld [vmem:[#allocation11 + $0x20] sm:$0xff]
    %v2665 = vld [vmem:[#allocation11 + $0x28] sm:$0xff]
    %v2666 = vld [vmem:[#allocation11 + $0x30] sm:$0xff]
    %v2667 = vld [vmem:[#allocation11 + $0x38] sm:$0xff]
    %v2668 = vld [vmem:[#allocation11 + $0x40] sm:$0xff]
    %v2669 = vld [vmem:[#allocation11 + $0x48] sm:$0xff]
    %v2670 = vld [vmem:[#allocation11 + $0x50] sm:$0xff]
    %v2671 = vld [vmem:[#allocation11 + $0x58] sm:$0xff]
    %v2672 = vld [vmem:[#allocation11 + $0x60] sm:$0xff]
    %v2673 = vld [vmem:[#allocation11 + $0x68] sm:$0xff]
    %v2674 = vld [vmem:[#allocation11 + $0x70] sm:$0xff]
    %v2675 = vld [vmem:[#allocation11 + $0x78] sm:$0xff]
    %v2676 = vld [vmem:[#allocation11 + $0x80] sm:$0xff]
    %v2677 = vld [vmem:[#allocation11 + $0x88] sm:$0xff]
    %v2678 = vld [vmem:[#allocation11 + $0x90] sm:$0xff]
    %v2679 = vld [vmem:[#allocation11 + $0x98] sm:$0xff]
    %v2680 = vld [vmem:[#allocation11 + $0xa0] sm:$0xff]
    %v2681 = vld [vmem:[#allocation11 + $0xa8] sm:$0xff]
    %v2682 = vld [vmem:[#allocation11 + $0xb0] sm:$0xff]
    %v2683 = vld [vmem:[#allocation11 + $0xb8] sm:$0xff]
    %v2684 = vld [vmem:[#allocation11 + $0xc0] sm:$0xff]
    %v2685 = vld [vmem:[#allocation11 + $0xc8] sm:$0xff]
    %v2686 = vld [vmem:[#allocation11 + $0xd0] sm:$0xff]
    %v2687 = vld [vmem:[#allocation11 + $0xd8] sm:$0xff]
    %v2688 = vld [vmem:[#allocation11 + $0xe0] sm:$0xff]
    %v2689 = vld [vmem:[#allocation11 + $0xe8] sm:$0xff]
    %v2690 = vld [vmem:[#allocation11 + $0xf0] sm:$0xff]
    %v2691 = vld [vmem:[#allocation11 + $0xf8] sm:$0xff]
    %v2692 = vld [vmem:[#allocation11 + $0x100] sm:$0xff]
    %v2693 = vld [vmem:[#allocation11 + $0x108] sm:$0xff]
    %v2694 = vld [vmem:[#allocation11 + $0x110] sm:$0xff]
    %v2695 = vld [vmem:[#allocation11 + $0x118] sm:$0xff]
    %v2696 = vld [vmem:[#allocation11 + $0x120] sm:$0xff]
    %v2697 = vld [vmem:[#allocation11 + $0x128] sm:$0xff]
    %v2698 = vld [vmem:[#allocation11 + $0x130] sm:$0xff]
    %v2699 = vld [vmem:[#allocation11 + $0x138] sm:$0xff]
    %v2700 = vld [vmem:[#allocation11 + $0x140] sm:$0xff]
    %v2701 = vld [vmem:[#allocation11 + $0x148] sm:$0xff]
    %v2702 = vld [vmem:[#allocation11 + $0x150] sm:$0xff]
    %v2703 = vld [vmem:[#allocation11 + $0x158] sm:$0xff]
    %v2704 = vld [vmem:[#allocation11 + $0x160] sm:$0xff]
    %v2705 = vld [vmem:[#allocation11 + $0x168] sm:$0xff]
    %v2706 = vld [vmem:[#allocation11 + $0x170] sm:$0xff]
    %v2707 = vld [vmem:[#allocation11 + $0x178] sm:$0xff]
    %v2708 = vld [vmem:[#allocation11 + $0x180] sm:$0xff]
    %v2709 = vld [vmem:[#allocation11 + $0x188] sm:$0xff]
    %v2710 = vld [vmem:[#allocation11 + $0x190] sm:$0xff]
    %v2711 = vld [vmem:[#allocation11 + $0x198] sm:$0xff]
    %v2712 = vld [vmem:[#allocation11 + $0x1a0] sm:$0xff]
    %v2713 = vld [vmem:[#allocation11 + $0x1a8] sm:$0xff]
    %v2714 = vld [vmem:[#allocation11 + $0x1b0] sm:$0xff]
    %v2715 = vld [vmem:[#allocation11 + $0x1b8] sm:$0xff]
    %v2716 = vld [vmem:[#allocation11 + $0x1c0] sm:$0xff]
    %v2717 = vld [vmem:[#allocation11 + $0x1c8] sm:$0xff]
    %v2718 = vld [vmem:[#allocation11 + $0x1d0] sm:$0xff]
    %v2719 = vld [vmem:[#allocation11 + $0x1d8] sm:$0xff]
    %v2720 = vld [vmem:[#allocation11 + $0x1e0] sm:$0xff]
    %v2721 = vld [vmem:[#allocation11 + $0x1e8] sm:$0xff]
    %v2722 = vld [vmem:[#allocation11 + $0x1f0] sm:$0xff]
    %v2723 = vld [vmem:[#allocation11 + $0x1f8] sm:$0xff]
    %2724 = vmatpush.msra.mxu0 %v2720
    %2725 = vmatpush.msra.mxu0 %v2716
    %2726 = vmatpush.msra.mxu0 %v2712
    %2727 = vmatpush.msra.mxu0 %v2708
    %2728 = vmatpush.msra.mxu0 %v2704
    %2729 = vmatpush.msra.mxu0 %v2700
    %2730 = vmatpush.msra.mxu0 %v2696
    %2731 = vmatpush.msra.mxu0 %v2692
    %2732 = vmatpush.msra.mxu0 %v2688
    %2733 = vmatpush.msra.mxu0 %v2684
    %2734 = vmatpush.msra.mxu0 %v2680
    %2735 = vmatpush.msra.mxu0 %v2676
    %2736 = vmatpush.msra.mxu0 %v2672
    %2737 = vmatpush.msra.mxu0 %v2668
    %2738 = vmatpush.msra.mxu0 %v2664
    %2739 = vmatpush.msra.mxu0 %v2660
    %2740 = vmatmul.f32.gmra.mxu0 %v2579
    %v2741 = vpop.f32.mrf.mxu0
    %v2742 = vadd.f32 0.0, %v2741
    %2743 = vdwg.mxu0
    %2744 = vmatpush.msra.mxu0 %v2721
    %2745 = vmatpush.msra.mxu0 %v2717
    %2746 = vmatpush.msra.mxu0 %v2713
    %2747 = vmatpush.msra.mxu0 %v2709
    %2748 = vmatpush.msra.mxu0 %v2705
    %2749 = vmatpush.msra.mxu0 %v2701
    %2750 = vmatpush.msra.mxu0 %v2697
    %2751 = vmatpush.msra.mxu0 %v2693
    %2752 = vmatpush.msra.mxu0 %v2689
    %2753 = vmatpush.msra.mxu0 %v2685
    %2754 = vmatpush.msra.mxu0 %v2681
    %2755 = vmatpush.msra.mxu0 %v2677
    %2756 = vmatpush.msra.mxu0 %v2673
    %2757 = vmatpush.msra.mxu0 %v2669
    %2758 = vmatpush.msra.mxu0 %v2665
    %2759 = vmatpush.msra.mxu0 %v2661
    %2760 = vmatmul.f32.gmra.mxu0 %v2579
    %v2761 = vpop.f32.mrf.mxu0
    %v2762 = vadd.f32 0.0, %v2761
    %2763 = vdwg.mxu0
    %2764 = vmatpush.msra.mxu0 %v2722
    %2765 = vmatpush.msra.mxu0 %v2718
    %2766 = vmatpush.msra.mxu0 %v2714
    %2767 = vmatpush.msra.mxu0 %v2710
    %2768 = vmatpush.msra.mxu0 %v2706
    %2769 = vmatpush.msra.mxu0 %v2702
    %2770 = vmatpush.msra.mxu0 %v2698
    %2771 = vmatpush.msra.mxu0 %v2694
    %2772 = vmatpush.msra.mxu0 %v2690
    %2773 = vmatpush.msra.mxu0 %v2686
    %2774 = vmatpush.msra.mxu0 %v2682
    %2775 = vmatpush.msra.mxu0 %v2678
    %2776 = vmatpush.msra.mxu0 %v2674
    %2777 = vmatpush.msra.mxu0 %v2670
    %2778 = vmatpush.msra.mxu0 %v2666
    %2779 = vmatpush.msra.mxu0 %v2662
    %2780 = vmatmul.f32.gmra.mxu0 %v2579
    %v2781 = vpop.f32.mrf.mxu0
    %v2782 = vadd.f32 0.0, %v2781
    %2783 = vdwg.mxu0
    %2784 = vmatpush.msra.mxu0 %v2723
    %2785 = vmatpush.msra.mxu0 %v2719
    %2786 = vmatpush.msra.mxu0 %v2715
    %2787 = vmatpush.msra.mxu0 %v2711
    %2788 = vmatpush.msra.mxu0 %v2707
    %2789 = vmatpush.msra.mxu0 %v2703
    %2790 = vmatpush.msra.mxu0 %v2699
    %2791 = vmatpush.msra.mxu0 %v2695
    %2792 = vmatpush.msra.mxu0 %v2691
    %2793 = vmatpush.msra.mxu0 %v2687
    %2794 = vmatpush.msra.mxu0 %v2683
    %2795 = vmatpush.msra.mxu0 %v2679
    %2796 = vmatpush.msra.mxu0 %v2675
    %2797 = vmatpush.msra.mxu0 %v2671
    %2798 = vmatpush.msra.mxu0 %v2667
    %2799 = vmatpush.msra.mxu0 %v2663
    %2800 = vmatmul.f32.gmra.mxu0 %v2579
    %v2801 = vpop.f32.mrf.mxu0
    %v2802 = vadd.f32 0.0, %v2801
    %2803 = vdwg.mxu0
    %v2804 = vadd.f32 %v2598, %v2742
    %v2805 = vadd.f32 %v2618, %v2762
    %v2806 = vadd.f32 %v2638, %v2782
    %v2807 = vadd.f32 %v2658, %v2802
    %v2808 = vmul.f32 %v2804, 0.5
    %v2809 = vtanh.pop %v2808
    %v2810 = vmul.f32 %v2809, 0.5
    %v2811 = vadd.f32 %v2810, 0.5
    %v2812 = vmul.f32 %v2805, 0.5
    %v2813 = vtanh.pop %v2812
    %v2814 = vmul.f32 %v2813, 0.5
    %v2815 = vadd.f32 %v2814, 0.5
    %v2816 = vtanh.pop %v2806
    %v2817 = vmul.f32 %v2807, 0.5
    %v2818 = vtanh.pop %v2817
    %v2819 = vmul.f32 %v2818, 0.5
    %v2820 = vadd.f32 %v2819, 0.5
    %v2821 = vmul.f32 %v2815, %v2341
    %v2822 = vmul.f32 %v2811, %v2816
    %v2823 = vadd.f32 %v2821, %v2822
    %v2824 = vtanh.pop %v2823
    %v2825 = vmul.f32 %v2820, %v2824
    %s2826 = scalar_lea.vmem [#allocation16], 32
    %2827 = vst [vmem:[%s2826] sm:$0xff] %v2825
    %v2828 = vld [vmem:[#allocation13] sm:$0xff]
    %v2829 = vld [vmem:[#allocation13 + $0x8] sm:$0xff]
    %v2830 = vld [vmem:[#allocation13 + $0x10] sm:$0xff]
    %v2831 = vld [vmem:[#allocation13 + $0x18] sm:$0xff]
    %v2832 = vld [vmem:[#allocation13 + $0x20] sm:$0xff]
    %v2833 = vld [vmem:[#allocation13 + $0x28] sm:$0xff]
    %v2834 = vld [vmem:[#allocation13 + $0x30] sm:$0xff]
    %v2835 = vld [vmem:[#allocation13 + $0x38] sm:$0xff]
    %v2836 = vld [vmem:[#allocation13 + $0x40] sm:$0xff]
    %v2837 = vld [vmem:[#allocation13 + $0x48] sm:$0xff]
    %v2838 = vld [vmem:[#allocation13 + $0x50] sm:$0xff]
    %v2839 = vld [vmem:[#allocation13 + $0x58] sm:$0xff]
    %v2840 = vld [vmem:[#allocation13 + $0x60] sm:$0xff]
    %v2841 = vld [vmem:[#allocation13 + $0x68] sm:$0xff]
    %v2842 = vld [vmem:[#allocation13 + $0x70] sm:$0xff]
    %v2843 = vld [vmem:[#allocation13 + $0x78] sm:$0xff]
    %v2844 = vld [vmem:[#allocation13 + $0x80] sm:$0xff]
    %v2845 = vld [vmem:[#allocation13 + $0x88] sm:$0xff]
    %v2846 = vld [vmem:[#allocation13 + $0x90] sm:$0xff]
    %v2847 = vld [vmem:[#allocation13 + $0x98] sm:$0xff]
    %v2848 = vld [vmem:[#allocation13 + $0xa0] sm:$0xff]
    %v2849 = vld [vmem:[#allocation13 + $0xa8] sm:$0xff]
    %v2850 = vld [vmem:[#allocation13 + $0xb0] sm:$0xff]
    %v2851 = vld [vmem:[#allocation13 + $0xb8] sm:$0xff]
    %v2852 = vld [vmem:[#allocation13 + $0xc0] sm:$0xff]
    %v2853 = vld [vmem:[#allocation13 + $0xc8] sm:$0xff]
    %v2854 = vld [vmem:[#allocation13 + $0xd0] sm:$0xff]
    %v2855 = vld [vmem:[#allocation13 + $0xd8] sm:$0xff]
    %v2856 = vld [vmem:[#allocation13 + $0xe0] sm:$0xff]
    %v2857 = vld [vmem:[#allocation13 + $0xe8] sm:$0xff]
    %v2858 = vld [vmem:[#allocation13 + $0xf0] sm:$0xff]
    %v2859 = vld [vmem:[#allocation13 + $0xf8] sm:$0xff]
    %v2860 = vld [vmem:[#allocation13 + $0x100] sm:$0xff]
    %v2861 = vld [vmem:[#allocation13 + $0x108] sm:$0xff]
    %v2862 = vld [vmem:[#allocation13 + $0x110] sm:$0xff]
    %v2863 = vld [vmem:[#allocation13 + $0x118] sm:$0xff]
    %v2864 = vld [vmem:[#allocation13 + $0x120] sm:$0xff]
    %v2865 = vld [vmem:[#allocation13 + $0x128] sm:$0xff]
    %v2866 = vld [vmem:[#allocation13 + $0x130] sm:$0xff]
    %v2867 = vld [vmem:[#allocation13 + $0x138] sm:$0xff]
    %v2868 = vld [vmem:[#allocation13 + $0x140] sm:$0xff]
    %v2869 = vld [vmem:[#allocation13 + $0x148] sm:$0xff]
    %v2870 = vld [vmem:[#allocation13 + $0x150] sm:$0xff]
    %v2871 = vld [vmem:[#allocation13 + $0x158] sm:$0xff]
    %v2872 = vld [vmem:[#allocation13 + $0x160] sm:$0xff]
    %v2873 = vld [vmem:[#allocation13 + $0x168] sm:$0xff]
    %v2874 = vld [vmem:[#allocation13 + $0x170] sm:$0xff]
    %v2875 = vld [vmem:[#allocation13 + $0x178] sm:$0xff]
    %v2876 = vld [vmem:[#allocation13 + $0x180] sm:$0xff]
    %v2877 = vld [vmem:[#allocation13 + $0x188] sm:$0xff]
    %v2878 = vld [vmem:[#allocation13 + $0x190] sm:$0xff]
    %v2879 = vld [vmem:[#allocation13 + $0x198] sm:$0xff]
    %v2880 = vld [vmem:[#allocation13 + $0x1a0] sm:$0xff]
    %v2881 = vld [vmem:[#allocation13 + $0x1a8] sm:$0xff]
    %v2882 = vld [vmem:[#allocation13 + $0x1b0] sm:$0xff]
    %v2883 = vld [vmem:[#allocation13 + $0x1b8] sm:$0xff]
    %v2884 = vld [vmem:[#allocation13 + $0x1c0] sm:$0xff]
    %v2885 = vld [vmem:[#allocation13 + $0x1c8] sm:$0xff]
    %v2886 = vld [vmem:[#allocation13 + $0x1d0] sm:$0xff]
    %v2887 = vld [vmem:[#allocation13 + $0x1d8] sm:$0xff]
    %v2888 = vld [vmem:[#allocation13 + $0x1e0] sm:$0xff]
    %v2889 = vld [vmem:[#allocation13 + $0x1e8] sm:$0xff]
    %v2890 = vld [vmem:[#allocation13 + $0x1f0] sm:$0xff]
    %v2891 = vld [vmem:[#allocation13 + $0x1f8] sm:$0xff]
    %v2892 = vld [vmem:[#allocation2 + $0xa0] sm:$0xff]
    %v2893 = vld [vmem:[#allocation2 + $0xa8] sm:$0xff]
    %v2894 = vld [vmem:[#allocation2 + $0xb0] sm:$0xff]
    %v2895 = vld [vmem:[#allocation2 + $0xb8] sm:$0xff]
    %v2896 = vld [vmem:[#allocation10] sm:$0xff]
    %v2897 = vld [vmem:[#allocation10 + $0x8] sm:$0xff]
    %v2898 = vld [vmem:[#allocation10 + $0x10] sm:$0xff]
    %v2899 = vld [vmem:[#allocation10 + $0x18] sm:$0xff]
    %v2900 = vld [vmem:[#allocation10 + $0x20] sm:$0xff]
    %v2901 = vld [vmem:[#allocation10 + $0x28] sm:$0xff]
    %v2902 = vld [vmem:[#allocation10 + $0x30] sm:$0xff]
    %v2903 = vld [vmem:[#allocation10 + $0x38] sm:$0xff]
    %v2904 = vld [vmem:[#allocation10 + $0x40] sm:$0xff]
    %v2905 = vld [vmem:[#allocation10 + $0x48] sm:$0xff]
    %v2906 = vld [vmem:[#allocation10 + $0x50] sm:$0xff]
    %v2907 = vld [vmem:[#allocation10 + $0x58] sm:$0xff]
    %v2908 = vld [vmem:[#allocation10 + $0x60] sm:$0xff]
    %v2909 = vld [vmem:[#allocation10 + $0x68] sm:$0xff]
    %v2910 = vld [vmem:[#allocation10 + $0x70] sm:$0xff]
    %v2911 = vld [vmem:[#allocation10 + $0x78] sm:$0xff]
    %v2912 = vld [vmem:[#allocation10 + $0x80] sm:$0xff]
    %v2913 = vld [vmem:[#allocation10 + $0x88] sm:$0xff]
    %v2914 = vld [vmem:[#allocation10 + $0x90] sm:$0xff]
    %v2915 = vld [vmem:[#allocation10 + $0x98] sm:$0xff]
    %v2916 = vld [vmem:[#allocation10 + $0xa0] sm:$0xff]
    %v2917 = vld [vmem:[#allocation10 + $0xa8] sm:$0xff]
    %v2918 = vld [vmem:[#allocation10 + $0xb0] sm:$0xff]
    %v2919 = vld [vmem:[#allocation10 + $0xb8] sm:$0xff]
    %v2920 = vld [vmem:[#allocation10 + $0xc0] sm:$0xff]
    %v2921 = vld [vmem:[#allocation10 + $0xc8] sm:$0xff]
    %v2922 = vld [vmem:[#allocation10 + $0xd0] sm:$0xff]
    %v2923 = vld [vmem:[#allocation10 + $0xd8] sm:$0xff]
    %v2924 = vld [vmem:[#allocation10 + $0xe0] sm:$0xff]
    %v2925 = vld [vmem:[#allocation10 + $0xe8] sm:$0xff]
    %v2926 = vld [vmem:[#allocation10 + $0xf0] sm:$0xff]
    %v2927 = vld [vmem:[#allocation10 + $0xf8] sm:$0xff]
    %v2928 = vld [vmem:[#allocation10 + $0x100] sm:$0xff]
    %v2929 = vld [vmem:[#allocation10 + $0x108] sm:$0xff]
    %v2930 = vld [vmem:[#allocation10 + $0x110] sm:$0xff]
    %v2931 = vld [vmem:[#allocation10 + $0x118] sm:$0xff]
    %v2932 = vld [vmem:[#allocation10 + $0x120] sm:$0xff]
    %v2933 = vld [vmem:[#allocation10 + $0x128] sm:$0xff]
    %v2934 = vld [vmem:[#allocation10 + $0x130] sm:$0xff]
    %v2935 = vld [vmem:[#allocation10 + $0x138] sm:$0xff]
    %v2936 = vld [vmem:[#allocation10 + $0x140] sm:$0xff]
    %v2937 = vld [vmem:[#allocation10 + $0x148] sm:$0xff]
    %v2938 = vld [vmem:[#allocation10 + $0x150] sm:$0xff]
    %v2939 = vld [vmem:[#allocation10 + $0x158] sm:$0xff]
    %v2940 = vld [vmem:[#allocation10 + $0x160] sm:$0xff]
    %v2941 = vld [vmem:[#allocation10 + $0x168] sm:$0xff]
    %v2942 = vld [vmem:[#allocation10 + $0x170] sm:$0xff]
    %v2943 = vld [vmem:[#allocation10 + $0x178] sm:$0xff]
    %v2944 = vld [vmem:[#allocation10 + $0x180] sm:$0xff]
    %v2945 = vld [vmem:[#allocation10 + $0x188] sm:$0xff]
    %v2946 = vld [vmem:[#allocation10 + $0x190] sm:$0xff]
    %v2947 = vld [vmem:[#allocation10 + $0x198] sm:$0xff]
    %v2948 = vld [vmem:[#allocation10 + $0x1a0] sm:$0xff]
    %v2949 = vld [vmem:[#allocation10 + $0x1a8] sm:$0xff]
    %v2950 = vld [vmem:[#allocation10 + $0x1b0] sm:$0xff]
    %v2951 = vld [vmem:[#allocation10 + $0x1b8] sm:$0xff]
    %v2952 = vld [vmem:[#allocation10 + $0x1c0] sm:$0xff]
    %v2953 = vld [vmem:[#allocation10 + $0x1c8] sm:$0xff]
    %v2954 = vld [vmem:[#allocation10 + $0x1d0] sm:$0xff]
    %v2955 = vld [vmem:[#allocation10 + $0x1d8] sm:$0xff]
    %v2956 = vld [vmem:[#allocation10 + $0x1e0] sm:$0xff]
    %v2957 = vld [vmem:[#allocation10 + $0x1e8] sm:$0xff]
    %v2958 = vld [vmem:[#allocation10 + $0x1f0] sm:$0xff]
    %v2959 = vld [vmem:[#allocation10 + $0x1f8] sm:$0xff]
    %2960 = vmatpush.msra.mxu0 %v2956
    %2961 = vmatpush.msra.mxu0 %v2952
    %2962 = vmatpush.msra.mxu0 %v2948
    %2963 = vmatpush.msra.mxu0 %v2944
    %2964 = vmatpush.msra.mxu0 %v2940
    %2965 = vmatpush.msra.mxu0 %v2936
    %2966 = vmatpush.msra.mxu0 %v2932
    %2967 = vmatpush.msra.mxu0 %v2928
    %2968 = vmatpush.msra.mxu0 %v2924
    %2969 = vmatpush.msra.mxu0 %v2920
    %2970 = vmatpush.msra.mxu0 %v2916
    %2971 = vmatpush.msra.mxu0 %v2912
    %2972 = vmatpush.msra.mxu0 %v2908
    %2973 = vmatpush.msra.mxu0 %v2904
    %2974 = vmatpush.msra.mxu0 %v2900
    %2975 = vmatpush.msra.mxu0 %v2896
    %2976 = vmatmul.f32.gmra.mxu0 %v2579
    %v2977 = vpop.f32.mrf.mxu0
    %v2978 = vadd.f32 0.0, %v2977
    %2979 = vdwg.mxu0
    %2980 = vmatpush.msra.mxu0 %v2957
    %2981 = vmatpush.msra.mxu0 %v2953
    %2982 = vmatpush.msra.mxu0 %v2949
    %2983 = vmatpush.msra.mxu0 %v2945
    %2984 = vmatpush.msra.mxu0 %v2941
    %2985 = vmatpush.msra.mxu0 %v2937
    %2986 = vmatpush.msra.mxu0 %v2933
    %2987 = vmatpush.msra.mxu0 %v2929
    %2988 = vmatpush.msra.mxu0 %v2925
    %2989 = vmatpush.msra.mxu0 %v2921
    %2990 = vmatpush.msra.mxu0 %v2917
    %2991 = vmatpush.msra.mxu0 %v2913
    %2992 = vmatpush.msra.mxu0 %v2909
    %2993 = vmatpush.msra.mxu0 %v2905
    %2994 = vmatpush.msra.mxu0 %v2901
    %2995 = vmatpush.msra.mxu0 %v2897
    %2996 = vmatmul.f32.gmra.mxu0 %v2579
    %v2997 = vpop.f32.mrf.mxu0
    %v2998 = vadd.f32 0.0, %v2997
    %2999 = vdwg.mxu0
    %3000 = vmatpush.msra.mxu0 %v2958
    %3001 = vmatpush.msra.mxu0 %v2954
    %3002 = vmatpush.msra.mxu0 %v2950
    %3003 = vmatpush.msra.mxu0 %v2946
    %3004 = vmatpush.msra.mxu0 %v2942
    %3005 = vmatpush.msra.mxu0 %v2938
    %3006 = vmatpush.msra.mxu0 %v2934
    %3007 = vmatpush.msra.mxu0 %v2930
    %3008 = vmatpush.msra.mxu0 %v2926
    %3009 = vmatpush.msra.mxu0 %v2922
    %3010 = vmatpush.msra.mxu0 %v2918
    %3011 = vmatpush.msra.mxu0 %v2914
    %3012 = vmatpush.msra.mxu0 %v2910
    %3013 = vmatpush.msra.mxu0 %v2906
    %3014 = vmatpush.msra.mxu0 %v2902
    %3015 = vmatpush.msra.mxu0 %v2898
    %3016 = vmatmul.f32.gmra.mxu0 %v2579
    %v3017 = vpop.f32.mrf.mxu0
    %v3018 = vadd.f32 0.0, %v3017
    %3019 = vdwg.mxu0
    %3020 = vmatpush.msra.mxu0 %v2959
    %3021 = vmatpush.msra.mxu0 %v2955
    %3022 = vmatpush.msra.mxu0 %v2951
    %3023 = vmatpush.msra.mxu0 %v2947
    %3024 = vmatpush.msra.mxu0 %v2943
    %3025 = vmatpush.msra.mxu0 %v2939
    %3026 = vmatpush.msra.mxu0 %v2935
    %3027 = vmatpush.msra.mxu0 %v2931
    %3028 = vmatpush.msra.mxu0 %v2927
    %3029 = vmatpush.msra.mxu0 %v2923
    %3030 = vmatpush.msra.mxu0 %v2919
    %3031 = vmatpush.msra.mxu0 %v2915
    %3032 = vmatpush.msra.mxu0 %v2911
    %3033 = vmatpush.msra.mxu0 %v2907
    %3034 = vmatpush.msra.mxu0 %v2903
    %3035 = vmatpush.msra.mxu0 %v2899
    %3036 = vmatmul.f32.gmra.mxu0 %v2579
    %v3037 = vpop.f32.mrf.mxu0
    %v3038 = vadd.f32 0.0, %v3037
    %3039 = vdwg.mxu0
    %v3040 = vadd.f32 %v2892, %v2978
    %v3041 = vadd.f32 %v2893, %v2998
    %v3042 = vadd.f32 %v2894, %v3018
    %v3043 = vadd.f32 %v2895, %v3038
    %v3044 = vmul.f32 %v3040, 0.5
    %v3045 = vtanh.pop %v3044
    %v3046 = vmul.f32 %v3045, 0.5
    %v3047 = vadd.f32 %v3046, 0.5
    %v3048 = vmul.f32 %v3041, 0.5
    %v3049 = vtanh.pop %v3048
    %v3050 = vmul.f32 %v3049, 0.5
    %v3051 = vadd.f32 %v3050, 0.5
    %v3052 = vtanh.pop %v3042
    %v3053 = vmul.f32 %v3043, 0.5
    %v3054 = vtanh.pop %v3053
    %v3055 = vmul.f32 %v3054, 0.5
    %v3056 = vadd.f32 %v3055, 0.5
    %v3057 = vmul.f32 %v3051, %v2577
    %v3058 = vmul.f32 %v3047, %v3052
    %v3059 = vadd.f32 %v3057, %v3058
    %v3060 = vtanh.pop %v3059
    %v3061 = vmul.f32 %v3056, %v3060
    %3062 = vmatpush.msra.mxu0 %v2888
    %3063 = vmatpush.msra.mxu0 %v2884
    %3064 = vmatpush.msra.mxu0 %v2880
    %3065 = vmatpush.msra.mxu0 %v2876
    %3066 = vmatpush.msra.mxu0 %v2872
    %3067 = vmatpush.msra.mxu0 %v2868
    %3068 = vmatpush.msra.mxu0 %v2864
    %3069 = vmatpush.msra.mxu0 %v2860
    %3070 = vmatpush.msra.mxu0 %v2856
    %3071 = vmatpush.msra.mxu0 %v2852
    %3072 = vmatpush.msra.mxu0 %v2848
    %3073 = vmatpush.msra.mxu0 %v2844
    %3074 = vmatpush.msra.mxu0 %v2840
    %3075 = vmatpush.msra.mxu0 %v2836
    %3076 = vmatpush.msra.mxu0 %v2832
    %3077 = vmatpush.msra.mxu0 %v2828
    %3078 = vmatmul.f32.gmra.mxu0 %v2825
    %v3079 = vpop.f32.mrf.mxu0
    %v3080 = vadd.f32 %v645, %v3079
    %3081 = vdwg.mxu0
    %3082 = vmatpush.msra.mxu0 %v2889
    %3083 = vmatpush.msra.mxu0 %v2885
    %3084 = vmatpush.msra.mxu0 %v2881
    %3085 = vmatpush.msra.mxu0 %v2877
    %3086 = vmatpush.msra.mxu0 %v2873
    %3087 = vmatpush.msra.mxu0 %v2869
    %3088 = vmatpush.msra.mxu0 %v2865
    %3089 = vmatpush.msra.mxu0 %v2861
    %3090 = vmatpush.msra.mxu0 %v2857
    %3091 = vmatpush.msra.mxu0 %v2853
    %3092 = vmatpush.msra.mxu0 %v2849
    %3093 = vmatpush.msra.mxu0 %v2845
    %3094 = vmatpush.msra.mxu0 %v2841
    %3095 = vmatpush.msra.mxu0 %v2837
    %3096 = vmatpush.msra.mxu0 %v2833
    %3097 = vmatpush.msra.mxu0 %v2829
    %3098 = vmatmul.f32.gmra.mxu0 %v2825
    %v3099 = vpop.f32.mrf.mxu0
    %v3100 = vadd.f32 %v646, %v3099
    %3101 = vdwg.mxu0
    %3102 = vmatpush.msra.mxu0 %v2890
    %3103 = vmatpush.msra.mxu0 %v2886
    %3104 = vmatpush.msra.mxu0 %v2882
    %3105 = vmatpush.msra.mxu0 %v2878
    %3106 = vmatpush.msra.mxu0 %v2874
    %3107 = vmatpush.msra.mxu0 %v2870
    %3108 = vmatpush.msra.mxu0 %v2866
    %3109 = vmatpush.msra.mxu0 %v2862
    %3110 = vmatpush.msra.mxu0 %v2858
    %3111 = vmatpush.msra.mxu0 %v2854
    %3112 = vmatpush.msra.mxu0 %v2850
    %3113 = vmatpush.msra.mxu0 %v2846
    %3114 = vmatpush.msra.mxu0 %v2842
    %3115 = vmatpush.msra.mxu0 %v2838
    %3116 = vmatpush.msra.mxu0 %v2834
    %3117 = vmatpush.msra.mxu0 %v2830
    %3118 = vmatmul.f32.gmra.mxu0 %v2825
    %v3119 = vpop.f32.mrf.mxu0
    %v3120 = vadd.f32 %v647, %v3119
    %3121 = vdwg.mxu0
    %3122 = vmatpush.msra.mxu0 %v2891
    %3123 = vmatpush.msra.mxu0 %v2887
    %3124 = vmatpush.msra.mxu0 %v2883
    %3125 = vmatpush.msra.mxu0 %v2879
    %3126 = vmatpush.msra.mxu0 %v2875
    %3127 = vmatpush.msra.mxu0 %v2871
    %3128 = vmatpush.msra.mxu0 %v2867
    %3129 = vmatpush.msra.mxu0 %v2863
    %3130 = vmatpush.msra.mxu0 %v2859
    %3131 = vmatpush.msra.mxu0 %v2855
    %3132 = vmatpush.msra.mxu0 %v2851
    %3133 = vmatpush.msra.mxu0 %v2847
    %3134 = vmatpush.msra.mxu0 %v2843
    %3135 = vmatpush.msra.mxu0 %v2839
    %3136 = vmatpush.msra.mxu0 %v2835
    %3137 = vmatpush.msra.mxu0 %v2831
    %3138 = vmatmul.f32.gmra.mxu0 %v2825
    %v3139 = vpop.f32.mrf.mxu0
    %v3140 = vadd.f32 %v648, %v3139
    %3141 = vdwg.mxu0
    %v3142 = vld [vmem:[#allocation11] sm:$0xff]
    %v3143 = vld [vmem:[#allocation11 + $0x8] sm:$0xff]
    %v3144 = vld [vmem:[#allocation11 + $0x10] sm:$0xff]
    %v3145 = vld [vmem:[#allocation11 + $0x18] sm:$0xff]
    %v3146 = vld [vmem:[#allocation11 + $0x20] sm:$0xff]
    %v3147 = vld [vmem:[#allocation11 + $0x28] sm:$0xff]
    %v3148 = vld [vmem:[#allocation11 + $0x30] sm:$0xff]
    %v3149 = vld [vmem:[#allocation11 + $0x38] sm:$0xff]
    %v3150 = vld [vmem:[#allocation11 + $0x40] sm:$0xff]
    %v3151 = vld [vmem:[#allocation11 + $0x48] sm:$0xff]
    %v3152 = vld [vmem:[#allocation11 + $0x50] sm:$0xff]
    %v3153 = vld [vmem:[#allocation11 + $0x58] sm:$0xff]
    %v3154 = vld [vmem:[#allocation11 + $0x60] sm:$0xff]
    %v3155 = vld [vmem:[#allocation11 + $0x68] sm:$0xff]
    %v3156 = vld [vmem:[#allocation11 + $0x70] sm:$0xff]
    %v3157 = vld [vmem:[#allocation11 + $0x78] sm:$0xff]
    %v3158 = vld [vmem:[#allocation11 + $0x80] sm:$0xff]
    %v3159 = vld [vmem:[#allocation11 + $0x88] sm:$0xff]
    %v3160 = vld [vmem:[#allocation11 + $0x90] sm:$0xff]
    %v3161 = vld [vmem:[#allocation11 + $0x98] sm:$0xff]
    %v3162 = vld [vmem:[#allocation11 + $0xa0] sm:$0xff]
    %v3163 = vld [vmem:[#allocation11 + $0xa8] sm:$0xff]
    %v3164 = vld [vmem:[#allocation11 + $0xb0] sm:$0xff]
    %v3165 = vld [vmem:[#allocation11 + $0xb8] sm:$0xff]
    %v3166 = vld [vmem:[#allocation11 + $0xc0] sm:$0xff]
    %v3167 = vld [vmem:[#allocation11 + $0xc8] sm:$0xff]
    %v3168 = vld [vmem:[#allocation11 + $0xd0] sm:$0xff]
    %v3169 = vld [vmem:[#allocation11 + $0xd8] sm:$0xff]
    %v3170 = vld [vmem:[#allocation11 + $0xe0] sm:$0xff]
    %v3171 = vld [vmem:[#allocation11 + $0xe8] sm:$0xff]
    %v3172 = vld [vmem:[#allocation11 + $0xf0] sm:$0xff]
    %v3173 = vld [vmem:[#allocation11 + $0xf8] sm:$0xff]
    %v3174 = vld [vmem:[#allocation11 + $0x100] sm:$0xff]
    %v3175 = vld [vmem:[#allocation11 + $0x108] sm:$0xff]
    %v3176 = vld [vmem:[#allocation11 + $0x110] sm:$0xff]
    %v3177 = vld [vmem:[#allocation11 + $0x118] sm:$0xff]
    %v3178 = vld [vmem:[#allocation11 + $0x120] sm:$0xff]
    %v3179 = vld [vmem:[#allocation11 + $0x128] sm:$0xff]
    %v3180 = vld [vmem:[#allocation11 + $0x130] sm:$0xff]
    %v3181 = vld [vmem:[#allocation11 + $0x138] sm:$0xff]
    %v3182 = vld [vmem:[#allocation11 + $0x140] sm:$0xff]
    %v3183 = vld [vmem:[#allocation11 + $0x148] sm:$0xff]
    %v3184 = vld [vmem:[#allocation11 + $0x150] sm:$0xff]
    %v3185 = vld [vmem:[#allocation11 + $0x158] sm:$0xff]
    %v3186 = vld [vmem:[#allocation11 + $0x160] sm:$0xff]
    %v3187 = vld [vmem:[#allocation11 + $0x168] sm:$0xff]
    %v3188 = vld [vmem:[#allocation11 + $0x170] sm:$0xff]
    %v3189 = vld [vmem:[#allocation11 + $0x178] sm:$0xff]
    %v3190 = vld [vmem:[#allocation11 + $0x180] sm:$0xff]
    %v3191 = vld [vmem:[#allocation11 + $0x188] sm:$0xff]
    %v3192 = vld [vmem:[#allocation11 + $0x190] sm:$0xff]
    %v3193 = vld [vmem:[#allocation11 + $0x198] sm:$0xff]
    %v3194 = vld [vmem:[#allocation11 + $0x1a0] sm:$0xff]
    %v3195 = vld [vmem:[#allocation11 + $0x1a8] sm:$0xff]
    %v3196 = vld [vmem:[#allocation11 + $0x1b0] sm:$0xff]
    %v3197 = vld [vmem:[#allocation11 + $0x1b8] sm:$0xff]
    %v3198 = vld [vmem:[#allocation11 + $0x1c0] sm:$0xff]
    %v3199 = vld [vmem:[#allocation11 + $0x1c8] sm:$0xff]
    %v3200 = vld [vmem:[#allocation11 + $0x1d0] sm:$0xff]
    %v3201 = vld [vmem:[#allocation11 + $0x1d8] sm:$0xff]
    %v3202 = vld [vmem:[#allocation11 + $0x1e0] sm:$0xff]
    %v3203 = vld [vmem:[#allocation11 + $0x1e8] sm:$0xff]
    %v3204 = vld [vmem:[#allocation11 + $0x1f0] sm:$0xff]
    %v3205 = vld [vmem:[#allocation11 + $0x1f8] sm:$0xff]
    %3206 = vmatpush.msra.mxu0 %v3202
    %3207 = vmatpush.msra.mxu0 %v3198
    %3208 = vmatpush.msra.mxu0 %v3194
    %3209 = vmatpush.msra.mxu0 %v3190
    %3210 = vmatpush.msra.mxu0 %v3186
    %3211 = vmatpush.msra.mxu0 %v3182
    %3212 = vmatpush.msra.mxu0 %v3178
    %3213 = vmatpush.msra.mxu0 %v3174
    %3214 = vmatpush.msra.mxu0 %v3170
    %3215 = vmatpush.msra.mxu0 %v3166
    %3216 = vmatpush.msra.mxu0 %v3162
    %3217 = vmatpush.msra.mxu0 %v3158
    %3218 = vmatpush.msra.mxu0 %v3154
    %3219 = vmatpush.msra.mxu0 %v3150
    %3220 = vmatpush.msra.mxu0 %v3146
    %3221 = vmatpush.msra.mxu0 %v3142
    %3222 = vmatmul.f32.gmra.mxu0 %v3061
    %v3223 = vpop.f32.mrf.mxu0
    %v3224 = vadd.f32 0.0, %v3223
    %3225 = vdwg.mxu0
    %3226 = vmatpush.msra.mxu0 %v3203
    %3227 = vmatpush.msra.mxu0 %v3199
    %3228 = vmatpush.msra.mxu0 %v3195
    %3229 = vmatpush.msra.mxu0 %v3191
    %3230 = vmatpush.msra.mxu0 %v3187
    %3231 = vmatpush.msra.mxu0 %v3183
    %3232 = vmatpush.msra.mxu0 %v3179
    %3233 = vmatpush.msra.mxu0 %v3175
    %3234 = vmatpush.msra.mxu0 %v3171
    %3235 = vmatpush.msra.mxu0 %v3167
    %3236 = vmatpush.msra.mxu0 %v3163
    %3237 = vmatpush.msra.mxu0 %v3159
    %3238 = vmatpush.msra.mxu0 %v3155
    %3239 = vmatpush.msra.mxu0 %v3151
    %3240 = vmatpush.msra.mxu0 %v3147
    %3241 = vmatpush.msra.mxu0 %v3143
    %3242 = vmatmul.f32.gmra.mxu0 %v3061
    %v3243 = vpop.f32.mrf.mxu0
    %v3244 = vadd.f32 0.0, %v3243
    %3245 = vdwg.mxu0
    %3246 = vmatpush.msra.mxu0 %v3204
    %3247 = vmatpush.msra.mxu0 %v3200
    %3248 = vmatpush.msra.mxu0 %v3196
    %3249 = vmatpush.msra.mxu0 %v3192
    %3250 = vmatpush.msra.mxu0 %v3188
    %3251 = vmatpush.msra.mxu0 %v3184
    %3252 = vmatpush.msra.mxu0 %v3180
    %3253 = vmatpush.msra.mxu0 %v3176
    %3254 = vmatpush.msra.mxu0 %v3172
    %3255 = vmatpush.msra.mxu0 %v3168
    %3256 = vmatpush.msra.mxu0 %v3164
    %3257 = vmatpush.msra.mxu0 %v3160
    %3258 = vmatpush.msra.mxu0 %v3156
    %3259 = vmatpush.msra.mxu0 %v3152
    %3260 = vmatpush.msra.mxu0 %v3148
    %3261 = vmatpush.msra.mxu0 %v3144
    %3262 = vmatmul.f32.gmra.mxu0 %v3061
    %v3263 = vpop.f32.mrf.mxu0
    %v3264 = vadd.f32 0.0, %v3263
    %3265 = vdwg.mxu0
    %3266 = vmatpush.msra.mxu0 %v3205
    %3267 = vmatpush.msra.mxu0 %v3201
    %3268 = vmatpush.msra.mxu0 %v3197
    %3269 = vmatpush.msra.mxu0 %v3193
    %3270 = vmatpush.msra.mxu0 %v3189
    %3271 = vmatpush.msra.mxu0 %v3185
    %3272 = vmatpush.msra.mxu0 %v3181
    %3273 = vmatpush.msra.mxu0 %v3177
    %3274 = vmatpush.msra.mxu0 %v3173
    %3275 = vmatpush.msra.mxu0 %v3169
    %3276 = vmatpush.msra.mxu0 %v3165
    %3277 = vmatpush.msra.mxu0 %v3161
    %3278 = vmatpush.msra.mxu0 %v3157
    %3279 = vmatpush.msra.mxu0 %v3153
    %3280 = vmatpush.msra.mxu0 %v3149
    %3281 = vmatpush.msra.mxu0 %v3145
    %3282 = vmatmul.f32.gmra.mxu0 %v3061
    %v3283 = vpop.f32.mrf.mxu0
    %v3284 = vadd.f32 0.0, %v3283
    %3285 = vdwg.mxu0
    %v3286 = vadd.f32 %v3080, %v3224
    %v3287 = vadd.f32 %v3100, %v3244
    %v3288 = vadd.f32 %v3120, %v3264
    %v3289 = vadd.f32 %v3140, %v3284
    %v3290 = vmul.f32 %v3286, 0.5
    %v3291 = vtanh.pop %v3290
    %v3292 = vmul.f32 %v3291, 0.5
    %v3293 = vadd.f32 %v3292, 0.5
    %v3294 = vmul.f32 %v3287, 0.5
    %v3295 = vtanh.pop %v3294
    %v3296 = vmul.f32 %v3295, 0.5
    %v3297 = vadd.f32 %v3296, 0.5
    %v3298 = vtanh.pop %v3288
    %v3299 = vmul.f32 %v3289, 0.5
    %v3300 = vtanh.pop %v3299
    %v3301 = vmul.f32 %v3300, 0.5
    %v3302 = vadd.f32 %v3301, 0.5
    %v3303 = vmul.f32 %v3297, %v2823
    %v3304 = vmul.f32 %v3293, %v3298
    %v3305 = vadd.f32 %v3303, %v3304
    %v3306 = vtanh.pop %v3305
    %v3307 = vmul.f32 %v3302, %v3306
    %s3308 = scalar_lea.vmem [#allocation16], 40
    %3309 = vst [vmem:[%s3308] sm:$0xff] %v3307
    %v3310 = vld [vmem:[#allocation13] sm:$0xff]
    %v3311 = vld [vmem:[#allocation13 + $0x8] sm:$0xff]
    %v3312 = vld [vmem:[#allocation13 + $0x10] sm:$0xff]
    %v3313 = vld [vmem:[#allocation13 + $0x18] sm:$0xff]
    %v3314 = vld [vmem:[#allocation13 + $0x20] sm:$0xff]
    %v3315 = vld [vmem:[#allocation13 + $0x28] sm:$0xff]
    %v3316 = vld [vmem:[#allocation13 + $0x30] sm:$0xff]
    %v3317 = vld [vmem:[#allocation13 + $0x38] sm:$0xff]
    %v3318 = vld [vmem:[#allocation13 + $0x40] sm:$0xff]
    %v3319 = vld [vmem:[#allocation13 + $0x48] sm:$0xff]
    %v3320 = vld [vmem:[#allocation13 + $0x50] sm:$0xff]
    %v3321 = vld [vmem:[#allocation13 + $0x58] sm:$0xff]
    %v3322 = vld [vmem:[#allocation13 + $0x60] sm:$0xff]
    %v3323 = vld [vmem:[#allocation13 + $0x68] sm:$0xff]
    %v3324 = vld [vmem:[#allocation13 + $0x70] sm:$0xff]
    %v3325 = vld [vmem:[#allocation13 + $0x78] sm:$0xff]
    %v3326 = vld [vmem:[#allocation13 + $0x80] sm:$0xff]
    %v3327 = vld [vmem:[#allocation13 + $0x88] sm:$0xff]
    %v3328 = vld [vmem:[#allocation13 + $0x90] sm:$0xff]
    %v3329 = vld [vmem:[#allocation13 + $0x98] sm:$0xff]
    %v3330 = vld [vmem:[#allocation13 + $0xa0] sm:$0xff]
    %v3331 = vld [vmem:[#allocation13 + $0xa8] sm:$0xff]
    %v3332 = vld [vmem:[#allocation13 + $0xb0] sm:$0xff]
    %v3333 = vld [vmem:[#allocation13 + $0xb8] sm:$0xff]
    %v3334 = vld [vmem:[#allocation13 + $0xc0] sm:$0xff]
    %v3335 = vld [vmem:[#allocation13 + $0xc8] sm:$0xff]
    %v3336 = vld [vmem:[#allocation13 + $0xd0] sm:$0xff]
    %v3337 = vld [vmem:[#allocation13 + $0xd8] sm:$0xff]
    %v3338 = vld [vmem:[#allocation13 + $0xe0] sm:$0xff]
    %v3339 = vld [vmem:[#allocation13 + $0xe8] sm:$0xff]
    %v3340 = vld [vmem:[#allocation13 + $0xf0] sm:$0xff]
    %v3341 = vld [vmem:[#allocation13 + $0xf8] sm:$0xff]
    %v3342 = vld [vmem:[#allocation13 + $0x100] sm:$0xff]
    %v3343 = vld [vmem:[#allocation13 + $0x108] sm:$0xff]
    %v3344 = vld [vmem:[#allocation13 + $0x110] sm:$0xff]
    %v3345 = vld [vmem:[#allocation13 + $0x118] sm:$0xff]
    %v3346 = vld [vmem:[#allocation13 + $0x120] sm:$0xff]
    %v3347 = vld [vmem:[#allocation13 + $0x128] sm:$0xff]
    %v3348 = vld [vmem:[#allocation13 + $0x130] sm:$0xff]
    %v3349 = vld [vmem:[#allocation13 + $0x138] sm:$0xff]
    %v3350 = vld [vmem:[#allocation13 + $0x140] sm:$0xff]
    %v3351 = vld [vmem:[#allocation13 + $0x148] sm:$0xff]
    %v3352 = vld [vmem:[#allocation13 + $0x150] sm:$0xff]
    %v3353 = vld [vmem:[#allocation13 + $0x158] sm:$0xff]
    %v3354 = vld [vmem:[#allocation13 + $0x160] sm:$0xff]
    %v3355 = vld [vmem:[#allocation13 + $0x168] sm:$0xff]
    %v3356 = vld [vmem:[#allocation13 + $0x170] sm:$0xff]
    %v3357 = vld [vmem:[#allocation13 + $0x178] sm:$0xff]
    %v3358 = vld [vmem:[#allocation13 + $0x180] sm:$0xff]
    %v3359 = vld [vmem:[#allocation13 + $0x188] sm:$0xff]
    %v3360 = vld [vmem:[#allocation13 + $0x190] sm:$0xff]
    %v3361 = vld [vmem:[#allocation13 + $0x198] sm:$0xff]
    %v3362 = vld [vmem:[#allocation13 + $0x1a0] sm:$0xff]
    %v3363 = vld [vmem:[#allocation13 + $0x1a8] sm:$0xff]
    %v3364 = vld [vmem:[#allocation13 + $0x1b0] sm:$0xff]
    %v3365 = vld [vmem:[#allocation13 + $0x1b8] sm:$0xff]
    %v3366 = vld [vmem:[#allocation13 + $0x1c0] sm:$0xff]
    %v3367 = vld [vmem:[#allocation13 + $0x1c8] sm:$0xff]
    %v3368 = vld [vmem:[#allocation13 + $0x1d0] sm:$0xff]
    %v3369 = vld [vmem:[#allocation13 + $0x1d8] sm:$0xff]
    %v3370 = vld [vmem:[#allocation13 + $0x1e0] sm:$0xff]
    %v3371 = vld [vmem:[#allocation13 + $0x1e8] sm:$0xff]
    %v3372 = vld [vmem:[#allocation13 + $0x1f0] sm:$0xff]
    %v3373 = vld [vmem:[#allocation13 + $0x1f8] sm:$0xff]
    %v3374 = vld [vmem:[#allocation2 + $0xc0] sm:$0xff]
    %v3375 = vld [vmem:[#allocation2 + $0xc8] sm:$0xff]
    %v3376 = vld [vmem:[#allocation2 + $0xd0] sm:$0xff]
    %v3377 = vld [vmem:[#allocation2 + $0xd8] sm:$0xff]
    %v3378 = vld [vmem:[#allocation10] sm:$0xff]
    %v3379 = vld [vmem:[#allocation10 + $0x8] sm:$0xff]
    %v3380 = vld [vmem:[#allocation10 + $0x10] sm:$0xff]
    %v3381 = vld [vmem:[#allocation10 + $0x18] sm:$0xff]
    %v3382 = vld [vmem:[#allocation10 + $0x20] sm:$0xff]
    %v3383 = vld [vmem:[#allocation10 + $0x28] sm:$0xff]
    %v3384 = vld [vmem:[#allocation10 + $0x30] sm:$0xff]
    %v3385 = vld [vmem:[#allocation10 + $0x38] sm:$0xff]
    %v3386 = vld [vmem:[#allocation10 + $0x40] sm:$0xff]
    %v3387 = vld [vmem:[#allocation10 + $0x48] sm:$0xff]
    %v3388 = vld [vmem:[#allocation10 + $0x50] sm:$0xff]
    %v3389 = vld [vmem:[#allocation10 + $0x58] sm:$0xff]
    %v3390 = vld [vmem:[#allocation10 + $0x60] sm:$0xff]
    %v3391 = vld [vmem:[#allocation10 + $0x68] sm:$0xff]
    %v3392 = vld [vmem:[#allocation10 + $0x70] sm:$0xff]
    %v3393 = vld [vmem:[#allocation10 + $0x78] sm:$0xff]
    %v3394 = vld [vmem:[#allocation10 + $0x80] sm:$0xff]
    %v3395 = vld [vmem:[#allocation10 + $0x88] sm:$0xff]
    %v3396 = vld [vmem:[#allocation10 + $0x90] sm:$0xff]
    %v3397 = vld [vmem:[#allocation10 + $0x98] sm:$0xff]
    %v3398 = vld [vmem:[#allocation10 + $0xa0] sm:$0xff]
    %v3399 = vld [vmem:[#allocation10 + $0xa8] sm:$0xff]
    %v3400 = vld [vmem:[#allocation10 + $0xb0] sm:$0xff]
    %v3401 = vld [vmem:[#allocation10 + $0xb8] sm:$0xff]
    %v3402 = vld [vmem:[#allocation10 + $0xc0] sm:$0xff]
    %v3403 = vld [vmem:[#allocation10 + $0xc8] sm:$0xff]
    %v3404 = vld [vmem:[#allocation10 + $0xd0] sm:$0xff]
    %v3405 = vld [vmem:[#allocation10 + $0xd8] sm:$0xff]
    %v3406 = vld [vmem:[#allocation10 + $0xe0] sm:$0xff]
    %v3407 = vld [vmem:[#allocation10 + $0xe8] sm:$0xff]
    %v3408 = vld [vmem:[#allocation10 + $0xf0] sm:$0xff]
    %v3409 = vld [vmem:[#allocation10 + $0xf8] sm:$0xff]
    %v3410 = vld [vmem:[#allocation10 + $0x100] sm:$0xff]
    %v3411 = vld [vmem:[#allocation10 + $0x108] sm:$0xff]
    %v3412 = vld [vmem:[#allocation10 + $0x110] sm:$0xff]
    %v3413 = vld [vmem:[#allocation10 + $0x118] sm:$0xff]
    %v3414 = vld [vmem:[#allocation10 + $0x120] sm:$0xff]
    %v3415 = vld [vmem:[#allocation10 + $0x128] sm:$0xff]
    %v3416 = vld [vmem:[#allocation10 + $0x130] sm:$0xff]
    %v3417 = vld [vmem:[#allocation10 + $0x138] sm:$0xff]
    %v3418 = vld [vmem:[#allocation10 + $0x140] sm:$0xff]
    %v3419 = vld [vmem:[#allocation10 + $0x148] sm:$0xff]
    %v3420 = vld [vmem:[#allocation10 + $0x150] sm:$0xff]
    %v3421 = vld [vmem:[#allocation10 + $0x158] sm:$0xff]
    %v3422 = vld [vmem:[#allocation10 + $0x160] sm:$0xff]
    %v3423 = vld [vmem:[#allocation10 + $0x168] sm:$0xff]
    %v3424 = vld [vmem:[#allocation10 + $0x170] sm:$0xff]
    %v3425 = vld [vmem:[#allocation10 + $0x178] sm:$0xff]
    %v3426 = vld [vmem:[#allocation10 + $0x180] sm:$0xff]
    %v3427 = vld [vmem:[#allocation10 + $0x188] sm:$0xff]
    %v3428 = vld [vmem:[#allocation10 + $0x190] sm:$0xff]
    %v3429 = vld [vmem:[#allocation10 + $0x198] sm:$0xff]
    %v3430 = vld [vmem:[#allocation10 + $0x1a0] sm:$0xff]
    %v3431 = vld [vmem:[#allocation10 + $0x1a8] sm:$0xff]
    %v3432 = vld [vmem:[#allocation10 + $0x1b0] sm:$0xff]
    %v3433 = vld [vmem:[#allocation10 + $0x1b8] sm:$0xff]
    %v3434 = vld [vmem:[#allocation10 + $0x1c0] sm:$0xff]
    %v3435 = vld [vmem:[#allocation10 + $0x1c8] sm:$0xff]
    %v3436 = vld [vmem:[#allocation10 + $0x1d0] sm:$0xff]
    %v3437 = vld [vmem:[#allocation10 + $0x1d8] sm:$0xff]
    %v3438 = vld [vmem:[#allocation10 + $0x1e0] sm:$0xff]
    %v3439 = vld [vmem:[#allocation10 + $0x1e8] sm:$0xff]
    %v3440 = vld [vmem:[#allocation10 + $0x1f0] sm:$0xff]
    %v3441 = vld [vmem:[#allocation10 + $0x1f8] sm:$0xff]
    %3442 = vmatpush.msra.mxu0 %v3438
    %3443 = vmatpush.msra.mxu0 %v3434
    %3444 = vmatpush.msra.mxu0 %v3430
    %3445 = vmatpush.msra.mxu0 %v3426
    %3446 = vmatpush.msra.mxu0 %v3422
    %3447 = vmatpush.msra.mxu0 %v3418
    %3448 = vmatpush.msra.mxu0 %v3414
    %3449 = vmatpush.msra.mxu0 %v3410
    %3450 = vmatpush.msra.mxu0 %v3406
    %3451 = vmatpush.msra.mxu0 %v3402
    %3452 = vmatpush.msra.mxu0 %v3398
    %3453 = vmatpush.msra.mxu0 %v3394
    %3454 = vmatpush.msra.mxu0 %v3390
    %3455 = vmatpush.msra.mxu0 %v3386
    %3456 = vmatpush.msra.mxu0 %v3382
    %3457 = vmatpush.msra.mxu0 %v3378
    %3458 = vmatmul.f32.gmra.mxu0 %v3061
    %v3459 = vpop.f32.mrf.mxu0
    %v3460 = vadd.f32 0.0, %v3459
    %3461 = vdwg.mxu0
    %3462 = vmatpush.msra.mxu0 %v3439
    %3463 = vmatpush.msra.mxu0 %v3435
    %3464 = vmatpush.msra.mxu0 %v3431
    %3465 = vmatpush.msra.mxu0 %v3427
    %3466 = vmatpush.msra.mxu0 %v3423
    %3467 = vmatpush.msra.mxu0 %v3419
    %3468 = vmatpush.msra.mxu0 %v3415
    %3469 = vmatpush.msra.mxu0 %v3411
    %3470 = vmatpush.msra.mxu0 %v3407
    %3471 = vmatpush.msra.mxu0 %v3403
    %3472 = vmatpush.msra.mxu0 %v3399
    %3473 = vmatpush.msra.mxu0 %v3395
    %3474 = vmatpush.msra.mxu0 %v3391
    %3475 = vmatpush.msra.mxu0 %v3387
    %3476 = vmatpush.msra.mxu0 %v3383
    %3477 = vmatpush.msra.mxu0 %v3379
    %3478 = vmatmul.f32.gmra.mxu0 %v3061
    %v3479 = vpop.f32.mrf.mxu0
    %v3480 = vadd.f32 0.0, %v3479
    %3481 = vdwg.mxu0
    %3482 = vmatpush.msra.mxu0 %v3440
    %3483 = vmatpush.msra.mxu0 %v3436
    %3484 = vmatpush.msra.mxu0 %v3432
    %3485 = vmatpush.msra.mxu0 %v3428
    %3486 = vmatpush.msra.mxu0 %v3424
    %3487 = vmatpush.msra.mxu0 %v3420
    %3488 = vmatpush.msra.mxu0 %v3416
    %3489 = vmatpush.msra.mxu0 %v3412
    %3490 = vmatpush.msra.mxu0 %v3408
    %3491 = vmatpush.msra.mxu0 %v3404
    %3492 = vmatpush.msra.mxu0 %v3400
    %3493 = vmatpush.msra.mxu0 %v3396
    %3494 = vmatpush.msra.mxu0 %v3392
    %3495 = vmatpush.msra.mxu0 %v3388
    %3496 = vmatpush.msra.mxu0 %v3384
    %3497 = vmatpush.msra.mxu0 %v3380
    %3498 = vmatmul.f32.gmra.mxu0 %v3061
    %v3499 = vpop.f32.mrf.mxu0
    %v3500 = vadd.f32 0.0, %v3499
    %3501 = vdwg.mxu0
    %3502 = vmatpush.msra.mxu0 %v3441
    %3503 = vmatpush.msra.mxu0 %v3437
    %3504 = vmatpush.msra.mxu0 %v3433
    %3505 = vmatpush.msra.mxu0 %v3429
    %3506 = vmatpush.msra.mxu0 %v3425
    %3507 = vmatpush.msra.mxu0 %v3421
    %3508 = vmatpush.msra.mxu0 %v3417
    %3509 = vmatpush.msra.mxu0 %v3413
    %3510 = vmatpush.msra.mxu0 %v3409
    %3511 = vmatpush.msra.mxu0 %v3405
    %3512 = vmatpush.msra.mxu0 %v3401
    %3513 = vmatpush.msra.mxu0 %v3397
    %3514 = vmatpush.msra.mxu0 %v3393
    %3515 = vmatpush.msra.mxu0 %v3389
    %3516 = vmatpush.msra.mxu0 %v3385
    %3517 = vmatpush.msra.mxu0 %v3381
    %3518 = vmatmul.f32.gmra.mxu0 %v3061
    %v3519 = vpop.f32.mrf.mxu0
    %v3520 = vadd.f32 0.0, %v3519
    %3521 = vdwg.mxu0
    %v3522 = vadd.f32 %v3374, %v3460
    %v3523 = vadd.f32 %v3375, %v3480
    %v3524 = vadd.f32 %v3376, %v3500
    %v3525 = vadd.f32 %v3377, %v3520
    %v3526 = vmul.f32 %v3522, 0.5
    %v3527 = vtanh.pop %v3526
    %v3528 = vmul.f32 %v3527, 0.5
    %v3529 = vadd.f32 %v3528, 0.5
    %v3530 = vmul.f32 %v3523, 0.5
    %v3531 = vtanh.pop %v3530
    %v3532 = vmul.f32 %v3531, 0.5
    %v3533 = vadd.f32 %v3532, 0.5
    %v3534 = vtanh.pop %v3524
    %v3535 = vmul.f32 %v3525, 0.5
    %v3536 = vtanh.pop %v3535
    %v3537 = vmul.f32 %v3536, 0.5
    %v3538 = vadd.f32 %v3537, 0.5
    %v3539 = vmul.f32 %v3533, %v3059
    %v3540 = vmul.f32 %v3529, %v3534
    %v3541 = vadd.f32 %v3539, %v3540
    %v3542 = vtanh.pop %v3541
    %v3543 = vmul.f32 %v3538, %v3542
    %3544 = vmatpush.msra.mxu0 %v3370
    %3545 = vmatpush.msra.mxu0 %v3366
    %3546 = vmatpush.msra.mxu0 %v3362
    %3547 = vmatpush.msra.mxu0 %v3358
    %3548 = vmatpush.msra.mxu0 %v3354
    %3549 = vmatpush.msra.mxu0 %v3350
    %3550 = vmatpush.msra.mxu0 %v3346
    %3551 = vmatpush.msra.mxu0 %v3342
    %3552 = vmatpush.msra.mxu0 %v3338
    %3553 = vmatpush.msra.mxu0 %v3334
    %3554 = vmatpush.msra.mxu0 %v3330
    %3555 = vmatpush.msra.mxu0 %v3326
    %3556 = vmatpush.msra.mxu0 %v3322
    %3557 = vmatpush.msra.mxu0 %v3318
    %3558 = vmatpush.msra.mxu0 %v3314
    %3559 = vmatpush.msra.mxu0 %v3310
    %3560 = vmatmul.f32.gmra.mxu0 %v3307
    %v3561 = vpop.f32.mrf.mxu0
    %v3562 = vadd.f32 %v645, %v3561
    %3563 = vdwg.mxu0
    %3564 = vmatpush.msra.mxu0 %v3371
    %3565 = vmatpush.msra.mxu0 %v3367
    %3566 = vmatpush.msra.mxu0 %v3363
    %3567 = vmatpush.msra.mxu0 %v3359
    %3568 = vmatpush.msra.mxu0 %v3355
    %3569 = vmatpush.msra.mxu0 %v3351
    %3570 = vmatpush.msra.mxu0 %v3347
    %3571 = vmatpush.msra.mxu0 %v3343
    %3572 = vmatpush.msra.mxu0 %v3339
    %3573 = vmatpush.msra.mxu0 %v3335
    %3574 = vmatpush.msra.mxu0 %v3331
    %3575 = vmatpush.msra.mxu0 %v3327
    %3576 = vmatpush.msra.mxu0 %v3323
    %3577 = vmatpush.msra.mxu0 %v3319
    %3578 = vmatpush.msra.mxu0 %v3315
    %3579 = vmatpush.msra.mxu0 %v3311
    %3580 = vmatmul.f32.gmra.mxu0 %v3307
    %v3581 = vpop.f32.mrf.mxu0
    %v3582 = vadd.f32 %v646, %v3581
    %3583 = vdwg.mxu0
    %3584 = vmatpush.msra.mxu0 %v3372
    %3585 = vmatpush.msra.mxu0 %v3368
    %3586 = vmatpush.msra.mxu0 %v3364
    %3587 = vmatpush.msra.mxu0 %v3360
    %3588 = vmatpush.msra.mxu0 %v3356
    %3589 = vmatpush.msra.mxu0 %v3352
    %3590 = vmatpush.msra.mxu0 %v3348
    %3591 = vmatpush.msra.mxu0 %v3344
    %3592 = vmatpush.msra.mxu0 %v3340
    %3593 = vmatpush.msra.mxu0 %v3336
    %3594 = vmatpush.msra.mxu0 %v3332
    %3595 = vmatpush.msra.mxu0 %v3328
    %3596 = vmatpush.msra.mxu0 %v3324
    %3597 = vmatpush.msra.mxu0 %v3320
    %3598 = vmatpush.msra.mxu0 %v3316
    %3599 = vmatpush.msra.mxu0 %v3312
    %3600 = vmatmul.f32.gmra.mxu0 %v3307
    %v3601 = vpop.f32.mrf.mxu0
    %v3602 = vadd.f32 %v647, %v3601
    %3603 = vdwg.mxu0
    %3604 = vmatpush.msra.mxu0 %v3373
    %3605 = vmatpush.msra.mxu0 %v3369
    %3606 = vmatpush.msra.mxu0 %v3365
    %3607 = vmatpush.msra.mxu0 %v3361
    %3608 = vmatpush.msra.mxu0 %v3357
    %3609 = vmatpush.msra.mxu0 %v3353
    %3610 = vmatpush.msra.mxu0 %v3349
    %3611 = vmatpush.msra.mxu0 %v3345
    %3612 = vmatpush.msra.mxu0 %v3341
    %3613 = vmatpush.msra.mxu0 %v3337
    %3614 = vmatpush.msra.mxu0 %v3333
    %3615 = vmatpush.msra.mxu0 %v3329
    %3616 = vmatpush.msra.mxu0 %v3325
    %3617 = vmatpush.msra.mxu0 %v3321
    %3618 = vmatpush.msra.mxu0 %v3317
    %3619 = vmatpush.msra.mxu0 %v3313
    %3620 = vmatmul.f32.gmra.mxu0 %v3307
    %v3621 = vpop.f32.mrf.mxu0
    %v3622 = vadd.f32 %v648, %v3621
    %3623 = vdwg.mxu0
    %v3624 = vld [vmem:[#allocation11] sm:$0xff]
    %v3625 = vld [vmem:[#allocation11 + $0x8] sm:$0xff]
    %v3626 = vld [vmem:[#allocation11 + $0x10] sm:$0xff]
    %v3627 = vld [vmem:[#allocation11 + $0x18] sm:$0xff]
    %v3628 = vld [vmem:[#allocation11 + $0x20] sm:$0xff]
    %v3629 = vld [vmem:[#allocation11 + $0x28] sm:$0xff]
    %v3630 = vld [vmem:[#allocation11 + $0x30] sm:$0xff]
    %v3631 = vld [vmem:[#allocation11 + $0x38] sm:$0xff]
    %v3632 = vld [vmem:[#allocation11 + $0x40] sm:$0xff]
    %v3633 = vld [vmem:[#allocation11 + $0x48] sm:$0xff]
    %v3634 = vld [vmem:[#allocation11 + $0x50] sm:$0xff]
    %v3635 = vld [vmem:[#allocation11 + $0x58] sm:$0xff]
    %v3636 = vld [vmem:[#allocation11 + $0x60] sm:$0xff]
    %v3637 = vld [vmem:[#allocation11 + $0x68] sm:$0xff]
    %v3638 = vld [vmem:[#allocation11 + $0x70] sm:$0xff]
    %v3639 = vld [vmem:[#allocation11 + $0x78] sm:$0xff]
    %v3640 = vld [vmem:[#allocation11 + $0x80] sm:$0xff]
    %v3641 = vld [vmem:[#allocation11 + $0x88] sm:$0xff]
    %v3642 = vld [vmem:[#allocation11 + $0x90] sm:$0xff]
    %v3643 = vld [vmem:[#allocation11 + $0x98] sm:$0xff]
    %v3644 = vld [vmem:[#allocation11 + $0xa0] sm:$0xff]
    %v3645 = vld [vmem:[#allocation11 + $0xa8] sm:$0xff]
    %v3646 = vld [vmem:[#allocation11 + $0xb0] sm:$0xff]
    %v3647 = vld [vmem:[#allocation11 + $0xb8] sm:$0xff]
    %v3648 = vld [vmem:[#allocation11 + $0xc0] sm:$0xff]
    %v3649 = vld [vmem:[#allocation11 + $0xc8] sm:$0xff]
    %v3650 = vld [vmem:[#allocation11 + $0xd0] sm:$0xff]
    %v3651 = vld [vmem:[#allocation11 + $0xd8] sm:$0xff]
    %v3652 = vld [vmem:[#allocation11 + $0xe0] sm:$0xff]
    %v3653 = vld [vmem:[#allocation11 + $0xe8] sm:$0xff]
    %v3654 = vld [vmem:[#allocation11 + $0xf0] sm:$0xff]
    %v3655 = vld [vmem:[#allocation11 + $0xf8] sm:$0xff]
    %v3656 = vld [vmem:[#allocation11 + $0x100] sm:$0xff]
    %v3657 = vld [vmem:[#allocation11 + $0x108] sm:$0xff]
    %v3658 = vld [vmem:[#allocation11 + $0x110] sm:$0xff]
    %v3659 = vld [vmem:[#allocation11 + $0x118] sm:$0xff]
    %v3660 = vld [vmem:[#allocation11 + $0x120] sm:$0xff]
    %v3661 = vld [vmem:[#allocation11 + $0x128] sm:$0xff]
    %v3662 = vld [vmem:[#allocation11 + $0x130] sm:$0xff]
    %v3663 = vld [vmem:[#allocation11 + $0x138] sm:$0xff]
    %v3664 = vld [vmem:[#allocation11 + $0x140] sm:$0xff]
    %v3665 = vld [vmem:[#allocation11 + $0x148] sm:$0xff]
    %v3666 = vld [vmem:[#allocation11 + $0x150] sm:$0xff]
    %v3667 = vld [vmem:[#allocation11 + $0x158] sm:$0xff]
    %v3668 = vld [vmem:[#allocation11 + $0x160] sm:$0xff]
    %v3669 = vld [vmem:[#allocation11 + $0x168] sm:$0xff]
    %v3670 = vld [vmem:[#allocation11 + $0x170] sm:$0xff]
    %v3671 = vld [vmem:[#allocation11 + $0x178] sm:$0xff]
    %v3672 = vld [vmem:[#allocation11 + $0x180] sm:$0xff]
    %v3673 = vld [vmem:[#allocation11 + $0x188] sm:$0xff]
    %v3674 = vld [vmem:[#allocation11 + $0x190] sm:$0xff]
    %v3675 = vld [vmem:[#allocation11 + $0x198] sm:$0xff]
    %v3676 = vld [vmem:[#allocation11 + $0x1a0] sm:$0xff]
    %v3677 = vld [vmem:[#allocation11 + $0x1a8] sm:$0xff]
    %v3678 = vld [vmem:[#allocation11 + $0x1b0] sm:$0xff]
    %v3679 = vld [vmem:[#allocation11 + $0x1b8] sm:$0xff]
    %v3680 = vld [vmem:[#allocation11 + $0x1c0] sm:$0xff]
    %v3681 = vld [vmem:[#allocation11 + $0x1c8] sm:$0xff]
    %v3682 = vld [vmem:[#allocation11 + $0x1d0] sm:$0xff]
    %v3683 = vld [vmem:[#allocation11 + $0x1d8] sm:$0xff]
    %v3684 = vld [vmem:[#allocation11 + $0x1e0] sm:$0xff]
    %v3685 = vld [vmem:[#allocation11 + $0x1e8] sm:$0xff]
    %v3686 = vld [vmem:[#allocation11 + $0x1f0] sm:$0xff]
    %v3687 = vld [vmem:[#allocation11 + $0x1f8] sm:$0xff]
    %3688 = vmatpush.msra.mxu0 %v3684
    %3689 = vmatpush.msra.mxu0 %v3680
    %3690 = vmatpush.msra.mxu0 %v3676
    %3691 = vmatpush.msra.mxu0 %v3672
    %3692 = vmatpush.msra.mxu0 %v3668
    %3693 = vmatpush.msra.mxu0 %v3664
    %3694 = vmatpush.msra.mxu0 %v3660
    %3695 = vmatpush.msra.mxu0 %v3656
    %3696 = vmatpush.msra.mxu0 %v3652
    %3697 = vmatpush.msra.mxu0 %v3648
    %3698 = vmatpush.msra.mxu0 %v3644
    %3699 = vmatpush.msra.mxu0 %v3640
    %3700 = vmatpush.msra.mxu0 %v3636
    %3701 = vmatpush.msra.mxu0 %v3632
    %3702 = vmatpush.msra.mxu0 %v3628
    %3703 = vmatpush.msra.mxu0 %v3624
    %3704 = vmatmul.f32.gmra.mxu0 %v3543
    %v3705 = vpop.f32.mrf.mxu0
    %v3706 = vadd.f32 0.0, %v3705
    %3707 = vdwg.mxu0
    %3708 = vmatpush.msra.mxu0 %v3685
    %3709 = vmatpush.msra.mxu0 %v3681
    %3710 = vmatpush.msra.mxu0 %v3677
    %3711 = vmatpush.msra.mxu0 %v3673
    %3712 = vmatpush.msra.mxu0 %v3669
    %3713 = vmatpush.msra.mxu0 %v3665
    %3714 = vmatpush.msra.mxu0 %v3661
    %3715 = vmatpush.msra.mxu0 %v3657
    %3716 = vmatpush.msra.mxu0 %v3653
    %3717 = vmatpush.msra.mxu0 %v3649
    %3718 = vmatpush.msra.mxu0 %v3645
    %3719 = vmatpush.msra.mxu0 %v3641
    %3720 = vmatpush.msra.mxu0 %v3637
    %3721 = vmatpush.msra.mxu0 %v3633
    %3722 = vmatpush.msra.mxu0 %v3629
    %3723 = vmatpush.msra.mxu0 %v3625
    %3724 = vmatmul.f32.gmra.mxu0 %v3543
    %v3725 = vpop.f32.mrf.mxu0
    %v3726 = vadd.f32 0.0, %v3725
    %3727 = vdwg.mxu0
    %3728 = vmatpush.msra.mxu0 %v3686
    %3729 = vmatpush.msra.mxu0 %v3682
    %3730 = vmatpush.msra.mxu0 %v3678
    %3731 = vmatpush.msra.mxu0 %v3674
    %3732 = vmatpush.msra.mxu0 %v3670
    %3733 = vmatpush.msra.mxu0 %v3666
    %3734 = vmatpush.msra.mxu0 %v3662
    %3735 = vmatpush.msra.mxu0 %v3658
    %3736 = vmatpush.msra.mxu0 %v3654
    %3737 = vmatpush.msra.mxu0 %v3650
    %3738 = vmatpush.msra.mxu0 %v3646
    %3739 = vmatpush.msra.mxu0 %v3642
    %3740 = vmatpush.msra.mxu0 %v3638
    %3741 = vmatpush.msra.mxu0 %v3634
    %3742 = vmatpush.msra.mxu0 %v3630
    %3743 = vmatpush.msra.mxu0 %v3626
    %3744 = vmatmul.f32.gmra.mxu0 %v3543
    %v3745 = vpop.f32.mrf.mxu0
    %v3746 = vadd.f32 0.0, %v3745
    %3747 = vdwg.mxu0
    %3748 = vmatpush.msra.mxu0 %v3687
    %3749 = vmatpush.msra.mxu0 %v3683
    %3750 = vmatpush.msra.mxu0 %v3679
    %3751 = vmatpush.msra.mxu0 %v3675
    %3752 = vmatpush.msra.mxu0 %v3671
    %3753 = vmatpush.msra.mxu0 %v3667
    %3754 = vmatpush.msra.mxu0 %v3663
    %3755 = vmatpush.msra.mxu0 %v3659
    %3756 = vmatpush.msra.mxu0 %v3655
    %3757 = vmatpush.msra.mxu0 %v3651
    %3758 = vmatpush.msra.mxu0 %v3647
    %3759 = vmatpush.msra.mxu0 %v3643
    %3760 = vmatpush.msra.mxu0 %v3639
    %3761 = vmatpush.msra.mxu0 %v3635
    %3762 = vmatpush.msra.mxu0 %v3631
    %3763 = vmatpush.msra.mxu0 %v3627
    %3764 = vmatmul.f32.gmra.mxu0 %v3543
    %v3765 = vpop.f32.mrf.mxu0
    %v3766 = vadd.f32 0.0, %v3765
    %3767 = vdwg.mxu0
    %v3768 = vadd.f32 %v3562, %v3706
    %v3769 = vadd.f32 %v3582, %v3726
    %v3770 = vadd.f32 %v3602, %v3746
    %v3771 = vadd.f32 %v3622, %v3766
    %v3772 = vmul.f32 %v3768, 0.5
    %v3773 = vtanh.pop %v3772
    %v3774 = vmul.f32 %v3773, 0.5
    %v3775 = vadd.f32 %v3774, 0.5
    %v3776 = vmul.f32 %v3769, 0.5
    %v3777 = vtanh.pop %v3776
    %v3778 = vmul.f32 %v3777, 0.5
    %v3779 = vadd.f32 %v3778, 0.5
    %v3780 = vtanh.pop %v3770
    %v3781 = vmul.f32 %v3771, 0.5
    %v3782 = vtanh.pop %v3781
    %v3783 = vmul.f32 %v3782, 0.5
    %v3784 = vadd.f32 %v3783, 0.5
    %v3785 = vmul.f32 %v3779, %v3305
    %v3786 = vmul.f32 %v3775, %v3780
    %v3787 = vadd.f32 %v3785, %v3786
    %v3788 = vtanh.pop %v3787
    %v3789 = vmul.f32 %v3784, %v3788
    %s3790 = scalar_lea.vmem [#allocation16], 48
    %3791 = vst [vmem:[%s3790] sm:$0xff] %v3789
    %v3792 = vld [vmem:[#allocation13] sm:$0xff]
    %v3793 = vld [vmem:[#allocation13 + $0x8] sm:$0xff]
    %v3794 = vld [vmem:[#allocation13 + $0x10] sm:$0xff]
    %v3795 = vld [vmem:[#allocation13 + $0x18] sm:$0xff]
    %v3796 = vld [vmem:[#allocation13 + $0x20] sm:$0xff]
    %v3797 = vld [vmem:[#allocation13 + $0x28] sm:$0xff]
    %v3798 = vld [vmem:[#allocation13 + $0x30] sm:$0xff]
    %v3799 = vld [vmem:[#allocation13 + $0x38] sm:$0xff]
    %v3800 = vld [vmem:[#allocation13 + $0x40] sm:$0xff]
    %v3801 = vld [vmem:[#allocation13 + $0x48] sm:$0xff]
    %v3802 = vld [vmem:[#allocation13 + $0x50] sm:$0xff]
    %v3803 = vld [vmem:[#allocation13 + $0x58] sm:$0xff]
    %v3804 = vld [vmem:[#allocation13 + $0x60] sm:$0xff]
    %v3805 = vld [vmem:[#allocation13 + $0x68] sm:$0xff]
    %v3806 = vld [vmem:[#allocation13 + $0x70] sm:$0xff]
    %v3807 = vld [vmem:[#allocation13 + $0x78] sm:$0xff]
    %v3808 = vld [vmem:[#allocation13 + $0x80] sm:$0xff]
    %v3809 = vld [vmem:[#allocation13 + $0x88] sm:$0xff]
    %v3810 = vld [vmem:[#allocation13 + $0x90] sm:$0xff]
    %v3811 = vld [vmem:[#allocation13 + $0x98] sm:$0xff]
    %v3812 = vld [vmem:[#allocation13 + $0xa0] sm:$0xff]
    %v3813 = vld [vmem:[#allocation13 + $0xa8] sm:$0xff]
    %v3814 = vld [vmem:[#allocation13 + $0xb0] sm:$0xff]
    %v3815 = vld [vmem:[#allocation13 + $0xb8] sm:$0xff]
    %v3816 = vld [vmem:[#allocation13 + $0xc0] sm:$0xff]
    %v3817 = vld [vmem:[#allocation13 + $0xc8] sm:$0xff]
    %v3818 = vld [vmem:[#allocation13 + $0xd0] sm:$0xff]
    %v3819 = vld [vmem:[#allocation13 + $0xd8] sm:$0xff]
    %v3820 = vld [vmem:[#allocation13 + $0xe0] sm:$0xff]
    %v3821 = vld [vmem:[#allocation13 + $0xe8] sm:$0xff]
    %v3822 = vld [vmem:[#allocation13 + $0xf0] sm:$0xff]
    %v3823 = vld [vmem:[#allocation13 + $0xf8] sm:$0xff]
    %v3824 = vld [vmem:[#allocation13 + $0x100] sm:$0xff]
    %v3825 = vld [vmem:[#allocation13 + $0x108] sm:$0xff]
    %v3826 = vld [vmem:[#allocation13 + $0x110] sm:$0xff]
    %v3827 = vld [vmem:[#allocation13 + $0x118] sm:$0xff]
    %v3828 = vld [vmem:[#allocation13 + $0x120] sm:$0xff]
    %v3829 = vld [vmem:[#allocation13 + $0x128] sm:$0xff]
    %v3830 = vld [vmem:[#allocation13 + $0x130] sm:$0xff]
    %v3831 = vld [vmem:[#allocation13 + $0x138] sm:$0xff]
    %v3832 = vld [vmem:[#allocation13 + $0x140] sm:$0xff]
    %v3833 = vld [vmem:[#allocation13 + $0x148] sm:$0xff]
    %v3834 = vld [vmem:[#allocation13 + $0x150] sm:$0xff]
    %v3835 = vld [vmem:[#allocation13 + $0x158] sm:$0xff]
    %v3836 = vld [vmem:[#allocation13 + $0x160] sm:$0xff]
    %v3837 = vld [vmem:[#allocation13 + $0x168] sm:$0xff]
    %v3838 = vld [vmem:[#allocation13 + $0x170] sm:$0xff]
    %v3839 = vld [vmem:[#allocation13 + $0x178] sm:$0xff]
    %v3840 = vld [vmem:[#allocation13 + $0x180] sm:$0xff]
    %v3841 = vld [vmem:[#allocation13 + $0x188] sm:$0xff]
    %v3842 = vld [vmem:[#allocation13 + $0x190] sm:$0xff]
    %v3843 = vld [vmem:[#allocation13 + $0x198] sm:$0xff]
    %v3844 = vld [vmem:[#allocation13 + $0x1a0] sm:$0xff]
    %v3845 = vld [vmem:[#allocation13 + $0x1a8] sm:$0xff]
    %v3846 = vld [vmem:[#allocation13 + $0x1b0] sm:$0xff]
    %v3847 = vld [vmem:[#allocation13 + $0x1b8] sm:$0xff]
    %v3848 = vld [vmem:[#allocation13 + $0x1c0] sm:$0xff]
    %v3849 = vld [vmem:[#allocation13 + $0x1c8] sm:$0xff]
    %v3850 = vld [vmem:[#allocation13 + $0x1d0] sm:$0xff]
    %v3851 = vld [vmem:[#allocation13 + $0x1d8] sm:$0xff]
    %v3852 = vld [vmem:[#allocation13 + $0x1e0] sm:$0xff]
    %v3853 = vld [vmem:[#allocation13 + $0x1e8] sm:$0xff]
    %v3854 = vld [vmem:[#allocation13 + $0x1f0] sm:$0xff]
    %v3855 = vld [vmem:[#allocation13 + $0x1f8] sm:$0xff]
    %v3856 = vld [vmem:[#allocation2 + $0xe0] sm:$0xff]
    %v3857 = vld [vmem:[#allocation2 + $0xe8] sm:$0xff]
    %v3858 = vld [vmem:[#allocation2 + $0xf0] sm:$0xff]
    %v3859 = vld [vmem:[#allocation2 + $0xf8] sm:$0xff]
    %v3860 = vld [vmem:[#allocation10] sm:$0xff]
    %v3861 = vld [vmem:[#allocation10 + $0x8] sm:$0xff]
    %v3862 = vld [vmem:[#allocation10 + $0x10] sm:$0xff]
    %v3863 = vld [vmem:[#allocation10 + $0x18] sm:$0xff]
    %v3864 = vld [vmem:[#allocation10 + $0x20] sm:$0xff]
    %v3865 = vld [vmem:[#allocation10 + $0x28] sm:$0xff]
    %v3866 = vld [vmem:[#allocation10 + $0x30] sm:$0xff]
    %v3867 = vld [vmem:[#allocation10 + $0x38] sm:$0xff]
    %v3868 = vld [vmem:[#allocation10 + $0x40] sm:$0xff]
    %v3869 = vld [vmem:[#allocation10 + $0x48] sm:$0xff]
    %v3870 = vld [vmem:[#allocation10 + $0x50] sm:$0xff]
    %v3871 = vld [vmem:[#allocation10 + $0x58] sm:$0xff]
    %v3872 = vld [vmem:[#allocation10 + $0x60] sm:$0xff]
    %v3873 = vld [vmem:[#allocation10 + $0x68] sm:$0xff]
    %v3874 = vld [vmem:[#allocation10 + $0x70] sm:$0xff]
    %v3875 = vld [vmem:[#allocation10 + $0x78] sm:$0xff]
    %v3876 = vld [vmem:[#allocation10 + $0x80] sm:$0xff]
    %v3877 = vld [vmem:[#allocation10 + $0x88] sm:$0xff]
    %v3878 = vld [vmem:[#allocation10 + $0x90] sm:$0xff]
    %v3879 = vld [vmem:[#allocation10 + $0x98] sm:$0xff]
    %v3880 = vld [vmem:[#allocation10 + $0xa0] sm:$0xff]
    %v3881 = vld [vmem:[#allocation10 + $0xa8] sm:$0xff]
    %v3882 = vld [vmem:[#allocation10 + $0xb0] sm:$0xff]
    %v3883 = vld [vmem:[#allocation10 + $0xb8] sm:$0xff]
    %v3884 = vld [vmem:[#allocation10 + $0xc0] sm:$0xff]
    %v3885 = vld [vmem:[#allocation10 + $0xc8] sm:$0xff]
    %v3886 = vld [vmem:[#allocation10 + $0xd0] sm:$0xff]
    %v3887 = vld [vmem:[#allocation10 + $0xd8] sm:$0xff]
    %v3888 = vld [vmem:[#allocation10 + $0xe0] sm:$0xff]
    %v3889 = vld [vmem:[#allocation10 + $0xe8] sm:$0xff]
    %v3890 = vld [vmem:[#allocation10 + $0xf0] sm:$0xff]
    %v3891 = vld [vmem:[#allocation10 + $0xf8] sm:$0xff]
    %v3892 = vld [vmem:[#allocation10 + $0x100] sm:$0xff]
    %v3893 = vld [vmem:[#allocation10 + $0x108] sm:$0xff]
    %v3894 = vld [vmem:[#allocation10 + $0x110] sm:$0xff]
    %v3895 = vld [vmem:[#allocation10 + $0x118] sm:$0xff]
    %v3896 = vld [vmem:[#allocation10 + $0x120] sm:$0xff]
    %v3897 = vld [vmem:[#allocation10 + $0x128] sm:$0xff]
    %v3898 = vld [vmem:[#allocation10 + $0x130] sm:$0xff]
    %v3899 = vld [vmem:[#allocation10 + $0x138] sm:$0xff]
    %v3900 = vld [vmem:[#allocation10 + $0x140] sm:$0xff]
    %v3901 = vld [vmem:[#allocation10 + $0x148] sm:$0xff]
    %v3902 = vld [vmem:[#allocation10 + $0x150] sm:$0xff]
    %v3903 = vld [vmem:[#allocation10 + $0x158] sm:$0xff]
    %v3904 = vld [vmem:[#allocation10 + $0x160] sm:$0xff]
    %v3905 = vld [vmem:[#allocation10 + $0x168] sm:$0xff]
    %v3906 = vld [vmem:[#allocation10 + $0x170] sm:$0xff]
    %v3907 = vld [vmem:[#allocation10 + $0x178] sm:$0xff]
    %v3908 = vld [vmem:[#allocation10 + $0x180] sm:$0xff]
    %v3909 = vld [vmem:[#allocation10 + $0x188] sm:$0xff]
    %v3910 = vld [vmem:[#allocation10 + $0x190] sm:$0xff]
    %v3911 = vld [vmem:[#allocation10 + $0x198] sm:$0xff]
    %v3912 = vld [vmem:[#allocation10 + $0x1a0] sm:$0xff]
    %v3913 = vld [vmem:[#allocation10 + $0x1a8] sm:$0xff]
    %v3914 = vld [vmem:[#allocation10 + $0x1b0] sm:$0xff]
    %v3915 = vld [vmem:[#allocation10 + $0x1b8] sm:$0xff]
    %v3916 = vld [vmem:[#allocation10 + $0x1c0] sm:$0xff]
    %v3917 = vld [vmem:[#allocation10 + $0x1c8] sm:$0xff]
    %v3918 = vld [vmem:[#allocation10 + $0x1d0] sm:$0xff]
    %v3919 = vld [vmem:[#allocation10 + $0x1d8] sm:$0xff]
    %v3920 = vld [vmem:[#allocation10 + $0x1e0] sm:$0xff]
    %v3921 = vld [vmem:[#allocation10 + $0x1e8] sm:$0xff]
    %v3922 = vld [vmem:[#allocation10 + $0x1f0] sm:$0xff]
    %v3923 = vld [vmem:[#allocation10 + $0x1f8] sm:$0xff]
    %3924 = vmatpush.msra.mxu0 %v3920
    %3925 = vmatpush.msra.mxu0 %v3916
    %3926 = vmatpush.msra.mxu0 %v3912
    %3927 = vmatpush.msra.mxu0 %v3908
    %3928 = vmatpush.msra.mxu0 %v3904
    %3929 = vmatpush.msra.mxu0 %v3900
    %3930 = vmatpush.msra.mxu0 %v3896
    %3931 = vmatpush.msra.mxu0 %v3892
    %3932 = vmatpush.msra.mxu0 %v3888
    %3933 = vmatpush.msra.mxu0 %v3884
    %3934 = vmatpush.msra.mxu0 %v3880
    %3935 = vmatpush.msra.mxu0 %v3876
    %3936 = vmatpush.msra.mxu0 %v3872
    %3937 = vmatpush.msra.mxu0 %v3868
    %3938 = vmatpush.msra.mxu0 %v3864
    %3939 = vmatpush.msra.mxu0 %v3860
    %3940 = vmatmul.f32.gmra.mxu0 %v3543
    %v3941 = vpop.f32.mrf.mxu0
    %v3942 = vadd.f32 0.0, %v3941
    %3943 = vdwg.mxu0
    %3944 = vmatpush.msra.mxu0 %v3921
    %3945 = vmatpush.msra.mxu0 %v3917
    %3946 = vmatpush.msra.mxu0 %v3913
    %3947 = vmatpush.msra.mxu0 %v3909
    %3948 = vmatpush.msra.mxu0 %v3905
    %3949 = vmatpush.msra.mxu0 %v3901
    %3950 = vmatpush.msra.mxu0 %v3897
    %3951 = vmatpush.msra.mxu0 %v3893
    %3952 = vmatpush.msra.mxu0 %v3889
    %3953 = vmatpush.msra.mxu0 %v3885
    %3954 = vmatpush.msra.mxu0 %v3881
    %3955 = vmatpush.msra.mxu0 %v3877
    %3956 = vmatpush.msra.mxu0 %v3873
    %3957 = vmatpush.msra.mxu0 %v3869
    %3958 = vmatpush.msra.mxu0 %v3865
    %3959 = vmatpush.msra.mxu0 %v3861
    %3960 = vmatmul.f32.gmra.mxu0 %v3543
    %v3961 = vpop.f32.mrf.mxu0
    %v3962 = vadd.f32 0.0, %v3961
    %3963 = vdwg.mxu0
    %3964 = vmatpush.msra.mxu0 %v3922
    %3965 = vmatpush.msra.mxu0 %v3918
    %3966 = vmatpush.msra.mxu0 %v3914
    %3967 = vmatpush.msra.mxu0 %v3910
    %3968 = vmatpush.msra.mxu0 %v3906
    %3969 = vmatpush.msra.mxu0 %v3902
    %3970 = vmatpush.msra.mxu0 %v3898
    %3971 = vmatpush.msra.mxu0 %v3894
    %3972 = vmatpush.msra.mxu0 %v3890
    %3973 = vmatpush.msra.mxu0 %v3886
    %3974 = vmatpush.msra.mxu0 %v3882
    %3975 = vmatpush.msra.mxu0 %v3878
    %3976 = vmatpush.msra.mxu0 %v3874
    %3977 = vmatpush.msra.mxu0 %v3870
    %3978 = vmatpush.msra.mxu0 %v3866
    %3979 = vmatpush.msra.mxu0 %v3862
    %3980 = vmatmul.f32.gmra.mxu0 %v3543
    %v3981 = vpop.f32.mrf.mxu0
    %v3982 = vadd.f32 0.0, %v3981
    %3983 = vdwg.mxu0
    %3984 = vmatpush.msra.mxu0 %v3923
    %3985 = vmatpush.msra.mxu0 %v3919
    %3986 = vmatpush.msra.mxu0 %v3915
    %3987 = vmatpush.msra.mxu0 %v3911
    %3988 = vmatpush.msra.mxu0 %v3907
    %3989 = vmatpush.msra.mxu0 %v3903
    %3990 = vmatpush.msra.mxu0 %v3899
    %3991 = vmatpush.msra.mxu0 %v3895
    %3992 = vmatpush.msra.mxu0 %v3891
    %3993 = vmatpush.msra.mxu0 %v3887
    %3994 = vmatpush.msra.mxu0 %v3883
    %3995 = vmatpush.msra.mxu0 %v3879
    %3996 = vmatpush.msra.mxu0 %v3875
    %3997 = vmatpush.msra.mxu0 %v3871
    %3998 = vmatpush.msra.mxu0 %v3867
    %3999 = vmatpush.msra.mxu0 %v3863
    %4000 = vmatmul.f32.gmra.mxu0 %v3543
    %v4001 = vpop.f32.mrf.mxu0
    %v4002 = vadd.f32 0.0, %v4001
    %4003 = vdwg.mxu0
    %v4004 = vadd.f32 %v3856, %v3942
    %v4005 = vadd.f32 %v3857, %v3962
    %v4006 = vadd.f32 %v3858, %v3982
    %v4007 = vadd.f32 %v3859, %v4002
    %v4008 = vmul.f32 %v4004, 0.5
    %v4009 = vtanh.pop %v4008
    %v4010 = vmul.f32 %v4009, 0.5
    %v4011 = vadd.f32 %v4010, 0.5
    %v4012 = vmul.f32 %v4005, 0.5
    %v4013 = vtanh.pop %v4012
    %v4014 = vmul.f32 %v4013, 0.5
    %v4015 = vadd.f32 %v4014, 0.5
    %v4016 = vtanh.pop %v4006
    %v4017 = vmul.f32 %v4007, 0.5
    %v4018 = vtanh.pop %v4017
    %v4019 = vmul.f32 %v4018, 0.5
    %v4020 = vadd.f32 %v4019, 0.5
    %v4021 = vmul.f32 %v4015, %v3541
    %v4022 = vmul.f32 %v4011, %v4016
    %v4023 = vadd.f32 %v4021, %v4022
    %v4024 = vtanh.pop %v4023
    %v4025 = vmul.f32 %v4020, %v4024
    %4026 = vmatpush.msra.mxu0 %v3852
    %4027 = vmatpush.msra.mxu0 %v3848
    %4028 = vmatpush.msra.mxu0 %v3844
    %4029 = vmatpush.msra.mxu0 %v3840
    %4030 = vmatpush.msra.mxu0 %v3836
    %4031 = vmatpush.msra.mxu0 %v3832
    %4032 = vmatpush.msra.mxu0 %v3828
    %4033 = vmatpush.msra.mxu0 %v3824
    %4034 = vmatpush.msra.mxu0 %v3820
    %4035 = vmatpush.msra.mxu0 %v3816
    %4036 = vmatpush.msra.mxu0 %v3812
    %4037 = vmatpush.msra.mxu0 %v3808
    %4038 = vmatpush.msra.mxu0 %v3804
    %4039 = vmatpush.msra.mxu0 %v3800
    %4040 = vmatpush.msra.mxu0 %v3796
    %4041 = vmatpush.msra.mxu0 %v3792
    %4042 = vmatmul.f32.gmra.mxu0 %v3789
    %v4043 = vpop.f32.mrf.mxu0
    %v4044 = vadd.f32 %v645, %v4043
    %4045 = vdwg.mxu0
    %4046 = vmatpush.msra.mxu0 %v3853
    %4047 = vmatpush.msra.mxu0 %v3849
    %4048 = vmatpush.msra.mxu0 %v3845
    %4049 = vmatpush.msra.mxu0 %v3841
    %4050 = vmatpush.msra.mxu0 %v3837
    %4051 = vmatpush.msra.mxu0 %v3833
    %4052 = vmatpush.msra.mxu0 %v3829
    %4053 = vmatpush.msra.mxu0 %v3825
    %4054 = vmatpush.msra.mxu0 %v3821
    %4055 = vmatpush.msra.mxu0 %v3817
    %4056 = vmatpush.msra.mxu0 %v3813
    %4057 = vmatpush.msra.mxu0 %v3809
    %4058 = vmatpush.msra.mxu0 %v3805
    %4059 = vmatpush.msra.mxu0 %v3801
    %4060 = vmatpush.msra.mxu0 %v3797
    %4061 = vmatpush.msra.mxu0 %v3793
    %4062 = vmatmul.f32.gmra.mxu0 %v3789
    %v4063 = vpop.f32.mrf.mxu0
    %v4064 = vadd.f32 %v646, %v4063
    %4065 = vdwg.mxu0
    %4066 = vmatpush.msra.mxu0 %v3854
    %4067 = vmatpush.msra.mxu0 %v3850
    %4068 = vmatpush.msra.mxu0 %v3846
    %4069 = vmatpush.msra.mxu0 %v3842
    %4070 = vmatpush.msra.mxu0 %v3838
    %4071 = vmatpush.msra.mxu0 %v3834
    %4072 = vmatpush.msra.mxu0 %v3830
    %4073 = vmatpush.msra.mxu0 %v3826
    %4074 = vmatpush.msra.mxu0 %v3822
    %4075 = vmatpush.msra.mxu0 %v3818
    %4076 = vmatpush.msra.mxu0 %v3814
    %4077 = vmatpush.msra.mxu0 %v3810
    %4078 = vmatpush.msra.mxu0 %v3806
    %4079 = vmatpush.msra.mxu0 %v3802
    %4080 = vmatpush.msra.mxu0 %v3798
    %4081 = vmatpush.msra.mxu0 %v3794
    %4082 = vmatmul.f32.gmra.mxu0 %v3789
    %v4083 = vpop.f32.mrf.mxu0
    %v4084 = vadd.f32 %v647, %v4083
    %4085 = vdwg.mxu0
    %4086 = vmatpush.msra.mxu0 %v3855
    %4087 = vmatpush.msra.mxu0 %v3851
    %4088 = vmatpush.msra.mxu0 %v3847
    %4089 = vmatpush.msra.mxu0 %v3843
    %4090 = vmatpush.msra.mxu0 %v3839
    %4091 = vmatpush.msra.mxu0 %v3835
    %4092 = vmatpush.msra.mxu0 %v3831
    %4093 = vmatpush.msra.mxu0 %v3827
    %4094 = vmatpush.msra.mxu0 %v3823
    %4095 = vmatpush.msra.mxu0 %v3819
    %4096 = vmatpush.msra.mxu0 %v3815
    %4097 = vmatpush.msra.mxu0 %v3811
    %4098 = vmatpush.msra.mxu0 %v3807
    %4099 = vmatpush.msra.mxu0 %v3803
    %4100 = vmatpush.msra.mxu0 %v3799
    %4101 = vmatpush.msra.mxu0 %v3795
    %4102 = vmatmul.f32.gmra.mxu0 %v3789
    %v4103 = vpop.f32.mrf.mxu0
    %v4104 = vadd.f32 %v648, %v4103
    %4105 = vdwg.mxu0
    %v4106 = vld [vmem:[#allocation11] sm:$0xff]
    %v4107 = vld [vmem:[#allocation11 + $0x8] sm:$0xff]
    %v4108 = vld [vmem:[#allocation11 + $0x10] sm:$0xff]
    %v4109 = vld [vmem:[#allocation11 + $0x18] sm:$0xff]
    %v4110 = vld [vmem:[#allocation11 + $0x20] sm:$0xff]
    %v4111 = vld [vmem:[#allocation11 + $0x28] sm:$0xff]
    %v4112 = vld [vmem:[#allocation11 + $0x30] sm:$0xff]
    %v4113 = vld [vmem:[#allocation11 + $0x38] sm:$0xff]
    %v4114 = vld [vmem:[#allocation11 + $0x40] sm:$0xff]
    %v4115 = vld [vmem:[#allocation11 + $0x48] sm:$0xff]
    %v4116 = vld [vmem:[#allocation11 + $0x50] sm:$0xff]
    %v4117 = vld [vmem:[#allocation11 + $0x58] sm:$0xff]
    %v4118 = vld [vmem:[#allocation11 + $0x60] sm:$0xff]
    %v4119 = vld [vmem:[#allocation11 + $0x68] sm:$0xff]
    %v4120 = vld [vmem:[#allocation11 + $0x70] sm:$0xff]
    %v4121 = vld [vmem:[#allocation11 + $0x78] sm:$0xff]
    %v4122 = vld [vmem:[#allocation11 + $0x80] sm:$0xff]
    %v4123 = vld [vmem:[#allocation11 + $0x88] sm:$0xff]
    %v4124 = vld [vmem:[#allocation11 + $0x90] sm:$0xff]
    %v4125 = vld [vmem:[#allocation11 + $0x98] sm:$0xff]
    %v4126 = vld [vmem:[#allocation11 + $0xa0] sm:$0xff]
    %v4127 = vld [vmem:[#allocation11 + $0xa8] sm:$0xff]
    %v4128 = vld [vmem:[#allocation11 + $0xb0] sm:$0xff]
    %v4129 = vld [vmem:[#allocation11 + $0xb8] sm:$0xff]
    %v4130 = vld [vmem:[#allocation11 + $0xc0] sm:$0xff]
    %v4131 = vld [vmem:[#allocation11 + $0xc8] sm:$0xff]
    %v4132 = vld [vmem:[#allocation11 + $0xd0] sm:$0xff]
    %v4133 = vld [vmem:[#allocation11 + $0xd8] sm:$0xff]
    %v4134 = vld [vmem:[#allocation11 + $0xe0] sm:$0xff]
    %v4135 = vld [vmem:[#allocation11 + $0xe8] sm:$0xff]
    %v4136 = vld [vmem:[#allocation11 + $0xf0] sm:$0xff]
    %v4137 = vld [vmem:[#allocation11 + $0xf8] sm:$0xff]
    %v4138 = vld [vmem:[#allocation11 + $0x100] sm:$0xff]
    %v4139 = vld [vmem:[#allocation11 + $0x108] sm:$0xff]
    %v4140 = vld [vmem:[#allocation11 + $0x110] sm:$0xff]
    %v4141 = vld [vmem:[#allocation11 + $0x118] sm:$0xff]
    %v4142 = vld [vmem:[#allocation11 + $0x120] sm:$0xff]
    %v4143 = vld [vmem:[#allocation11 + $0x128] sm:$0xff]
    %v4144 = vld [vmem:[#allocation11 + $0x130] sm:$0xff]
    %v4145 = vld [vmem:[#allocation11 + $0x138] sm:$0xff]
    %v4146 = vld [vmem:[#allocation11 + $0x140] sm:$0xff]
    %v4147 = vld [vmem:[#allocation11 + $0x148] sm:$0xff]
    %v4148 = vld [vmem:[#allocation11 + $0x150] sm:$0xff]
    %v4149 = vld [vmem:[#allocation11 + $0x158] sm:$0xff]
    %v4150 = vld [vmem:[#allocation11 + $0x160] sm:$0xff]
    %v4151 = vld [vmem:[#allocation11 + $0x168] sm:$0xff]
    %v4152 = vld [vmem:[#allocation11 + $0x170] sm:$0xff]
    %v4153 = vld [vmem:[#allocation11 + $0x178] sm:$0xff]
    %v4154 = vld [vmem:[#allocation11 + $0x180] sm:$0xff]
    %v4155 = vld [vmem:[#allocation11 + $0x188] sm:$0xff]
    %v4156 = vld [vmem:[#allocation11 + $0x190] sm:$0xff]
    %v4157 = vld [vmem:[#allocation11 + $0x198] sm:$0xff]
    %v4158 = vld [vmem:[#allocation11 + $0x1a0] sm:$0xff]
    %v4159 = vld [vmem:[#allocation11 + $0x1a8] sm:$0xff]
    %v4160 = vld [vmem:[#allocation11 + $0x1b0] sm:$0xff]
    %v4161 = vld [vmem:[#allocation11 + $0x1b8] sm:$0xff]
    %v4162 = vld [vmem:[#allocation11 + $0x1c0] sm:$0xff]
    %v4163 = vld [vmem:[#allocation11 + $0x1c8] sm:$0xff]
    %v4164 = vld [vmem:[#allocation11 + $0x1d0] sm:$0xff]
    %v4165 = vld [vmem:[#allocation11 + $0x1d8] sm:$0xff]
    %v4166 = vld [vmem:[#allocation11 + $0x1e0] sm:$0xff]
    %v4167 = vld [vmem:[#allocation11 + $0x1e8] sm:$0xff]
    %v4168 = vld [vmem:[#allocation11 + $0x1f0] sm:$0xff]
    %v4169 = vld [vmem:[#allocation11 + $0x1f8] sm:$0xff]
    %4170 = vmatpush.msra.mxu0 %v4166
    %4171 = vmatpush.msra.mxu0 %v4162
    %4172 = vmatpush.msra.mxu0 %v4158
    %4173 = vmatpush.msra.mxu0 %v4154
    %4174 = vmatpush.msra.mxu0 %v4150
    %4175 = vmatpush.msra.mxu0 %v4146
    %4176 = vmatpush.msra.mxu0 %v4142
    %4177 = vmatpush.msra.mxu0 %v4138
    %4178 = vmatpush.msra.mxu0 %v4134
    %4179 = vmatpush.msra.mxu0 %v4130
    %4180 = vmatpush.msra.mxu0 %v4126
    %4181 = vmatpush.msra.mxu0 %v4122
    %4182 = vmatpush.msra.mxu0 %v4118
    %4183 = vmatpush.msra.mxu0 %v4114
    %4184 = vmatpush.msra.mxu0 %v4110
    %4185 = vmatpush.msra.mxu0 %v4106
    %4186 = vmatmul.f32.gmra.mxu0 %v4025
    %v4187 = vpop.f32.mrf.mxu0
    %v4188 = vadd.f32 0.0, %v4187
    %4189 = vdwg.mxu0
    %4190 = vmatpush.msra.mxu0 %v4167
    %4191 = vmatpush.msra.mxu0 %v4163
    %4192 = vmatpush.msra.mxu0 %v4159
    %4193 = vmatpush.msra.mxu0 %v4155
    %4194 = vmatpush.msra.mxu0 %v4151
    %4195 = vmatpush.msra.mxu0 %v4147
    %4196 = vmatpush.msra.mxu0 %v4143
    %4197 = vmatpush.msra.mxu0 %v4139
    %4198 = vmatpush.msra.mxu0 %v4135
    %4199 = vmatpush.msra.mxu0 %v4131
    %4200 = vmatpush.msra.mxu0 %v4127
    %4201 = vmatpush.msra.mxu0 %v4123
    %4202 = vmatpush.msra.mxu0 %v4119
    %4203 = vmatpush.msra.mxu0 %v4115
    %4204 = vmatpush.msra.mxu0 %v4111
    %4205 = vmatpush.msra.mxu0 %v4107
    %4206 = vmatmul.f32.gmra.mxu0 %v4025
    %v4207 = vpop.f32.mrf.mxu0
    %v4208 = vadd.f32 0.0, %v4207
    %4209 = vdwg.mxu0
    %4210 = vmatpush.msra.mxu0 %v4168
    %4211 = vmatpush.msra.mxu0 %v4164
    %4212 = vmatpush.msra.mxu0 %v4160
    %4213 = vmatpush.msra.mxu0 %v4156
    %4214 = vmatpush.msra.mxu0 %v4152
    %4215 = vmatpush.msra.mxu0 %v4148
    %4216 = vmatpush.msra.mxu0 %v4144
    %4217 = vmatpush.msra.mxu0 %v4140
    %4218 = vmatpush.msra.mxu0 %v4136
    %4219 = vmatpush.msra.mxu0 %v4132
    %4220 = vmatpush.msra.mxu0 %v4128
    %4221 = vmatpush.msra.mxu0 %v4124
    %4222 = vmatpush.msra.mxu0 %v4120
    %4223 = vmatpush.msra.mxu0 %v4116
    %4224 = vmatpush.msra.mxu0 %v4112
    %4225 = vmatpush.msra.mxu0 %v4108
    %4226 = vmatmul.f32.gmra.mxu0 %v4025
    %v4227 = vpop.f32.mrf.mxu0
    %v4228 = vadd.f32 0.0, %v4227
    %4229 = vdwg.mxu0
    %4230 = vmatpush.msra.mxu0 %v4169
    %4231 = vmatpush.msra.mxu0 %v4165
    %4232 = vmatpush.msra.mxu0 %v4161
    %4233 = vmatpush.msra.mxu0 %v4157
    %4234 = vmatpush.msra.mxu0 %v4153
    %4235 = vmatpush.msra.mxu0 %v4149
    %4236 = vmatpush.msra.mxu0 %v4145
    %4237 = vmatpush.msra.mxu0 %v4141
    %4238 = vmatpush.msra.mxu0 %v4137
    %4239 = vmatpush.msra.mxu0 %v4133
    %4240 = vmatpush.msra.mxu0 %v4129
    %4241 = vmatpush.msra.mxu0 %v4125
    %4242 = vmatpush.msra.mxu0 %v4121
    %4243 = vmatpush.msra.mxu0 %v4117
    %4244 = vmatpush.msra.mxu0 %v4113
    %4245 = vmatpush.msra.mxu0 %v4109
    %4246 = vmatmul.f32.gmra.mxu0 %v4025
    %v4247 = vpop.f32.mrf.mxu0
    %v4248 = vadd.f32 0.0, %v4247
    %4249 = vdwg.mxu0
    %v4250 = vadd.f32 %v4044, %v4188
    %v4251 = vadd.f32 %v4064, %v4208
    %v4252 = vadd.f32 %v4084, %v4228
    %v4253 = vadd.f32 %v4104, %v4248
    %v4254 = vmul.f32 %v4250, 0.5
    %v4255 = vtanh.pop %v4254
    %v4256 = vmul.f32 %v4255, 0.5
    %v4257 = vadd.f32 %v4256, 0.5
    %v4258 = vmul.f32 %v4251, 0.5
    %v4259 = vtanh.pop %v4258
    %v4260 = vmul.f32 %v4259, 0.5
    %v4261 = vadd.f32 %v4260, 0.5
    %v4262 = vtanh.pop %v4252
    %v4263 = vmul.f32 %v4253, 0.5
    %v4264 = vtanh.pop %v4263
    %v4265 = vmul.f32 %v4264, 0.5
    %v4266 = vadd.f32 %v4265, 0.5
    %v4267 = vmul.f32 %v4261, %v3787
    %v4268 = vmul.f32 %v4257, %v4262
    %v4269 = vadd.f32 %v4267, %v4268
    %v4270 = vtanh.pop %v4269
    %v4271 = vmul.f32 %v4266, %v4270
    %s4272 = scalar_lea.vmem [#allocation16], 56
    %4273 = vst [vmem:[%s4272] sm:$0xff] %v4271
    %4274 = vst [vmem:[#allocation3] sm:$0xff] %v4025
    %4275 = vst [vmem:[#allocation3 + $0x8] sm:$0xff] %v4271
    %4276 = vst [vmem:[#allocation4] sm:$0xff] %v4023
    %4277 = vst [vmem:[#allocation4 + $0x8] sm:$0xff] %v4269
    // Predicated region
    $region58: #{tpu_custom_call.1} parent=1 // pred_check
      _
    $region59: #{tpu_custom_call.1} parent=1 // pred_check_branch
      %4279 = sbr.rel (0) target = $region61
    $region60: #{tpu_custom_call.1} parent=1 // pred_region
      %4281 = vsyncadd [#allocation7], 0
      %s4282 = sshll.u32 [#allocation16], 4
      %s4283 = int_to_ptr.vmem [resolvable:$true] %s4282
      %s4284 = sshll.u32 %s7, 4
      %s4285 = int_to_ptr.hbm [resolvable:$true] %s4284
      %4290 = dma.vmem_to_hbm [thread:$0]  %s4283, 1024, %s4285, [#allocation7], 128, 128, 8
    $region61: #{tpu_custom_call.1} parent=1 // pred_fallthru
      _
    // Predicated region
    $region62: #{tpu_custom_call.1} parent=1 // pred_check
      _
    $region63: #{tpu_custom_call.1} parent=1 // pred_check_branch
      %4292 = sbr.rel (0) target = $region65
    $region64: #{tpu_custom_call.1} parent=1 // pred_region
      %4294 = dma.done [#allocation7], 1024
    $region65: #{tpu_custom_call.1} parent=1 // pred_fallthru
      _
    %4295 = vsyncpa [#allocation6], 1
    %4296 = vsyncpa [#allocation9], 1
    %4297 = vsyncpa [#allocation12], 1
    %4298 = vsyncpa [#allocation15], 1
    %4299 = vsyncpa [#allocation7], 1

</llo_original>
